<compile_context>
chip_gen: v5e
topology: v5e:2x2
jax: 0.10.0
libtpu: 0.0.40
codegen_flags: <defaults>
</compile_context>

<pallas_src>
import functools

import jax
import jax.numpy as jnp
from jax.experimental import pallas as pl
from jax.experimental.pallas import tpu as pltpu


# ---------------------------------------------------------------------------
# Small helpers
# ---------------------------------------------------------------------------
def _round_up(x, m):
    return (x + m - 1) // m * m


def _pad2d(a, rows, cols):
    r, c = a.shape
    if r == rows and c == cols:
        return a
    return jnp.pad(a, ((0, rows - r), (0, cols - c)))


def _fold_bn(gamma, beta, mean, var, eps=1e-5):
    scale = gamma / jnp.sqrt(var + eps)
    shift = beta - mean * scale
    return scale, shift


# ---------------------------------------------------------------------------
# Kernel 1: 3x3 VALID conv + folded-BN + ReLU, taps folded into per-tap matmuls
#   (no HBM im2col; one grid step = one batch element x one Cout tile)
# ---------------------------------------------------------------------------
def _conv_bn_relu_kernel(x_ref, w_ref, scale_ref, shift_ref, o_ref, acc_ref,
                         *, taps, row_stride, m_rows):
    # x_ref: (1, rows, Cp) bf16   w_ref: (kh*kw, Cp, cn) bf16
    # scale/shift: (1, cn) f32    o_ref: (1, m_rows, cn)   acc_ref: (m_rows, cn) f32
    for t, (p, q) in enumerate(taps):
        off = p * row_stride + q                     # static shift of the window
        xs = x_ref[0, off:off + m_rows, :]           # (m_rows, Cp) bf16
        contrib = jnp.dot(xs, w_ref[t], preferred_element_type=jnp.float32)
        if t == 0:
            acc_ref[...] = contrib
        else:
            acc_ref[...] += contrib
    out = acc_ref[...] * scale_ref[...] + shift_ref[...]
    o_ref[0] = jnp.maximum(out, 0.0).astype(o_ref.dtype)


def conv3x3_bn_relu(x_nhwc, w_oihw, bn_params, *, out_dtype=jnp.bfloat16):
    """VALID stride-1 conv (no bias) + folded BN + ReLU.  NHWC in / NHWC out."""
    B, H, W, Cin = x_nhwc.shape
    O, Cin2, kh, kw = w_oihw.shape
    assert Cin == Cin2
    Ho, Wo = H - kh + 1, W - kw + 1
    m_rows = Ho * W                 # keep the full width; trim kw-1 edge cols after
    Cp = _round_up(Cin, 128)        # lane-dense K
    Op = _round_up(O, 128)          # lane-dense N
    cn = min(128, Op)
    nc = Op // cn
    rows = _round_up(H * W + kw - 1, 8)   # slack: every tap window stays in bounds

    x_flat = x_nhwc.astype(jnp.bfloat16).reshape(B, H * W, Cin)
    x_flat = jnp.pad(x_flat, ((0, 0), (0, rows - H * W), (0, Cp - Cin)))

    w = jnp.transpose(w_oihw, (2, 3, 1, 0)).reshape(kh * kw, Cin, O)
    w = jnp.pad(w.astype(jnp.bfloat16), ((0, 0), (0, Cp - Cin), (0, Op - O)))

    scale, shift = _fold_bn(*bn_params)
    sp = jnp.pad(scale.reshape(1, O).astype(jnp.float32), ((0, 0), (0, Op - O)))
    bp = jnp.pad(shift.reshape(1, O).astype(jnp.float32), ((0, 0), (0, Op - O)))

    taps = tuple((p, q) for p in range(kh) for q in range(kw))
    out = pl.pallas_call(
        functools.partial(_conv_bn_relu_kernel, taps=taps, row_stride=W,
                          m_rows=m_rows),
        out_shape=jax.ShapeDtypeStruct((B, m_rows, Op), out_dtype),
        grid=(B, nc),
        in_specs=[
            pl.BlockSpec((1, rows, Cp), lambda b, c: (b, 0, 0)),
            pl.BlockSpec((kh * kw, Cp, cn), lambda b, c: (0, 0, c)),
            pl.BlockSpec((1, cn), lambda b, c: (0, c)),
            pl.BlockSpec((1, cn), lambda b, c: (0, c)),
        ],
        out_specs=pl.BlockSpec((1, m_rows, cn), lambda b, c: (b, 0, c)),
        scratch_shapes=[pltpu.VMEM((m_rows, cn), jnp.float32)],
        compiler_params=pltpu.CompilerParams(
            dimension_semantics=("parallel", "parallel")),
    )(x_flat, w, sp, bp)

    # drop padded Cout lanes, un-flatten rows, trim the kw-1 garbage columns
    out = out[:, :, :O].reshape(B, Ho, W, O)[:, :, :Wo, :]
    return out


# ---------------------------------------------------------------------------
# Kernel 2: depthwise cross-correlation
#   grid = (batch, channel tiles, Ho chunks); register accumulation per chunk
# ---------------------------------------------------------------------------
def _xcorr_kernel(s_ref, k_ref, o_ref, *, ho_tile):
    # s_ref: (1, Hpad, Ws, ct), k_ref: (1, Hk, Wk, ct), o_ref: (1, ho_tile, Wo, ct)
    _, Hk, Wk, _ = k_ref.shape
    _, _, Wo, _ = o_ref.shape
    hwin = ho_tile + Hk - 1
    ho0 = pl.multiple_of(pl.program_id(2) * ho_tile, ho_tile)
    acc = None
    for q in range(Wk):
        # One misaligned W slice per q (hoisted out of the p loop).
        # TODO(synk): use pltpu.roll (XLU) for the W shift instead of a slice.
        s_q = s_ref[0, pl.ds(ho0, hwin), q:q + Wo, :].astype(jnp.float32)
        k_q = k_ref[0, :, q:q + 1, :].astype(jnp.float32)   # (Hk, 1, ct)
        part = s_q[0:ho_tile] * k_q[0:1]
        for p in range(1, Hk):                               # leading-dim slices: cheap
            part = part + s_q[p:p + ho_tile] * k_q[p:p + 1]
        acc = part if acc is None else acc + part
    o_ref[0] = acc.astype(o_ref.dtype)                       # single store per chunk


def xcorr_depthwise_pallas(search, kernel, *, ho_tile=8):
    """search: (B, Hs, Ws, C), kernel: (B, Hk, Wk, C) -> (B, Ho, Wo, C)."""
    B, Hs, Ws, C = search.shape
    _, Hk, Wk, _ = kernel.shape
    Ho, Wo = Hs - Hk + 1, Ws - Wk + 1
    Ho_pad = _round_up(Ho, ho_tile)
    nho = Ho_pad // ho_tile
    need_h = Ho_pad + Hk - 1
    if need_h > Hs:                       # zero-pad rows read by padded output chunks
        search = jnp.pad(search, ((0, 0), (0, need_h - Hs), (0, 0), (0, 0)))
    ct = 128 if C % 128 == 0 else C       # lane-dense channel tiles when possible
    nc = C // ct
    out = pl.pallas_call(
        functools.partial(_xcorr_kernel, ho_tile=ho_tile),
        out_shape=jax.ShapeDtypeStruct((B, Ho_pad, Wo, C), search.dtype),
        grid=(B, nc, nho),
        in_specs=[
            pl.BlockSpec((1, need_h, Ws, ct), lambda b, c, h: (b, 0, 0, c)),
            pl.BlockSpec((1, Hk, Wk, ct), lambda b, c, h: (b, 0, 0, c)),
        ],
        out_specs=pl.BlockSpec((1, ho_tile, Wo, ct), lambda b, c, h: (b, h, 0, c)),
        compiler_params=pltpu.CompilerParams(
            dimension_semantics=("parallel", "parallel", "parallel")),
    )(search, kernel)
    return out[:, :Ho]


# ---------------------------------------------------------------------------
# Kernel 3: fused head (1x1 conv + BN + ReLU, then 1x1 conv + bias)
# ---------------------------------------------------------------------------
def _head_kernel(x_ref, w1_ref, s1_ref, b1_ref, w2_ref, b2_ref, o_ref):
    # x_ref arrives bf16: no per-tile up/down-cast chain.
    h = jnp.dot(x_ref[...], w1_ref[...], preferred_element_type=jnp.float32)
    h = jnp.maximum(h * s1_ref[...] + b1_ref[...], 0.0)
    out = jnp.dot(h.astype(jnp.bfloat16), w2_ref[...],
                  preferred_element_type=jnp.float32) + b2_ref[...]
    o_ref[...] = out.astype(o_ref.dtype)


def head_fused(x, w1, scale1, shift1, w2, bias2, *, tm=256,
               out_dtype=jnp.float32):
    """x: (M, C) bf16; w1: (C, C); w2: (C, Co) -> (M, Co) f32."""
    M, C = x.shape
    Co = w2.shape[1]
    Cp = _round_up(C, 128)        # lane-dense hidden dim
    Cop = _round_up(Co, 128)      # lane-dense output even if Co is tiny
    tm = min(tm, _round_up(M, 8))
    if M > 8 and (M + tm - 1) // tm < 2:
        # Guarantee >=2 parallel grid points so both v7x TensorCores are fed.
        tm = _round_up((M + 1) // 2, 8)
    Mp = _round_up(M, tm)

    xp = _pad2d(x.astype(jnp.bfloat16), Mp, Cp)
    w1p = _pad2d(w1.astype(jnp.bfloat16), Cp, Cp)
    s1p = _pad2d(scale1.reshape(1, C).astype(jnp.float32), 1, Cp)
    b1p = _pad2d(shift1.reshape(1, C).astype(jnp.float32), 1, Cp)
    w2p = _pad2d(w2.astype(jnp.bfloat16), Cp, Cop)
    b2p = _pad2d(bias2.reshape(1, Co).astype(jnp.float32), 1, Cop)

    out = pl.pallas_call(
        _head_kernel,
        out_shape=jax.ShapeDtypeStruct((Mp, Cop), out_dtype),
        grid=(Mp // tm,),
        in_specs=[
            pl.BlockSpec((tm, Cp), lambda i: (i, 0)),
            pl.BlockSpec((Cp, Cp), lambda i: (0, 0)),    # weights VMEM-resident
            pl.BlockSpec((1, Cp), lambda i: (0, 0)),
            pl.BlockSpec((1, Cp), lambda i: (0, 0)),
            pl.BlockSpec((Cp, Cop), lambda i: (0, 0)),
            pl.BlockSpec((1, Cop), lambda i: (0, 0)),
        ],
        out_specs=pl.BlockSpec((tm, Cop), lambda i: (i, 0)),
        compiler_params=pltpu.CompilerParams(
            dimension_semantics=("parallel",)),
    )(xp, w1p, s1p, b1p, w2p, b2p)
    return out[:M, :Co]


# ---------------------------------------------------------------------------
# Forward (NCHW in / NCHW out, matching the PyTorch module)
# ---------------------------------------------------------------------------
def depthwise_xcorr_forward(params, z_nchw, x_nchw):
    """Equivalent of DepthwiseXCorr.forward(kernel=z, search=x)."""
    z = jnp.transpose(z_nchw, (0, 2, 3, 1))               # NCHW -> NHWC
    x = jnp.transpose(x_nchw, (0, 2, 3, 1))

    # bf16 intermediates between kernels (f32 only inside the kernels).
    zk = conv3x3_bn_relu(z, params["wk"], params["k_bn"])   # (B, Hk, Wk, hidden) bf16
    xs = conv3x3_bn_relu(x, params["ws"], params["s_bn"])   # (B, Hs, Ws, hidden) bf16

    feat = xcorr_depthwise_pallas(xs, zk)                   # (B, Ho, Wo, hidden) bf16

    B, Ho, Wo, C = feat.shape
    flat = feat.reshape(B * Ho * Wo, C)

    s1, sh1 = _fold_bn(*params["h1_bn"])
    w1 = params["wh1"].reshape(params["wh1"].shape[0], -1).T      # (C, C)
    w2 = params["wh2"].reshape(params["wh2"].shape[0], -1).T      # (C, Cout)
    out = head_fused(flat, w1, s1, sh1, w2, params["bh2"])        # f32

    out = out.reshape(B, Ho, Wo, -1)
    return jnp.transpose(out, (0, 3, 1, 2))               # back to NCHW


# ---------------------------------------------------------------------------
# Pure-JAX reference (for verification)
# ---------------------------------------------------------------------------
def _ref_forward(params, z_nchw, x_nchw):
    def conv2d(x, w):
        return jax.lax.conv_general_dilated(
            x, w, (1, 1), "VALID",
            dimension_numbers=("NCHW", "OIHW", "NCHW"))

    def bn(x, bn_params, eps=1e-5):
        gamma, beta, mean, var = bn_params
        s = (gamma / jnp.sqrt(var + eps)).reshape(1, -1, 1, 1)
        b = (beta - mean * gamma / jnp.sqrt(var + eps)).reshape(1, -1, 1, 1)
        return x * s + b

    zk = jax.nn.relu(bn(conv2d(z_nchw, params["wk"]), params["k_bn"]))
    xs = jax.nn.relu(bn(conv2d(x_nchw, params["ws"]), params["s_bn"]))

    B, C, Hk, Wk = zk.shape
    xs_r = xs.reshape(1, B * C, xs.shape[2], xs.shape[3])
    k_r = zk.reshape(B * C, 1, Hk, Wk)
    feat = jax.lax.conv_general_dilated(
        xs_r, k_r, (1, 1), "VALID",
        dimension_numbers=("NCHW", "OIHW", "NCHW"),
        feature_group_count=B * C)
    feat = feat.reshape(B, C, feat.shape[2], feat.shape[3])

    h = jax.nn.relu(bn(conv2d(feat, params["wh1"]), params["h1_bn"]))
    out = conv2d(h, params["wh2"]) + params["bh2"].reshape(1, -1, 1, 1)
    return out


# ---------------------------------------------------------------------------
# Parameter init + main
# ---------------------------------------------------------------------------
def _init_params(key, in_channels, hidden, out_channels, ksize):
    ks = jax.random.split(key, 12)

    def bn_params(k, c):
        k0, k1, k2, k3 = jax.random.split(k, 4)
        gamma = 1.0 + 0.1 * jax.random.normal(k0, (c,), jnp.float32)
        beta = 0.1 * jax.random.normal(k1, (c,), jnp.float32)
        mean = 0.1 * jax.random.normal(k2, (c,), jnp.float32)
        var = 1.0 + 0.1 * jax.random.uniform(k3, (c,), jnp.float32)
        return (gamma, beta, mean, var)

    return {
        "wk": 0.1 * jax.random.normal(ks[0], (hidden, in_channels, ksize, ksize), jnp.float32),
        "k_bn": bn_params(ks[1], hidden),
        "ws": 0.1 * jax.random.normal(ks[2], (hidden, in_channels, ksize, ksize), jnp.float32),
        "s_bn": bn_params(ks[3], hidden),
        "wh1": 0.1 * jax.random.normal(ks[4], (hidden, hidden, 1, 1), jnp.float32),
        "h1_bn": bn_params(ks[5], hidden),
        "wh2": 0.1 * jax.random.normal(ks[6], (out_channels, hidden, 1, 1), jnp.float32),
        "bh2": 0.1 * jax.random.normal(ks[7], (out_channels,), jnp.float32),
    }


if __name__ == "__main__":
    B, Cin, hidden, Cout, ksize = 2, 4, 32, 8, 3
    Hz = Wz = 8     # template ("kernel") input spatial
    Hx = Wx = 16    # search input spatial

    key = jax.random.PRNGKey(0)
    kp, kz, kx = jax.random.split(key, 3)
    params = _init_params(kp, Cin, hidden, Cout, ksize)

    z = jax.random.normal(kz, (B, Cin, Hz, Wz), jnp.float32)   # "kernel" branch
    x = jax.random.normal(kx, (B, Cin, Hx, Wx), jnp.float32)   # "search" branch

    fwd = jax.jit(depthwise_xcorr_forward)
    out = jax.block_until_ready(fwd(params, z, x))

    ref = jax.block_until_ready(_ref_forward(params, z, x))
    expect_hw = (Hx - ksize + 1) - (Hz - ksize + 1) + 1
    assert out.shape == ref.shape == (B, Cout, expect_hw, expect_hw)
    # Tolerance accounts for bf16 MXU operands AND bf16 inter-kernel
    # intermediates (accumulation is f32 everywhere inside the kernels).
    err = jnp.max(jnp.abs(out - ref)) / (jnp.max(jnp.abs(ref)) + 1e-6)
    assert float(err) < 5e-2, f"mismatch vs reference: rel err {float(err)}"

    print("KERNEL_OK")
</pallas_src>

<mosaic_0001>
module attributes {stable_mosaic.version = 11 : i64} {
  func.func @_conv_bn_relu_kernel(%arg0: i32, %arg1: i32, %arg2: memref<1x264x128xbf16, #tpu.memory_space<vmem>>, %arg3: memref<9x128x128xbf16, #tpu.memory_space<vmem>>, %arg4: memref<1x128xf32, #tpu.memory_space<vmem>>, %arg5: memref<1x128xf32, #tpu.memory_space<vmem>>, %arg6: memref<1x224x128xbf16, #tpu.memory_space<vmem>>, %arg7: memref<224x128xf32, #tpu.memory_space<vmem>>) attributes {dimension_semantics = [#tpu.dimension_semantics<parallel>, #tpu.dimension_semantics<parallel>], iteration_bounds = array<i64: 2, 1>, scalar_prefetch = 0 : i64, scratch_operands = 1 : i64, tpu.core_type = #tpu.core_type<tc>, window_params = [{transform_indices = @transform_0, window_bounds = array<i64: 1, 264, 128>}, {transform_indices = @transform_1, window_bounds = array<i64: 9, 128, 128>}, {transform_indices = @transform_2, window_bounds = array<i64: 1, 128>}, {transform_indices = @transform_3, window_bounds = array<i64: 1, 128>}, {transform_indices = @transform_4, window_bounds = array<i64: 1, 224, 128>}]} {
    %c0 = arith.constant 0 : index
    %c0_0 = arith.constant 0 : index
    %c0_1 = arith.constant 0 : index
    %0 = vector.load %arg2[%c0, %c0_0, %c0_1] : memref<1x264x128xbf16, #tpu.memory_space<vmem>>, vector<1x224x128xbf16>
    %1 = vector.shape_cast %0 : vector<1x224x128xbf16> to vector<224x128xbf16>
    %c0_2 = arith.constant 0 : index
    %c0_3 = arith.constant 0 : index
    %c0_4 = arith.constant 0 : index
    %2 = vector.load %arg3[%c0_2, %c0_3, %c0_4] : memref<9x128x128xbf16, #tpu.memory_space<vmem>>, vector<1x128x128xbf16>
    %3 = vector.shape_cast %2 : vector<1x128x128xbf16> to vector<128x128xbf16>
    %cst = arith.constant dense<0.000000e+00> : vector<224x128xf32>
    %4 = tpu.matmul %1, %3, %cst {dimension_numbers = #tpu.dot_dimension_numbers<[1], [0], [0], [1], [0, 0, 1, 1], [], []>} : vector<224x128xbf16>, vector<128x128xbf16>, vector<224x128xf32> -> vector<224x128xf32>
    %c0_5 = arith.constant 0 : index
    %c0_6 = arith.constant 0 : index
    %5 = vector.load %arg7[%c0_5, %c0_6] : memref<224x128xf32, #tpu.memory_space<vmem>>, vector<224x128xf32>
    tpu.vector_store %arg7[%c0_5, %c0_6], %4 {strides = array<i32>} : memref<224x128xf32, #tpu.memory_space<vmem>>, vector<224x128xf32>,
    %c0_7 = arith.constant 0 : index
    %c1 = arith.constant 1 : index
    %c0_8 = arith.constant 0 : index
    %6 = vector.load %arg2[%c0_7, %c1, %c0_8] : memref<1x264x128xbf16, #tpu.memory_space<vmem>>, vector<1x224x128xbf16>
    %7 = vector.shape_cast %6 : vector<1x224x128xbf16> to vector<224x128xbf16>
    %c1_9 = arith.constant 1 : index
    %c0_10 = arith.constant 0 : index
    %c0_11 = arith.constant 0 : index
    %8 = vector.load %arg3[%c1_9, %c0_10, %c0_11] : memref<9x128x128xbf16, #tpu.memory_space<vmem>>, vector<1x128x128xbf16>
    %9 = vector.shape_cast %8 : vector<1x128x128xbf16> to vector<128x128xbf16>
    %cst_12 = arith.constant dense<0.000000e+00> : vector<224x128xf32>
    %10 = tpu.matmul %7, %9, %cst_12 {dimension_numbers = #tpu.dot_dimension_numbers<[1], [0], [0], [1], [0, 0, 1, 1], [], []>} : vector<224x128xbf16>, vector<128x128xbf16>, vector<224x128xf32> -> vector<224x128xf32>
    %c0_13 = arith.constant 0 : index
    %c0_14 = arith.constant 0 : index
    %11 = vector.load %arg7[%c0_13, %c0_14] : memref<224x128xf32, #tpu.memory_space<vmem>>, vector<224x128xf32>
    %12 = arith.addf %11, %10 : vector<224x128xf32>
    %c0_15 = arith.constant 0 : index
    %c0_16 = arith.constant 0 : index
    %13 = vector.load %arg7[%c0_15, %c0_16] : memref<224x128xf32, #tpu.memory_space<vmem>>, vector<224x128xf32>
    tpu.vector_store %arg7[%c0_15, %c0_16], %12 {strides = array<i32>} : memref<224x128xf32, #tpu.memory_space<vmem>>, vector<224x128xf32>,
    %c0_17 = arith.constant 0 : index
    %c2 = arith.constant 2 : index
    %c0_18 = arith.constant 0 : index
    %14 = vector.load %arg2[%c0_17, %c2, %c0_18] : memref<1x264x128xbf16, #tpu.memory_space<vmem>>, vector<1x224x128xbf16>
    %15 = vector.shape_cast %14 : vector<1x224x128xbf16> to vector<224x128xbf16>
    %c2_19 = arith.constant 2 : index
    %c0_20 = arith.constant 0 : index
    %c0_21 = arith.constant 0 : index
    %16 = vector.load %arg3[%c2_19, %c0_20, %c0_21] : memref<9x128x128xbf16, #tpu.memory_space<vmem>>, vector<1x128x128xbf16>
    %17 = vector.shape_cast %16 : vector<1x128x128xbf16> to vector<128x128xbf16>
    %cst_22 = arith.constant dense<0.000000e+00> : vector<224x128xf32>
    %18 = tpu.matmul %15, %17, %cst_22 {dimension_numbers = #tpu.dot_dimension_numbers<[1], [0], [0], [1], [0, 0, 1, 1], [], []>} : vector<224x128xbf16>, vector<128x128xbf16>, vector<224x128xf32> -> vector<224x128xf32>
    %c0_23 = arith.constant 0 : index
    %c0_24 = arith.constant 0 : index
    %19 = vector.load %arg7[%c0_23, %c0_24] : memref<224x128xf32, #tpu.memory_space<vmem>>, vector<224x128xf32>
    %20 = arith.addf %19, %18 : vector<224x128xf32>
    %c0_25 = arith.constant 0 : index
    %c0_26 = arith.constant 0 : index
    %21 = vector.load %arg7[%c0_25, %c0_26] : memref<224x128xf32, #tpu.memory_space<vmem>>, vector<224x128xf32>
    tpu.vector_store %arg7[%c0_25, %c0_26], %20 {strides = array<i32>} : memref<224x128xf32, #tpu.memory_space<vmem>>, vector<224x128xf32>,
    %c0_27 = arith.constant 0 : index
    %c16 = arith.constant 16 : index
    %c0_28 = arith.constant 0 : index
    %22 = vector.load %arg2[%c0_27, %c16, %c0_28] : memref<1x264x128xbf16, #tpu.memory_space<vmem>>, vector<1x224x128xbf16>
    %23 = vector.shape_cast %22 : vector<1x224x128xbf16> to vector<224x128xbf16>
    %c3 = arith.constant 3 : index
    %c0_29 = arith.constant 0 : index
    %c0_30 = arith.constant 0 : index
    %24 = vector.load %arg3[%c3, %c0_29, %c0_30] : memref<9x128x128xbf16, #tpu.memory_space<vmem>>, vector<1x128x128xbf16>
    %25 = vector.shape_cast %24 : vector<1x128x128xbf16> to vector<128x128xbf16>
    %cst_31 = arith.constant dense<0.000000e+00> : vector<224x128xf32>
    %26 = tpu.matmul %23, %25, %cst_31 {dimension_numbers = #tpu.dot_dimension_numbers<[1], [0], [0], [1], [0, 0, 1, 1], [], []>} : vector<224x128xbf16>, vector<128x128xbf16>, vector<224x128xf32> -> vector<224x128xf32>
    %c0_32 = arith.constant 0 : index
    %c0_33 = arith.constant 0 : index
    %27 = vector.load %arg7[%c0_32, %c0_33] : memref<224x128xf32, #tpu.memory_space<vmem>>, vector<224x128xf32>
    %28 = arith.addf %27, %26 : vector<224x128xf32>
    %c0_34 = arith.constant 0 : index
    %c0_35 = arith.constant 0 : index
    %29 = vector.load %arg7[%c0_34, %c0_35] : memref<224x128xf32, #tpu.memory_space<vmem>>, vector<224x128xf32>
    tpu.vector_store %arg7[%c0_34, %c0_35], %28 {strides = array<i32>} : memref<224x128xf32, #tpu.memory_space<vmem>>, vector<224x128xf32>,
    %c0_36 = arith.constant 0 : index
    %c17 = arith.constant 17 : index
    %c0_37 = arith.constant 0 : index
    %30 = vector.load %arg2[%c0_36, %c17, %c0_37] : memref<1x264x128xbf16, #tpu.memory_space<vmem>>, vector<1x224x128xbf16>
    %31 = vector.shape_cast %30 : vector<1x224x128xbf16> to vector<224x128xbf16>
    %c4 = arith.constant 4 : index
    %c0_38 = arith.constant 0 : index
    %c0_39 = arith.constant 0 : index
    %32 = vector.load %arg3[%c4, %c0_38, %c0_39] : memref<9x128x128xbf16, #tpu.memory_space<vmem>>, vector<1x128x128xbf16>
    %33 = vector.shape_cast %32 : vector<1x128x128xbf16> to vector<128x128xbf16>
    %cst_40 = arith.constant dense<0.000000e+00> : vector<224x128xf32>
    %34 = tpu.matmul %31, %33, %cst_40 {dimension_numbers = #tpu.dot_dimension_numbers<[1], [0], [0], [1], [0, 0, 1, 1], [], []>} : vector<224x128xbf16>, vector<128x128xbf16>, vector<224x128xf32> -> vector<224x128xf32>
    %c0_41 = arith.constant 0 : index
    %c0_42 = arith.constant 0 : index
    %35 = vector.load %arg7[%c0_41, %c0_42] : memref<224x128xf32, #tpu.memory_space<vmem>>, vector<224x128xf32>
    %36 = arith.addf %35, %34 : vector<224x128xf32>
    %c0_43 = arith.constant 0 : index
    %c0_44 = arith.constant 0 : index
    %37 = vector.load %arg7[%c0_43, %c0_44] : memref<224x128xf32, #tpu.memory_space<vmem>>, vector<224x128xf32>
    tpu.vector_store %arg7[%c0_43, %c0_44], %36 {strides = array<i32>} : memref<224x128xf32, #tpu.memory_space<vmem>>, vector<224x128xf32>,
    %c0_45 = arith.constant 0 : index
    %c18 = arith.constant 18 : index
    %c0_46 = arith.constant 0 : index
    %38 = vector.load %arg2[%c0_45, %c18, %c0_46] : memref<1x264x128xbf16, #tpu.memory_space<vmem>>, vector<1x224x128xbf16>
    %39 = vector.shape_cast %38 : vector<1x224x128xbf16> to vector<224x128xbf16>
    %c5 = arith.constant 5 : index
    %c0_47 = arith.constant 0 : index
    %c0_48 = arith.constant 0 : index
    %40 = vector.load %arg3[%c5, %c0_47, %c0_48] : memref<9x128x128xbf16, #tpu.memory_space<vmem>>, vector<1x128x128xbf16>
    %41 = vector.shape_cast %40 : vector<1x128x128xbf16> to vector<128x128xbf16>
    %cst_49 = arith.constant dense<0.000000e+00> : vector<224x128xf32>
    %42 = tpu.matmul %39, %41, %cst_49 {dimension_numbers = #tpu.dot_dimension_numbers<[1], [0], [0], [1], [0, 0, 1, 1], [], []>} : vector<224x128xbf16>, vector<128x128xbf16>, vector<224x128xf32> -> vector<224x128xf32>
    %c0_50 = arith.constant 0 : index
    %c0_51 = arith.constant 0 : index
    %43 = vector.load %arg7[%c0_50, %c0_51] : memref<224x128xf32, #tpu.memory_space<vmem>>, vector<224x128xf32>
    %44 = arith.addf %43, %42 : vector<224x128xf32>
    %c0_52 = arith.constant 0 : index
    %c0_53 = arith.constant 0 : index
    %45 = vector.load %arg7[%c0_52, %c0_53] : memref<224x128xf32, #tpu.memory_space<vmem>>, vector<224x128xf32>
    tpu.vector_store %arg7[%c0_52, %c0_53], %44 {strides = array<i32>} : memref<224x128xf32, #tpu.memory_space<vmem>>, vector<224x128xf32>,
    %c0_54 = arith.constant 0 : index
    %c32 = arith.constant 32 : index
    %c0_55 = arith.constant 0 : index
    %46 = vector.load %arg2[%c0_54, %c32, %c0_55] : memref<1x264x128xbf16, #tpu.memory_space<vmem>>, vector<1x224x128xbf16>
    %47 = vector.shape_cast %46 : vector<1x224x128xbf16> to vector<224x128xbf16>
    %c6 = arith.constant 6 : index
    %c0_56 = arith.constant 0 : index
    %c0_57 = arith.constant 0 : index
    %48 = vector.load %arg3[%c6, %c0_56, %c0_57] : memref<9x128x128xbf16, #tpu.memory_space<vmem>>, vector<1x128x128xbf16>
    %49 = vector.shape_cast %48 : vector<1x128x128xbf16> to vector<128x128xbf16>
    %cst_58 = arith.constant dense<0.000000e+00> : vector<224x128xf32>
    %50 = tpu.matmul %47, %49, %cst_58 {dimension_numbers = #tpu.dot_dimension_numbers<[1], [0], [0], [1], [0, 0, 1, 1], [], []>} : vector<224x128xbf16>, vector<128x128xbf16>, vector<224x128xf32> -> vector<224x128xf32>
    %c0_59 = arith.constant 0 : index
    %c0_60 = arith.constant 0 : index
    %51 = vector.load %arg7[%c0_59, %c0_60] : memref<224x128xf32, #tpu.memory_space<vmem>>, vector<224x128xf32>
    %52 = arith.addf %51, %50 : vector<224x128xf32>
    %c0_61 = arith.constant 0 : index
    %c0_62 = arith.constant 0 : index
    %53 = vector.load %arg7[%c0_61, %c0_62] : memref<224x128xf32, #tpu.memory_space<vmem>>, vector<224x128xf32>
    tpu.vector_store %arg7[%c0_61, %c0_62], %52 {strides = array<i32>} : memref<224x128xf32, #tpu.memory_space<vmem>>, vector<224x128xf32>,
    %c0_63 = arith.constant 0 : index
    %c33 = arith.constant 33 : index
    %c0_64 = arith.constant 0 : index
    %54 = vector.load %arg2[%c0_63, %c33, %c0_64] : memref<1x264x128xbf16, #tpu.memory_space<vmem>>, vector<1x224x128xbf16>
    %55 = vector.shape_cast %54 : vector<1x224x128xbf16> to vector<224x128xbf16>
    %c7 = arith.constant 7 : index
    %c0_65 = arith.constant 0 : index
    %c0_66 = arith.constant 0 : index
    %56 = vector.load %arg3[%c7, %c0_65, %c0_66] : memref<9x128x128xbf16, #tpu.memory_space<vmem>>, vector<1x128x128xbf16>
    %57 = vector.shape_cast %56 : vector<1x128x128xbf16> to vector<128x128xbf16>
    %cst_67 = arith.constant dense<0.000000e+00> : vector<224x128xf32>
    %58 = tpu.matmul %55, %57, %cst_67 {dimension_numbers = #tpu.dot_dimension_numbers<[1], [0], [0], [1], [0, 0, 1, 1], [], []>} : vector<224x128xbf16>, vector<128x128xbf16>, vector<224x128xf32> -> vector<224x128xf32>
    %c0_68 = arith.constant 0 : index
    %c0_69 = arith.constant 0 : index
    %59 = vector.load %arg7[%c0_68, %c0_69] : memref<224x128xf32, #tpu.memory_space<vmem>>, vector<224x128xf32>
    %60 = arith.addf %59, %58 : vector<224x128xf32>
    %c0_70 = arith.constant 0 : index
    %c0_71 = arith.constant 0 : index
    %61 = vector.load %arg7[%c0_70, %c0_71] : memref<224x128xf32, #tpu.memory_space<vmem>>, vector<224x128xf32>
    tpu.vector_store %arg7[%c0_70, %c0_71], %60 {strides = array<i32>} : memref<224x128xf32, #tpu.memory_space<vmem>>, vector<224x128xf32>,
    %c0_72 = arith.constant 0 : index
    %c34 = arith.constant 34 : index
    %c0_73 = arith.constant 0 : index
    %62 = vector.load %arg2[%c0_72, %c34, %c0_73] : memref<1x264x128xbf16, #tpu.memory_space<vmem>>, vector<1x224x128xbf16>
    %63 = vector.shape_cast %62 : vector<1x224x128xbf16> to vector<224x128xbf16>
    %c8 = arith.constant 8 : index
    %c0_74 = arith.constant 0 : index
    %c0_75 = arith.constant 0 : index
    %64 = vector.load %arg3[%c8, %c0_74, %c0_75] : memref<9x128x128xbf16, #tpu.memory_space<vmem>>, vector<1x128x128xbf16>
    %65 = vector.shape_cast %64 : vector<1x128x128xbf16> to vector<128x128xbf16>
    %cst_76 = arith.constant dense<0.000000e+00> : vector<224x128xf32>
    %66 = tpu.matmul %63, %65, %cst_76 {dimension_numbers = #tpu.dot_dimension_numbers<[1], [0], [0], [1], [0, 0, 1, 1], [], []>} : vector<224x128xbf16>, vector<128x128xbf16>, vector<224x128xf32> -> vector<224x128xf32>
    %c0_77 = arith.constant 0 : index
    %c0_78 = arith.constant 0 : index
    %67 = vector.load %arg7[%c0_77, %c0_78] : memref<224x128xf32, #tpu.memory_space<vmem>>, vector<224x128xf32>
    %68 = arith.addf %67, %66 : vector<224x128xf32>
    %c0_79 = arith.constant 0 : index
    %c0_80 = arith.constant 0 : index
    %69 = vector.load %arg7[%c0_79, %c0_80] : memref<224x128xf32, #tpu.memory_space<vmem>>, vector<224x128xf32>
    tpu.vector_store %arg7[%c0_79, %c0_80], %68 {strides = array<i32>} : memref<224x128xf32, #tpu.memory_space<vmem>>, vector<224x128xf32>,
    %c0_81 = arith.constant 0 : index
    %c0_82 = arith.constant 0 : index
    %70 = vector.load %arg7[%c0_81, %c0_82] : memref<224x128xf32, #tpu.memory_space<vmem>>, vector<224x128xf32>
    %c0_83 = arith.constant 0 : index
    %c0_84 = arith.constant 0 : index
    %71 = vector.load %arg4[%c0_83, %c0_84] : memref<1x128xf32, #tpu.memory_space<vmem>>, vector<1x128xf32>
    %72 = vector.broadcast %71 : vector<1x128xf32> to vector<224x128xf32>
    %73 = arith.mulf %70, %72 : vector<224x128xf32>
    %c0_85 = arith.constant 0 : index
    %c0_86 = arith.constant 0 : index
    %74 = vector.load %arg5[%c0_85, %c0_86] : memref<1x128xf32, #tpu.memory_space<vmem>>, vector<1x128xf32>
    %75 = vector.broadcast %74 : vector<1x128xf32> to vector<224x128xf32>
    %76 = arith.addf %73, %75 : vector<224x128xf32>
    %cst_87 = arith.constant 0.000000e+00 : f32
    %77 = vector.broadcast %cst_87 : f32 to vector<224x128xf32>
    %78 = arith.maximumf %76, %77 : vector<224x128xf32>
    %79 = arith.truncf %78 : vector<224x128xf32> to vector<224x128xbf16>
    %c0_88 = arith.constant 0 : index
    %c0_89 = arith.constant 0 : index
    %c0_90 = arith.constant 0 : index
    %80 = vector.load %arg6[%c0_88, %c0_89, %c0_90] : memref<1x224x128xbf16, #tpu.memory_space<vmem>>, vector<1x224x128xbf16>
    %81 = vector.shape_cast %80 : vector<1x224x128xbf16> to vector<224x128xbf16>
    %82 = vector.shape_cast %79 : vector<224x128xbf16> to vector<1x224x128xbf16>
    tpu.vector_store %arg6[%c0_88, %c0_89, %c0_90], %82 {strides = array<i32>} : memref<1x224x128xbf16, #tpu.memory_space<vmem>>, vector<1x224x128xbf16>,
    return
  }
  func.func @transform_0(%arg0: i32, %arg1: i32) -> (i32, i32, i32) {
    %c0_i32 = arith.constant 0 : i32
    %c0_i32_0 = arith.constant 0 : i32
    %c0_i32_1 = arith.constant 0 : i32
    return %arg0, %c0_i32, %c0_i32_0 : i32, i32, i32
  }
  func.func @transform_1(%arg0: i32, %arg1: i32) -> (i32, i32, i32) {
    %c0_i32 = arith.constant 0 : i32
    %c0_i32_0 = arith.constant 0 : i32
    %c0_i32_1 = arith.constant 0 : i32
    return %c0_i32, %c0_i32_0, %arg1 : i32, i32, i32
  }
  func.func @transform_2(%arg0: i32, %arg1: i32) -> (i32, i32) {
    %c0_i32 = arith.constant 0 : i32
    %c0_i32_0 = arith.constant 0 : i32
    return %c0_i32, %arg1 : i32, i32
  }
  func.func @transform_3(%arg0: i32, %arg1: i32) -> (i32, i32) {
    %c0_i32 = arith.constant 0 : i32
    %c0_i32_0 = arith.constant 0 : i32
    return %c0_i32, %arg1 : i32, i32
  }
  func.func @transform_4(%arg0: i32, %arg1: i32) -> (i32, i32, i32) {
    %c0_i32 = arith.constant 0 : i32
    %c0_i32_0 = arith.constant 0 : i32
    return %arg0, %c0_i32, %arg1 : i32, i32, i32
  }
}

module attributes {stable_mosaic.version = 11 : i64} {
  func.func @_conv_bn_relu_kernel(%arg0: i32, %arg1: i32, %arg2: memref<1x72x128xbf16, #tpu.memory_space<vmem>>, %arg3: memref<9x128x128xbf16, #tpu.memory_space<vmem>>, %arg4: memref<1x128xf32, #tpu.memory_space<vmem>>, %arg5: memref<1x128xf32, #tpu.memory_space<vmem>>, %arg6: memref<1x48x128xbf16, #tpu.memory_space<vmem>>, %arg7: memref<48x128xf32, #tpu.memory_space<vmem>>) attributes {dimension_semantics = [#tpu.dimension_semantics<parallel>, #tpu.dimension_semantics<parallel>], iteration_bounds = array<i64: 2, 1>, scalar_prefetch = 0 : i64, scratch_operands = 1 : i64, tpu.core_type = #tpu.core_type<tc>, window_params = [{transform_indices = @transform_0, window_bounds = array<i64: 1, 72, 128>}, {transform_indices = @transform_1, window_bounds = array<i64: 9, 128, 128>}, {transform_indices = @transform_2, window_bounds = array<i64: 1, 128>}, {transform_indices = @transform_3, window_bounds = array<i64: 1, 128>}, {transform_indices = @transform_4, window_bounds = array<i64: 1, 48, 128>}]} {
    %c0 = arith.constant 0 : index
    %c0_0 = arith.constant 0 : index
    %c0_1 = arith.constant 0 : index
    %0 = vector.load %arg2[%c0, %c0_0, %c0_1] : memref<1x72x128xbf16, #tpu.memory_space<vmem>>, vector<1x48x128xbf16>
    %1 = vector.shape_cast %0 : vector<1x48x128xbf16> to vector<48x128xbf16>
    %c0_2 = arith.constant 0 : index
    %c0_3 = arith.constant 0 : index
    %c0_4 = arith.constant 0 : index
    %2 = vector.load %arg3[%c0_2, %c0_3, %c0_4] : memref<9x128x128xbf16, #tpu.memory_space<vmem>>, vector<1x128x128xbf16>
    %3 = vector.shape_cast %2 : vector<1x128x128xbf16> to vector<128x128xbf16>
    %cst = arith.constant dense<0.000000e+00> : vector<48x128xf32>
    %4 = tpu.matmul %1, %3, %cst {dimension_numbers = #tpu.dot_dimension_numbers<[1], [0], [0], [1], [0, 0, 1, 1], [], []>} : vector<48x128xbf16>, vector<128x128xbf16>, vector<48x128xf32> -> vector<48x128xf32>
    %c0_5 = arith.constant 0 : index
    %c0_6 = arith.constant 0 : index
    %5 = vector.load %arg7[%c0_5, %c0_6] : memref<48x128xf32, #tpu.memory_space<vmem>>, vector<48x128xf32>
    tpu.vector_store %arg7[%c0_5, %c0_6], %4 {strides = array<i32>} : memref<48x128xf32, #tpu.memory_space<vmem>>, vector<48x128xf32>,
    %c0_7 = arith.constant 0 : index
    %c1 = arith.constant 1 : index
    %c0_8 = arith.constant 0 : index
    %6 = vector.load %arg2[%c0_7, %c1, %c0_8] : memref<1x72x128xbf16, #tpu.memory_space<vmem>>, vector<1x48x128xbf16>
    %7 = vector.shape_cast %6 : vector<1x48x128xbf16> to vector<48x128xbf16>
    %c1_9 = arith.constant 1 : index
    %c0_10 = arith.constant 0 : index
    %c0_11 = arith.constant 0 : index
    %8 = vector.load %arg3[%c1_9, %c0_10, %c0_11] : memref<9x128x128xbf16, #tpu.memory_space<vmem>>, vector<1x128x128xbf16>
    %9 = vector.shape_cast %8 : vector<1x128x128xbf16> to vector<128x128xbf16>
    %cst_12 = arith.constant dense<0.000000e+00> : vector<48x128xf32>
    %10 = tpu.matmul %7, %9, %cst_12 {dimension_numbers = #tpu.dot_dimension_numbers<[1], [0], [0], [1], [0, 0, 1, 1], [], []>} : vector<48x128xbf16>, vector<128x128xbf16>, vector<48x128xf32> -> vector<48x128xf32>
    %c0_13 = arith.constant 0 : index
    %c0_14 = arith.constant 0 : index
    %11 = vector.load %arg7[%c0_13, %c0_14] : memref<48x128xf32, #tpu.memory_space<vmem>>, vector<48x128xf32>
    %12 = arith.addf %11, %10 : vector<48x128xf32>
    %c0_15 = arith.constant 0 : index
    %c0_16 = arith.constant 0 : index
    %13 = vector.load %arg7[%c0_15, %c0_16] : memref<48x128xf32, #tpu.memory_space<vmem>>, vector<48x128xf32>
    tpu.vector_store %arg7[%c0_15, %c0_16], %12 {strides = array<i32>} : memref<48x128xf32, #tpu.memory_space<vmem>>, vector<48x128xf32>,
    %c0_17 = arith.constant 0 : index
    %c2 = arith.constant 2 : index
    %c0_18 = arith.constant 0 : index
    %14 = vector.load %arg2[%c0_17, %c2, %c0_18] : memref<1x72x128xbf16, #tpu.memory_space<vmem>>, vector<1x48x128xbf16>
    %15 = vector.shape_cast %14 : vector<1x48x128xbf16> to vector<48x128xbf16>
    %c2_19 = arith.constant 2 : index
    %c0_20 = arith.constant 0 : index
    %c0_21 = arith.constant 0 : index
    %16 = vector.load %arg3[%c2_19, %c0_20, %c0_21] : memref<9x128x128xbf16, #tpu.memory_space<vmem>>, vector<1x128x128xbf16>
    %17 = vector.shape_cast %16 : vector<1x128x128xbf16> to vector<128x128xbf16>
    %cst_22 = arith.constant dense<0.000000e+00> : vector<48x128xf32>
    %18 = tpu.matmul %15, %17, %cst_22 {dimension_numbers = #tpu.dot_dimension_numbers<[1], [0], [0], [1], [0, 0, 1, 1], [], []>} : vector<48x128xbf16>, vector<128x128xbf16>, vector<48x128xf32> -> vector<48x128xf32>
    %c0_23 = arith.constant 0 : index
    %c0_24 = arith.constant 0 : index
    %19 = vector.load %arg7[%c0_23, %c0_24] : memref<48x128xf32, #tpu.memory_space<vmem>>, vector<48x128xf32>
    %20 = arith.addf %19, %18 : vector<48x128xf32>
    %c0_25 = arith.constant 0 : index
    %c0_26 = arith.constant 0 : index
    %21 = vector.load %arg7[%c0_25, %c0_26] : memref<48x128xf32, #tpu.memory_space<vmem>>, vector<48x128xf32>
    tpu.vector_store %arg7[%c0_25, %c0_26], %20 {strides = array<i32>} : memref<48x128xf32, #tpu.memory_space<vmem>>, vector<48x128xf32>,
    %c0_27 = arith.constant 0 : index
    %c8 = arith.constant 8 : index
    %c0_28 = arith.constant 0 : index
    %22 = vector.load %arg2[%c0_27, %c8, %c0_28] : memref<1x72x128xbf16, #tpu.memory_space<vmem>>, vector<1x48x128xbf16>
    %23 = vector.shape_cast %22 : vector<1x48x128xbf16> to vector<48x128xbf16>
    %c3 = arith.constant 3 : index
    %c0_29 = arith.constant 0 : index
    %c0_30 = arith.constant 0 : index
    %24 = vector.load %arg3[%c3, %c0_29, %c0_30] : memref<9x128x128xbf16, #tpu.memory_space<vmem>>, vector<1x128x128xbf16>
    %25 = vector.shape_cast %24 : vector<1x128x128xbf16> to vector<128x128xbf16>
    %cst_31 = arith.constant dense<0.000000e+00> : vector<48x128xf32>
    %26 = tpu.matmul %23, %25, %cst_31 {dimension_numbers = #tpu.dot_dimension_numbers<[1], [0], [0], [1], [0, 0, 1, 1], [], []>} : vector<48x128xbf16>, vector<128x128xbf16>, vector<48x128xf32> -> vector<48x128xf32>
    %c0_32 = arith.constant 0 : index
    %c0_33 = arith.constant 0 : index
    %27 = vector.load %arg7[%c0_32, %c0_33] : memref<48x128xf32, #tpu.memory_space<vmem>>, vector<48x128xf32>
    %28 = arith.addf %27, %26 : vector<48x128xf32>
    %c0_34 = arith.constant 0 : index
    %c0_35 = arith.constant 0 : index
    %29 = vector.load %arg7[%c0_34, %c0_35] : memref<48x128xf32, #tpu.memory_space<vmem>>, vector<48x128xf32>
    tpu.vector_store %arg7[%c0_34, %c0_35], %28 {strides = array<i32>} : memref<48x128xf32, #tpu.memory_space<vmem>>, vector<48x128xf32>,
    %c0_36 = arith.constant 0 : index
    %c9 = arith.constant 9 : index
    %c0_37 = arith.constant 0 : index
    %30 = vector.load %arg2[%c0_36, %c9, %c0_37] : memref<1x72x128xbf16, #tpu.memory_space<vmem>>, vector<1x48x128xbf16>
    %31 = vector.shape_cast %30 : vector<1x48x128xbf16> to vector<48x128xbf16>
    %c4 = arith.constant 4 : index
    %c0_38 = arith.constant 0 : index
    %c0_39 = arith.constant 0 : index
    %32 = vector.load %arg3[%c4, %c0_38, %c0_39] : memref<9x128x128xbf16, #tpu.memory_space<vmem>>, vector<1x128x128xbf16>
    %33 = vector.shape_cast %32 : vector<1x128x128xbf16> to vector<128x128xbf16>
    %cst_40 = arith.constant dense<0.000000e+00> : vector<48x128xf32>
    %34 = tpu.matmul %31, %33, %cst_40 {dimension_numbers = #tpu.dot_dimension_numbers<[1], [0], [0], [1], [0, 0, 1, 1], [], []>} : vector<48x128xbf16>, vector<128x128xbf16>, vector<48x128xf32> -> vector<48x128xf32>
    %c0_41 = arith.constant 0 : index
    %c0_42 = arith.constant 0 : index
    %35 = vector.load %arg7[%c0_41, %c0_42] : memref<48x128xf32, #tpu.memory_space<vmem>>, vector<48x128xf32>
    %36 = arith.addf %35, %34 : vector<48x128xf32>
    %c0_43 = arith.constant 0 : index
    %c0_44 = arith.constant 0 : index
    %37 = vector.load %arg7[%c0_43, %c0_44] : memref<48x128xf32, #tpu.memory_space<vmem>>, vector<48x128xf32>
    tpu.vector_store %arg7[%c0_43, %c0_44], %36 {strides = array<i32>} : memref<48x128xf32, #tpu.memory_space<vmem>>, vector<48x128xf32>,
    %c0_45 = arith.constant 0 : index
    %c10 = arith.constant 10 : index
    %c0_46 = arith.constant 0 : index
    %38 = vector.load %arg2[%c0_45, %c10, %c0_46] : memref<1x72x128xbf16, #tpu.memory_space<vmem>>, vector<1x48x128xbf16>
    %39 = vector.shape_cast %38 : vector<1x48x128xbf16> to vector<48x128xbf16>
    %c5 = arith.constant 5 : index
    %c0_47 = arith.constant 0 : index
    %c0_48 = arith.constant 0 : index
    %40 = vector.load %arg3[%c5, %c0_47, %c0_48] : memref<9x128x128xbf16, #tpu.memory_space<vmem>>, vector<1x128x128xbf16>
    %41 = vector.shape_cast %40 : vector<1x128x128xbf16> to vector<128x128xbf16>
    %cst_49 = arith.constant dense<0.000000e+00> : vector<48x128xf32>
    %42 = tpu.matmul %39, %41, %cst_49 {dimension_numbers = #tpu.dot_dimension_numbers<[1], [0], [0], [1], [0, 0, 1, 1], [], []>} : vector<48x128xbf16>, vector<128x128xbf16>, vector<48x128xf32> -> vector<48x128xf32>
    %c0_50 = arith.constant 0 : index
    %c0_51 = arith.constant 0 : index
    %43 = vector.load %arg7[%c0_50, %c0_51] : memref<48x128xf32, #tpu.memory_space<vmem>>, vector<48x128xf32>
    %44 = arith.addf %43, %42 : vector<48x128xf32>
    %c0_52 = arith.constant 0 : index
    %c0_53 = arith.constant 0 : index
    %45 = vector.load %arg7[%c0_52, %c0_53] : memref<48x128xf32, #tpu.memory_space<vmem>>, vector<48x128xf32>
    tpu.vector_store %arg7[%c0_52, %c0_53], %44 {strides = array<i32>} : memref<48x128xf32, #tpu.memory_space<vmem>>, vector<48x128xf32>,
    %c0_54 = arith.constant 0 : index
    %c16 = arith.constant 16 : index
    %c0_55 = arith.constant 0 : index
    %46 = vector.load %arg2[%c0_54, %c16, %c0_55] : memref<1x72x128xbf16, #tpu.memory_space<vmem>>, vector<1x48x128xbf16>
    %47 = vector.shape_cast %46 : vector<1x48x128xbf16> to vector<48x128xbf16>
    %c6 = arith.constant 6 : index
    %c0_56 = arith.constant 0 : index
    %c0_57 = arith.constant 0 : index
    %48 = vector.load %arg3[%c6, %c0_56, %c0_57] : memref<9x128x128xbf16, #tpu.memory_space<vmem>>, vector<1x128x128xbf16>
    %49 = vector.shape_cast %48 : vector<1x128x128xbf16> to vector<128x128xbf16>
    %cst_58 = arith.constant dense<0.000000e+00> : vector<48x128xf32>
    %50 = tpu.matmul %47, %49, %cst_58 {dimension_numbers = #tpu.dot_dimension_numbers<[1], [0], [0], [1], [0, 0, 1, 1], [], []>} : vector<48x128xbf16>, vector<128x128xbf16>, vector<48x128xf32> -> vector<48x128xf32>
    %c0_59 = arith.constant 0 : index
    %c0_60 = arith.constant 0 : index
    %51 = vector.load %arg7[%c0_59, %c0_60] : memref<48x128xf32, #tpu.memory_space<vmem>>, vector<48x128xf32>
    %52 = arith.addf %51, %50 : vector<48x128xf32>
    %c0_61 = arith.constant 0 : index
    %c0_62 = arith.constant 0 : index
    %53 = vector.load %arg7[%c0_61, %c0_62] : memref<48x128xf32, #tpu.memory_space<vmem>>, vector<48x128xf32>
    tpu.vector_store %arg7[%c0_61, %c0_62], %52 {strides = array<i32>} : memref<48x128xf32, #tpu.memory_space<vmem>>, vector<48x128xf32>,
    %c0_63 = arith.constant 0 : index
    %c17 = arith.constant 17 : index
    %c0_64 = arith.constant 0 : index
    %54 = vector.load %arg2[%c0_63, %c17, %c0_64] : memref<1x72x128xbf16, #tpu.memory_space<vmem>>, vector<1x48x128xbf16>
    %55 = vector.shape_cast %54 : vector<1x48x128xbf16> to vector<48x128xbf16>
    %c7 = arith.constant 7 : index
    %c0_65 = arith.constant 0 : index
    %c0_66 = arith.constant 0 : index
    %56 = vector.load %arg3[%c7, %c0_65, %c0_66] : memref<9x128x128xbf16, #tpu.memory_space<vmem>>, vector<1x128x128xbf16>
    %57 = vector.shape_cast %56 : vector<1x128x128xbf16> to vector<128x128xbf16>
    %cst_67 = arith.constant dense<0.000000e+00> : vector<48x128xf32>
    %58 = tpu.matmul %55, %57, %cst_67 {dimension_numbers = #tpu.dot_dimension_numbers<[1], [0], [0], [1], [0, 0, 1, 1], [], []>} : vector<48x128xbf16>, vector<128x128xbf16>, vector<48x128xf32> -> vector<48x128xf32>
    %c0_68 = arith.constant 0 : index
    %c0_69 = arith.constant 0 : index
    %59 = vector.load %arg7[%c0_68, %c0_69] : memref<48x128xf32, #tpu.memory_space<vmem>>, vector<48x128xf32>
    %60 = arith.addf %59, %58 : vector<48x128xf32>
    %c0_70 = arith.constant 0 : index
    %c0_71 = arith.constant 0 : index
    %61 = vector.load %arg7[%c0_70, %c0_71] : memref<48x128xf32, #tpu.memory_space<vmem>>, vector<48x128xf32>
    tpu.vector_store %arg7[%c0_70, %c0_71], %60 {strides = array<i32>} : memref<48x128xf32, #tpu.memory_space<vmem>>, vector<48x128xf32>,
    %c0_72 = arith.constant 0 : index
    %c18 = arith.constant 18 : index
    %c0_73 = arith.constant 0 : index
    %62 = vector.load %arg2[%c0_72, %c18, %c0_73] : memref<1x72x128xbf16, #tpu.memory_space<vmem>>, vector<1x48x128xbf16>
    %63 = vector.shape_cast %62 : vector<1x48x128xbf16> to vector<48x128xbf16>
    %c8_74 = arith.constant 8 : index
    %c0_75 = arith.constant 0 : index
    %c0_76 = arith.constant 0 : index
    %64 = vector.load %arg3[%c8_74, %c0_75, %c0_76] : memref<9x128x128xbf16, #tpu.memory_space<vmem>>, vector<1x128x128xbf16>
    %65 = vector.shape_cast %64 : vector<1x128x128xbf16> to vector<128x128xbf16>
    %cst_77 = arith.constant dense<0.000000e+00> : vector<48x128xf32>
    %66 = tpu.matmul %63, %65, %cst_77 {dimension_numbers = #tpu.dot_dimension_numbers<[1], [0], [0], [1], [0, 0, 1, 1], [], []>} : vector<48x128xbf16>, vector<128x128xbf16>, vector<48x128xf32> -> vector<48x128xf32>
    %c0_78 = arith.constant 0 : index
    %c0_79 = arith.constant 0 : index
    %67 = vector.load %arg7[%c0_78, %c0_79] : memref<48x128xf32, #tpu.memory_space<vmem>>, vector<48x128xf32>
    %68 = arith.addf %67, %66 : vector<48x128xf32>
    %c0_80 = arith.constant 0 : index
    %c0_81 = arith.constant 0 : index
    %69 = vector.load %arg7[%c0_80, %c0_81] : memref<48x128xf32, #tpu.memory_space<vmem>>, vector<48x128xf32>
    tpu.vector_store %arg7[%c0_80, %c0_81], %68 {strides = array<i32>} : memref<48x128xf32, #tpu.memory_space<vmem>>, vector<48x128xf32>,
    %c0_82 = arith.constant 0 : index
    %c0_83 = arith.constant 0 : index
    %70 = vector.load %arg7[%c0_82, %c0_83] : memref<48x128xf32, #tpu.memory_space<vmem>>, vector<48x128xf32>
    %c0_84 = arith.constant 0 : index
    %c0_85 = arith.constant 0 : index
    %71 = vector.load %arg4[%c0_84, %c0_85] : memref<1x128xf32, #tpu.memory_space<vmem>>, vector<1x128xf32>
    %72 = vector.broadcast %71 : vector<1x128xf32> to vector<48x128xf32>
    %73 = arith.mulf %70, %72 : vector<48x128xf32>
    %c0_86 = arith.constant 0 : index
    %c0_87 = arith.constant 0 : index
    %74 = vector.load %arg5[%c0_86, %c0_87] : memref<1x128xf32, #tpu.memory_space<vmem>>, vector<1x128xf32>
    %75 = vector.broadcast %74 : vector<1x128xf32> to vector<48x128xf32>
    %76 = arith.addf %73, %75 : vector<48x128xf32>
    %cst_88 = arith.constant 0.000000e+00 : f32
    %77 = vector.broadcast %cst_88 : f32 to vector<48x128xf32>
    %78 = arith.maximumf %76, %77 : vector<48x128xf32>
    %79 = arith.truncf %78 : vector<48x128xf32> to vector<48x128xbf16>
    %c0_89 = arith.constant 0 : index
    %c0_90 = arith.constant 0 : index
    %c0_91 = arith.constant 0 : index
    %80 = vector.load %arg6[%c0_89, %c0_90, %c0_91] : memref<1x48x128xbf16, #tpu.memory_space<vmem>>, vector<1x48x128xbf16>
    %81 = vector.shape_cast %80 : vector<1x48x128xbf16> to vector<48x128xbf16>
    %82 = vector.shape_cast %79 : vector<48x128xbf16> to vector<1x48x128xbf16>
    tpu.vector_store %arg6[%c0_89, %c0_90, %c0_91], %82 {strides = array<i32>} : memref<1x48x128xbf16, #tpu.memory_space<vmem>>, vector<1x48x128xbf16>,
    return
  }
  func.func @transform_0(%arg0: i32, %arg1: i32) -> (i32, i32, i32) {
    %c0_i32 = arith.constant 0 : i32
    %c0_i32_0 = arith.constant 0 : i32
    %c0_i32_1 = arith.constant 0 : i32
    return %arg0, %c0_i32, %c0_i32_0 : i32, i32, i32
  }
  func.func @transform_1(%arg0: i32, %arg1: i32) -> (i32, i32, i32) {
    %c0_i32 = arith.constant 0 : i32
    %c0_i32_0 = arith.constant 0 : i32
    %c0_i32_1 = arith.constant 0 : i32
    return %c0_i32, %c0_i32_0, %arg1 : i32, i32, i32
  }
  func.func @transform_2(%arg0: i32, %arg1: i32) -> (i32, i32) {
    %c0_i32 = arith.constant 0 : i32
    %c0_i32_0 = arith.constant 0 : i32
    return %c0_i32, %arg1 : i32, i32
  }
  func.func @transform_3(%arg0: i32, %arg1: i32) -> (i32, i32) {
    %c0_i32 = arith.constant 0 : i32
    %c0_i32_0 = arith.constant 0 : i32
    return %c0_i32, %arg1 : i32, i32
  }
  func.func @transform_4(%arg0: i32, %arg1: i32) -> (i32, i32, i32) {
    %c0_i32 = arith.constant 0 : i32
    %c0_i32_0 = arith.constant 0 : i32
    return %arg0, %c0_i32, %arg1 : i32, i32, i32
  }
}

module attributes {stable_mosaic.version = 11 : i64} {
  func.func @_xcorr_kernel(%arg0: i32, %arg1: i32, %arg2: i32, %arg3: memref<1x21x14x32xbf16, #tpu.memory_space<vmem>>, %arg4: memref<1x6x6x32xbf16, #tpu.memory_space<vmem>>, %arg5: memref<1x8x9x32xbf16, #tpu.memory_space<vmem>>) attributes {dimension_semantics = [#tpu.dimension_semantics<parallel>, #tpu.dimension_semantics<parallel>, #tpu.dimension_semantics<parallel>], iteration_bounds = array<i64: 2, 1, 2>, scalar_prefetch = 0 : i64, scratch_operands = 0 : i64, tpu.core_type = #tpu.core_type<tc>, window_params = [{transform_indices = @transform_0, window_bounds = array<i64: 1, 21, 14, 32>}, {transform_indices = @transform_1, window_bounds = array<i64: 1, 6, 6, 32>}, {transform_indices = @transform_2, window_bounds = array<i64: 1, 8, 9, 32>}]} {
    %c8_i32 = arith.constant 8 : i32
    %0 = arith.muli %arg2, %c8_i32 : i32
    %1 = tpu.assume_multiple %0, 8 : i32
    %c0 = arith.constant 0 : index
    %2 = arith.index_cast %1 : i32 to index
    %c0_0 = arith.constant 0 : index
    %c0_1 = arith.constant 0 : index
    %3 = vector.load %arg3[%c0, %2, %c0_0, %c0_1] : memref<1x21x14x32xbf16, #tpu.memory_space<vmem>>, vector<1x13x9x32xbf16>
    %4 = vector.shape_cast %3 : vector<1x13x9x32xbf16> to vector<13x9x32xbf16>
    %5 = arith.extf %4 : vector<13x9x32xbf16> to vector<13x9x32xf32>
    %c0_2 = arith.constant 0 : index
    %c0_3 = arith.constant 0 : index
    %c0_4 = arith.constant 0 : index
    %c0_5 = arith.constant 0 : index
    %6 = vector.load %arg4[%c0_2, %c0_3, %c0_4, %c0_5] : memref<1x6x6x32xbf16, #tpu.memory_space<vmem>>, vector<1x6x1x32xbf16>
    %7 = vector.shape_cast %6 : vector<1x6x1x32xbf16> to vector<6x1x32xbf16>
    %8 = arith.extf %7 : vector<6x1x32xbf16> to vector<6x1x32xf32>
    %9 = vector.extract_strided_slice %5 {offsets = [0, 0, 0], sizes = [8, 9, 32], strides = [1, 1, 1]} : vector<13x9x32xf32> to vector<8x9x32xf32>
    %10 = vector.extract_strided_slice %8 {offsets = [0, 0, 0], sizes = [1, 1, 32], strides = [1, 1, 1]} : vector<6x1x32xf32> to vector<1x1x32xf32>
    %11 = vector.broadcast %10 : vector<1x1x32xf32> to vector<8x9x32xf32>
    %12 = arith.mulf %9, %11 : vector<8x9x32xf32>
    %13 = vector.extract_strided_slice %5 {offsets = [1, 0, 0], sizes = [8, 9, 32], strides = [1, 1, 1]} : vector<13x9x32xf32> to vector<8x9x32xf32>
    %14 = vector.extract_strided_slice %8 {offsets = [1, 0, 0], sizes = [1, 1, 32], strides = [1, 1, 1]} : vector<6x1x32xf32> to vector<1x1x32xf32>
    %15 = vector.broadcast %14 : vector<1x1x32xf32> to vector<8x9x32xf32>
    %16 = arith.mulf %13, %15 : vector<8x9x32xf32>
    %17 = arith.addf %12, %16 : vector<8x9x32xf32>
    %18 = vector.extract_strided_slice %5 {offsets = [2, 0, 0], sizes = [8, 9, 32], strides = [1, 1, 1]} : vector<13x9x32xf32> to vector<8x9x32xf32>
    %19 = vector.extract_strided_slice %8 {offsets = [2, 0, 0], sizes = [1, 1, 32], strides = [1, 1, 1]} : vector<6x1x32xf32> to vector<1x1x32xf32>
    %20 = vector.broadcast %19 : vector<1x1x32xf32> to vector<8x9x32xf32>
    %21 = arith.mulf %18, %20 : vector<8x9x32xf32>
    %22 = arith.addf %17, %21 : vector<8x9x32xf32>
    %23 = vector.extract_strided_slice %5 {offsets = [3, 0, 0], sizes = [8, 9, 32], strides = [1, 1, 1]} : vector<13x9x32xf32> to vector<8x9x32xf32>
    %24 = vector.extract_strided_slice %8 {offsets = [3, 0, 0], sizes = [1, 1, 32], strides = [1, 1, 1]} : vector<6x1x32xf32> to vector<1x1x32xf32>
    %25 = vector.broadcast %24 : vector<1x1x32xf32> to vector<8x9x32xf32>
    %26 = arith.mulf %23, %25 : vector<8x9x32xf32>
    %27 = arith.addf %22, %26 : vector<8x9x32xf32>
    %28 = vector.extract_strided_slice %5 {offsets = [4, 0, 0], sizes = [8, 9, 32], strides = [1, 1, 1]} : vector<13x9x32xf32> to vector<8x9x32xf32>
    %29 = vector.extract_strided_slice %8 {offsets = [4, 0, 0], sizes = [1, 1, 32], strides = [1, 1, 1]} : vector<6x1x32xf32> to vector<1x1x32xf32>
    %30 = vector.broadcast %29 : vector<1x1x32xf32> to vector<8x9x32xf32>
    %31 = arith.mulf %28, %30 : vector<8x9x32xf32>
    %32 = arith.addf %27, %31 : vector<8x9x32xf32>
    %33 = vector.extract_strided_slice %5 {offsets = [5, 0, 0], sizes = [8, 9, 32], strides = [1, 1, 1]} : vector<13x9x32xf32> to vector<8x9x32xf32>
    %34 = vector.extract_strided_slice %8 {offsets = [5, 0, 0], sizes = [1, 1, 32], strides = [1, 1, 1]} : vector<6x1x32xf32> to vector<1x1x32xf32>
    %35 = vector.broadcast %34 : vector<1x1x32xf32> to vector<8x9x32xf32>
    %36 = arith.mulf %33, %35 : vector<8x9x32xf32>
    %37 = arith.addf %32, %36 : vector<8x9x32xf32>
    %c0_6 = arith.constant 0 : index
    %38 = arith.index_cast %1 : i32 to index
    %c1 = arith.constant 1 : index
    %c0_7 = arith.constant 0 : index
    %39 = vector.load %arg3[%c0_6, %38, %c1, %c0_7] : memref<1x21x14x32xbf16, #tpu.memory_space<vmem>>, vector<1x13x9x32xbf16>
    %40 = vector.shape_cast %39 : vector<1x13x9x32xbf16> to vector<13x9x32xbf16>
    %41 = arith.extf %40 : vector<13x9x32xbf16> to vector<13x9x32xf32>
    %c0_8 = arith.constant 0 : index
    %c0_9 = arith.constant 0 : index
    %c1_10 = arith.constant 1 : index
    %c0_11 = arith.constant 0 : index
    %42 = vector.load %arg4[%c0_8, %c0_9, %c1_10, %c0_11] : memref<1x6x6x32xbf16, #tpu.memory_space<vmem>>, vector<1x6x1x32xbf16>
    %43 = vector.shape_cast %42 : vector<1x6x1x32xbf16> to vector<6x1x32xbf16>
    %44 = arith.extf %43 : vector<6x1x32xbf16> to vector<6x1x32xf32>
    %45 = vector.extract_strided_slice %41 {offsets = [0, 0, 0], sizes = [8, 9, 32], strides = [1, 1, 1]} : vector<13x9x32xf32> to vector<8x9x32xf32>
    %46 = vector.extract_strided_slice %44 {offsets = [0, 0, 0], sizes = [1, 1, 32], strides = [1, 1, 1]} : vector<6x1x32xf32> to vector<1x1x32xf32>
    %47 = vector.broadcast %46 : vector<1x1x32xf32> to vector<8x9x32xf32>
    %48 = arith.mulf %45, %47 : vector<8x9x32xf32>
    %49 = vector.extract_strided_slice %41 {offsets = [1, 0, 0], sizes = [8, 9, 32], strides = [1, 1, 1]} : vector<13x9x32xf32> to vector<8x9x32xf32>
    %50 = vector.extract_strided_slice %44 {offsets = [1, 0, 0], sizes = [1, 1, 32], strides = [1, 1, 1]} : vector<6x1x32xf32> to vector<1x1x32xf32>
    %51 = vector.broadcast %50 : vector<1x1x32xf32> to vector<8x9x32xf32>
    %52 = arith.mulf %49, %51 : vector<8x9x32xf32>
    %53 = arith.addf %48, %52 : vector<8x9x32xf32>
    %54 = vector.extract_strided_slice %41 {offsets = [2, 0, 0], sizes = [8, 9, 32], strides = [1, 1, 1]} : vector<13x9x32xf32> to vector<8x9x32xf32>
    %55 = vector.extract_strided_slice %44 {offsets = [2, 0, 0], sizes = [1, 1, 32], strides = [1, 1, 1]} : vector<6x1x32xf32> to vector<1x1x32xf32>
    %56 = vector.broadcast %55 : vector<1x1x32xf32> to vector<8x9x32xf32>
    %57 = arith.mulf %54, %56 : vector<8x9x32xf32>
    %58 = arith.addf %53, %57 : vector<8x9x32xf32>
    %59 = vector.extract_strided_slice %41 {offsets = [3, 0, 0], sizes = [8, 9, 32], strides = [1, 1, 1]} : vector<13x9x32xf32> to vector<8x9x32xf32>
    %60 = vector.extract_strided_slice %44 {offsets = [3, 0, 0], sizes = [1, 1, 32], strides = [1, 1, 1]} : vector<6x1x32xf32> to vector<1x1x32xf32>
    %61 = vector.broadcast %60 : vector<1x1x32xf32> to vector<8x9x32xf32>
    %62 = arith.mulf %59, %61 : vector<8x9x32xf32>
    %63 = arith.addf %58, %62 : vector<8x9x32xf32>
    %64 = vector.extract_strided_slice %41 {offsets = [4, 0, 0], sizes = [8, 9, 32], strides = [1, 1, 1]} : vector<13x9x32xf32> to vector<8x9x32xf32>
    %65 = vector.extract_strided_slice %44 {offsets = [4, 0, 0], sizes = [1, 1, 32], strides = [1, 1, 1]} : vector<6x1x32xf32> to vector<1x1x32xf32>
    %66 = vector.broadcast %65 : vector<1x1x32xf32> to vector<8x9x32xf32>
    %67 = arith.mulf %64, %66 : vector<8x9x32xf32>
    %68 = arith.addf %63, %67 : vector<8x9x32xf32>
    %69 = vector.extract_strided_slice %41 {offsets = [5, 0, 0], sizes = [8, 9, 32], strides = [1, 1, 1]} : vector<13x9x32xf32> to vector<8x9x32xf32>
    %70 = vector.extract_strided_slice %44 {offsets = [5, 0, 0], sizes = [1, 1, 32], strides = [1, 1, 1]} : vector<6x1x32xf32> to vector<1x1x32xf32>
    %71 = vector.broadcast %70 : vector<1x1x32xf32> to vector<8x9x32xf32>
    %72 = arith.mulf %69, %71 : vector<8x9x32xf32>
    %73 = arith.addf %68, %72 : vector<8x9x32xf32>
    %74 = arith.addf %37, %73 : vector<8x9x32xf32>
    %c0_12 = arith.constant 0 : index
    %75 = arith.index_cast %1 : i32 to index
    %c2 = arith.constant 2 : index
    %c0_13 = arith.constant 0 : index
    %76 = vector.load %arg3[%c0_12, %75, %c2, %c0_13] : memref<1x21x14x32xbf16, #tpu.memory_space<vmem>>, vector<1x13x9x32xbf16>
    %77 = vector.shape_cast %76 : vector<1x13x9x32xbf16> to vector<13x9x32xbf16>
    %78 = arith.extf %77 : vector<13x9x32xbf16> to vector<13x9x32xf32>
    %c0_14 = arith.constant 0 : index
    %c0_15 = arith.constant 0 : index
    %c2_16 = arith.constant 2 : index
    %c0_17 = arith.constant 0 : index
    %79 = vector.load %arg4[%c0_14, %c0_15, %c2_16, %c0_17] : memref<1x6x6x32xbf16, #tpu.memory_space<vmem>>, vector<1x6x1x32xbf16>
    %80 = vector.shape_cast %79 : vector<1x6x1x32xbf16> to vector<6x1x32xbf16>
    %81 = arith.extf %80 : vector<6x1x32xbf16> to vector<6x1x32xf32>
    %82 = vector.extract_strided_slice %78 {offsets = [0, 0, 0], sizes = [8, 9, 32], strides = [1, 1, 1]} : vector<13x9x32xf32> to vector<8x9x32xf32>
    %83 = vector.extract_strided_slice %81 {offsets = [0, 0, 0], sizes = [1, 1, 32], strides = [1, 1, 1]} : vector<6x1x32xf32> to vector<1x1x32xf32>
    %84 = vector.broadcast %83 : vector<1x1x32xf32> to vector<8x9x32xf32>
    %85 = arith.mulf %82, %84 : vector<8x9x32xf32>
    %86 = vector.extract_strided_slice %78 {offsets = [1, 0, 0], sizes = [8, 9, 32], strides = [1, 1, 1]} : vector<13x9x32xf32> to vector<8x9x32xf32>
    %87 = vector.extract_strided_slice %81 {offsets = [1, 0, 0], sizes = [1, 1, 32], strides = [1, 1, 1]} : vector<6x1x32xf32> to vector<1x1x32xf32>
    %88 = vector.broadcast %87 : vector<1x1x32xf32> to vector<8x9x32xf32>
    %89 = arith.mulf %86, %88 : vector<8x9x32xf32>
    %90 = arith.addf %85, %89 : vector<8x9x32xf32>
    %91 = vector.extract_strided_slice %78 {offsets = [2, 0, 0], sizes = [8, 9, 32], strides = [1, 1, 1]} : vector<13x9x32xf32> to vector<8x9x32xf32>
    %92 = vector.extract_strided_slice %81 {offsets = [2, 0, 0], sizes = [1, 1, 32], strides = [1, 1, 1]} : vector<6x1x32xf32> to vector<1x1x32xf32>
    %93 = vector.broadcast %92 : vector<1x1x32xf32> to vector<8x9x32xf32>
    %94 = arith.mulf %91, %93 : vector<8x9x32xf32>
    %95 = arith.addf %90, %94 : vector<8x9x32xf32>
    %96 = vector.extract_strided_slice %78 {offsets = [3, 0, 0], sizes = [8, 9, 32], strides = [1, 1, 1]} : vector<13x9x32xf32> to vector<8x9x32xf32>
    %97 = vector.extract_strided_slice %81 {offsets = [3, 0, 0], sizes = [1, 1, 32], strides = [1, 1, 1]} : vector<6x1x32xf32> to vector<1x1x32xf32>
    %98 = vector.broadcast %97 : vector<1x1x32xf32> to vector<8x9x32xf32>
    %99 = arith.mulf %96, %98 : vector<8x9x32xf32>
    %100 = arith.addf %95, %99 : vector<8x9x32xf32>
    %101 = vector.extract_strided_slice %78 {offsets = [4, 0, 0], sizes = [8, 9, 32], strides = [1, 1, 1]} : vector<13x9x32xf32> to vector<8x9x32xf32>
    %102 = vector.extract_strided_slice %81 {offsets = [4, 0, 0], sizes = [1, 1, 32], strides = [1, 1, 1]} : vector<6x1x32xf32> to vector<1x1x32xf32>
    %103 = vector.broadcast %102 : vector<1x1x32xf32> to vector<8x9x32xf32>
    %104 = arith.mulf %101, %103 : vector<8x9x32xf32>
    %105 = arith.addf %100, %104 : vector<8x9x32xf32>
    %106 = vector.extract_strided_slice %78 {offsets = [5, 0, 0], sizes = [8, 9, 32], strides = [1, 1, 1]} : vector<13x9x32xf32> to vector<8x9x32xf32>
    %107 = vector.extract_strided_slice %81 {offsets = [5, 0, 0], sizes = [1, 1, 32], strides = [1, 1, 1]} : vector<6x1x32xf32> to vector<1x1x32xf32>
    %108 = vector.broadcast %107 : vector<1x1x32xf32> to vector<8x9x32xf32>
    %109 = arith.mulf %106, %108 : vector<8x9x32xf32>
    %110 = arith.addf %105, %109 : vector<8x9x32xf32>
    %111 = arith.addf %74, %110 : vector<8x9x32xf32>
    %c0_18 = arith.constant 0 : index
    %112 = arith.index_cast %1 : i32 to index
    %c3 = arith.constant 3 : index
    %c0_19 = arith.constant 0 : index
    %113 = vector.load %arg3[%c0_18, %112, %c3, %c0_19] : memref<1x21x14x32xbf16, #tpu.memory_space<vmem>>, vector<1x13x9x32xbf16>
    %114 = vector.shape_cast %113 : vector<1x13x9x32xbf16> to vector<13x9x32xbf16>
    %115 = arith.extf %114 : vector<13x9x32xbf16> to vector<13x9x32xf32>
    %c0_20 = arith.constant 0 : index
    %c0_21 = arith.constant 0 : index
    %c3_22 = arith.constant 3 : index
    %c0_23 = arith.constant 0 : index
    %116 = vector.load %arg4[%c0_20, %c0_21, %c3_22, %c0_23] : memref<1x6x6x32xbf16, #tpu.memory_space<vmem>>, vector<1x6x1x32xbf16>
    %117 = vector.shape_cast %116 : vector<1x6x1x32xbf16> to vector<6x1x32xbf16>
    %118 = arith.extf %117 : vector<6x1x32xbf16> to vector<6x1x32xf32>
    %119 = vector.extract_strided_slice %115 {offsets = [0, 0, 0], sizes = [8, 9, 32], strides = [1, 1, 1]} : vector<13x9x32xf32> to vector<8x9x32xf32>
    %120 = vector.extract_strided_slice %118 {offsets = [0, 0, 0], sizes = [1, 1, 32], strides = [1, 1, 1]} : vector<6x1x32xf32> to vector<1x1x32xf32>
    %121 = vector.broadcast %120 : vector<1x1x32xf32> to vector<8x9x32xf32>
    %122 = arith.mulf %119, %121 : vector<8x9x32xf32>
    %123 = vector.extract_strided_slice %115 {offsets = [1, 0, 0], sizes = [8, 9, 32], strides = [1, 1, 1]} : vector<13x9x32xf32> to vector<8x9x32xf32>
    %124 = vector.extract_strided_slice %118 {offsets = [1, 0, 0], sizes = [1, 1, 32], strides = [1, 1, 1]} : vector<6x1x32xf32> to vector<1x1x32xf32>
    %125 = vector.broadcast %124 : vector<1x1x32xf32> to vector<8x9x32xf32>
    %126 = arith.mulf %123, %125 : vector<8x9x32xf32>
    %127 = arith.addf %122, %126 : vector<8x9x32xf32>
    %128 = vector.extract_strided_slice %115 {offsets = [2, 0, 0], sizes = [8, 9, 32], strides = [1, 1, 1]} : vector<13x9x32xf32> to vector<8x9x32xf32>
    %129 = vector.extract_strided_slice %118 {offsets = [2, 0, 0], sizes = [1, 1, 32], strides = [1, 1, 1]} : vector<6x1x32xf32> to vector<1x1x32xf32>
    %130 = vector.broadcast %129 : vector<1x1x32xf32> to vector<8x9x32xf32>
    %131 = arith.mulf %128, %130 : vector<8x9x32xf32>
    %132 = arith.addf %127, %131 : vector<8x9x32xf32>
    %133 = vector.extract_strided_slice %115 {offsets = [3, 0, 0], sizes = [8, 9, 32], strides = [1, 1, 1]} : vector<13x9x32xf32> to vector<8x9x32xf32>
    %134 = vector.extract_strided_slice %118 {offsets = [3, 0, 0], sizes = [1, 1, 32], strides = [1, 1, 1]} : vector<6x1x32xf32> to vector<1x1x32xf32>
    %135 = vector.broadcast %134 : vector<1x1x32xf32> to vector<8x9x32xf32>
    %136 = arith.mulf %133, %135 : vector<8x9x32xf32>
    %137 = arith.addf %132, %136 : vector<8x9x32xf32>
    %138 = vector.extract_strided_slice %115 {offsets = [4, 0, 0], sizes = [8, 9, 32], strides = [1, 1, 1]} : vector<13x9x32xf32> to vector<8x9x32xf32>
    %139 = vector.extract_strided_slice %118 {offsets = [4, 0, 0], sizes = [1, 1, 32], strides = [1, 1, 1]} : vector<6x1x32xf32> to vector<1x1x32xf32>
    %140 = vector.broadcast %139 : vector<1x1x32xf32> to vector<8x9x32xf32>
    %141 = arith.mulf %138, %140 : vector<8x9x32xf32>
    %142 = arith.addf %137, %141 : vector<8x9x32xf32>
    %143 = vector.extract_strided_slice %115 {offsets = [5, 0, 0], sizes = [8, 9, 32], strides = [1, 1, 1]} : vector<13x9x32xf32> to vector<8x9x32xf32>
    %144 = vector.extract_strided_slice %118 {offsets = [5, 0, 0], sizes = [1, 1, 32], strides = [1, 1, 1]} : vector<6x1x32xf32> to vector<1x1x32xf32>
    %145 = vector.broadcast %144 : vector<1x1x32xf32> to vector<8x9x32xf32>
    %146 = arith.mulf %143, %145 : vector<8x9x32xf32>
    %147 = arith.addf %142, %146 : vector<8x9x32xf32>
    %148 = arith.addf %111, %147 : vector<8x9x32xf32>
    %c0_24 = arith.constant 0 : index
    %149 = arith.index_cast %1 : i32 to index
    %c4 = arith.constant 4 : index
    %c0_25 = arith.constant 0 : index
    %150 = vector.load %arg3[%c0_24, %149, %c4, %c0_25] : memref<1x21x14x32xbf16, #tpu.memory_space<vmem>>, vector<1x13x9x32xbf16>
    %151 = vector.shape_cast %150 : vector<1x13x9x32xbf16> to vector<13x9x32xbf16>
    %152 = arith.extf %151 : vector<13x9x32xbf16> to vector<13x9x32xf32>
    %c0_26 = arith.constant 0 : index
    %c0_27 = arith.constant 0 : index
    %c4_28 = arith.constant 4 : index
    %c0_29 = arith.constant 0 : index
    %153 = vector.load %arg4[%c0_26, %c0_27, %c4_28, %c0_29] : memref<1x6x6x32xbf16, #tpu.memory_space<vmem>>, vector<1x6x1x32xbf16>
    %154 = vector.shape_cast %153 : vector<1x6x1x32xbf16> to vector<6x1x32xbf16>
    %155 = arith.extf %154 : vector<6x1x32xbf16> to vector<6x1x32xf32>
    %156 = vector.extract_strided_slice %152 {offsets = [0, 0, 0], sizes = [8, 9, 32], strides = [1, 1, 1]} : vector<13x9x32xf32> to vector<8x9x32xf32>
    %157 = vector.extract_strided_slice %155 {offsets = [0, 0, 0], sizes = [1, 1, 32], strides = [1, 1, 1]} : vector<6x1x32xf32> to vector<1x1x32xf32>
    %158 = vector.broadcast %157 : vector<1x1x32xf32> to vector<8x9x32xf32>
    %159 = arith.mulf %156, %158 : vector<8x9x32xf32>
    %160 = vector.extract_strided_slice %152 {offsets = [1, 0, 0], sizes = [8, 9, 32], strides = [1, 1, 1]} : vector<13x9x32xf32> to vector<8x9x32xf32>
    %161 = vector.extract_strided_slice %155 {offsets = [1, 0, 0], sizes = [1, 1, 32], strides = [1, 1, 1]} : vector<6x1x32xf32> to vector<1x1x32xf32>
    %162 = vector.broadcast %161 : vector<1x1x32xf32> to vector<8x9x32xf32>
    %163 = arith.mulf %160, %162 : vector<8x9x32xf32>
    %164 = arith.addf %159, %163 : vector<8x9x32xf32>
    %165 = vector.extract_strided_slice %152 {offsets = [2, 0, 0], sizes = [8, 9, 32], strides = [1, 1, 1]} : vector<13x9x32xf32> to vector<8x9x32xf32>
    %166 = vector.extract_strided_slice %155 {offsets = [2, 0, 0], sizes = [1, 1, 32], strides = [1, 1, 1]} : vector<6x1x32xf32> to vector<1x1x32xf32>
    %167 = vector.broadcast %166 : vector<1x1x32xf32> to vector<8x9x32xf32>
    %168 = arith.mulf %165, %167 : vector<8x9x32xf32>
    %169 = arith.addf %164, %168 : vector<8x9x32xf32>
    %170 = vector.extract_strided_slice %152 {offsets = [3, 0, 0], sizes = [8, 9, 32], strides = [1, 1, 1]} : vector<13x9x32xf32> to vector<8x9x32xf32>
    %171 = vector.extract_strided_slice %155 {offsets = [3, 0, 0], sizes = [1, 1, 32], strides = [1, 1, 1]} : vector<6x1x32xf32> to vector<1x1x32xf32>
    %172 = vector.broadcast %171 : vector<1x1x32xf32> to vector<8x9x32xf32>
    %173 = arith.mulf %170, %172 : vector<8x9x32xf32>
    %174 = arith.addf %169, %173 : vector<8x9x32xf32>
    %175 = vector.extract_strided_slice %152 {offsets = [4, 0, 0], sizes = [8, 9, 32], strides = [1, 1, 1]} : vector<13x9x32xf32> to vector<8x9x32xf32>
    %176 = vector.extract_strided_slice %155 {offsets = [4, 0, 0], sizes = [1, 1, 32], strides = [1, 1, 1]} : vector<6x1x32xf32> to vector<1x1x32xf32>
    %177 = vector.broadcast %176 : vector<1x1x32xf32> to vector<8x9x32xf32>
    %178 = arith.mulf %175, %177 : vector<8x9x32xf32>
    %179 = arith.addf %174, %178 : vector<8x9x32xf32>
    %180 = vector.extract_strided_slice %152 {offsets = [5, 0, 0], sizes = [8, 9, 32], strides = [1, 1, 1]} : vector<13x9x32xf32> to vector<8x9x32xf32>
    %181 = vector.extract_strided_slice %155 {offsets = [5, 0, 0], sizes = [1, 1, 32], strides = [1, 1, 1]} : vector<6x1x32xf32> to vector<1x1x32xf32>
    %182 = vector.broadcast %181 : vector<1x1x32xf32> to vector<8x9x32xf32>
    %183 = arith.mulf %180, %182 : vector<8x9x32xf32>
    %184 = arith.addf %179, %183 : vector<8x9x32xf32>
    %185 = arith.addf %148, %184 : vector<8x9x32xf32>
    %c0_30 = arith.constant 0 : index
    %186 = arith.index_cast %1 : i32 to index
    %c5 = arith.constant 5 : index
    %c0_31 = arith.constant 0 : index
    %187 = vector.load %arg3[%c0_30, %186, %c5, %c0_31] : memref<1x21x14x32xbf16, #tpu.memory_space<vmem>>, vector<1x13x9x32xbf16>
    %188 = vector.shape_cast %187 : vector<1x13x9x32xbf16> to vector<13x9x32xbf16>
    %189 = arith.extf %188 : vector<13x9x32xbf16> to vector<13x9x32xf32>
    %c0_32 = arith.constant 0 : index
    %c0_33 = arith.constant 0 : index
    %c5_34 = arith.constant 5 : index
    %c0_35 = arith.constant 0 : index
    %190 = vector.load %arg4[%c0_32, %c0_33, %c5_34, %c0_35] : memref<1x6x6x32xbf16, #tpu.memory_space<vmem>>, vector<1x6x1x32xbf16>
    %191 = vector.shape_cast %190 : vector<1x6x1x32xbf16> to vector<6x1x32xbf16>
    %192 = arith.extf %191 : vector<6x1x32xbf16> to vector<6x1x32xf32>
    %193 = vector.extract_strided_slice %189 {offsets = [0, 0, 0], sizes = [8, 9, 32], strides = [1, 1, 1]} : vector<13x9x32xf32> to vector<8x9x32xf32>
    %194 = vector.extract_strided_slice %192 {offsets = [0, 0, 0], sizes = [1, 1, 32], strides = [1, 1, 1]} : vector<6x1x32xf32> to vector<1x1x32xf32>
    %195 = vector.broadcast %194 : vector<1x1x32xf32> to vector<8x9x32xf32>
    %196 = arith.mulf %193, %195 : vector<8x9x32xf32>
    %197 = vector.extract_strided_slice %189 {offsets = [1, 0, 0], sizes = [8, 9, 32], strides = [1, 1, 1]} : vector<13x9x32xf32> to vector<8x9x32xf32>
    %198 = vector.extract_strided_slice %192 {offsets = [1, 0, 0], sizes = [1, 1, 32], strides = [1, 1, 1]} : vector<6x1x32xf32> to vector<1x1x32xf32>
    %199 = vector.broadcast %198 : vector<1x1x32xf32> to vector<8x9x32xf32>
    %200 = arith.mulf %197, %199 : vector<8x9x32xf32>
    %201 = arith.addf %196, %200 : vector<8x9x32xf32>
    %202 = vector.extract_strided_slice %189 {offsets = [2, 0, 0], sizes = [8, 9, 32], strides = [1, 1, 1]} : vector<13x9x32xf32> to vector<8x9x32xf32>
    %203 = vector.extract_strided_slice %192 {offsets = [2, 0, 0], sizes = [1, 1, 32], strides = [1, 1, 1]} : vector<6x1x32xf32> to vector<1x1x32xf32>
    %204 = vector.broadcast %203 : vector<1x1x32xf32> to vector<8x9x32xf32>
    %205 = arith.mulf %202, %204 : vector<8x9x32xf32>
    %206 = arith.addf %201, %205 : vector<8x9x32xf32>
    %207 = vector.extract_strided_slice %189 {offsets = [3, 0, 0], sizes = [8, 9, 32], strides = [1, 1, 1]} : vector<13x9x32xf32> to vector<8x9x32xf32>
    %208 = vector.extract_strided_slice %192 {offsets = [3, 0, 0], sizes = [1, 1, 32], strides = [1, 1, 1]} : vector<6x1x32xf32> to vector<1x1x32xf32>
    %209 = vector.broadcast %208 : vector<1x1x32xf32> to vector<8x9x32xf32>
    %210 = arith.mulf %207, %209 : vector<8x9x32xf32>
    %211 = arith.addf %206, %210 : vector<8x9x32xf32>
    %212 = vector.extract_strided_slice %189 {offsets = [4, 0, 0], sizes = [8, 9, 32], strides = [1, 1, 1]} : vector<13x9x32xf32> to vector<8x9x32xf32>
    %213 = vector.extract_strided_slice %192 {offsets = [4, 0, 0], sizes = [1, 1, 32], strides = [1, 1, 1]} : vector<6x1x32xf32> to vector<1x1x32xf32>
    %214 = vector.broadcast %213 : vector<1x1x32xf32> to vector<8x9x32xf32>
    %215 = arith.mulf %212, %214 : vector<8x9x32xf32>
    %216 = arith.addf %211, %215 : vector<8x9x32xf32>
    %217 = vector.extract_strided_slice %189 {offsets = [5, 0, 0], sizes = [8, 9, 32], strides = [1, 1, 1]} : vector<13x9x32xf32> to vector<8x9x32xf32>
    %218 = vector.extract_strided_slice %192 {offsets = [5, 0, 0], sizes = [1, 1, 32], strides = [1, 1, 1]} : vector<6x1x32xf32> to vector<1x1x32xf32>
    %219 = vector.broadcast %218 : vector<1x1x32xf32> to vector<8x9x32xf32>
    %220 = arith.mulf %217, %219 : vector<8x9x32xf32>
    %221 = arith.addf %216, %220 : vector<8x9x32xf32>
    %222 = arith.addf %185, %221 : vector<8x9x32xf32>
    %223 = arith.truncf %222 : vector<8x9x32xf32> to vector<8x9x32xbf16>
    %c0_36 = arith.constant 0 : index
    %c0_37 = arith.constant 0 : index
    %c0_38 = arith.constant 0 : index
    %c0_39 = arith.constant 0 : index
    %224 = vector.load %arg5[%c0_36, %c0_37, %c0_38, %c0_39] : memref<1x8x9x32xbf16, #tpu.memory_space<vmem>>, vector<1x8x9x32xbf16>
    %225 = vector.shape_cast %224 : vector<1x8x9x32xbf16> to vector<8x9x32xbf16>
    %226 = vector.shape_cast %223 : vector<8x9x32xbf16> to vector<1x8x9x32xbf16>
    tpu.vector_store %arg5[%c0_36, %c0_37, %c0_38, %c0_39], %226 {strides = array<i32>} : memref<1x8x9x32xbf16, #tpu.memory_space<vmem>>, vector<1x8x9x32xbf16>,
    return
  }
  func.func @transform_0(%arg0: i32, %arg1: i32, %arg2: i32) -> (i32, i32, i32, i32) {
    %c0_i32 = arith.constant 0 : i32
    %c0_i32_0 = arith.constant 0 : i32
    %c0_i32_1 = arith.constant 0 : i32
    return %arg0, %c0_i32, %c0_i32_0, %arg1 : i32, i32, i32, i32
  }
  func.func @transform_1(%arg0: i32, %arg1: i32, %arg2: i32) -> (i32, i32, i32, i32) {
    %c0_i32 = arith.constant 0 : i32
    %c0_i32_0 = arith.constant 0 : i32
    %c0_i32_1 = arith.constant 0 : i32
    return %arg0, %c0_i32, %c0_i32_0, %arg1 : i32, i32, i32, i32
  }
  func.func @transform_2(%arg0: i32, %arg1: i32, %arg2: i32) -> (i32, i32, i32, i32) {
    %c0_i32 = arith.constant 0 : i32
    %c0_i32_0 = arith.constant 0 : i32
    return %arg0, %arg2, %c0_i32, %arg1 : i32, i32, i32, i32
  }
}

module attributes {stable_mosaic.version = 11 : i64} {
  func.func @_head_kernel(%arg0: i32, %arg1: memref<88x128xbf16, #tpu.memory_space<vmem>>, %arg2: memref<128x128xbf16, #tpu.memory_space<vmem>>, %arg3: memref<1x128xf32, #tpu.memory_space<vmem>>, %arg4: memref<1x128xf32, #tpu.memory_space<vmem>>, %arg5: memref<128x128xbf16, #tpu.memory_space<vmem>>, %arg6: memref<1x128xf32, #tpu.memory_space<vmem>>, %arg7: memref<88x128xf32, #tpu.memory_space<vmem>>) attributes {dimension_semantics = [#tpu.dimension_semantics<parallel>], iteration_bounds = array<i64: 2>, scalar_prefetch = 0 : i64, scratch_operands = 0 : i64, tpu.core_type = #tpu.core_type<tc>, window_params = [{transform_indices = @transform_0, window_bounds = array<i64: 88, 128>}, {pipeline_mode = #tpu.pipeline_mode<synchronous>, transform_indices = @transform_1, window_bounds = array<i64: 128, 128>}, {pipeline_mode = #tpu.pipeline_mode<synchronous>, transform_indices = @transform_2, window_bounds = array<i64: 1, 128>}, {pipeline_mode = #tpu.pipeline_mode<synchronous>, transform_indices = @transform_3, window_bounds = array<i64: 1, 128>}, {pipeline_mode = #tpu.pipeline_mode<synchronous>, transform_indices = @transform_4, window_bounds = array<i64: 128, 128>}, {pipeline_mode = #tpu.pipeline_mode<synchronous>, transform_indices = @transform_5, window_bounds = array<i64: 1, 128>}, {transform_indices = @transform_6, window_bounds = array<i64: 88, 128>}]} {
    %c0 = arith.constant 0 : index
    %c0_0 = arith.constant 0 : index
    %0 = vector.load %arg1[%c0, %c0_0] : memref<88x128xbf16, #tpu.memory_space<vmem>>, vector<88x128xbf16>
    %c0_1 = arith.constant 0 : index
    %c0_2 = arith.constant 0 : index
    %1 = vector.load %arg2[%c0_1, %c0_2] : memref<128x128xbf16, #tpu.memory_space<vmem>>, vector<128x128xbf16>
    %cst = arith.constant dense<0.000000e+00> : vector<88x128xf32>
    %2 = tpu.matmul %0, %1, %cst {dimension_numbers = #tpu.dot_dimension_numbers<[1], [0], [0], [1], [0, 0, 1, 1], [], []>} : vector<88x128xbf16>, vector<128x128xbf16>, vector<88x128xf32> -> vector<88x128xf32>
    %c0_3 = arith.constant 0 : index
    %c0_4 = arith.constant 0 : index
    %3 = vector.load %arg3[%c0_3, %c0_4] : memref<1x128xf32, #tpu.memory_space<vmem>>, vector<1x128xf32>
    %4 = vector.broadcast %3 : vector<1x128xf32> to vector<88x128xf32>
    %5 = arith.mulf %2, %4 : vector<88x128xf32>
    %c0_5 = arith.constant 0 : index
    %c0_6 = arith.constant 0 : index
    %6 = vector.load %arg4[%c0_5, %c0_6] : memref<1x128xf32, #tpu.memory_space<vmem>>, vector<1x128xf32>
    %7 = vector.broadcast %6 : vector<1x128xf32> to vector<88x128xf32>
    %8 = arith.addf %5, %7 : vector<88x128xf32>
    %cst_7 = arith.constant 0.000000e+00 : f32
    %9 = vector.broadcast %cst_7 : f32 to vector<88x128xf32>
    %10 = arith.maximumf %8, %9 : vector<88x128xf32>
    %11 = arith.truncf %10 : vector<88x128xf32> to vector<88x128xbf16>
    %c0_8 = arith.constant 0 : index
    %c0_9 = arith.constant 0 : index
    %12 = vector.load %arg5[%c0_8, %c0_9] : memref<128x128xbf16, #tpu.memory_space<vmem>>, vector<128x128xbf16>
    %cst_10 = arith.constant dense<0.000000e+00> : vector<88x128xf32>
    %13 = tpu.matmul %11, %12, %cst_10 {dimension_numbers = #tpu.dot_dimension_numbers<[1], [0], [0], [1], [0, 0, 1, 1], [], []>} : vector<88x128xbf16>, vector<128x128xbf16>, vector<88x128xf32> -> vector<88x128xf32>
    %c0_11 = arith.constant 0 : index
    %c0_12 = arith.constant 0 : index
    %14 = vector.load %arg6[%c0_11, %c0_12] : memref<1x128xf32, #tpu.memory_space<vmem>>, vector<1x128xf32>
    %15 = vector.broadcast %14 : vector<1x128xf32> to vector<88x128xf32>
    %16 = arith.addf %13, %15 : vector<88x128xf32>
    %c0_13 = arith.constant 0 : index
    %c0_14 = arith.constant 0 : index
    %17 = vector.load %arg7[%c0_13, %c0_14] : memref<88x128xf32, #tpu.memory_space<vmem>>, vector<88x128xf32>
    tpu.vector_store %arg7[%c0_13, %c0_14], %16 {strides = array<i32>} : memref<88x128xf32, #tpu.memory_space<vmem>>, vector<88x128xf32>,
    return
  }
  func.func @transform_0(%arg0: i32) -> (i32, i32) {
    %c0_i32 = arith.constant 0 : i32
    %c0_i32_0 = arith.constant 0 : i32
    return %arg0, %c0_i32 : i32, i32
  }
  func.func @transform_1(%arg0: i32) -> (i32, i32) {
    %c0_i32 = arith.constant 0 : i32
    %c0_i32_0 = arith.constant 0 : i32
    %c0_i32_1 = arith.constant 0 : i32
    return %c0_i32, %c0_i32_0 : i32, i32
  }
  func.func @transform_2(%arg0: i32) -> (i32, i32) {
    %c0_i32 = arith.constant 0 : i32
    %c0_i32_0 = arith.constant 0 : i32
    %c0_i32_1 = arith.constant 0 : i32
    return %c0_i32, %c0_i32_0 : i32, i32
  }
  func.func @transform_3(%arg0: i32) -> (i32, i32) {
    %c0_i32 = arith.constant 0 : i32
    %c0_i32_0 = arith.constant 0 : i32
    %c0_i32_1 = arith.constant 0 : i32
    return %c0_i32, %c0_i32_0 : i32, i32
  }
  func.func @transform_4(%arg0: i32) -> (i32, i32) {
    %c0_i32 = arith.constant 0 : i32
    %c0_i32_0 = arith.constant 0 : i32
    %c0_i32_1 = arith.constant 0 : i32
    return %c0_i32, %c0_i32_0 : i32, i32
  }
  func.func @transform_5(%arg0: i32) -> (i32, i32) {
    %c0_i32 = arith.constant 0 : i32
    %c0_i32_0 = arith.constant 0 : i32
    %c0_i32_1 = arith.constant 0 : i32
    return %c0_i32, %c0_i32_0 : i32, i32
  }
  func.func @transform_6(%arg0: i32) -> (i32, i32) {
    %c0_i32 = arith.constant 0 : i32
    %c0_i32_0 = arith.constant 0 : i32
    return %arg0, %c0_i32 : i32, i32
  }
}

</mosaic_0001>

<llo_original>
// kernel: depthwise_xcorr_forward.4
$region0: #{depthwise_xcorr_forward.4}
  #allocation0 [shape = 'u32[]', space=smem, size = 0x4, offset = 0x4, fixed_abs, tag = 'smem constant byte address 0x4 - core index']
  #allocation1 [shape = 'u32[72,128]{1,0:T(1,128)}', space=vmem, size = 0x9000, scoped, tag = 'internal scratch']
  #allocation2 [shape = 'f32[48,128]{1,0:T(8,128)}', space=vmem, size = 0x6000, scoped, tag = 'scratch operand']
  %s0 = inlined_call_operand.vmem [shape: bf16[2,72,128], index: 0, kind: input, shape index: {}]
  %s1 = inlined_call_operand.vmem [shape: bf16[9,128,128], index: 1, kind: input, shape index: {}]
  %s2 = inlined_call_operand.vmem [shape: f32[1,128], index: 2, kind: input, shape index: {}]
  %s3 = inlined_call_operand.vmem [shape: f32[1,128], index: 3, kind: input, shape index: {}]
  %s4 = inlined_call_operand.vmem [shape: bf16[2,48,128], index: 4, kind: output, shape index: {}]
  %s5 = sld [smem:[#allocation0]]
  $region49: #{depthwise_xcorr_forward.4} parent=0
    _
  %s7 = ssub.s32 1, %s5
  %s8 = scalar_select 0, %s7, %s5
  loop: start=0, step=1, limit=4
  $region2: #{depthwise_xcorr_forward.4} parent=0 // loop_pre_header
    _
  $region3: #{depthwise_xcorr_forward.4} parent=0 // loop_header
    %s10 = sphi 0, %s14
    %p11 = scmp.ge.s32.totalorder %s10, 4
    %s17 = sphi 0, %s29
    %s18 = sphi 0, %s25
    %s19 = sphi 0, %s17
    %s20 = sphi 0, %s18
    %s21 = sphi 0, %s19
    %s22 = sphi 0, %s20
    %s32 = sphi 0, %s34
    %s35 = sphi 0, %s32
    %s36 = sphi 0, %s35
    %s52 = sphi 0, %s36
    %s58 = sphi 0, %s60
    %s61 = sphi 0, %s58
    %s62 = sphi 0, %s61
    %s78 = sphi 0, %s62
    %s84 = sphi 0, %s86
    %s87 = sphi 0, %s84
    %s88 = sphi 0, %s87
    %s104 = sphi 0, %s88
    %s110 = sphi 0, %s112
    %s113 = sphi 0, %s110
    %s114 = sphi 0, %s113
    %s130 = sphi 0, %s114
    %s138 = sphi 0, %s140
    %s141 = sphi 0, %s138
    %s142 = sphi 0, %s141
    %s158 = sphi 0, %s142
  $region4: #{depthwise_xcorr_forward.4} parent=0 // loop_header_branch
    %13 = sbr.rel (%p11) target = $region8
  $region5: #{depthwise_xcorr_forward.4} parent=0 // loop_body
    %s15 = ssub.s32 %s10, 1
    %s16 = ssub.s32 %s10, 2
    %s23 = sadd.s32 1, %s18
    %p24 = scmp.ge.s32.totalorder %s23, 1
    %s25 = scalar_select %p24, 0, %s23
    %s26 = sadd.s32 1, %s17
    %s27 = scalar_select %p24, %s26, %s17
    %p28 = scmp.ge.s32.totalorder %s27, 2
    %s29 = scalar_select %p28, 0, %s27
    %s30 = ssub.s32 %s17, %s29
    %p31 = scmp.eq.s32.totalorder %s30, 0
    %s33 = sadd.s32 %s32, 1
    %s34 = scalar_select %p31, %s32, %s33
    %p37 = pneg %p31
    %p38 = scmp.eq.s32.totalorder %s10, 1
    %p39 = por %p37, %p38
    %p40 = scmp.ne.s32.totalorder %s32, %s35
    %p41 = scmp.eq.s32.totalorder %s10, 0
    %p42 = por %p40, %p41
    %p43 = scmp.ne.s32.totalorder %s32, %s35
    %p44 = scmp.eq.s32.totalorder %s15, 1
    %p45 = por %p43, %p44
    %p46 = scmp.ne.s32.totalorder %s35, %s36
    %p47 = scmp.eq.s32.totalorder %s15, 0
    %p48 = por %p46, %p47
    %p49 = scmp.ne.s32.totalorder %s35, %s36
    %p50 = scmp.eq.s32.totalorder %s16, 1
    %p51 = por %p49, %p50
    %p53 = scmp.ne.s32.totalorder %s36, %s52
    %p54 = scmp.eq.s32.totalorder %s16, 0
    %p55 = por %p53, %p54
    %s56 = ssub.s32 %s18, %s25
    %p57 = scmp.eq.s32.totalorder %s56, 0
    %s59 = sadd.s32 %s58, 1
    %s60 = scalar_select %p57, %s58, %s59
    %p63 = pneg %p57
    %p64 = scmp.eq.s32.totalorder %s10, 1
    %p65 = por %p63, %p64
    %p66 = scmp.ne.s32.totalorder %s58, %s61
    %p67 = scmp.eq.s32.totalorder %s10, 0
    %p68 = por %p66, %p67
    %p69 = scmp.ne.s32.totalorder %s58, %s61
    %p70 = scmp.eq.s32.totalorder %s15, 1
    %p71 = por %p69, %p70
    %p72 = scmp.ne.s32.totalorder %s61, %s62
    %p73 = scmp.eq.s32.totalorder %s15, 0
    %p74 = por %p72, %p73
    %p75 = scmp.ne.s32.totalorder %s61, %s62
    %p76 = scmp.eq.s32.totalorder %s16, 1
    %p77 = por %p75, %p76
    %p79 = scmp.ne.s32.totalorder %s62, %s78
    %p80 = scmp.eq.s32.totalorder %s16, 0
    %p81 = por %p79, %p80
    %s82 = ssub.s32 %s18, %s25
    %p83 = scmp.eq.s32.totalorder %s82, 0
    %s85 = sadd.s32 %s84, 1
    %s86 = scalar_select %p83, %s84, %s85
    %p89 = pneg %p83
    %p90 = scmp.eq.s32.totalorder %s10, 1
    %p91 = por %p89, %p90
    %p92 = scmp.ne.s32.totalorder %s84, %s87
    %p93 = scmp.eq.s32.totalorder %s10, 0
    %p94 = por %p92, %p93
    %p95 = scmp.ne.s32.totalorder %s84, %s87
    %p96 = scmp.eq.s32.totalorder %s15, 1
    %p97 = por %p95, %p96
    %p98 = scmp.ne.s32.totalorder %s87, %s88
    %p99 = scmp.eq.s32.totalorder %s15, 0
    %p100 = por %p98, %p99
    %p101 = scmp.ne.s32.totalorder %s87, %s88
    %p102 = scmp.eq.s32.totalorder %s16, 1
    %p103 = por %p101, %p102
    %p105 = scmp.ne.s32.totalorder %s88, %s104
    %p106 = scmp.eq.s32.totalorder %s16, 0
    %p107 = por %p105, %p106
    %s108 = ssub.s32 %s18, %s25
    %p109 = scmp.eq.s32.totalorder %s108, 0
    %s111 = sadd.s32 %s110, 1
    %s112 = scalar_select %p109, %s110, %s111
    %p115 = pneg %p109
    %p116 = scmp.eq.s32.totalorder %s10, 1
    %p117 = por %p115, %p116
    %p118 = scmp.ne.s32.totalorder %s110, %s113
    %p119 = scmp.eq.s32.totalorder %s10, 0
    %p120 = por %p118, %p119
    %p121 = scmp.ne.s32.totalorder %s110, %s113
    %p122 = scmp.eq.s32.totalorder %s15, 1
    %p123 = por %p121, %p122
    %p124 = scmp.ne.s32.totalorder %s113, %s114
    %p125 = scmp.eq.s32.totalorder %s15, 0
    %p126 = por %p124, %p125
    %p127 = scmp.ne.s32.totalorder %s113, %s114
    %p128 = scmp.eq.s32.totalorder %s16, 1
    %p129 = por %p127, %p128
    %p131 = scmp.ne.s32.totalorder %s114, %s130
    %p132 = scmp.eq.s32.totalorder %s16, 0
    %p133 = por %p131, %p132
    %s134 = ssub.s32 %s17, %s29
    %s135 = ssub.s32 %s18, %s25
    %s136 = sor.u32 %s134, %s135
    %p137 = scmp.eq.s32.totalorder %s136, 0
    %s139 = sadd.s32 %s138, 1
    %s140 = scalar_select %p137, %s138, %s139
    %p143 = pneg %p137
    %p144 = scmp.eq.s32.totalorder %s10, 1
    %p145 = por %p143, %p144
    %p146 = scmp.ne.s32.totalorder %s138, %s141
    %p147 = scmp.eq.s32.totalorder %s10, 0
    %p148 = por %p146, %p147
    %p149 = scmp.ne.s32.totalorder %s138, %s141
    %p150 = scmp.eq.s32.totalorder %s15, 1
    %p151 = por %p149, %p150
    %p152 = scmp.ne.s32.totalorder %s141, %s142
    %p153 = scmp.eq.s32.totalorder %s15, 0
    %p154 = por %p152, %p153
    %p155 = scmp.ne.s32.totalorder %s141, %s142
    %p156 = scmp.eq.s32.totalorder %s16, 1
    %p157 = por %p155, %p156
    %p159 = scmp.ne.s32.totalorder %s142, %s158
    %p160 = scmp.eq.s32.totalorder %s16, 0
    %p161 = por %p159, %p160
    %p162 = scmp.le.s32.totalorder 1, %s10
    %p163 = scmp.lt.s32.totalorder %s10, 3
    %p164 = pnand %p162, %p163
    %p165 = pneg %p164
    // Predicated region
    $region9: #{depthwise_xcorr_forward.4} parent=5 // pred_check
      _
    $region10: #{depthwise_xcorr_forward.4} parent=5 // pred_check_branch
      %167 = sbr.rel (%p164) target = $region12
    $region11: #{depthwise_xcorr_forward.4} parent=5 // pred_region
      %s168 = ssub.s32 %s10, 1
      // Predicated region
      $region13: #{depthwise_xcorr_forward.4} parent=11 // pred_check
        %p169 = pneg %p74
      $region14: #{depthwise_xcorr_forward.4} parent=11 // pred_check_branch
        %171 = sbr.rel (%p169) target = $region16
      $region15: #{depthwise_xcorr_forward.4} parent=11 // pred_region
        %p172 = scmp.lt.s32.totalorder %s20, 0
        %s173 = scalar_select %p172, %s20, 0
        %s174 = smul.addr %s173, 4
        %s175 = scalar_lea.vmem %s1, %s174
      $region16: #{depthwise_xcorr_forward.4} parent=11 // pred_fallthru
        _
      // Predicated region
      $region17: #{depthwise_xcorr_forward.4} parent=11 // pred_check
        %p176 = pneg %p100
      $region18: #{depthwise_xcorr_forward.4} parent=11 // pred_check_branch
        %178 = sbr.rel (%p176) target = $region20
      $region19: #{depthwise_xcorr_forward.4} parent=11 // pred_region
        %p179 = scmp.lt.s32.totalorder %s20, 0
        %s180 = scalar_select %p179, %s20, 0
        %s181 = scalar_lea.vmem %s2, %s180
      $region20: #{depthwise_xcorr_forward.4} parent=11 // pred_fallthru
        _
      // Predicated region
      $region21: #{depthwise_xcorr_forward.4} parent=11 // pred_check
        %p182 = pneg %p126
      $region22: #{depthwise_xcorr_forward.4} parent=11 // pred_check_branch
        %184 = sbr.rel (%p182) target = $region24
      $region23: #{depthwise_xcorr_forward.4} parent=11 // pred_region
        %p185 = scmp.lt.s32.totalorder %s20, 0
        %s186 = scalar_select %p185, %s20, 0
        %s187 = scalar_lea.vmem %s3, %s186
      $region24: #{depthwise_xcorr_forward.4} parent=11 // pred_fallthru
        _
    $region12: #{depthwise_xcorr_forward.4} parent=5 // pred_fallthru
      _
    %p188 = scmp.lt.s32.totalorder %s10, 2
    // Predicated region
    $region25: #{depthwise_xcorr_forward.4} parent=5 // pred_check
      %p189 = pneg %p188
    $region26: #{depthwise_xcorr_forward.4} parent=5 // pred_check_branch
      %191 = sbr.rel (%p189) target = $region28
    $region27: #{depthwise_xcorr_forward.4} parent=5 // pred_region
      // Predicated region
      $region29: #{depthwise_xcorr_forward.4} parent=27 // pred_check
        %p192 = pneg %p42
      $region30: #{depthwise_xcorr_forward.4} parent=27 // pred_check_branch
        %194 = sbr.rel (%p192) target = $region32
      $region31: #{depthwise_xcorr_forward.4} parent=27 // pred_region
        %p195 = scmp.lt.s32.totalorder %s17, 1
        %s196 = scalar_select %p195, %s17, 1
        %s197 = smul.addr %s196, 9
        %s198 = smul.addr %s197, 4
        %s199 = scalar_lea.vmem %s0, %s198
      $region32: #{depthwise_xcorr_forward.4} parent=27 // pred_fallthru
        _
    $region28: #{depthwise_xcorr_forward.4} parent=5 // pred_fallthru
      _
    %p200 = scmp.le.s32.totalorder 1, %s10
    %p201 = scmp.lt.s32.totalorder %s10, 3
    %p202 = pnand %p200, %p201
    %p203 = pneg %p202
    // Predicated region
    $region33: #{depthwise_xcorr_forward.4} parent=5 // pred_check
      _
    $region34: #{depthwise_xcorr_forward.4} parent=5 // pred_check_branch
      %205 = sbr.rel (%p202) target = $region36
    $region35: #{depthwise_xcorr_forward.4} parent=5 // pred_region
      %s206 = ssub.s32 %s10, 1
      %p207 = scmp.lt.s32.totalorder %s19, 1
      %s208 = scalar_select %p207, %s19, 1
      %s209 = smul.addr %s208, 9
      %s210 = smul.addr %s209, 4
      %s211 = scalar_lea.vmem %s0, %s210
      %p212 = pneg %p48
      %p213 = pneg %p45
      %p214 = scmp.lt.s32.totalorder %s20, 0
      %s215 = scalar_select %p214, %s20, 0
      %s216 = smul.addr %s215, 4
      %s217 = scalar_lea.vmem %s1, %s216
      %p218 = pneg %p74
      %p219 = pneg %p71
      %p220 = scmp.lt.s32.totalorder %s20, 0
      %s221 = scalar_select %p220, %s20, 0
      %s222 = scalar_lea.vmem %s2, %s221
      %p223 = pneg %p100
      %p224 = pneg %p97
      %p225 = scmp.lt.s32.totalorder %s20, 0
      %s226 = scalar_select %p225, %s20, 0
      %s227 = scalar_lea.vmem %s3, %s226
      %p228 = pneg %p126
      %p229 = pneg %p123
      %p230 = pneg %p154
      %p231 = pneg %p151
      %p232 = scmp.lt.s32.totalorder %s19, 1
      %s233 = scalar_select %p232, %s19, 1
      %p234 = scmp.lt.s32.totalorder %s20, 0
      %s235 = scalar_select %p234, %s20, 0
      %s236 = smul.addr %s233, 6
      %s237 = sadd.s32 %s235, %s236
      %s238 = smul.addr %s237, 4
      %s239 = scalar_lea.vmem %s4, %s238
      %p240 = scmp.lt.s32.totalorder %s19, 1
      %s241 = scalar_select %p240, %s19, 1
      %s242 = smul.addr %s241, 9
      %s243 = smul.addr %s242, 4
      %s244 = scalar_lea.vmem %s0, %s243
      %p245 = scmp.lt.s32.totalorder %s20, 0
      %s246 = scalar_select %p245, %s20, 0
      %s247 = smul.addr %s246, 4
      %s248 = scalar_lea.vmem %s1, %s247
      %p249 = scmp.lt.s32.totalorder %s20, 0
      %s250 = scalar_select %p249, %s20, 0
      %s251 = scalar_lea.vmem %s2, %s250
      %p252 = scmp.lt.s32.totalorder %s20, 0
      %s253 = scalar_select %p252, %s20, 0
      %s254 = scalar_lea.vmem %s3, %s253
      %p255 = scmp.lt.s32.totalorder %s19, 1
      %s256 = scalar_select %p255, %s19, 1
      %p257 = scmp.lt.s32.totalorder %s20, 0
      %s258 = scalar_select %p257, %s20, 0
      %s259 = smul.addr %s256, 6
      %s260 = sadd.s32 %s258, %s259
      %s261 = smul.addr %s260, 4
      %s262 = scalar_lea.vmem %s4, %s261
      %v263 = vld [vmem:[%s244] sm:$0xf]
      %v264 = vld [vmem:[%s244 + $0x4] sm:$0xf]
      %v265 = vld [vmem:[%s244 + $0x8] sm:$0xf]
      %v266 = vld [vmem:[%s244 + $0xc] sm:$0xf]
      %v267 = vld [vmem:[%s244 + $0x10] sm:$0xf]
      %v268 = vld [vmem:[%s244 + $0x14] sm:$0xf]
      %v269 = vld [vmem:[%s248] sm:$0xf]
      %v270 = vld [vmem:[%s248 + $0x4] sm:$0xf]
      %v271 = vld [vmem:[%s248 + $0x8] sm:$0xf]
      %v272 = vld [vmem:[%s248 + $0xc] sm:$0xf]
      %v273 = vld [vmem:[%s248 + $0x10] sm:$0xf]
      %v274 = vld [vmem:[%s248 + $0x14] sm:$0xf]
      %v275 = vld [vmem:[%s248 + $0x18] sm:$0xf]
      %v276 = vld [vmem:[%s248 + $0x1c] sm:$0xf]
      %v277 = vld [vmem:[%s248 + $0x20] sm:$0xf]
      %v278 = vld [vmem:[%s248 + $0x24] sm:$0xf]
      %v279 = vld [vmem:[%s248 + $0x28] sm:$0xf]
      %v280 = vld [vmem:[%s248 + $0x2c] sm:$0xf]
      %v281 = vld [vmem:[%s248 + $0x30] sm:$0xf]
      %v282 = vld [vmem:[%s248 + $0x34] sm:$0xf]
      %v283 = vld [vmem:[%s248 + $0x38] sm:$0xf]
      %v284 = vld [vmem:[%s248 + $0x3c] sm:$0xf]
      %v291 = vunpack.c.l.b16 %v263
      %v292 = vunpack.c.l.b16 %v264
      %v293 = vunpack.c.l.b16 %v265
      %v294 = vunpack.c.l.b16 %v266
      %v295 = vunpack.c.l.b16 %v267
      %v296 = vunpack.c.l.b16 %v268
      %v297 = vpack.c.b16 %v292, %v291
      %v298 = vpack.c.b16 %v294, %v293
      %v299 = vpack.c.b16 %v296, %v295
      %v319 = vunpack.c.l.b16 %v269
      %v320 = vunpack.c.l.b16 %v270
      %v321 = vunpack.c.l.b16 %v271
      %v322 = vunpack.c.l.b16 %v272
      %v323 = vunpack.c.l.b16 %v273
      %v324 = vunpack.c.l.b16 %v274
      %v325 = vunpack.c.l.b16 %v275
      %v326 = vunpack.c.l.b16 %v276
      %v327 = vunpack.c.l.b16 %v277
      %v328 = vunpack.c.l.b16 %v278
      %v329 = vunpack.c.l.b16 %v279
      %v330 = vunpack.c.l.b16 %v280
      %v331 = vunpack.c.l.b16 %v281
      %v332 = vunpack.c.l.b16 %v282
      %v333 = vunpack.c.l.b16 %v283
      %v334 = vunpack.c.l.b16 %v284
      %v335 = vpack.c.b16 %v320, %v319
      %v336 = vpack.c.b16 %v322, %v321
      %v337 = vpack.c.b16 %v324, %v323
      %v338 = vpack.c.b16 %v326, %v325
      %v339 = vpack.c.b16 %v328, %v327
      %v340 = vpack.c.b16 %v330, %v329
      %v341 = vpack.c.b16 %v332, %v331
      %v342 = vpack.c.b16 %v334, %v333
      %351 = vmatpush.bf16.msra.mxu0 %v342
      %352 = vmatpush.bf16.msra.mxu0 %v341
      %353 = vmatpush.bf16.msra.mxu0 %v340
      %354 = vmatpush.bf16.msra.mxu0 %v339
      %355 = vmatpush.bf16.msra.mxu0 %v338
      %356 = vmatpush.bf16.msra.mxu0 %v337
      %357 = vmatpush.bf16.msra.mxu0 %v336
      %358 = vmatpush.bf16.msra.mxu0 %v335
      %359 = vmatmul.bf16.gmra.mxu0 %v297
      %v360 = vpop.f32.mrf.mxu0
      %v361 = vadd.f32 0.0, %v360
      %v362 = vpop.f32.mrf.mxu0
      %v363 = vadd.f32 0.0, %v362
      %364 = vmatmul.bf16.gmra.mxu0 %v298
      %v365 = vpop.f32.mrf.mxu0
      %v366 = vadd.f32 0.0, %v365
      %v367 = vpop.f32.mrf.mxu0
      %v368 = vadd.f32 0.0, %v367
      %369 = vmatmul.bf16.gmra.mxu0 %v299
      %v370 = vpop.f32.mrf.mxu0
      %v371 = vadd.f32 0.0, %v370
      %v372 = vpop.f32.mrf.mxu0
      %v373 = vadd.f32 0.0, %v372
      %374 = vdwg.mxu0
      %375 = vst [vmem:[#allocation2] sm:$0xff] %v361
      %376 = vst [vmem:[#allocation2 + $0x8] sm:$0xff] %v363
      %377 = vst [vmem:[#allocation2 + $0x10] sm:$0xff] %v366
      %378 = vst [vmem:[#allocation2 + $0x18] sm:$0xff] %v368
      %379 = vst [vmem:[#allocation2 + $0x20] sm:$0xff] %v371
      %380 = vst [vmem:[#allocation2 + $0x28] sm:$0xff] %v373
      %v381 = vld [vmem:[%s244] sm:$0xf]
      %v382 = vld [vmem:[%s244 + $0x4] sm:$0xf]
      %v383 = vld [vmem:[%s244 + $0x8] sm:$0xf]
      %v384 = vld [vmem:[%s244 + $0xc] sm:$0xf]
      %v385 = vld [vmem:[%s244 + $0x10] sm:$0xf]
      %v386 = vld [vmem:[%s244 + $0x14] sm:$0xf]
      %v387 = vld [vmem:[%s244 + $0x18] sm:$0x1]
      %s388 = scalar_lea.vmem %s248, 64
      %v389 = vld [vmem:[%s388] sm:$0xf]
      %v390 = vld [vmem:[%s388 + $0x4] sm:$0xf]
      %v391 = vld [vmem:[%s388 + $0x8] sm:$0xf]
      %v392 = vld [vmem:[%s388 + $0xc] sm:$0xf]
      %v393 = vld [vmem:[%s388 + $0x10] sm:$0xf]
      %v394 = vld [vmem:[%s388 + $0x14] sm:$0xf]
      %v395 = vld [vmem:[%s388 + $0x18] sm:$0xf]
      %v396 = vld [vmem:[%s388 + $0x1c] sm:$0xf]
      %v397 = vld [vmem:[%s388 + $0x20] sm:$0xf]
      %v398 = vld [vmem:[%s388 + $0x24] sm:$0xf]
      %v399 = vld [vmem:[%s388 + $0x28] sm:$0xf]
      %v400 = vld [vmem:[%s388 + $0x2c] sm:$0xf]
      %v401 = vld [vmem:[%s388 + $0x30] sm:$0xf]
      %v402 = vld [vmem:[%s388 + $0x34] sm:$0xf]
      %v403 = vld [vmem:[%s388 + $0x38] sm:$0xf]
      %v404 = vld [vmem:[%s388 + $0x3c] sm:$0xf]
      %v412 = vunpack.c.l.b16 %v381
      %v413 = vunpack.c.l.b16 %v382
      %v414 = vunpack.c.l.b16 %v383
      %v415 = vunpack.c.l.b16 %v384
      %v416 = vunpack.c.l.b16 %v385
      %v417 = vunpack.c.l.b16 %v386
      %v418 = vunpack.c.l.b16 %v387
      %v419 = vpack.c.b16 %v413, %v412
      %v420 = vpack.c.b16 %v415, %v414
      %v421 = vpack.c.b16 %v417, %v416
      %v422 = vpack.c.b16 %v418, %v418
      %vm423 = vsmask.f32 7424
      %v425 = vshrl.u32 %v419, 16
      %v427 = vshll.u32 %v419, 16
      %v429 = vrot.slane %v427, 1
      %v430 = vor.u32 %v425, %v429
      %v432 = vshll.u32 %v420, 16
      %v434 = vrot.slane %v432, 1
      %v435 = vsel %vm423, %v430, %v434
      %v436 = vshrl.u32 %v420, 16
      %v438 = vor.u32 %v436, %v434
      %v440 = vshll.u32 %v421, 16
      %v442 = vrot.slane %v440, 1
      %v443 = vsel %vm423, %v438, %v442
      %v444 = vshrl.u32 %v421, 16
      %v446 = vor.u32 %v444, %v442
      %v448 = vshll.u32 %v422, 16
      %v450 = vrot.slane %v448, 1
      %v451 = vsel %vm423, %v446, %v450
      %v471 = vunpack.c.l.b16 %v389
      %v472 = vunpack.c.l.b16 %v390
      %v473 = vunpack.c.l.b16 %v391
      %v474 = vunpack.c.l.b16 %v392
      %v475 = vunpack.c.l.b16 %v393
      %v476 = vunpack.c.l.b16 %v394
      %v477 = vunpack.c.l.b16 %v395
      %v478 = vunpack.c.l.b16 %v396
      %v479 = vunpack.c.l.b16 %v397
      %v480 = vunpack.c.l.b16 %v398
      %v481 = vunpack.c.l.b16 %v399
      %v482 = vunpack.c.l.b16 %v400
      %v483 = vunpack.c.l.b16 %v401
      %v484 = vunpack.c.l.b16 %v402
      %v485 = vunpack.c.l.b16 %v403
      %v486 = vunpack.c.l.b16 %v404
      %v487 = vpack.c.b16 %v472, %v471
      %v488 = vpack.c.b16 %v474, %v473
      %v489 = vpack.c.b16 %v476, %v475
      %v490 = vpack.c.b16 %v478, %v477
      %v491 = vpack.c.b16 %v480, %v479
      %v492 = vpack.c.b16 %v482, %v481
      %v493 = vpack.c.b16 %v484, %v483
      %v494 = vpack.c.b16 %v486, %v485
      %503 = vmatpush.bf16.msra.mxu0 %v494
      %504 = vmatpush.bf16.msra.mxu0 %v493
      %505 = vmatpush.bf16.msra.mxu0 %v492
      %506 = vmatpush.bf16.msra.mxu0 %v491
      %507 = vmatpush.bf16.msra.mxu0 %v490
      %508 = vmatpush.bf16.msra.mxu0 %v489
      %509 = vmatpush.bf16.msra.mxu0 %v488
      %510 = vmatpush.bf16.msra.mxu0 %v487
      %511 = vmatmul.bf16.gmra.mxu0 %v435
      %v512 = vpop.f32.mrf.mxu0
      %v513 = vadd.f32 0.0, %v512
      %v514 = vpop.f32.mrf.mxu0
      %v515 = vadd.f32 0.0, %v514
      %516 = vmatmul.bf16.gmra.mxu0 %v443
      %v517 = vpop.f32.mrf.mxu0
      %v518 = vadd.f32 0.0, %v517
      %v519 = vpop.f32.mrf.mxu0
      %v520 = vadd.f32 0.0, %v519
      %521 = vmatmul.bf16.gmra.mxu0 %v451
      %v522 = vpop.f32.mrf.mxu0
      %v523 = vadd.f32 0.0, %v522
      %v524 = vpop.f32.mrf.mxu0
      %v525 = vadd.f32 0.0, %v524
      %526 = vdwg.mxu0
      %v527 = vld [vmem:[#allocation2] sm:$0xff]
      %v528 = vld [vmem:[#allocation2 + $0x8] sm:$0xff]
      %v529 = vld [vmem:[#allocation2 + $0x10] sm:$0xff]
      %v530 = vld [vmem:[#allocation2 + $0x18] sm:$0xff]
      %v531 = vld [vmem:[#allocation2 + $0x20] sm:$0xff]
      %v532 = vld [vmem:[#allocation2 + $0x28] sm:$0xff]
      %v533 = vadd.f32 %v527, %v513
      %v534 = vadd.f32 %v528, %v515
      %v535 = vadd.f32 %v529, %v518
      %v536 = vadd.f32 %v530, %v520
      %v537 = vadd.f32 %v531, %v523
      %v538 = vadd.f32 %v532, %v525
      %539 = vst [vmem:[#allocation2] sm:$0xff] %v533
      %540 = vst [vmem:[#allocation2 + $0x8] sm:$0xff] %v534
      %541 = vst [vmem:[#allocation2 + $0x10] sm:$0xff] %v535
      %542 = vst [vmem:[#allocation2 + $0x18] sm:$0xff] %v536
      %543 = vst [vmem:[#allocation2 + $0x20] sm:$0xff] %v537
      %544 = vst [vmem:[#allocation2 + $0x28] sm:$0xff] %v538
      %v545 = vld [vmem:[%s244] sm:$0xe]
      %v546 = vld [vmem:[%s244 + $0x4] sm:$0xf]
      %v547 = vld [vmem:[%s244 + $0x8] sm:$0xf]
      %v548 = vld [vmem:[%s244 + $0xc] sm:$0xf]
      %v549 = vld [vmem:[%s244 + $0x10] sm:$0xf]
      %v550 = vld [vmem:[%s244 + $0x14] sm:$0xf]
      %v551 = vld [vmem:[%s244 + $0x18] sm:$0x1]
      %s552 = scalar_lea.vmem %s248, 128
      %v553 = vld [vmem:[%s552] sm:$0xf]
      %v554 = vld [vmem:[%s552 + $0x4] sm:$0xf]
      %v555 = vld [vmem:[%s552 + $0x8] sm:$0xf]
      %v556 = vld [vmem:[%s552 + $0xc] sm:$0xf]
      %v557 = vld [vmem:[%s552 + $0x10] sm:$0xf]
      %v558 = vld [vmem:[%s552 + $0x14] sm:$0xf]
      %v559 = vld [vmem:[%s552 + $0x18] sm:$0xf]
      %v560 = vld [vmem:[%s552 + $0x1c] sm:$0xf]
      %v561 = vld [vmem:[%s552 + $0x20] sm:$0xf]
      %v562 = vld [vmem:[%s552 + $0x24] sm:$0xf]
      %v563 = vld [vmem:[%s552 + $0x28] sm:$0xf]
      %v564 = vld [vmem:[%s552 + $0x2c] sm:$0xf]
      %v565 = vld [vmem:[%s552 + $0x30] sm:$0xf]
      %v566 = vld [vmem:[%s552 + $0x34] sm:$0xf]
      %v567 = vld [vmem:[%s552 + $0x38] sm:$0xf]
      %v568 = vld [vmem:[%s552 + $0x3c] sm:$0xf]
      %v576 = vunpack.c.l.b16 %v545
      %v577 = vunpack.c.l.b16 %v546
      %v578 = vunpack.c.l.b16 %v547
      %v579 = vunpack.c.l.b16 %v548
      %v580 = vunpack.c.l.b16 %v549
      %v581 = vunpack.c.l.b16 %v550
      %v582 = vunpack.c.l.b16 %v551
      %v583 = vpack.c.b16 %v577, %v576
      %v584 = vpack.c.b16 %v579, %v578
      %v585 = vpack.c.b16 %v581, %v580
      %v586 = vpack.c.b16 %v582, %v582
      %vm587 = vcmask 1046528
      %v588 = vrot.slane %v583, 1
      %v589 = vrot.slane %v584, 1
      %v590 = vsel %vm587, %v588, %v589
      %v591 = vrot.slane %v585, 1
      %v592 = vsel %vm587, %v589, %v591
      %v593 = vrot.slane %v586, 1
      %v594 = vsel %vm587, %v591, %v593
      %v614 = vunpack.c.l.b16 %v553
      %v615 = vunpack.c.l.b16 %v554
      %v616 = vunpack.c.l.b16 %v555
      %v617 = vunpack.c.l.b16 %v556
      %v618 = vunpack.c.l.b16 %v557
      %v619 = vunpack.c.l.b16 %v558
      %v620 = vunpack.c.l.b16 %v559
      %v621 = vunpack.c.l.b16 %v560
      %v622 = vunpack.c.l.b16 %v561
      %v623 = vunpack.c.l.b16 %v562
      %v624 = vunpack.c.l.b16 %v563
      %v625 = vunpack.c.l.b16 %v564
      %v626 = vunpack.c.l.b16 %v565
      %v627 = vunpack.c.l.b16 %v566
      %v628 = vunpack.c.l.b16 %v567
      %v629 = vunpack.c.l.b16 %v568
      %v630 = vpack.c.b16 %v615, %v614
      %v631 = vpack.c.b16 %v617, %v616
      %v632 = vpack.c.b16 %v619, %v618
      %v633 = vpack.c.b16 %v621, %v620
      %v634 = vpack.c.b16 %v623, %v622
      %v635 = vpack.c.b16 %v625, %v624
      %v636 = vpack.c.b16 %v627, %v626
      %v637 = vpack.c.b16 %v629, %v628
      %646 = vmatpush.bf16.msra.mxu0 %v637
      %647 = vmatpush.bf16.msra.mxu0 %v636
      %648 = vmatpush.bf16.msra.mxu0 %v635
      %649 = vmatpush.bf16.msra.mxu0 %v634
      %650 = vmatpush.bf16.msra.mxu0 %v633
      %651 = vmatpush.bf16.msra.mxu0 %v632
      %652 = vmatpush.bf16.msra.mxu0 %v631
      %653 = vmatpush.bf16.msra.mxu0 %v630
      %654 = vmatmul.bf16.gmra.mxu0 %v590
      %v655 = vpop.f32.mrf.mxu0
      %v656 = vadd.f32 0.0, %v655
      %v657 = vpop.f32.mrf.mxu0
      %v658 = vadd.f32 0.0, %v657
      %659 = vmatmul.bf16.gmra.mxu0 %v592
      %v660 = vpop.f32.mrf.mxu0
      %v661 = vadd.f32 0.0, %v660
      %v662 = vpop.f32.mrf.mxu0
      %v663 = vadd.f32 0.0, %v662
      %664 = vmatmul.bf16.gmra.mxu0 %v594
      %v665 = vpop.f32.mrf.mxu0
      %v666 = vadd.f32 0.0, %v665
      %v667 = vpop.f32.mrf.mxu0
      %v668 = vadd.f32 0.0, %v667
      %669 = vdwg.mxu0
      %v670 = vld [vmem:[#allocation2] sm:$0xff]
      %v671 = vld [vmem:[#allocation2 + $0x8] sm:$0xff]
      %v672 = vld [vmem:[#allocation2 + $0x10] sm:$0xff]
      %v673 = vld [vmem:[#allocation2 + $0x18] sm:$0xff]
      %v674 = vld [vmem:[#allocation2 + $0x20] sm:$0xff]
      %v675 = vld [vmem:[#allocation2 + $0x28] sm:$0xff]
      %v676 = vadd.f32 %v670, %v656
      %v677 = vadd.f32 %v671, %v658
      %v678 = vadd.f32 %v672, %v661
      %v679 = vadd.f32 %v673, %v663
      %v680 = vadd.f32 %v674, %v666
      %v681 = vadd.f32 %v675, %v668
      %682 = vst [vmem:[#allocation2] sm:$0xff] %v676
      %683 = vst [vmem:[#allocation2 + $0x8] sm:$0xff] %v677
      %684 = vst [vmem:[#allocation2 + $0x10] sm:$0xff] %v678
      %685 = vst [vmem:[#allocation2 + $0x18] sm:$0xff] %v679
      %686 = vst [vmem:[#allocation2 + $0x20] sm:$0xff] %v680
      %687 = vst [vmem:[#allocation2 + $0x28] sm:$0xff] %v681
      %v688 = vld [vmem:[%s244 + $0x4] sm:$0xf]
      %v689 = vld [vmem:[%s244 + $0x8] sm:$0xf]
      %v690 = vld [vmem:[%s244 + $0xc] sm:$0xf]
      %v691 = vld [vmem:[%s244 + $0x10] sm:$0xf]
      %v692 = vld [vmem:[%s244 + $0x14] sm:$0xf]
      %v693 = vld [vmem:[%s244 + $0x18] sm:$0xf]
      %s694 = scalar_lea.vmem %s248, 192
      %v695 = vld [vmem:[%s694] sm:$0xf]
      %v696 = vld [vmem:[%s694 + $0x4] sm:$0xf]
      %v697 = vld [vmem:[%s694 + $0x8] sm:$0xf]
      %v698 = vld [vmem:[%s694 + $0xc] sm:$0xf]
      %v699 = vld [vmem:[%s694 + $0x10] sm:$0xf]
      %v700 = vld [vmem:[%s694 + $0x14] sm:$0xf]
      %v701 = vld [vmem:[%s694 + $0x18] sm:$0xf]
      %v702 = vld [vmem:[%s694 + $0x1c] sm:$0xf]
      %v703 = vld [vmem:[%s694 + $0x20] sm:$0xf]
      %v704 = vld [vmem:[%s694 + $0x24] sm:$0xf]
      %v705 = vld [vmem:[%s694 + $0x28] sm:$0xf]
      %v706 = vld [vmem:[%s694 + $0x2c] sm:$0xf]
      %v707 = vld [vmem:[%s694 + $0x30] sm:$0xf]
      %v708 = vld [vmem:[%s694 + $0x34] sm:$0xf]
      %v709 = vld [vmem:[%s694 + $0x38] sm:$0xf]
      %v710 = vld [vmem:[%s694 + $0x3c] sm:$0xf]
      %v717 = vunpack.c.l.b16 %v688
      %v718 = vunpack.c.l.b16 %v689
      %v719 = vunpack.c.l.b16 %v690
      %v720 = vunpack.c.l.b16 %v691
      %v721 = vunpack.c.l.b16 %v692
      %v722 = vunpack.c.l.b16 %v693
      %v723 = vpack.c.b16 %v718, %v717
      %v724 = vpack.c.b16 %v720, %v719
      %v725 = vpack.c.b16 %v722, %v721
      %v745 = vunpack.c.l.b16 %v695
      %v746 = vunpack.c.l.b16 %v696
      %v747 = vunpack.c.l.b16 %v697
      %v748 = vunpack.c.l.b16 %v698
      %v749 = vunpack.c.l.b16 %v699
      %v750 = vunpack.c.l.b16 %v700
      %v751 = vunpack.c.l.b16 %v701
      %v752 = vunpack.c.l.b16 %v702
      %v753 = vunpack.c.l.b16 %v703
      %v754 = vunpack.c.l.b16 %v704
      %v755 = vunpack.c.l.b16 %v705
      %v756 = vunpack.c.l.b16 %v706
      %v757 = vunpack.c.l.b16 %v707
      %v758 = vunpack.c.l.b16 %v708
      %v759 = vunpack.c.l.b16 %v709
      %v760 = vunpack.c.l.b16 %v710
      %v761 = vpack.c.b16 %v746, %v745
      %v762 = vpack.c.b16 %v748, %v747
      %v763 = vpack.c.b16 %v750, %v749
      %v764 = vpack.c.b16 %v752, %v751
      %v765 = vpack.c.b16 %v754, %v753
      %v766 = vpack.c.b16 %v756, %v755
      %v767 = vpack.c.b16 %v758, %v757
      %v768 = vpack.c.b16 %v760, %v759
      %777 = vmatpush.bf16.msra.mxu0 %v768
      %778 = vmatpush.bf16.msra.mxu0 %v767
      %779 = vmatpush.bf16.msra.mxu0 %v766
      %780 = vmatpush.bf16.msra.mxu0 %v765
      %781 = vmatpush.bf16.msra.mxu0 %v764
      %782 = vmatpush.bf16.msra.mxu0 %v763
      %783 = vmatpush.bf16.msra.mxu0 %v762
      %784 = vmatpush.bf16.msra.mxu0 %v761
      %785 = vmatmul.bf16.gmra.mxu0 %v723
      %v786 = vpop.f32.mrf.mxu0
      %v787 = vadd.f32 0.0, %v786
      %v788 = vpop.f32.mrf.mxu0
      %v789 = vadd.f32 0.0, %v788
      %790 = vmatmul.bf16.gmra.mxu0 %v724
      %v791 = vpop.f32.mrf.mxu0
      %v792 = vadd.f32 0.0, %v791
      %v793 = vpop.f32.mrf.mxu0
      %v794 = vadd.f32 0.0, %v793
      %795 = vmatmul.bf16.gmra.mxu0 %v725
      %v796 = vpop.f32.mrf.mxu0
      %v797 = vadd.f32 0.0, %v796
      %v798 = vpop.f32.mrf.mxu0
      %v799 = vadd.f32 0.0, %v798
      %800 = vdwg.mxu0
      %v801 = vld [vmem:[#allocation2] sm:$0xff]
      %v802 = vld [vmem:[#allocation2 + $0x8] sm:$0xff]
      %v803 = vld [vmem:[#allocation2 + $0x10] sm:$0xff]
      %v804 = vld [vmem:[#allocation2 + $0x18] sm:$0xff]
      %v805 = vld [vmem:[#allocation2 + $0x20] sm:$0xff]
      %v806 = vld [vmem:[#allocation2 + $0x28] sm:$0xff]
      %v807 = vadd.f32 %v801, %v787
      %v808 = vadd.f32 %v802, %v789
      %v809 = vadd.f32 %v803, %v792
      %v810 = vadd.f32 %v804, %v794
      %v811 = vadd.f32 %v805, %v797
      %v812 = vadd.f32 %v806, %v799
      %813 = vst [vmem:[#allocation2] sm:$0xff] %v807
      %814 = vst [vmem:[#allocation2 + $0x8] sm:$0xff] %v808
      %815 = vst [vmem:[#allocation2 + $0x10] sm:$0xff] %v809
      %816 = vst [vmem:[#allocation2 + $0x18] sm:$0xff] %v810
      %817 = vst [vmem:[#allocation2 + $0x20] sm:$0xff] %v811
      %818 = vst [vmem:[#allocation2 + $0x28] sm:$0xff] %v812
      %v819 = vld [vmem:[%s244 + $0x4] sm:$0xf]
      %v820 = vld [vmem:[%s244 + $0x8] sm:$0xf]
      %v821 = vld [vmem:[%s244 + $0xc] sm:$0xf]
      %v822 = vld [vmem:[%s244 + $0x10] sm:$0xf]
      %v823 = vld [vmem:[%s244 + $0x14] sm:$0xf]
      %v824 = vld [vmem:[%s244 + $0x18] sm:$0xf]
      %v825 = vld [vmem:[%s244 + $0x1c] sm:$0x1]
      %s826 = scalar_lea.vmem %s248, 256
      %v827 = vld [vmem:[%s826] sm:$0xf]
      %v828 = vld [vmem:[%s826 + $0x4] sm:$0xf]
      %v829 = vld [vmem:[%s826 + $0x8] sm:$0xf]
      %v830 = vld [vmem:[%s826 + $0xc] sm:$0xf]
      %v831 = vld [vmem:[%s826 + $0x10] sm:$0xf]
      %v832 = vld [vmem:[%s826 + $0x14] sm:$0xf]
      %v833 = vld [vmem:[%s826 + $0x18] sm:$0xf]
      %v834 = vld [vmem:[%s826 + $0x1c] sm:$0xf]
      %v835 = vld [vmem:[%s826 + $0x20] sm:$0xf]
      %v836 = vld [vmem:[%s826 + $0x24] sm:$0xf]
      %v837 = vld [vmem:[%s826 + $0x28] sm:$0xf]
      %v838 = vld [vmem:[%s826 + $0x2c] sm:$0xf]
      %v839 = vld [vmem:[%s826 + $0x30] sm:$0xf]
      %v840 = vld [vmem:[%s826 + $0x34] sm:$0xf]
      %v841 = vld [vmem:[%s826 + $0x38] sm:$0xf]
      %v842 = vld [vmem:[%s826 + $0x3c] sm:$0xf]
      %v850 = vunpack.c.l.b16 %v819
      %v851 = vunpack.c.l.b16 %v820
      %v852 = vunpack.c.l.b16 %v821
      %v853 = vunpack.c.l.b16 %v822
      %v854 = vunpack.c.l.b16 %v823
      %v855 = vunpack.c.l.b16 %v824
      %v856 = vunpack.c.l.b16 %v825
      %v857 = vpack.c.b16 %v851, %v850
      %v858 = vpack.c.b16 %v853, %v852
      %v859 = vpack.c.b16 %v855, %v854
      %v860 = vpack.c.b16 %v856, %v856
      %v862 = vshrl.u32 %v857, 16
      %v864 = vshll.u32 %v857, 16
      %v866 = vrot.slane %v864, 1
      %v867 = vor.u32 %v862, %v866
      %v869 = vshll.u32 %v858, 16
      %v871 = vrot.slane %v869, 1
      %v872 = vsel %vm423, %v867, %v871
      %v873 = vshrl.u32 %v858, 16
      %v875 = vor.u32 %v873, %v871
      %v877 = vshll.u32 %v859, 16
      %v879 = vrot.slane %v877, 1
      %v880 = vsel %vm423, %v875, %v879
      %v881 = vshrl.u32 %v859, 16
      %v883 = vor.u32 %v881, %v879
      %v885 = vshll.u32 %v860, 16
      %v887 = vrot.slane %v885, 1
      %v888 = vsel %vm423, %v883, %v887
      %v908 = vunpack.c.l.b16 %v827
      %v909 = vunpack.c.l.b16 %v828
      %v910 = vunpack.c.l.b16 %v829
      %v911 = vunpack.c.l.b16 %v830
      %v912 = vunpack.c.l.b16 %v831
      %v913 = vunpack.c.l.b16 %v832
      %v914 = vunpack.c.l.b16 %v833
      %v915 = vunpack.c.l.b16 %v834
      %v916 = vunpack.c.l.b16 %v835
      %v917 = vunpack.c.l.b16 %v836
      %v918 = vunpack.c.l.b16 %v837
      %v919 = vunpack.c.l.b16 %v838
      %v920 = vunpack.c.l.b16 %v839
      %v921 = vunpack.c.l.b16 %v840
      %v922 = vunpack.c.l.b16 %v841
      %v923 = vunpack.c.l.b16 %v842
      %v924 = vpack.c.b16 %v909, %v908
      %v925 = vpack.c.b16 %v911, %v910
      %v926 = vpack.c.b16 %v913, %v912
      %v927 = vpack.c.b16 %v915, %v914
      %v928 = vpack.c.b16 %v917, %v916
      %v929 = vpack.c.b16 %v919, %v918
      %v930 = vpack.c.b16 %v921, %v920
      %v931 = vpack.c.b16 %v923, %v922
      %940 = vmatpush.bf16.msra.mxu0 %v931
      %941 = vmatpush.bf16.msra.mxu0 %v930
      %942 = vmatpush.bf16.msra.mxu0 %v929
      %943 = vmatpush.bf16.msra.mxu0 %v928
      %944 = vmatpush.bf16.msra.mxu0 %v927
      %945 = vmatpush.bf16.msra.mxu0 %v926
      %946 = vmatpush.bf16.msra.mxu0 %v925
      %947 = vmatpush.bf16.msra.mxu0 %v924
      %948 = vmatmul.bf16.gmra.mxu0 %v872
      %v949 = vpop.f32.mrf.mxu0
      %v950 = vadd.f32 0.0, %v949
      %v951 = vpop.f32.mrf.mxu0
      %v952 = vadd.f32 0.0, %v951
      %953 = vmatmul.bf16.gmra.mxu0 %v880
      %v954 = vpop.f32.mrf.mxu0
      %v955 = vadd.f32 0.0, %v954
      %v956 = vpop.f32.mrf.mxu0
      %v957 = vadd.f32 0.0, %v956
      %958 = vmatmul.bf16.gmra.mxu0 %v888
      %v959 = vpop.f32.mrf.mxu0
      %v960 = vadd.f32 0.0, %v959
      %v961 = vpop.f32.mrf.mxu0
      %v962 = vadd.f32 0.0, %v961
      %963 = vdwg.mxu0
      %v964 = vld [vmem:[#allocation2] sm:$0xff]
      %v965 = vld [vmem:[#allocation2 + $0x8] sm:$0xff]
      %v966 = vld [vmem:[#allocation2 + $0x10] sm:$0xff]
      %v967 = vld [vmem:[#allocation2 + $0x18] sm:$0xff]
      %v968 = vld [vmem:[#allocation2 + $0x20] sm:$0xff]
      %v969 = vld [vmem:[#allocation2 + $0x28] sm:$0xff]
      %v970 = vadd.f32 %v964, %v950
      %v971 = vadd.f32 %v965, %v952
      %v972 = vadd.f32 %v966, %v955
      %v973 = vadd.f32 %v967, %v957
      %v974 = vadd.f32 %v968, %v960
      %v975 = vadd.f32 %v969, %v962
      %976 = vst [vmem:[#allocation2] sm:$0xff] %v970
      %977 = vst [vmem:[#allocation2 + $0x8] sm:$0xff] %v971
      %978 = vst [vmem:[#allocation2 + $0x10] sm:$0xff] %v972
      %979 = vst [vmem:[#allocation2 + $0x18] sm:$0xff] %v973
      %980 = vst [vmem:[#allocation2 + $0x20] sm:$0xff] %v974
      %981 = vst [vmem:[#allocation2 + $0x28] sm:$0xff] %v975
      %v982 = vld [vmem:[%s244 + $0x4] sm:$0xe]
      %v983 = vld [vmem:[%s244 + $0x8] sm:$0xf]
      %v984 = vld [vmem:[%s244 + $0xc] sm:$0xf]
      %v985 = vld [vmem:[%s244 + $0x10] sm:$0xf]
      %v986 = vld [vmem:[%s244 + $0x14] sm:$0xf]
      %v987 = vld [vmem:[%s244 + $0x18] sm:$0xf]
      %v988 = vld [vmem:[%s244 + $0x1c] sm:$0x1]
      %s989 = scalar_lea.vmem %s248, 320
      %v990 = vld [vmem:[%s989] sm:$0xf]
      %v991 = vld [vmem:[%s989 + $0x4] sm:$0xf]
      %v992 = vld [vmem:[%s989 + $0x8] sm:$0xf]
      %v993 = vld [vmem:[%s989 + $0xc] sm:$0xf]
      %v994 = vld [vmem:[%s989 + $0x10] sm:$0xf]
      %v995 = vld [vmem:[%s989 + $0x14] sm:$0xf]
      %v996 = vld [vmem:[%s989 + $0x18] sm:$0xf]
      %v997 = vld [vmem:[%s989 + $0x1c] sm:$0xf]
      %v998 = vld [vmem:[%s989 + $0x20] sm:$0xf]
      %v999 = vld [vmem:[%s989 + $0x24] sm:$0xf]
      %v1000 = vld [vmem:[%s989 + $0x28] sm:$0xf]
      %v1001 = vld [vmem:[%s989 + $0x2c] sm:$0xf]
      %v1002 = vld [vmem:[%s989 + $0x30] sm:$0xf]
      %v1003 = vld [vmem:[%s989 + $0x34] sm:$0xf]
      %v1004 = vld [vmem:[%s989 + $0x38] sm:$0xf]
      %v1005 = vld [vmem:[%s989 + $0x3c] sm:$0xf]
      %v1013 = vunpack.c.l.b16 %v982
      %v1014 = vunpack.c.l.b16 %v983
      %v1015 = vunpack.c.l.b16 %v984
      %v1016 = vunpack.c.l.b16 %v985
      %v1017 = vunpack.c.l.b16 %v986
      %v1018 = vunpack.c.l.b16 %v987
      %v1019 = vunpack.c.l.b16 %v988
      %v1020 = vpack.c.b16 %v1014, %v1013
      %v1021 = vpack.c.b16 %v1016, %v1015
      %v1022 = vpack.c.b16 %v1018, %v1017
      %v1023 = vpack.c.b16 %v1019, %v1019
      %v1024 = vrot.slane %v1020, 1
      %v1025 = vrot.slane %v1021, 1
      %v1026 = vsel %vm587, %v1024, %v1025
      %v1027 = vrot.slane %v1022, 1
      %v1028 = vsel %vm587, %v1025, %v1027
      %v1029 = vrot.slane %v1023, 1
      %v1030 = vsel %vm587, %v1027, %v1029
      %v1050 = vunpack.c.l.b16 %v990
      %v1051 = vunpack.c.l.b16 %v991
      %v1052 = vunpack.c.l.b16 %v992
      %v1053 = vunpack.c.l.b16 %v993
      %v1054 = vunpack.c.l.b16 %v994
      %v1055 = vunpack.c.l.b16 %v995
      %v1056 = vunpack.c.l.b16 %v996
      %v1057 = vunpack.c.l.b16 %v997
      %v1058 = vunpack.c.l.b16 %v998
      %v1059 = vunpack.c.l.b16 %v999
      %v1060 = vunpack.c.l.b16 %v1000
      %v1061 = vunpack.c.l.b16 %v1001
      %v1062 = vunpack.c.l.b16 %v1002
      %v1063 = vunpack.c.l.b16 %v1003
      %v1064 = vunpack.c.l.b16 %v1004
      %v1065 = vunpack.c.l.b16 %v1005
      %v1066 = vpack.c.b16 %v1051, %v1050
      %v1067 = vpack.c.b16 %v1053, %v1052
      %v1068 = vpack.c.b16 %v1055, %v1054
      %v1069 = vpack.c.b16 %v1057, %v1056
      %v1070 = vpack.c.b16 %v1059, %v1058
      %v1071 = vpack.c.b16 %v1061, %v1060
      %v1072 = vpack.c.b16 %v1063, %v1062
      %v1073 = vpack.c.b16 %v1065, %v1064
      %1082 = vmatpush.bf16.msra.mxu0 %v1073
      %1083 = vmatpush.bf16.msra.mxu0 %v1072
      %1084 = vmatpush.bf16.msra.mxu0 %v1071
      %1085 = vmatpush.bf16.msra.mxu0 %v1070
      %1086 = vmatpush.bf16.msra.mxu0 %v1069
      %1087 = vmatpush.bf16.msra.mxu0 %v1068
      %1088 = vmatpush.bf16.msra.mxu0 %v1067
      %1089 = vmatpush.bf16.msra.mxu0 %v1066
      %1090 = vmatmul.bf16.gmra.mxu0 %v1026
      %v1091 = vpop.f32.mrf.mxu0
      %v1092 = vadd.f32 0.0, %v1091
      %v1093 = vpop.f32.mrf.mxu0
      %v1094 = vadd.f32 0.0, %v1093
      %1095 = vmatmul.bf16.gmra.mxu0 %v1028
      %v1096 = vpop.f32.mrf.mxu0
      %v1097 = vadd.f32 0.0, %v1096
      %v1098 = vpop.f32.mrf.mxu0
      %v1099 = vadd.f32 0.0, %v1098
      %1100 = vmatmul.bf16.gmra.mxu0 %v1030
      %v1101 = vpop.f32.mrf.mxu0
      %v1102 = vadd.f32 0.0, %v1101
      %v1103 = vpop.f32.mrf.mxu0
      %v1104 = vadd.f32 0.0, %v1103
      %1105 = vdwg.mxu0
      %v1106 = vld [vmem:[#allocation2] sm:$0xff]
      %v1107 = vld [vmem:[#allocation2 + $0x8] sm:$0xff]
      %v1108 = vld [vmem:[#allocation2 + $0x10] sm:$0xff]
      %v1109 = vld [vmem:[#allocation2 + $0x18] sm:$0xff]
      %v1110 = vld [vmem:[#allocation2 + $0x20] sm:$0xff]
      %v1111 = vld [vmem:[#allocation2 + $0x28] sm:$0xff]
      %v1112 = vadd.f32 %v1106, %v1092
      %v1113 = vadd.f32 %v1107, %v1094
      %v1114 = vadd.f32 %v1108, %v1097
      %v1115 = vadd.f32 %v1109, %v1099
      %v1116 = vadd.f32 %v1110, %v1102
      %v1117 = vadd.f32 %v1111, %v1104
      %1118 = vst [vmem:[#allocation2] sm:$0xff] %v1112
      %1119 = vst [vmem:[#allocation2 + $0x8] sm:$0xff] %v1113
      %1120 = vst [vmem:[#allocation2 + $0x10] sm:$0xff] %v1114
      %1121 = vst [vmem:[#allocation2 + $0x18] sm:$0xff] %v1115
      %1122 = vst [vmem:[#allocation2 + $0x20] sm:$0xff] %v1116
      %1123 = vst [vmem:[#allocation2 + $0x28] sm:$0xff] %v1117
      %v1124 = vld [vmem:[%s244 + $0x8] sm:$0xf]
      %v1125 = vld [vmem:[%s244 + $0xc] sm:$0xf]
      %v1126 = vld [vmem:[%s244 + $0x10] sm:$0xf]
      %v1127 = vld [vmem:[%s244 + $0x14] sm:$0xf]
      %v1128 = vld [vmem:[%s244 + $0x18] sm:$0xf]
      %v1129 = vld [vmem:[%s244 + $0x1c] sm:$0xf]
      %s1130 = scalar_lea.vmem %s248, 384
      %v1131 = vld [vmem:[%s1130] sm:$0xf]
      %v1132 = vld [vmem:[%s1130 + $0x4] sm:$0xf]
      %v1133 = vld [vmem:[%s1130 + $0x8] sm:$0xf]
      %v1134 = vld [vmem:[%s1130 + $0xc] sm:$0xf]
      %v1135 = vld [vmem:[%s1130 + $0x10] sm:$0xf]
      %v1136 = vld [vmem:[%s1130 + $0x14] sm:$0xf]
      %v1137 = vld [vmem:[%s1130 + $0x18] sm:$0xf]
      %v1138 = vld [vmem:[%s1130 + $0x1c] sm:$0xf]
      %v1139 = vld [vmem:[%s1130 + $0x20] sm:$0xf]
      %v1140 = vld [vmem:[%s1130 + $0x24] sm:$0xf]
      %v1141 = vld [vmem:[%s1130 + $0x28] sm:$0xf]
      %v1142 = vld [vmem:[%s1130 + $0x2c] sm:$0xf]
      %v1143 = vld [vmem:[%s1130 + $0x30] sm:$0xf]
      %v1144 = vld [vmem:[%s1130 + $0x34] sm:$0xf]
      %v1145 = vld [vmem:[%s1130 + $0x38] sm:$0xf]
      %v1146 = vld [vmem:[%s1130 + $0x3c] sm:$0xf]
      %v1153 = vunpack.c.l.b16 %v1124
      %v1154 = vunpack.c.l.b16 %v1125
      %v1155 = vunpack.c.l.b16 %v1126
      %v1156 = vunpack.c.l.b16 %v1127
      %v1157 = vunpack.c.l.b16 %v1128
      %v1158 = vunpack.c.l.b16 %v1129
      %v1159 = vpack.c.b16 %v1154, %v1153
      %v1160 = vpack.c.b16 %v1156, %v1155
      %v1161 = vpack.c.b16 %v1158, %v1157
      %v1181 = vunpack.c.l.b16 %v1131
      %v1182 = vunpack.c.l.b16 %v1132
      %v1183 = vunpack.c.l.b16 %v1133
      %v1184 = vunpack.c.l.b16 %v1134
      %v1185 = vunpack.c.l.b16 %v1135
      %v1186 = vunpack.c.l.b16 %v1136
      %v1187 = vunpack.c.l.b16 %v1137
      %v1188 = vunpack.c.l.b16 %v1138
      %v1189 = vunpack.c.l.b16 %v1139
      %v1190 = vunpack.c.l.b16 %v1140
      %v1191 = vunpack.c.l.b16 %v1141
      %v1192 = vunpack.c.l.b16 %v1142
      %v1193 = vunpack.c.l.b16 %v1143
      %v1194 = vunpack.c.l.b16 %v1144
      %v1195 = vunpack.c.l.b16 %v1145
      %v1196 = vunpack.c.l.b16 %v1146
      %v1197 = vpack.c.b16 %v1182, %v1181
      %v1198 = vpack.c.b16 %v1184, %v1183
      %v1199 = vpack.c.b16 %v1186, %v1185
      %v1200 = vpack.c.b16 %v1188, %v1187
      %v1201 = vpack.c.b16 %v1190, %v1189
      %v1202 = vpack.c.b16 %v1192, %v1191
      %v1203 = vpack.c.b16 %v1194, %v1193
      %v1204 = vpack.c.b16 %v1196, %v1195
      %1213 = vmatpush.bf16.msra.mxu0 %v1204
      %1214 = vmatpush.bf16.msra.mxu0 %v1203
      %1215 = vmatpush.bf16.msra.mxu0 %v1202
      %1216 = vmatpush.bf16.msra.mxu0 %v1201
      %1217 = vmatpush.bf16.msra.mxu0 %v1200
      %1218 = vmatpush.bf16.msra.mxu0 %v1199
      %1219 = vmatpush.bf16.msra.mxu0 %v1198
      %1220 = vmatpush.bf16.msra.mxu0 %v1197
      %1221 = vmatmul.bf16.gmra.mxu0 %v1159
      %v1222 = vpop.f32.mrf.mxu0
      %v1223 = vadd.f32 0.0, %v1222
      %v1224 = vpop.f32.mrf.mxu0
      %v1225 = vadd.f32 0.0, %v1224
      %1226 = vmatmul.bf16.gmra.mxu0 %v1160
      %v1227 = vpop.f32.mrf.mxu0
      %v1228 = vadd.f32 0.0, %v1227
      %v1229 = vpop.f32.mrf.mxu0
      %v1230 = vadd.f32 0.0, %v1229
      %1231 = vmatmul.bf16.gmra.mxu0 %v1161
      %v1232 = vpop.f32.mrf.mxu0
      %v1233 = vadd.f32 0.0, %v1232
      %v1234 = vpop.f32.mrf.mxu0
      %v1235 = vadd.f32 0.0, %v1234
      %1236 = vdwg.mxu0
      %v1237 = vld [vmem:[#allocation2] sm:$0xff]
      %v1238 = vld [vmem:[#allocation2 + $0x8] sm:$0xff]
      %v1239 = vld [vmem:[#allocation2 + $0x10] sm:$0xff]
      %v1240 = vld [vmem:[#allocation2 + $0x18] sm:$0xff]
      %v1241 = vld [vmem:[#allocation2 + $0x20] sm:$0xff]
      %v1242 = vld [vmem:[#allocation2 + $0x28] sm:$0xff]
      %v1243 = vadd.f32 %v1237, %v1223
      %v1244 = vadd.f32 %v1238, %v1225
      %v1245 = vadd.f32 %v1239, %v1228
      %v1246 = vadd.f32 %v1240, %v1230
      %v1247 = vadd.f32 %v1241, %v1233
      %v1248 = vadd.f32 %v1242, %v1235
      %1249 = vst [vmem:[#allocation2] sm:$0xff] %v1243
      %1250 = vst [vmem:[#allocation2 + $0x8] sm:$0xff] %v1244
      %1251 = vst [vmem:[#allocation2 + $0x10] sm:$0xff] %v1245
      %1252 = vst [vmem:[#allocation2 + $0x18] sm:$0xff] %v1246
      %1253 = vst [vmem:[#allocation2 + $0x20] sm:$0xff] %v1247
      %1254 = vst [vmem:[#allocation2 + $0x28] sm:$0xff] %v1248
      %v1255 = vld [vmem:[%s244 + $0x8] sm:$0xf]
      %v1256 = vld [vmem:[%s244 + $0xc] sm:$0xf]
      %v1257 = vld [vmem:[%s244 + $0x10] sm:$0xf]
      %v1258 = vld [vmem:[%s244 + $0x14] sm:$0xf]
      %v1259 = vld [vmem:[%s244 + $0x18] sm:$0xf]
      %v1260 = vld [vmem:[%s244 + $0x1c] sm:$0xf]
      %v1261 = vld [vmem:[%s244 + $0x20] sm:$0x1]
      %s1262 = scalar_lea.vmem %s248, 448
      %v1263 = vld [vmem:[%s1262] sm:$0xf]
      %v1264 = vld [vmem:[%s1262 + $0x4] sm:$0xf]
      %v1265 = vld [vmem:[%s1262 + $0x8] sm:$0xf]
      %v1266 = vld [vmem:[%s1262 + $0xc] sm:$0xf]
      %v1267 = vld [vmem:[%s1262 + $0x10] sm:$0xf]
      %v1268 = vld [vmem:[%s1262 + $0x14] sm:$0xf]
      %v1269 = vld [vmem:[%s1262 + $0x18] sm:$0xf]
      %v1270 = vld [vmem:[%s1262 + $0x1c] sm:$0xf]
      %v1271 = vld [vmem:[%s1262 + $0x20] sm:$0xf]
      %v1272 = vld [vmem:[%s1262 + $0x24] sm:$0xf]
      %v1273 = vld [vmem:[%s1262 + $0x28] sm:$0xf]
      %v1274 = vld [vmem:[%s1262 + $0x2c] sm:$0xf]
      %v1275 = vld [vmem:[%s1262 + $0x30] sm:$0xf]
      %v1276 = vld [vmem:[%s1262 + $0x34] sm:$0xf]
      %v1277 = vld [vmem:[%s1262 + $0x38] sm:$0xf]
      %v1278 = vld [vmem:[%s1262 + $0x3c] sm:$0xf]
      %v1286 = vunpack.c.l.b16 %v1255
      %v1287 = vunpack.c.l.b16 %v1256
      %v1288 = vunpack.c.l.b16 %v1257
      %v1289 = vunpack.c.l.b16 %v1258
      %v1290 = vunpack.c.l.b16 %v1259
      %v1291 = vunpack.c.l.b16 %v1260
      %v1292 = vunpack.c.l.b16 %v1261
      %v1293 = vpack.c.b16 %v1287, %v1286
      %v1294 = vpack.c.b16 %v1289, %v1288
      %v1295 = vpack.c.b16 %v1291, %v1290
      %v1296 = vpack.c.b16 %v1292, %v1292
      %v1298 = vshrl.u32 %v1293, 16
      %v1300 = vshll.u32 %v1293, 16
      %v1302 = vrot.slane %v1300, 1
      %v1303 = vor.u32 %v1298, %v1302
      %v1305 = vshll.u32 %v1294, 16
      %v1307 = vrot.slane %v1305, 1
      %v1308 = vsel %vm423, %v1303, %v1307
      %v1309 = vshrl.u32 %v1294, 16
      %v1311 = vor.u32 %v1309, %v1307
      %v1313 = vshll.u32 %v1295, 16
      %v1315 = vrot.slane %v1313, 1
      %v1316 = vsel %vm423, %v1311, %v1315
      %v1317 = vshrl.u32 %v1295, 16
      %v1319 = vor.u32 %v1317, %v1315
      %v1321 = vshll.u32 %v1296, 16
      %v1323 = vrot.slane %v1321, 1
      %v1324 = vsel %vm423, %v1319, %v1323
      %v1344 = vunpack.c.l.b16 %v1263
      %v1345 = vunpack.c.l.b16 %v1264
      %v1346 = vunpack.c.l.b16 %v1265
      %v1347 = vunpack.c.l.b16 %v1266
      %v1348 = vunpack.c.l.b16 %v1267
      %v1349 = vunpack.c.l.b16 %v1268
      %v1350 = vunpack.c.l.b16 %v1269
      %v1351 = vunpack.c.l.b16 %v1270
      %v1352 = vunpack.c.l.b16 %v1271
      %v1353 = vunpack.c.l.b16 %v1272
      %v1354 = vunpack.c.l.b16 %v1273
      %v1355 = vunpack.c.l.b16 %v1274
      %v1356 = vunpack.c.l.b16 %v1275
      %v1357 = vunpack.c.l.b16 %v1276
      %v1358 = vunpack.c.l.b16 %v1277
      %v1359 = vunpack.c.l.b16 %v1278
      %v1360 = vpack.c.b16 %v1345, %v1344
      %v1361 = vpack.c.b16 %v1347, %v1346
      %v1362 = vpack.c.b16 %v1349, %v1348
      %v1363 = vpack.c.b16 %v1351, %v1350
      %v1364 = vpack.c.b16 %v1353, %v1352
      %v1365 = vpack.c.b16 %v1355, %v1354
      %v1366 = vpack.c.b16 %v1357, %v1356
      %v1367 = vpack.c.b16 %v1359, %v1358
      %1376 = vmatpush.bf16.msra.mxu0 %v1367
      %1377 = vmatpush.bf16.msra.mxu0 %v1366
      %1378 = vmatpush.bf16.msra.mxu0 %v1365
      %1379 = vmatpush.bf16.msra.mxu0 %v1364
      %1380 = vmatpush.bf16.msra.mxu0 %v1363
      %1381 = vmatpush.bf16.msra.mxu0 %v1362
      %1382 = vmatpush.bf16.msra.mxu0 %v1361
      %1383 = vmatpush.bf16.msra.mxu0 %v1360
      %1384 = vmatmul.bf16.gmra.mxu0 %v1308
      %v1385 = vpop.f32.mrf.mxu0
      %v1386 = vadd.f32 0.0, %v1385
      %v1387 = vpop.f32.mrf.mxu0
      %v1388 = vadd.f32 0.0, %v1387
      %1389 = vmatmul.bf16.gmra.mxu0 %v1316
      %v1390 = vpop.f32.mrf.mxu0
      %v1391 = vadd.f32 0.0, %v1390
      %v1392 = vpop.f32.mrf.mxu0
      %v1393 = vadd.f32 0.0, %v1392
      %1394 = vmatmul.bf16.gmra.mxu0 %v1324
      %v1395 = vpop.f32.mrf.mxu0
      %v1396 = vadd.f32 0.0, %v1395
      %v1397 = vpop.f32.mrf.mxu0
      %v1398 = vadd.f32 0.0, %v1397
      %1399 = vdwg.mxu0
      %v1400 = vld [vmem:[#allocation2] sm:$0xff]
      %v1401 = vld [vmem:[#allocation2 + $0x8] sm:$0xff]
      %v1402 = vld [vmem:[#allocation2 + $0x10] sm:$0xff]
      %v1403 = vld [vmem:[#allocation2 + $0x18] sm:$0xff]
      %v1404 = vld [vmem:[#allocation2 + $0x20] sm:$0xff]
      %v1405 = vld [vmem:[#allocation2 + $0x28] sm:$0xff]
      %v1406 = vadd.f32 %v1400, %v1386
      %v1407 = vadd.f32 %v1401, %v1388
      %v1408 = vadd.f32 %v1402, %v1391
      %v1409 = vadd.f32 %v1403, %v1393
      %v1410 = vadd.f32 %v1404, %v1396
      %v1411 = vadd.f32 %v1405, %v1398
      %1412 = vst [vmem:[#allocation2] sm:$0xff] %v1406
      %1413 = vst [vmem:[#allocation2 + $0x8] sm:$0xff] %v1407
      %1414 = vst [vmem:[#allocation2 + $0x10] sm:$0xff] %v1408
      %1415 = vst [vmem:[#allocation2 + $0x18] sm:$0xff] %v1409
      %1416 = vst [vmem:[#allocation2 + $0x20] sm:$0xff] %v1410
      %1417 = vst [vmem:[#allocation2 + $0x28] sm:$0xff] %v1411
      %v1418 = vld [vmem:[%s244 + $0x8] sm:$0xe]
      %v1419 = vld [vmem:[%s244 + $0xc] sm:$0xf]
      %v1420 = vld [vmem:[%s244 + $0x10] sm:$0xf]
      %v1421 = vld [vmem:[%s244 + $0x14] sm:$0xf]
      %v1422 = vld [vmem:[%s244 + $0x18] sm:$0xf]
      %v1423 = vld [vmem:[%s244 + $0x1c] sm:$0xf]
      %v1424 = vld [vmem:[%s244 + $0x20] sm:$0x1]
      %s1425 = scalar_lea.vmem %s248, 512
      %v1426 = vld [vmem:[%s1425] sm:$0xf]
      %v1427 = vld [vmem:[%s1425 + $0x4] sm:$0xf]
      %v1428 = vld [vmem:[%s1425 + $0x8] sm:$0xf]
      %v1429 = vld [vmem:[%s1425 + $0xc] sm:$0xf]
      %v1430 = vld [vmem:[%s1425 + $0x10] sm:$0xf]
      %v1431 = vld [vmem:[%s1425 + $0x14] sm:$0xf]
      %v1432 = vld [vmem:[%s1425 + $0x18] sm:$0xf]
      %v1433 = vld [vmem:[%s1425 + $0x1c] sm:$0xf]
      %v1434 = vld [vmem:[%s1425 + $0x20] sm:$0xf]
      %v1435 = vld [vmem:[%s1425 + $0x24] sm:$0xf]
      %v1436 = vld [vmem:[%s1425 + $0x28] sm:$0xf]
      %v1437 = vld [vmem:[%s1425 + $0x2c] sm:$0xf]
      %v1438 = vld [vmem:[%s1425 + $0x30] sm:$0xf]
      %v1439 = vld [vmem:[%s1425 + $0x34] sm:$0xf]
      %v1440 = vld [vmem:[%s1425 + $0x38] sm:$0xf]
      %v1441 = vld [vmem:[%s1425 + $0x3c] sm:$0xf]
      %v1449 = vunpack.c.l.b16 %v1418
      %v1450 = vunpack.c.l.b16 %v1419
      %v1451 = vunpack.c.l.b16 %v1420
      %v1452 = vunpack.c.l.b16 %v1421
      %v1453 = vunpack.c.l.b16 %v1422
      %v1454 = vunpack.c.l.b16 %v1423
      %v1455 = vunpack.c.l.b16 %v1424
      %v1456 = vpack.c.b16 %v1450, %v1449
      %v1457 = vpack.c.b16 %v1452, %v1451
      %v1458 = vpack.c.b16 %v1454, %v1453
      %v1459 = vpack.c.b16 %v1455, %v1455
      %v1460 = vrot.slane %v1456, 1
      %v1461 = vrot.slane %v1457, 1
      %v1462 = vsel %vm587, %v1460, %v1461
      %v1463 = vrot.slane %v1458, 1
      %v1464 = vsel %vm587, %v1461, %v1463
      %v1465 = vrot.slane %v1459, 1
      %v1466 = vsel %vm587, %v1463, %v1465
      %v1486 = vunpack.c.l.b16 %v1426
      %v1487 = vunpack.c.l.b16 %v1427
      %v1488 = vunpack.c.l.b16 %v1428
      %v1489 = vunpack.c.l.b16 %v1429
      %v1490 = vunpack.c.l.b16 %v1430
      %v1491 = vunpack.c.l.b16 %v1431
      %v1492 = vunpack.c.l.b16 %v1432
      %v1493 = vunpack.c.l.b16 %v1433
      %v1494 = vunpack.c.l.b16 %v1434
      %v1495 = vunpack.c.l.b16 %v1435
      %v1496 = vunpack.c.l.b16 %v1436
      %v1497 = vunpack.c.l.b16 %v1437
      %v1498 = vunpack.c.l.b16 %v1438
      %v1499 = vunpack.c.l.b16 %v1439
      %v1500 = vunpack.c.l.b16 %v1440
      %v1501 = vunpack.c.l.b16 %v1441
      %v1502 = vpack.c.b16 %v1487, %v1486
      %v1503 = vpack.c.b16 %v1489, %v1488
      %v1504 = vpack.c.b16 %v1491, %v1490
      %v1505 = vpack.c.b16 %v1493, %v1492
      %v1506 = vpack.c.b16 %v1495, %v1494
      %v1507 = vpack.c.b16 %v1497, %v1496
      %v1508 = vpack.c.b16 %v1499, %v1498
      %v1509 = vpack.c.b16 %v1501, %v1500
      %1518 = vmatpush.bf16.msra.mxu0 %v1509
      %1519 = vmatpush.bf16.msra.mxu0 %v1508
      %1520 = vmatpush.bf16.msra.mxu0 %v1507
      %1521 = vmatpush.bf16.msra.mxu0 %v1506
      %1522 = vmatpush.bf16.msra.mxu0 %v1505
      %1523 = vmatpush.bf16.msra.mxu0 %v1504
      %1524 = vmatpush.bf16.msra.mxu0 %v1503
      %1525 = vmatpush.bf16.msra.mxu0 %v1502
      %1526 = vmatmul.bf16.gmra.mxu0 %v1462
      %v1527 = vpop.f32.mrf.mxu0
      %v1528 = vadd.f32 0.0, %v1527
      %v1529 = vpop.f32.mrf.mxu0
      %v1530 = vadd.f32 0.0, %v1529
      %1531 = vmatmul.bf16.gmra.mxu0 %v1464
      %v1532 = vpop.f32.mrf.mxu0
      %v1533 = vadd.f32 0.0, %v1532
      %v1534 = vpop.f32.mrf.mxu0
      %v1535 = vadd.f32 0.0, %v1534
      %1536 = vmatmul.bf16.gmra.mxu0 %v1466
      %v1537 = vpop.f32.mrf.mxu0
      %v1538 = vadd.f32 0.0, %v1537
      %v1539 = vpop.f32.mrf.mxu0
      %v1540 = vadd.f32 0.0, %v1539
      %1541 = vdwg.mxu0
      %v1542 = vld [vmem:[#allocation2] sm:$0xff]
      %v1543 = vld [vmem:[#allocation2 + $0x8] sm:$0xff]
      %v1544 = vld [vmem:[#allocation2 + $0x10] sm:$0xff]
      %v1545 = vld [vmem:[#allocation2 + $0x18] sm:$0xff]
      %v1546 = vld [vmem:[#allocation2 + $0x20] sm:$0xff]
      %v1547 = vld [vmem:[#allocation2 + $0x28] sm:$0xff]
      %v1548 = vadd.f32 %v1542, %v1528
      %v1549 = vadd.f32 %v1543, %v1530
      %v1550 = vadd.f32 %v1544, %v1533
      %v1551 = vadd.f32 %v1545, %v1535
      %v1552 = vadd.f32 %v1546, %v1538
      %v1553 = vadd.f32 %v1547, %v1540
      %1554 = vst [vmem:[#allocation2] sm:$0xff] %v1548
      %1555 = vst [vmem:[#allocation2 + $0x8] sm:$0xff] %v1549
      %1556 = vst [vmem:[#allocation2 + $0x10] sm:$0xff] %v1550
      %1557 = vst [vmem:[#allocation2 + $0x18] sm:$0xff] %v1551
      %1558 = vst [vmem:[#allocation2 + $0x20] sm:$0xff] %v1552
      %1559 = vst [vmem:[#allocation2 + $0x28] sm:$0xff] %v1553
      %v1560 = vld [vmem:[#allocation2] sm:$0xff]
      %v1561 = vld [vmem:[#allocation2 + $0x8] sm:$0xff]
      %v1562 = vld [vmem:[#allocation2 + $0x10] sm:$0xff]
      %v1563 = vld [vmem:[#allocation2 + $0x18] sm:$0xff]
      %v1564 = vld [vmem:[#allocation2 + $0x20] sm:$0xff]
      %v1565 = vld [vmem:[#allocation2 + $0x28] sm:$0xff]
      %v1566 = vld [vmem:[%s251] sm:$0x1]
      %v1568 = vperm.slane %v1566, 0
      %v1570 = vmul.f32 %v1560, %v1568
      %v1571 = vmul.f32 %v1561, %v1568
      %v1572 = vmul.f32 %v1562, %v1568
      %v1573 = vmul.f32 %v1563, %v1568
      %v1574 = vmul.f32 %v1564, %v1568
      %v1575 = vmul.f32 %v1565, %v1568
      %v1576 = vld [vmem:[%s254] sm:$0x1]
      %v1578 = vperm.slane %v1576, 0
      %v1580 = vadd.f32 %v1570, %v1578
      %v1581 = vadd.f32 %v1571, %v1578
      %v1582 = vadd.f32 %v1572, %v1578
      %v1583 = vadd.f32 %v1573, %v1578
      %v1584 = vadd.f32 %v1574, %v1578
      %v1585 = vadd.f32 %v1575, %v1578
      %v1586 = vmax.f32 %v1580, 0.0
      %v1587 = vmax.f32 %v1581, 0.0
      %v1588 = vmax.f32 %v1582, 0.0
      %v1589 = vmax.f32 %v1583, 0.0
      %v1590 = vmax.f32 %v1584, 0.0
      %v1591 = vmax.f32 %v1585, 0.0
      %v1592 = vpack.c.bf16 %v1586, %v1586
      %v1593 = vpack.c.bf16 %v1587, %v1587
      %v1594 = vpack.c.bf16 %v1588, %v1588
      %v1595 = vpack.c.bf16 %v1589, %v1589
      %v1596 = vpack.c.bf16 %v1590, %v1590
      %v1597 = vpack.c.bf16 %v1591, %v1591
      %1598 = vst [vmem:[%s262] sm:$0xf] %v1592
      %1599 = vst [vmem:[%s262 + $0x4] sm:$0xf] %v1593
      %1600 = vst [vmem:[%s262 + $0x8] sm:$0xf] %v1594
      %1601 = vst [vmem:[%s262 + $0xc] sm:$0xf] %v1595
      %1602 = vst [vmem:[%s262 + $0x10] sm:$0xf] %v1596
      %1603 = vst [vmem:[%s262 + $0x14] sm:$0xf] %v1597
      %p1604 = scmp.lt.s32.totalorder %s19, 1
      %s1605 = scalar_select %p1604, %s19, 1
      %p1606 = scmp.lt.s32.totalorder %s20, 0
      %s1607 = scalar_select %p1606, %s20, 0
      %s1608 = smul.addr %s1605, 6
      %s1609 = sadd.s32 %s1607, %s1608
      %s1610 = smul.addr %s1609, 4
      %s1611 = scalar_lea.vmem %s4, %s1610
      // Predicated region
      $region37: #{depthwise_xcorr_forward.4} parent=35 // pred_check
        %p1612 = pneg %p151
      $region38: #{depthwise_xcorr_forward.4} parent=35 // pred_check_branch
        %1614 = sbr.rel (%p1612) target = $region40
      $region39: #{depthwise_xcorr_forward.4} parent=35 // pred_region
        _
      $region40: #{depthwise_xcorr_forward.4} parent=35 // pred_fallthru
        _
    $region36: #{depthwise_xcorr_forward.4} parent=5 // pred_fallthru
      _
    %p1615 = scmp.le.s32.totalorder 2, %s10
    // Predicated region
    $region41: #{depthwise_xcorr_forward.4} parent=5 // pred_check
      %p1616 = pneg %p1615
    $region42: #{depthwise_xcorr_forward.4} parent=5 // pred_check_branch
      %1618 = sbr.rel (%p1616) target = $region44
    $region43: #{depthwise_xcorr_forward.4} parent=5 // pred_region
      %s1619 = ssub.s32 %s10, 2
      // Predicated region
      $region45: #{depthwise_xcorr_forward.4} parent=43 // pred_check
        %p1620 = pneg %p157
      $region46: #{depthwise_xcorr_forward.4} parent=43 // pred_check_branch
        %1622 = sbr.rel (%p1620) target = $region48
      $region47: #{depthwise_xcorr_forward.4} parent=43 // pred_region
        %p1623 = scmp.lt.s32.totalorder %s21, 1
        %s1624 = scalar_select %p1623, %s21, 1
        %p1625 = scmp.lt.s32.totalorder %s22, 0
        %s1626 = scalar_select %p1625, %s22, 0
        %s1627 = smul.addr %s1624, 6
        %s1628 = sadd.s32 %s1626, %s1627
        %s1629 = smul.addr %s1628, 4
        %s1630 = scalar_lea.vmem %s4, %s1629
      $region48: #{depthwise_xcorr_forward.4} parent=43 // pred_fallthru
        _
    $region44: #{depthwise_xcorr_forward.4} parent=5 // pred_fallthru
      _
  $region6: #{depthwise_xcorr_forward.4} parent=0 // loop_footer
    %s14 = sadd.s32 1, %s10
  $region7: #{depthwise_xcorr_forward.4} parent=0 // loop_footer_branch
    %9 = sbr.rel target = $region3
  $region8: #{depthwise_xcorr_forward.4} parent=0 // loop_exit
    _

// kernel: depthwise_xcorr_forward.7
$region0: #{depthwise_xcorr_forward.7}
  #allocation0 [shape = 'u32[]', space=smem, size = 0x4, offset = 0x4, fixed_abs, tag = 'smem constant byte address 0x4 - core index']
  #allocation1 [shape = 'u32[72,128]{1,0:T(1,128)}', space=vmem, size = 0x9000, scoped, tag = 'internal scratch']
  %s0 = inlined_call_operand.vmem [shape: bf16[176,128], index: 0, kind: input, shape index: {}]
  %s1 = inlined_call_operand.vmem [shape: bf16[128,128], index: 1, kind: input, shape index: {}]
  %s2 = inlined_call_operand.vmem [shape: f32[1,128], index: 2, kind: input, shape index: {}]
  %s3 = inlined_call_operand.vmem [shape: f32[1,128], index: 3, kind: input, shape index: {}]
  %s4 = inlined_call_operand.vmem [shape: bf16[128,128], index: 4, kind: input, shape index: {}]
  %s5 = inlined_call_operand.vmem [shape: f32[1,128], index: 5, kind: input, shape index: {}]
  %s6 = inlined_call_operand.vmem [shape: f32[176,128], index: 6, kind: output, shape index: {}]
  %s7 = sld [smem:[#allocation0]]
  $region57: #{depthwise_xcorr_forward.7} parent=0
    _
  %s9 = ssub.s32 1, %s7
  %s10 = scalar_select 0, %s9, %s7
  loop: start=0, step=1, limit=4
  $region2: #{depthwise_xcorr_forward.7} parent=0 // loop_pre_header
    _
  $region3: #{depthwise_xcorr_forward.7} parent=0 // loop_header
    %s12 = sphi 0, %s16
    %p13 = scmp.ge.s32.totalorder %s12, 4
    %s22 = sphi 0, %s24
    %s25 = sphi 0, %s22
    %s26 = sphi 0, %s25
    %s42 = sphi 0, %s26
    %s46 = sphi 0, %s46
    %s48 = sphi 0, %s46
    %s49 = sphi 0, %s48
    %s63 = sphi 0, %s49
    %s67 = sphi 0, %s67
    %s69 = sphi 0, %s67
    %s70 = sphi 0, %s69
    %s84 = sphi 0, %s70
    %s88 = sphi 0, %s88
    %s90 = sphi 0, %s88
    %s91 = sphi 0, %s90
    %s105 = sphi 0, %s91
    %s109 = sphi 0, %s109
    %s111 = sphi 0, %s109
    %s112 = sphi 0, %s111
    %s126 = sphi 0, %s112
    %s130 = sphi 0, %s130
    %s132 = sphi 0, %s130
    %s133 = sphi 0, %s132
    %s147 = sphi 0, %s133
    %s153 = sphi 0, %s155
    %s156 = sphi 0, %s153
    %s157 = sphi 0, %s156
    %s173 = sphi 0, %s157
  $region4: #{depthwise_xcorr_forward.7} parent=0 // loop_header_branch
    %15 = sbr.rel (%p13) target = $region8
  $region5: #{depthwise_xcorr_forward.7} parent=0 // loop_body
    %s17 = ssub.s32 %s12, 1
    %s18 = ssub.s32 %s12, 2
    %s19 = sadd.s32 %s12, 1
    %s20 = ssub.s32 %s12, %s19
    %p21 = scmp.eq.s32.totalorder %s20, 0
    %s23 = sadd.s32 %s22, 1
    %s24 = scalar_select %p21, %s22, %s23
    %p27 = pneg %p21
    %p28 = scmp.eq.s32.totalorder %s12, 1
    %p29 = por %p27, %p28
    %p30 = scmp.ne.s32.totalorder %s22, %s25
    %p31 = scmp.eq.s32.totalorder %s12, 0
    %p32 = por %p30, %p31
    %p33 = scmp.ne.s32.totalorder %s22, %s25
    %p34 = scmp.eq.s32.totalorder %s17, 1
    %p35 = por %p33, %p34
    %p36 = scmp.ne.s32.totalorder %s25, %s26
    %p37 = scmp.eq.s32.totalorder %s17, 0
    %p38 = por %p36, %p37
    %p39 = scmp.ne.s32.totalorder %s25, %s26
    %p40 = scmp.eq.s32.totalorder %s18, 1
    %p41 = por %p39, %p40
    %p43 = scmp.ne.s32.totalorder %s26, %s42
    %p44 = scmp.eq.s32.totalorder %s18, 0
    %p45 = por %p43, %p44
    %s47 = sadd.s32 %s46, 1
    %p50 = scmp.eq.s32.totalorder %s12, 1
    %p51 = scmp.ne.s32.totalorder %s46, %s48
    %p52 = scmp.eq.s32.totalorder %s12, 0
    %p53 = por %p51, %p52
    %p54 = scmp.ne.s32.totalorder %s46, %s48
    %p55 = scmp.eq.s32.totalorder %s17, 1
    %p56 = por %p54, %p55
    %p57 = scmp.ne.s32.totalorder %s48, %s49
    %p58 = scmp.eq.s32.totalorder %s17, 0
    %p59 = por %p57, %p58
    %p60 = scmp.ne.s32.totalorder %s48, %s49
    %p61 = scmp.eq.s32.totalorder %s18, 1
    %p62 = por %p60, %p61
    %p64 = scmp.ne.s32.totalorder %s49, %s63
    %p65 = scmp.eq.s32.totalorder %s18, 0
    %p66 = por %p64, %p65
    %s68 = sadd.s32 %s67, 1
    %p71 = scmp.eq.s32.totalorder %s12, 1
    %p72 = scmp.ne.s32.totalorder %s67, %s69
    %p73 = scmp.eq.s32.totalorder %s12, 0
    %p74 = por %p72, %p73
    %p75 = scmp.ne.s32.totalorder %s67, %s69
    %p76 = scmp.eq.s32.totalorder %s17, 1
    %p77 = por %p75, %p76
    %p78 = scmp.ne.s32.totalorder %s69, %s70
    %p79 = scmp.eq.s32.totalorder %s17, 0
    %p80 = por %p78, %p79
    %p81 = scmp.ne.s32.totalorder %s69, %s70
    %p82 = scmp.eq.s32.totalorder %s18, 1
    %p83 = por %p81, %p82
    %p85 = scmp.ne.s32.totalorder %s70, %s84
    %p86 = scmp.eq.s32.totalorder %s18, 0
    %p87 = por %p85, %p86
    %s89 = sadd.s32 %s88, 1
    %p92 = scmp.eq.s32.totalorder %s12, 1
    %p93 = scmp.ne.s32.totalorder %s88, %s90
    %p94 = scmp.eq.s32.totalorder %s12, 0
    %p95 = por %p93, %p94
    %p96 = scmp.ne.s32.totalorder %s88, %s90
    %p97 = scmp.eq.s32.totalorder %s17, 1
    %p98 = por %p96, %p97
    %p99 = scmp.ne.s32.totalorder %s90, %s91
    %p100 = scmp.eq.s32.totalorder %s17, 0
    %p101 = por %p99, %p100
    %p102 = scmp.ne.s32.totalorder %s90, %s91
    %p103 = scmp.eq.s32.totalorder %s18, 1
    %p104 = por %p102, %p103
    %p106 = scmp.ne.s32.totalorder %s91, %s105
    %p107 = scmp.eq.s32.totalorder %s18, 0
    %p108 = por %p106, %p107
    %s110 = sadd.s32 %s109, 1
    %p113 = scmp.eq.s32.totalorder %s12, 1
    %p114 = scmp.ne.s32.totalorder %s109, %s111
    %p115 = scmp.eq.s32.totalorder %s12, 0
    %p116 = por %p114, %p115
    %p117 = scmp.ne.s32.totalorder %s109, %s111
    %p118 = scmp.eq.s32.totalorder %s17, 1
    %p119 = por %p117, %p118
    %p120 = scmp.ne.s32.totalorder %s111, %s112
    %p121 = scmp.eq.s32.totalorder %s17, 0
    %p122 = por %p120, %p121
    %p123 = scmp.ne.s32.totalorder %s111, %s112
    %p124 = scmp.eq.s32.totalorder %s18, 1
    %p125 = por %p123, %p124
    %p127 = scmp.ne.s32.totalorder %s112, %s126
    %p128 = scmp.eq.s32.totalorder %s18, 0
    %p129 = por %p127, %p128
    %s131 = sadd.s32 %s130, 1
    %p134 = scmp.eq.s32.totalorder %s12, 1
    %p135 = scmp.ne.s32.totalorder %s130, %s132
    %p136 = scmp.eq.s32.totalorder %s12, 0
    %p137 = por %p135, %p136
    %p138 = scmp.ne.s32.totalorder %s130, %s132
    %p139 = scmp.eq.s32.totalorder %s17, 1
    %p140 = por %p138, %p139
    %p141 = scmp.ne.s32.totalorder %s132, %s133
    %p142 = scmp.eq.s32.totalorder %s17, 0
    %p143 = por %p141, %p142
    %p144 = scmp.ne.s32.totalorder %s132, %s133
    %p145 = scmp.eq.s32.totalorder %s18, 1
    %p146 = por %p144, %p145
    %p148 = scmp.ne.s32.totalorder %s133, %s147
    %p149 = scmp.eq.s32.totalorder %s18, 0
    %p150 = por %p148, %p149
    %s151 = ssub.s32 %s12, %s19
    %p152 = scmp.eq.s32.totalorder %s151, 0
    %s154 = sadd.s32 %s153, 1
    %s155 = scalar_select %p152, %s153, %s154
    %p158 = pneg %p152
    %p159 = scmp.eq.s32.totalorder %s12, 1
    %p160 = por %p158, %p159
    %p161 = scmp.ne.s32.totalorder %s153, %s156
    %p162 = scmp.eq.s32.totalorder %s12, 0
    %p163 = por %p161, %p162
    %p164 = scmp.ne.s32.totalorder %s153, %s156
    %p165 = scmp.eq.s32.totalorder %s17, 1
    %p166 = por %p164, %p165
    %p167 = scmp.ne.s32.totalorder %s156, %s157
    %p168 = scmp.eq.s32.totalorder %s17, 0
    %p169 = por %p167, %p168
    %p170 = scmp.ne.s32.totalorder %s156, %s157
    %p171 = scmp.eq.s32.totalorder %s18, 1
    %p172 = por %p170, %p171
    %p174 = scmp.ne.s32.totalorder %s157, %s173
    %p175 = scmp.eq.s32.totalorder %s18, 0
    %p176 = por %p174, %p175
    %p177 = scmp.le.s32.totalorder 1, %s12
    %p178 = scmp.lt.s32.totalorder %s12, 3
    %p179 = pnand %p177, %p178
    %p180 = pneg %p179
    // Predicated region
    $region9: #{depthwise_xcorr_forward.7} parent=5 // pred_check
      _
    $region10: #{depthwise_xcorr_forward.7} parent=5 // pred_check_branch
      %182 = sbr.rel (%p179) target = $region12
    $region11: #{depthwise_xcorr_forward.7} parent=5 // pred_region
      %s183 = ssub.s32 %s12, 1
      // Predicated region
      $region13: #{depthwise_xcorr_forward.7} parent=11 // pred_check
        %p184 = pneg %p59
      $region14: #{depthwise_xcorr_forward.7} parent=11 // pred_check_branch
        %186 = sbr.rel (%p184) target = $region16
      $region15: #{depthwise_xcorr_forward.7} parent=11 // pred_region
        _
      $region16: #{depthwise_xcorr_forward.7} parent=11 // pred_fallthru
        _
      // Predicated region
      $region17: #{depthwise_xcorr_forward.7} parent=11 // pred_check
        %p187 = pneg %p80
      $region18: #{depthwise_xcorr_forward.7} parent=11 // pred_check_branch
        %189 = sbr.rel (%p187) target = $region20
      $region19: #{depthwise_xcorr_forward.7} parent=11 // pred_region
        _
      $region20: #{depthwise_xcorr_forward.7} parent=11 // pred_fallthru
        _
      // Predicated region
      $region21: #{depthwise_xcorr_forward.7} parent=11 // pred_check
        %p190 = pneg %p101
      $region22: #{depthwise_xcorr_forward.7} parent=11 // pred_check_branch
        %192 = sbr.rel (%p190) target = $region24
      $region23: #{depthwise_xcorr_forward.7} parent=11 // pred_region
        _
      $region24: #{depthwise_xcorr_forward.7} parent=11 // pred_fallthru
        _
      // Predicated region
      $region25: #{depthwise_xcorr_forward.7} parent=11 // pred_check
        %p193 = pneg %p122
      $region26: #{depthwise_xcorr_forward.7} parent=11 // pred_check_branch
        %195 = sbr.rel (%p193) target = $region28
      $region27: #{depthwise_xcorr_forward.7} parent=11 // pred_region
        _
      $region28: #{depthwise_xcorr_forward.7} parent=11 // pred_fallthru
        _
      // Predicated region
      $region29: #{depthwise_xcorr_forward.7} parent=11 // pred_check
        %p196 = pneg %p143
      $region30: #{depthwise_xcorr_forward.7} parent=11 // pred_check_branch
        %198 = sbr.rel (%p196) target = $region32
      $region31: #{depthwise_xcorr_forward.7} parent=11 // pred_region
        _
      $region32: #{depthwise_xcorr_forward.7} parent=11 // pred_fallthru
        _
    $region12: #{depthwise_xcorr_forward.7} parent=5 // pred_fallthru
      _
    %p199 = scmp.lt.s32.totalorder %s12, 2
    // Predicated region
    $region33: #{depthwise_xcorr_forward.7} parent=5 // pred_check
      %p200 = pneg %p199
    $region34: #{depthwise_xcorr_forward.7} parent=5 // pred_check_branch
      %202 = sbr.rel (%p200) target = $region36
    $region35: #{depthwise_xcorr_forward.7} parent=5 // pred_region
      // Predicated region
      $region37: #{depthwise_xcorr_forward.7} parent=35 // pred_check
        %p203 = pneg %p32
      $region38: #{depthwise_xcorr_forward.7} parent=35 // pred_check_branch
        %205 = sbr.rel (%p203) target = $region40
      $region39: #{depthwise_xcorr_forward.7} parent=35 // pred_region
        %s206 = smul.u32 11, %s12
        %p207 = scmp.lt.s32.totalorder %s206, 21
        %s208 = scalar_select %p207, %s206, 21
        %s209 = smul.addr %s208, 4
        %s210 = scalar_lea.vmem %s0, %s209
        %s211 = smul.u32 11, %s12
      $region40: #{depthwise_xcorr_forward.7} parent=35 // pred_fallthru
        _
    $region36: #{depthwise_xcorr_forward.7} parent=5 // pred_fallthru
      _
    %p212 = scmp.le.s32.totalorder 1, %s12
    %p213 = scmp.lt.s32.totalorder %s12, 3
    %p214 = pnand %p212, %p213
    %p215 = pneg %p214
    // Predicated region
    $region41: #{depthwise_xcorr_forward.7} parent=5 // pred_check
      _
    $region42: #{depthwise_xcorr_forward.7} parent=5 // pred_check_branch
      %217 = sbr.rel (%p214) target = $region44
    $region43: #{depthwise_xcorr_forward.7} parent=5 // pred_region
      %s218 = ssub.s32 %s12, 1
      %s219 = smul.u32 11, %s17
      %p220 = scmp.lt.s32.totalorder %s219, 21
      %s221 = scalar_select %p220, %s219, 21
      %s222 = smul.addr %s221, 4
      %s223 = scalar_lea.vmem %s0, %s222
      %p224 = pneg %p38
      %p225 = pneg %p35
      %p226 = pneg %p59
      %p227 = pneg %p56
      %p228 = pneg %p80
      %p229 = pneg %p77
      %p230 = pneg %p101
      %p231 = pneg %p98
      %p232 = pneg %p122
      %p233 = pneg %p119
      %p234 = pneg %p143
      %p235 = pneg %p140
      %p236 = pneg %p169
      %p237 = pneg %p166
      %s238 = smul.u32 11, %s17
      %p239 = scmp.lt.s32.totalorder %s238, 21
      %s240 = scalar_select %p239, %s238, 21
      %s241 = smul.addr %s240, 8
      %s242 = scalar_lea.vmem %s6, %s241
      %s243 = smul.u32 11, %s17
      %p244 = scmp.lt.s32.totalorder %s243, 21
      %s245 = scalar_select %p244, %s243, 21
      %s246 = smul.addr %s245, 4
      %s247 = scalar_lea.vmem %s0, %s246
      %s248 = smul.u32 11, %s17
      %s249 = smul.u32 11, %s17
      %p250 = scmp.lt.s32.totalorder %s249, 21
      %s251 = scalar_select %p250, %s249, 21
      %s252 = smul.addr %s251, 8
      %s253 = scalar_lea.vmem %s6, %s252
      %s254 = smul.u32 11, %s17
      %v255 = vld [vmem:[%s247] sm:$0xf]
      %v256 = vld [vmem:[%s247 + $0x4] sm:$0xf]
      %v257 = vld [vmem:[%s247 + $0x8] sm:$0xf]
      %v258 = vld [vmem:[%s247 + $0xc] sm:$0xf]
      %v259 = vld [vmem:[%s247 + $0x10] sm:$0xf]
      %v260 = vld [vmem:[%s247 + $0x14] sm:$0xf]
      %v261 = vld [vmem:[%s247 + $0x18] sm:$0xf]
      %v262 = vld [vmem:[%s247 + $0x1c] sm:$0xf]
      %v263 = vld [vmem:[%s247 + $0x20] sm:$0xf]
      %v264 = vld [vmem:[%s247 + $0x24] sm:$0xf]
      %v265 = vld [vmem:[%s247 + $0x28] sm:$0xf]
      %v266 = vld [vmem:[%s1] sm:$0xf]
      %v267 = vld [vmem:[%s1 + $0x4] sm:$0xf]
      %v268 = vld [vmem:[%s1 + $0x8] sm:$0xf]
      %v269 = vld [vmem:[%s1 + $0xc] sm:$0xf]
      %v270 = vld [vmem:[%s1 + $0x10] sm:$0xf]
      %v271 = vld [vmem:[%s1 + $0x14] sm:$0xf]
      %v272 = vld [vmem:[%s1 + $0x18] sm:$0xf]
      %v273 = vld [vmem:[%s1 + $0x1c] sm:$0xf]
      %v274 = vld [vmem:[%s1 + $0x20] sm:$0xf]
      %v275 = vld [vmem:[%s1 + $0x24] sm:$0xf]
      %v276 = vld [vmem:[%s1 + $0x28] sm:$0xf]
      %v277 = vld [vmem:[%s1 + $0x2c] sm:$0xf]
      %v278 = vld [vmem:[%s1 + $0x30] sm:$0xf]
      %v279 = vld [vmem:[%s1 + $0x34] sm:$0xf]
      %v280 = vld [vmem:[%s1 + $0x38] sm:$0xf]
      %v281 = vld [vmem:[%s1 + $0x3c] sm:$0xf]
      %v293 = vunpack.c.l.b16 %v255
      %v294 = vunpack.c.l.b16 %v256
      %v295 = vunpack.c.l.b16 %v257
      %v296 = vunpack.c.l.b16 %v258
      %v297 = vunpack.c.l.b16 %v259
      %v298 = vunpack.c.l.b16 %v260
      %v299 = vunpack.c.l.b16 %v261
      %v300 = vunpack.c.l.b16 %v262
      %v301 = vunpack.c.l.b16 %v263
      %v302 = vunpack.c.l.b16 %v264
      %v303 = vunpack.c.l.b16 %v265
      %v304 = vpack.c.b16 %v294, %v293
      %v305 = vpack.c.b16 %v296, %v295
      %v306 = vpack.c.b16 %v298, %v297
      %v307 = vpack.c.b16 %v300, %v299
      %v308 = vpack.c.b16 %v302, %v301
      %v309 = vpack.c.b16 %v303, %v303
      %v332 = vunpack.c.l.b16 %v266
      %v333 = vunpack.c.l.b16 %v267
      %v334 = vunpack.c.l.b16 %v268
      %v335 = vunpack.c.l.b16 %v269
      %v336 = vunpack.c.l.b16 %v270
      %v337 = vunpack.c.l.b16 %v271
      %v338 = vunpack.c.l.b16 %v272
      %v339 = vunpack.c.l.b16 %v273
      %v340 = vunpack.c.l.b16 %v274
      %v341 = vunpack.c.l.b16 %v275
      %v342 = vunpack.c.l.b16 %v276
      %v343 = vunpack.c.l.b16 %v277
      %v344 = vunpack.c.l.b16 %v278
      %v345 = vunpack.c.l.b16 %v279
      %v346 = vunpack.c.l.b16 %v280
      %v347 = vunpack.c.l.b16 %v281
      %v348 = vpack.c.b16 %v333, %v332
      %v349 = vpack.c.b16 %v335, %v334
      %v350 = vpack.c.b16 %v337, %v336
      %v351 = vpack.c.b16 %v339, %v338
      %v352 = vpack.c.b16 %v341, %v340
      %v353 = vpack.c.b16 %v343, %v342
      %v354 = vpack.c.b16 %v345, %v344
      %v355 = vpack.c.b16 %v347, %v346
      %364 = vmatpush.bf16.msra.mxu0 %v355
      %365 = vmatpush.bf16.msra.mxu0 %v354
      %366 = vmatpush.bf16.msra.mxu0 %v353
      %367 = vmatpush.bf16.msra.mxu0 %v352
      %368 = vmatpush.bf16.msra.mxu0 %v351
      %369 = vmatpush.bf16.msra.mxu0 %v350
      %370 = vmatpush.bf16.msra.mxu0 %v349
      %371 = vmatpush.bf16.msra.mxu0 %v348
      %372 = vmatmul.bf16.gmra.mxu0 %v304
      %v373 = vpop.f32.mrf.mxu0
      %v374 = vadd.f32 0.0, %v373
      %v375 = vpop.f32.mrf.mxu0
      %v376 = vadd.f32 0.0, %v375
      %377 = vmatmul.bf16.gmra.mxu0 %v305
      %v378 = vpop.f32.mrf.mxu0
      %v379 = vadd.f32 0.0, %v378
      %v380 = vpop.f32.mrf.mxu0
      %v381 = vadd.f32 0.0, %v380
      %382 = vmatmul.bf16.gmra.mxu0 %v306
      %v383 = vpop.f32.mrf.mxu0
      %v384 = vadd.f32 0.0, %v383
      %v385 = vpop.f32.mrf.mxu0
      %v386 = vadd.f32 0.0, %v385
      %387 = vmatmul.bf16.gmra.mxu0 %v307
      %v388 = vpop.f32.mrf.mxu0
      %v389 = vadd.f32 0.0, %v388
      %v390 = vpop.f32.mrf.mxu0
      %v391 = vadd.f32 0.0, %v390
      %392 = vmatmul.bf16.gmra.mxu0 %v308
      %v393 = vpop.f32.mrf.mxu0
      %v394 = vadd.f32 0.0, %v393
      %v395 = vpop.f32.mrf.mxu0
      %v396 = vadd.f32 0.0, %v395
      %397 = vmatmul.bf16.gmra.mxu0 %v309
      %v398 = vpop.f32.mrf.mxu0
      %v399 = vadd.f32 0.0, %v398
      %v400 = vpop.f32.mrf.mxu0
      %401 = vdwg.mxu0
      %v402 = vld [vmem:[%s2] sm:$0x1]
      %v404 = vperm.slane %v402, 0
      %v406 = vmul.f32 %v374, %v404
      %v407 = vmul.f32 %v376, %v404
      %v408 = vmul.f32 %v379, %v404
      %v409 = vmul.f32 %v381, %v404
      %v410 = vmul.f32 %v384, %v404
      %v411 = vmul.f32 %v386, %v404
      %v412 = vmul.f32 %v389, %v404
      %v413 = vmul.f32 %v391, %v404
      %v414 = vmul.f32 %v394, %v404
      %v415 = vmul.f32 %v396, %v404
      %v416 = vmul.f32 %v399, %v404
      %v417 = vld [vmem:[%s3] sm:$0x1]
      %v419 = vperm.slane %v417, 0
      %v421 = vadd.f32 %v406, %v419
      %v422 = vadd.f32 %v407, %v419
      %v423 = vadd.f32 %v408, %v419
      %v424 = vadd.f32 %v409, %v419
      %v425 = vadd.f32 %v410, %v419
      %v426 = vadd.f32 %v411, %v419
      %v427 = vadd.f32 %v412, %v419
      %v428 = vadd.f32 %v413, %v419
      %v429 = vadd.f32 %v414, %v419
      %v430 = vadd.f32 %v415, %v419
      %v431 = vadd.f32 %v416, %v419
      %v432 = vmax.f32 %v421, 0.0
      %v433 = vmax.f32 %v422, 0.0
      %v434 = vmax.f32 %v423, 0.0
      %v435 = vmax.f32 %v424, 0.0
      %v436 = vmax.f32 %v425, 0.0
      %v437 = vmax.f32 %v426, 0.0
      %v438 = vmax.f32 %v427, 0.0
      %v439 = vmax.f32 %v428, 0.0
      %v440 = vmax.f32 %v429, 0.0
      %v441 = vmax.f32 %v430, 0.0
      %v442 = vmax.f32 %v431, 0.0
      %v443 = vpack.c.bf16 %v433, %v432
      %v444 = vpack.c.bf16 %v435, %v434
      %v445 = vpack.c.bf16 %v437, %v436
      %v446 = vpack.c.bf16 %v439, %v438
      %v447 = vpack.c.bf16 %v441, %v440
      %v448 = vpack.c.bf16 %v442, %v442
      %v449 = vld [vmem:[%s4] sm:$0xf]
      %v450 = vld [vmem:[%s4 + $0x4] sm:$0xf]
      %v451 = vld [vmem:[%s4 + $0x8] sm:$0xf]
      %v452 = vld [vmem:[%s4 + $0xc] sm:$0xf]
      %v453 = vld [vmem:[%s4 + $0x10] sm:$0xf]
      %v454 = vld [vmem:[%s4 + $0x14] sm:$0xf]
      %v455 = vld [vmem:[%s4 + $0x18] sm:$0xf]
      %v456 = vld [vmem:[%s4 + $0x1c] sm:$0xf]
      %v457 = vld [vmem:[%s4 + $0x20] sm:$0xf]
      %v458 = vld [vmem:[%s4 + $0x24] sm:$0xf]
      %v459 = vld [vmem:[%s4 + $0x28] sm:$0xf]
      %v460 = vld [vmem:[%s4 + $0x2c] sm:$0xf]
      %v461 = vld [vmem:[%s4 + $0x30] sm:$0xf]
      %v462 = vld [vmem:[%s4 + $0x34] sm:$0xf]
      %v463 = vld [vmem:[%s4 + $0x38] sm:$0xf]
      %v464 = vld [vmem:[%s4 + $0x3c] sm:$0xf]
      %v465 = vld [vmem:[%s5] sm:$0x1]
      %v467 = vperm.slane %v465, 0
      %v485 = vunpack.c.l.b16 %v449
      %v486 = vunpack.c.l.b16 %v450
      %v487 = vunpack.c.l.b16 %v451
      %v488 = vunpack.c.l.b16 %v452
      %v489 = vunpack.c.l.b16 %v453
      %v490 = vunpack.c.l.b16 %v454
      %v491 = vunpack.c.l.b16 %v455
      %v492 = vunpack.c.l.b16 %v456
      %v493 = vunpack.c.l.b16 %v457
      %v494 = vunpack.c.l.b16 %v458
      %v495 = vunpack.c.l.b16 %v459
      %v496 = vunpack.c.l.b16 %v460
      %v497 = vunpack.c.l.b16 %v461
      %v498 = vunpack.c.l.b16 %v462
      %v499 = vunpack.c.l.b16 %v463
      %v500 = vunpack.c.l.b16 %v464
      %v501 = vpack.c.b16 %v486, %v485
      %v502 = vpack.c.b16 %v488, %v487
      %v503 = vpack.c.b16 %v490, %v489
      %v504 = vpack.c.b16 %v492, %v491
      %v505 = vpack.c.b16 %v494, %v493
      %v506 = vpack.c.b16 %v496, %v495
      %v507 = vpack.c.b16 %v498, %v497
      %v508 = vpack.c.b16 %v500, %v499
      %517 = vmatpush.bf16.msra.mxu0 %v508
      %518 = vmatpush.bf16.msra.mxu0 %v507
      %519 = vmatpush.bf16.msra.mxu0 %v506
      %520 = vmatpush.bf16.msra.mxu0 %v505
      %521 = vmatpush.bf16.msra.mxu0 %v504
      %522 = vmatpush.bf16.msra.mxu0 %v503
      %523 = vmatpush.bf16.msra.mxu0 %v502
      %524 = vmatpush.bf16.msra.mxu0 %v501
      %525 = vmatmul.bf16.gmra.mxu0 %v443
      %v526 = vpop.f32.mrf.mxu0
      %v527 = vadd.f32 %v467, %v526
      %v528 = vpop.f32.mrf.mxu0
      %v529 = vadd.f32 %v467, %v528
      %530 = vmatmul.bf16.gmra.mxu0 %v444
      %v531 = vpop.f32.mrf.mxu0
      %v532 = vadd.f32 %v467, %v531
      %v533 = vpop.f32.mrf.mxu0
      %v534 = vadd.f32 %v467, %v533
      %535 = vmatmul.bf16.gmra.mxu0 %v445
      %v536 = vpop.f32.mrf.mxu0
      %v537 = vadd.f32 %v467, %v536
      %v538 = vpop.f32.mrf.mxu0
      %v539 = vadd.f32 %v467, %v538
      %540 = vmatmul.bf16.gmra.mxu0 %v446
      %v541 = vpop.f32.mrf.mxu0
      %v542 = vadd.f32 %v467, %v541
      %v543 = vpop.f32.mrf.mxu0
      %v544 = vadd.f32 %v467, %v543
      %545 = vmatmul.bf16.gmra.mxu0 %v447
      %v546 = vpop.f32.mrf.mxu0
      %v547 = vadd.f32 %v467, %v546
      %v548 = vpop.f32.mrf.mxu0
      %v549 = vadd.f32 %v467, %v548
      %550 = vmatmul.bf16.gmra.mxu0 %v448
      %v551 = vpop.f32.mrf.mxu0
      %v552 = vadd.f32 %v467, %v551
      %v553 = vpop.f32.mrf.mxu0
      %554 = vdwg.mxu0
      %555 = vst [vmem:[%s253] sm:$0xff] %v527
      %556 = vst [vmem:[%s253 + $0x8] sm:$0xff] %v529
      %557 = vst [vmem:[%s253 + $0x10] sm:$0xff] %v532
      %558 = vst [vmem:[%s253 + $0x18] sm:$0xff] %v534
      %559 = vst [vmem:[%s253 + $0x20] sm:$0xff] %v537
      %560 = vst [vmem:[%s253 + $0x28] sm:$0xff] %v539
      %561 = vst [vmem:[%s253 + $0x30] sm:$0xff] %v542
      %562 = vst [vmem:[%s253 + $0x38] sm:$0xff] %v544
      %563 = vst [vmem:[%s253 + $0x40] sm:$0xff] %v547
      %564 = vst [vmem:[%s253 + $0x48] sm:$0xff] %v549
      %565 = vst [vmem:[%s253 + $0x50] sm:$0xff] %v552
      %s566 = smul.u32 11, %s17
      %p567 = scmp.lt.s32.totalorder %s566, 21
      %s568 = scalar_select %p567, %s566, 21
      %s569 = smul.addr %s568, 8
      %s570 = scalar_lea.vmem %s6, %s569
      // Predicated region
      $region45: #{depthwise_xcorr_forward.7} parent=43 // pred_check
        %p571 = pneg %p166
      $region46: #{depthwise_xcorr_forward.7} parent=43 // pred_check_branch
        %573 = sbr.rel (%p571) target = $region48
      $region47: #{depthwise_xcorr_forward.7} parent=43 // pred_region
        %s574 = smul.u32 11, %s17
      $region48: #{depthwise_xcorr_forward.7} parent=43 // pred_fallthru
        _
    $region44: #{depthwise_xcorr_forward.7} parent=5 // pred_fallthru
      _
    %p575 = scmp.le.s32.totalorder 2, %s12
    // Predicated region
    $region49: #{depthwise_xcorr_forward.7} parent=5 // pred_check
      %p576 = pneg %p575
    $region50: #{depthwise_xcorr_forward.7} parent=5 // pred_check_branch
      %578 = sbr.rel (%p576) target = $region52
    $region51: #{depthwise_xcorr_forward.7} parent=5 // pred_region
      %s579 = ssub.s32 %s12, 2
      // Predicated region
      $region53: #{depthwise_xcorr_forward.7} parent=51 // pred_check
        %p580 = pneg %p172
      $region54: #{depthwise_xcorr_forward.7} parent=51 // pred_check_branch
        %582 = sbr.rel (%p580) target = $region56
      $region55: #{depthwise_xcorr_forward.7} parent=51 // pred_region
        %s583 = smul.u32 11, %s18
        %p584 = scmp.lt.s32.totalorder %s583, 21
        %s585 = scalar_select %p584, %s583, 21
        %s586 = smul.addr %s585, 8
        %s587 = scalar_lea.vmem %s6, %s586
      $region56: #{depthwise_xcorr_forward.7} parent=51 // pred_fallthru
        _
    $region52: #{depthwise_xcorr_forward.7} parent=5 // pred_fallthru
      _
  $region6: #{depthwise_xcorr_forward.7} parent=0 // loop_footer
    %s16 = sadd.s32 1, %s12
  $region7: #{depthwise_xcorr_forward.7} parent=0 // loop_footer_branch
    %11 = sbr.rel target = $region3
  $region8: #{depthwise_xcorr_forward.7} parent=0 // loop_exit
    _

// kernel: depthwise_xcorr_forward.6
$region0: #{depthwise_xcorr_forward.6}
  #allocation0 [shape = 'u32[]', space=smem, size = 0x4, offset = 0x4, fixed_abs, tag = 'smem constant byte address 0x4 - core index']
  #allocation1 [shape = 'u32[72,128]{1,0:T(1,128)}', space=vmem, size = 0x9000, scoped, tag = 'internal scratch']
  %s0 = inlined_call_operand.vmem [shape: bf16[2,21,14,32], index: 0, kind: input, shape index: {}]
  %s1 = inlined_call_operand.vmem [shape: bf16[2,6,6,32], index: 1, kind: input, shape index: {}]
  %s2 = inlined_call_operand.vmem [shape: bf16[2,16,9,32], index: 2, kind: output, shape index: {}]
  %s3 = sld [smem:[#allocation0]]
  $region41: #{depthwise_xcorr_forward.6} parent=0
    _
  %s5 = ssub.s32 1, %s3
  %s6 = scalar_select 0, %s5, %s3
  loop: start=0, step=1, limit=6
  $region2: #{depthwise_xcorr_forward.6} parent=0 // loop_pre_header
    _
  $region3: #{depthwise_xcorr_forward.6} parent=0 // loop_header
    %s8 = sphi 0, %s12
    %p9 = scmp.ge.s32.totalorder %s8, 6
    %s15 = sphi 0, %s34
    %s16 = sphi 0, %s30
    %s17 = sphi 0, %s26
    %s18 = sphi 0, %s15
    %s19 = sphi 0, %s16
    %s20 = sphi 0, %s17
    %s21 = sphi 0, %s18
    %s22 = sphi 0, %s19
    %s23 = sphi 0, %s20
    %s39 = sphi 0, %s41
    %s42 = sphi 0, %s39
    %s43 = sphi 0, %s42
    %s59 = sphi 0, %s43
    %s67 = sphi 0, %s69
    %s70 = sphi 0, %s67
    %s71 = sphi 0, %s70
    %s87 = sphi 0, %s71
    %s97 = sphi 0, %s99
    %s100 = sphi 0, %s97
    %s101 = sphi 0, %s100
    %s117 = sphi 0, %s101
  $region4: #{depthwise_xcorr_forward.6} parent=0 // loop_header_branch
    %11 = sbr.rel (%p9) target = $region8
  $region5: #{depthwise_xcorr_forward.6} parent=0 // loop_body
    %s13 = ssub.s32 %s8, 1
    %s14 = ssub.s32 %s8, 2
    %s24 = sadd.s32 1, %s17
    %p25 = scmp.ge.s32.totalorder %s24, 2
    %s26 = scalar_select %p25, 0, %s24
    %s27 = sadd.s32 1, %s16
    %s28 = scalar_select %p25, %s27, %s16
    %p29 = scmp.ge.s32.totalorder %s28, 1
    %s30 = scalar_select %p29, 0, %s28
    %s31 = sadd.s32 1, %s15
    %s32 = scalar_select %p29, %s31, %s15
    %p33 = scmp.ge.s32.totalorder %s32, 2
    %s34 = scalar_select %p33, 0, %s32
    %s35 = ssub.s32 %s15, %s34
    %s36 = ssub.s32 %s16, %s30
    %s37 = sor.u32 %s35, %s36
    %p38 = scmp.eq.s32.totalorder %s37, 0
    %s40 = sadd.s32 %s39, 1
    %s41 = scalar_select %p38, %s39, %s40
    %p44 = pneg %p38
    %p45 = scmp.eq.s32.totalorder %s8, 3
    %p46 = por %p44, %p45
    %p47 = scmp.ne.s32.totalorder %s39, %s42
    %p48 = scmp.eq.s32.totalorder %s8, 0
    %p49 = por %p47, %p48
    %p50 = scmp.ne.s32.totalorder %s39, %s42
    %p51 = scmp.eq.s32.totalorder %s13, 3
    %p52 = por %p50, %p51
    %p53 = scmp.ne.s32.totalorder %s42, %s43
    %p54 = scmp.eq.s32.totalorder %s13, 0
    %p55 = por %p53, %p54
    %p56 = scmp.ne.s32.totalorder %s42, %s43
    %p57 = scmp.eq.s32.totalorder %s14, 3
    %p58 = por %p56, %p57
    %p60 = scmp.ne.s32.totalorder %s43, %s59
    %p61 = scmp.eq.s32.totalorder %s14, 0
    %p62 = por %p60, %p61
    %s63 = ssub.s32 %s15, %s34
    %s64 = ssub.s32 %s16, %s30
    %s65 = sor.u32 %s63, %s64
    %p66 = scmp.eq.s32.totalorder %s65, 0
    %s68 = sadd.s32 %s67, 1
    %s69 = scalar_select %p66, %s67, %s68
    %p72 = pneg %p66
    %p73 = scmp.eq.s32.totalorder %s8, 3
    %p74 = por %p72, %p73
    %p75 = scmp.ne.s32.totalorder %s67, %s70
    %p76 = scmp.eq.s32.totalorder %s8, 0
    %p77 = por %p75, %p76
    %p78 = scmp.ne.s32.totalorder %s67, %s70
    %p79 = scmp.eq.s32.totalorder %s13, 3
    %p80 = por %p78, %p79
    %p81 = scmp.ne.s32.totalorder %s70, %s71
    %p82 = scmp.eq.s32.totalorder %s13, 0
    %p83 = por %p81, %p82
    %p84 = scmp.ne.s32.totalorder %s70, %s71
    %p85 = scmp.eq.s32.totalorder %s14, 3
    %p86 = por %p84, %p85
    %p88 = scmp.ne.s32.totalorder %s71, %s87
    %p89 = scmp.eq.s32.totalorder %s14, 0
    %p90 = por %p88, %p89
    %s91 = ssub.s32 %s15, %s34
    %s92 = ssub.s32 %s17, %s26
    %s93 = sor.u32 %s91, %s92
    %s94 = ssub.s32 %s16, %s30
    %s95 = sor.u32 %s93, %s94
    %p96 = scmp.eq.s32.totalorder %s95, 0
    %s98 = sadd.s32 %s97, 1
    %s99 = scalar_select %p96, %s97, %s98
    %p102 = pneg %p96
    %p103 = scmp.eq.s32.totalorder %s8, 3
    %p104 = por %p102, %p103
    %p105 = scmp.ne.s32.totalorder %s97, %s100
    %p106 = scmp.eq.s32.totalorder %s8, 0
    %p107 = por %p105, %p106
    %p108 = scmp.ne.s32.totalorder %s97, %s100
    %p109 = scmp.eq.s32.totalorder %s13, 3
    %p110 = por %p108, %p109
    %p111 = scmp.ne.s32.totalorder %s100, %s101
    %p112 = scmp.eq.s32.totalorder %s13, 0
    %p113 = por %p111, %p112
    %p114 = scmp.ne.s32.totalorder %s100, %s101
    %p115 = scmp.eq.s32.totalorder %s14, 3
    %p116 = por %p114, %p115
    %p118 = scmp.ne.s32.totalorder %s101, %s117
    %p119 = scmp.eq.s32.totalorder %s14, 0
    %p120 = por %p118, %p119
    %p121 = scmp.le.s32.totalorder 1, %s8
    %p122 = scmp.lt.s32.totalorder %s8, 5
    %p123 = pnand %p121, %p122
    %p124 = pneg %p123
    // Predicated region
    $region9: #{depthwise_xcorr_forward.6} parent=5 // pred_check
      _
    $region10: #{depthwise_xcorr_forward.6} parent=5 // pred_check_branch
      %126 = sbr.rel (%p123) target = $region12
    $region11: #{depthwise_xcorr_forward.6} parent=5 // pred_region
      %s127 = ssub.s32 %s8, 1
    $region12: #{depthwise_xcorr_forward.6} parent=5 // pred_fallthru
      _
    %p128 = scmp.lt.s32.totalorder %s8, 4
    // Predicated region
    $region13: #{depthwise_xcorr_forward.6} parent=5 // pred_check
      %p129 = pneg %p128
    $region14: #{depthwise_xcorr_forward.6} parent=5 // pred_check_branch
      %131 = sbr.rel (%p129) target = $region16
    $region15: #{depthwise_xcorr_forward.6} parent=5 // pred_region
      // Predicated region
      $region17: #{depthwise_xcorr_forward.6} parent=15 // pred_check
        %p132 = pneg %p49
      $region18: #{depthwise_xcorr_forward.6} parent=15 // pred_check_branch
        %134 = sbr.rel (%p132) target = $region20
      $region19: #{depthwise_xcorr_forward.6} parent=15 // pred_region
        %p135 = scmp.lt.s32.totalorder %s15, 1
        %s136 = scalar_select %p135, %s15, 1
        %p137 = scmp.lt.s32.totalorder %s16, 0
        %s138 = scalar_select %p137, %s16, 0
        %s139 = smul.addr %s136, 42
        %s140 = sadd.s32 %s138, %s139
        %s141 = smul.addr %s140, 4
        %s142 = scalar_lea.vmem %s0, %s141
      $region20: #{depthwise_xcorr_forward.6} parent=15 // pred_fallthru
        _
      // Predicated region
      $region21: #{depthwise_xcorr_forward.6} parent=15 // pred_check
        %p143 = pneg %p77
      $region22: #{depthwise_xcorr_forward.6} parent=15 // pred_check_branch
        %145 = sbr.rel (%p143) target = $region24
      $region23: #{depthwise_xcorr_forward.6} parent=15 // pred_region
        %p146 = scmp.lt.s32.totalorder %s15, 1
        %s147 = scalar_select %p146, %s15, 1
        %p148 = scmp.lt.s32.totalorder %s16, 0
        %s149 = scalar_select %p148, %s16, 0
        %s150 = smul.addr %s147, 6
        %s151 = sadd.s32 %s149, %s150
        %s152 = smul.addr %s151, 4
        %s153 = scalar_lea.vmem %s1, %s152
      $region24: #{depthwise_xcorr_forward.6} parent=15 // pred_fallthru
        _
    $region16: #{depthwise_xcorr_forward.6} parent=5 // pred_fallthru
      _
    %p154 = scmp.le.s32.totalorder 1, %s8
    %p155 = scmp.lt.s32.totalorder %s8, 5
    %p156 = pnand %p154, %p155
    %p157 = pneg %p156
    // Predicated region
    $region25: #{depthwise_xcorr_forward.6} parent=5 // pred_check
      _
    $region26: #{depthwise_xcorr_forward.6} parent=5 // pred_check_branch
      %159 = sbr.rel (%p156) target = $region28
    $region27: #{depthwise_xcorr_forward.6} parent=5 // pred_region
      %s160 = ssub.s32 %s8, 1
      %p161 = scmp.lt.s32.totalorder %s18, 1
      %s162 = scalar_select %p161, %s18, 1
      %p163 = scmp.lt.s32.totalorder %s19, 0
      %s164 = scalar_select %p163, %s19, 0
      %s165 = smul.addr %s162, 42
      %s166 = sadd.s32 %s164, %s165
      %s167 = smul.addr %s166, 4
      %s168 = scalar_lea.vmem %s0, %s167
      %p169 = pneg %p55
      %p170 = pneg %p52
      %p171 = scmp.lt.s32.totalorder %s18, 1
      %s172 = scalar_select %p171, %s18, 1
      %p173 = scmp.lt.s32.totalorder %s19, 0
      %s174 = scalar_select %p173, %s19, 0
      %s175 = smul.addr %s172, 6
      %s176 = sadd.s32 %s174, %s175
      %s177 = smul.addr %s176, 4
      %s178 = scalar_lea.vmem %s1, %s177
      %p179 = pneg %p83
      %p180 = pneg %p80
      %p181 = pneg %p113
      %p182 = pneg %p110
      %s183 = smul.u32 8, %s20
      %p184 = scmp.lt.s32.totalorder %s18, 1
      %s185 = scalar_select %p184, %s18, 1
      %p186 = scmp.lt.s32.totalorder %s183, 15
      %s187 = scalar_select %p186, %s183, 15
      %p188 = scmp.lt.s32.totalorder %s19, 0
      %s189 = scalar_select %p188, %s19, 0
      %s190 = smul.addr %s187, 2
      %s191 = sadd.s32 %s189, %s190
      %s192 = smul.addr %s185, 32
      %s193 = sadd.s32 %s191, %s192
      %s194 = smul.addr %s193, 4
      %s195 = scalar_lea.vmem %s2, %s194
      %p196 = scmp.lt.s32.totalorder %s18, 1
      %s197 = scalar_select %p196, %s18, 1
      %p198 = scmp.lt.s32.totalorder %s19, 0
      %s199 = scalar_select %p198, %s19, 0
      %s200 = smul.addr %s197, 42
      %s201 = sadd.s32 %s199, %s200
      %s202 = smul.addr %s201, 4
      %s203 = scalar_lea.vmem %s0, %s202
      %p204 = scmp.lt.s32.totalorder %s18, 1
      %s205 = scalar_select %p204, %s18, 1
      %p206 = scmp.lt.s32.totalorder %s19, 0
      %s207 = scalar_select %p206, %s19, 0
      %s208 = smul.addr %s205, 6
      %s209 = sadd.s32 %s207, %s208
      %s210 = smul.addr %s209, 4
      %s211 = scalar_lea.vmem %s1, %s210
      %s212 = smul.u32 8, %s20
      %p213 = scmp.lt.s32.totalorder %s18, 1
      %s214 = scalar_select %p213, %s18, 1
      %p215 = scmp.lt.s32.totalorder %s212, 15
      %s216 = scalar_select %p215, %s212, 15
      %p217 = scmp.lt.s32.totalorder %s19, 0
      %s218 = scalar_select %p217, %s19, 0
      %s219 = smul.addr %s216, 2
      %s220 = sadd.s32 %s218, %s219
      %s221 = smul.addr %s214, 32
      %s222 = sadd.s32 %s220, %s221
      %s223 = smul.addr %s222, 4
      %s224 = scalar_lea.vmem %s2, %s223
      %s225 = smul.u32 8, %s20
      %s226 = smul.u32 %s20, 8
      %s227 = smul.u32 %s226, 2
      %s228 = smul.addr %s227, 4
      %s229 = scalar_lea.vmem %s203, %s228
      %v230 = vld [vmem:[%s229] sm:$0xf]
      %v231 = vld [vmem:[%s229 + $0x4] sm:$0x1]
      %v232 = vld [vmem:[%s229 + $0x8] sm:$0xf]
      %v233 = vld [vmem:[%s229 + $0xc] sm:$0x1]
      %v234 = vld [vmem:[%s229 + $0x10] sm:$0xf]
      %v235 = vld [vmem:[%s229 + $0x14] sm:$0x1]
      %v236 = vld [vmem:[%s229 + $0x18] sm:$0xf]
      %v237 = vld [vmem:[%s229 + $0x1c] sm:$0x1]
      %v238 = vld [vmem:[%s229 + $0x20] sm:$0xf]
      %v239 = vld [vmem:[%s229 + $0x24] sm:$0x1]
      %v240 = vld [vmem:[%s229 + $0x28] sm:$0xf]
      %v241 = vld [vmem:[%s229 + $0x2c] sm:$0x1]
      %v242 = vld [vmem:[%s229 + $0x30] sm:$0xf]
      %v243 = vld [vmem:[%s229 + $0x34] sm:$0x1]
      %v244 = vld [vmem:[%s229 + $0x38] sm:$0xf]
      %v245 = vld [vmem:[%s229 + $0x3c] sm:$0x1]
      %v246 = vld [vmem:[%s229 + $0x40] sm:$0xf]
      %v247 = vld [vmem:[%s229 + $0x44] sm:$0x1]
      %v248 = vld [vmem:[%s229 + $0x48] sm:$0xf]
      %v249 = vld [vmem:[%s229 + $0x4c] sm:$0x1]
      %v250 = vld [vmem:[%s229 + $0x50] sm:$0xf]
      %v251 = vld [vmem:[%s229 + $0x54] sm:$0x1]
      %v252 = vld [vmem:[%s229 + $0x58] sm:$0xf]
      %v253 = vld [vmem:[%s229 + $0x5c] sm:$0x1]
      %v254 = vld [vmem:[%s229 + $0x60] sm:$0xf]
      %v255 = vld [vmem:[%s229 + $0x64] sm:$0x1]
      %v256 = vunpack.c.l.bf16 %v230
      %v257 = vunpack.c.l.bf16 %v231
      %v258 = vunpack.c.l.bf16 %v232
      %v259 = vunpack.c.l.bf16 %v233
      %v260 = vunpack.c.l.bf16 %v234
      %v261 = vunpack.c.l.bf16 %v235
      %v262 = vunpack.c.l.bf16 %v236
      %v263 = vunpack.c.l.bf16 %v237
      %v264 = vunpack.c.l.bf16 %v238
      %v265 = vunpack.c.l.bf16 %v239
      %v266 = vunpack.c.l.bf16 %v240
      %v267 = vunpack.c.l.bf16 %v241
      %v268 = vunpack.c.l.bf16 %v242
      %v269 = vunpack.c.l.bf16 %v243
      %v270 = vunpack.c.l.bf16 %v244
      %v271 = vunpack.c.l.bf16 %v245
      %v272 = vunpack.c.l.bf16 %v246
      %v273 = vunpack.c.l.bf16 %v247
      %v274 = vunpack.c.l.bf16 %v248
      %v275 = vunpack.c.l.bf16 %v249
      %v276 = vunpack.c.l.bf16 %v250
      %v277 = vunpack.c.l.bf16 %v251
      %v278 = vunpack.c.l.bf16 %v252
      %v279 = vunpack.c.l.bf16 %v253
      %v280 = vunpack.c.l.bf16 %v254
      %v281 = vunpack.c.l.bf16 %v255
      %v282 = vld [vmem:[%s211] sm:$0x1]
      %v283 = vld [vmem:[%s211 + $0x4] sm:$0x1]
      %v284 = vld [vmem:[%s211 + $0x8] sm:$0x1]
      %v285 = vld [vmem:[%s211 + $0xc] sm:$0x1]
      %v286 = vld [vmem:[%s211 + $0x10] sm:$0x1]
      %v287 = vld [vmem:[%s211 + $0x14] sm:$0x1]
      %v288 = vunpack.c.l.bf16 %v282
      %v289 = vunpack.c.l.bf16 %v283
      %v290 = vunpack.c.l.bf16 %v284
      %v291 = vunpack.c.l.bf16 %v285
      %v292 = vunpack.c.l.bf16 %v286
      %v293 = vunpack.c.l.bf16 %v287
      %v294 = vperm.slane %v288, 0
      %v295 = vmul.f32 %v256, %v294
      %v296 = vmul.f32 %v257, %v294
      %v297 = vmul.f32 %v258, %v294
      %v298 = vmul.f32 %v259, %v294
      %v299 = vmul.f32 %v260, %v294
      %v300 = vmul.f32 %v261, %v294
      %v301 = vmul.f32 %v262, %v294
      %v302 = vmul.f32 %v263, %v294
      %v303 = vmul.f32 %v264, %v294
      %v304 = vmul.f32 %v265, %v294
      %v305 = vmul.f32 %v266, %v294
      %v306 = vmul.f32 %v267, %v294
      %v307 = vmul.f32 %v268, %v294
      %v308 = vmul.f32 %v269, %v294
      %v309 = vmul.f32 %v270, %v294
      %v310 = vmul.f32 %v271, %v294
      %v311 = vperm.slane %v289, 0
      %v312 = vmul.f32 %v258, %v311
      %v313 = vmul.f32 %v259, %v311
      %v314 = vmul.f32 %v260, %v311
      %v315 = vmul.f32 %v261, %v311
      %v316 = vmul.f32 %v262, %v311
      %v317 = vmul.f32 %v263, %v311
      %v318 = vmul.f32 %v264, %v311
      %v319 = vmul.f32 %v265, %v311
      %v320 = vmul.f32 %v266, %v311
      %v321 = vmul.f32 %v267, %v311
      %v322 = vmul.f32 %v268, %v311
      %v323 = vmul.f32 %v269, %v311
      %v324 = vmul.f32 %v270, %v311
      %v325 = vmul.f32 %v271, %v311
      %v326 = vmul.f32 %v272, %v311
      %v327 = vmul.f32 %v273, %v311
      %v328 = vadd.f32 %v295, %v312
      %v329 = vadd.f32 %v296, %v313
      %v330 = vadd.f32 %v297, %v314
      %v331 = vadd.f32 %v298, %v315
      %v332 = vadd.f32 %v299, %v316
      %v333 = vadd.f32 %v300, %v317
      %v334 = vadd.f32 %v301, %v318
      %v335 = vadd.f32 %v302, %v319
      %v336 = vadd.f32 %v303, %v320
      %v337 = vadd.f32 %v304, %v321
      %v338 = vadd.f32 %v305, %v322
      %v339 = vadd.f32 %v306, %v323
      %v340 = vadd.f32 %v307, %v324
      %v341 = vadd.f32 %v308, %v325
      %v342 = vadd.f32 %v309, %v326
      %v343 = vadd.f32 %v310, %v327
      %v344 = vperm.slane %v290, 0
      %v345 = vmul.f32 %v260, %v344
      %v346 = vmul.f32 %v261, %v344
      %v347 = vmul.f32 %v262, %v344
      %v348 = vmul.f32 %v263, %v344
      %v349 = vmul.f32 %v264, %v344
      %v350 = vmul.f32 %v265, %v344
      %v351 = vmul.f32 %v266, %v344
      %v352 = vmul.f32 %v267, %v344
      %v353 = vmul.f32 %v268, %v344
      %v354 = vmul.f32 %v269, %v344
      %v355 = vmul.f32 %v270, %v344
      %v356 = vmul.f32 %v271, %v344
      %v357 = vmul.f32 %v272, %v344
      %v358 = vmul.f32 %v273, %v344
      %v359 = vmul.f32 %v274, %v344
      %v360 = vmul.f32 %v275, %v344
      %v361 = vadd.f32 %v328, %v345
      %v362 = vadd.f32 %v329, %v346
      %v363 = vadd.f32 %v330, %v347
      %v364 = vadd.f32 %v331, %v348
      %v365 = vadd.f32 %v332, %v349
      %v366 = vadd.f32 %v333, %v350
      %v367 = vadd.f32 %v334, %v351
      %v368 = vadd.f32 %v335, %v352
      %v369 = vadd.f32 %v336, %v353
      %v370 = vadd.f32 %v337, %v354
      %v371 = vadd.f32 %v338, %v355
      %v372 = vadd.f32 %v339, %v356
      %v373 = vadd.f32 %v340, %v357
      %v374 = vadd.f32 %v341, %v358
      %v375 = vadd.f32 %v342, %v359
      %v376 = vadd.f32 %v343, %v360
      %v377 = vperm.slane %v291, 0
      %v378 = vmul.f32 %v262, %v377
      %v379 = vmul.f32 %v263, %v377
      %v380 = vmul.f32 %v264, %v377
      %v381 = vmul.f32 %v265, %v377
      %v382 = vmul.f32 %v266, %v377
      %v383 = vmul.f32 %v267, %v377
      %v384 = vmul.f32 %v268, %v377
      %v385 = vmul.f32 %v269, %v377
      %v386 = vmul.f32 %v270, %v377
      %v387 = vmul.f32 %v271, %v377
      %v388 = vmul.f32 %v272, %v377
      %v389 = vmul.f32 %v273, %v377
      %v390 = vmul.f32 %v274, %v377
      %v391 = vmul.f32 %v275, %v377
      %v392 = vmul.f32 %v276, %v377
      %v393 = vmul.f32 %v277, %v377
      %v394 = vadd.f32 %v361, %v378
      %v395 = vadd.f32 %v362, %v379
      %v396 = vadd.f32 %v363, %v380
      %v397 = vadd.f32 %v364, %v381
      %v398 = vadd.f32 %v365, %v382
      %v399 = vadd.f32 %v366, %v383
      %v400 = vadd.f32 %v367, %v384
      %v401 = vadd.f32 %v368, %v385
      %v402 = vadd.f32 %v369, %v386
      %v403 = vadd.f32 %v370, %v387
      %v404 = vadd.f32 %v371, %v388
      %v405 = vadd.f32 %v372, %v389
      %v406 = vadd.f32 %v373, %v390
      %v407 = vadd.f32 %v374, %v391
      %v408 = vadd.f32 %v375, %v392
      %v409 = vadd.f32 %v376, %v393
      %v410 = vperm.slane %v292, 0
      %v411 = vmul.f32 %v264, %v410
      %v412 = vmul.f32 %v265, %v410
      %v413 = vmul.f32 %v266, %v410
      %v414 = vmul.f32 %v267, %v410
      %v415 = vmul.f32 %v268, %v410
      %v416 = vmul.f32 %v269, %v410
      %v417 = vmul.f32 %v270, %v410
      %v418 = vmul.f32 %v271, %v410
      %v419 = vmul.f32 %v272, %v410
      %v420 = vmul.f32 %v273, %v410
      %v421 = vmul.f32 %v274, %v410
      %v422 = vmul.f32 %v275, %v410
      %v423 = vmul.f32 %v276, %v410
      %v424 = vmul.f32 %v277, %v410
      %v425 = vmul.f32 %v278, %v410
      %v426 = vmul.f32 %v279, %v410
      %v427 = vadd.f32 %v394, %v411
      %v428 = vadd.f32 %v395, %v412
      %v429 = vadd.f32 %v396, %v413
      %v430 = vadd.f32 %v397, %v414
      %v431 = vadd.f32 %v398, %v415
      %v432 = vadd.f32 %v399, %v416
      %v433 = vadd.f32 %v400, %v417
      %v434 = vadd.f32 %v401, %v418
      %v435 = vadd.f32 %v402, %v419
      %v436 = vadd.f32 %v403, %v420
      %v437 = vadd.f32 %v404, %v421
      %v438 = vadd.f32 %v405, %v422
      %v439 = vadd.f32 %v406, %v423
      %v440 = vadd.f32 %v407, %v424
      %v441 = vadd.f32 %v408, %v425
      %v442 = vadd.f32 %v409, %v426
      %v443 = vperm.slane %v293, 0
      %v444 = vmul.f32 %v266, %v443
      %v445 = vmul.f32 %v267, %v443
      %v446 = vmul.f32 %v268, %v443
      %v447 = vmul.f32 %v269, %v443
      %v448 = vmul.f32 %v270, %v443
      %v449 = vmul.f32 %v271, %v443
      %v450 = vmul.f32 %v272, %v443
      %v451 = vmul.f32 %v273, %v443
      %v452 = vmul.f32 %v274, %v443
      %v453 = vmul.f32 %v275, %v443
      %v454 = vmul.f32 %v276, %v443
      %v455 = vmul.f32 %v277, %v443
      %v456 = vmul.f32 %v278, %v443
      %v457 = vmul.f32 %v279, %v443
      %v458 = vmul.f32 %v280, %v443
      %v459 = vmul.f32 %v281, %v443
      %v460 = vadd.f32 %v427, %v444
      %v461 = vadd.f32 %v428, %v445
      %v462 = vadd.f32 %v429, %v446
      %v463 = vadd.f32 %v430, %v447
      %v464 = vadd.f32 %v431, %v448
      %v465 = vadd.f32 %v432, %v449
      %v466 = vadd.f32 %v433, %v450
      %v467 = vadd.f32 %v434, %v451
      %v468 = vadd.f32 %v435, %v452
      %v469 = vadd.f32 %v436, %v453
      %v470 = vadd.f32 %v437, %v454
      %v471 = vadd.f32 %v438, %v455
      %v472 = vadd.f32 %v439, %v456
      %v473 = vadd.f32 %v440, %v457
      %v474 = vadd.f32 %v441, %v458
      %v475 = vadd.f32 %v442, %v459
      %v476 = vperm.slane %v288, 1
      %v477 = vmul.f32 %v256, %v476
      %v478 = vmul.f32 %v257, %v476
      %v479 = vmul.f32 %v258, %v476
      %v480 = vmul.f32 %v259, %v476
      %v481 = vmul.f32 %v260, %v476
      %v482 = vmul.f32 %v261, %v476
      %v483 = vmul.f32 %v262, %v476
      %v484 = vmul.f32 %v263, %v476
      %v485 = vmul.f32 %v264, %v476
      %v486 = vmul.f32 %v265, %v476
      %v487 = vmul.f32 %v266, %v476
      %v488 = vmul.f32 %v267, %v476
      %v489 = vmul.f32 %v268, %v476
      %v490 = vmul.f32 %v269, %v476
      %v491 = vmul.f32 %v270, %v476
      %v492 = vmul.f32 %v271, %v476
      %v493 = vperm.slane %v289, 1
      %v494 = vmul.f32 %v258, %v493
      %v495 = vmul.f32 %v259, %v493
      %v496 = vmul.f32 %v260, %v493
      %v497 = vmul.f32 %v261, %v493
      %v498 = vmul.f32 %v262, %v493
      %v499 = vmul.f32 %v263, %v493
      %v500 = vmul.f32 %v264, %v493
      %v501 = vmul.f32 %v265, %v493
      %v502 = vmul.f32 %v266, %v493
      %v503 = vmul.f32 %v267, %v493
      %v504 = vmul.f32 %v268, %v493
      %v505 = vmul.f32 %v269, %v493
      %v506 = vmul.f32 %v270, %v493
      %v507 = vmul.f32 %v271, %v493
      %v508 = vmul.f32 %v272, %v493
      %v509 = vmul.f32 %v273, %v493
      %v510 = vadd.f32 %v477, %v494
      %v511 = vadd.f32 %v478, %v495
      %v512 = vadd.f32 %v479, %v496
      %v513 = vadd.f32 %v480, %v497
      %v514 = vadd.f32 %v481, %v498
      %v515 = vadd.f32 %v482, %v499
      %v516 = vadd.f32 %v483, %v500
      %v517 = vadd.f32 %v484, %v501
      %v518 = vadd.f32 %v485, %v502
      %v519 = vadd.f32 %v486, %v503
      %v520 = vadd.f32 %v487, %v504
      %v521 = vadd.f32 %v488, %v505
      %v522 = vadd.f32 %v489, %v506
      %v523 = vadd.f32 %v490, %v507
      %v524 = vadd.f32 %v491, %v508
      %v525 = vadd.f32 %v492, %v509
      %v526 = vperm.slane %v290, 1
      %v527 = vmul.f32 %v260, %v526
      %v528 = vmul.f32 %v261, %v526
      %v529 = vmul.f32 %v262, %v526
      %v530 = vmul.f32 %v263, %v526
      %v531 = vmul.f32 %v264, %v526
      %v532 = vmul.f32 %v265, %v526
      %v533 = vmul.f32 %v266, %v526
      %v534 = vmul.f32 %v267, %v526
      %v535 = vmul.f32 %v268, %v526
      %v536 = vmul.f32 %v269, %v526
      %v537 = vmul.f32 %v270, %v526
      %v538 = vmul.f32 %v271, %v526
      %v539 = vmul.f32 %v272, %v526
      %v540 = vmul.f32 %v273, %v526
      %v541 = vmul.f32 %v274, %v526
      %v542 = vmul.f32 %v275, %v526
      %v543 = vadd.f32 %v510, %v527
      %v544 = vadd.f32 %v511, %v528
      %v545 = vadd.f32 %v512, %v529
      %v546 = vadd.f32 %v513, %v530
      %v547 = vadd.f32 %v514, %v531
      %v548 = vadd.f32 %v515, %v532
      %v549 = vadd.f32 %v516, %v533
      %v550 = vadd.f32 %v517, %v534
      %v551 = vadd.f32 %v518, %v535
      %v552 = vadd.f32 %v519, %v536
      %v553 = vadd.f32 %v520, %v537
      %v554 = vadd.f32 %v521, %v538
      %v555 = vadd.f32 %v522, %v539
      %v556 = vadd.f32 %v523, %v540
      %v557 = vadd.f32 %v524, %v541
      %v558 = vadd.f32 %v525, %v542
      %v559 = vperm.slane %v291, 1
      %v560 = vmul.f32 %v262, %v559
      %v561 = vmul.f32 %v263, %v559
      %v562 = vmul.f32 %v264, %v559
      %v563 = vmul.f32 %v265, %v559
      %v564 = vmul.f32 %v266, %v559
      %v565 = vmul.f32 %v267, %v559
      %v566 = vmul.f32 %v268, %v559
      %v567 = vmul.f32 %v269, %v559
      %v568 = vmul.f32 %v270, %v559
      %v569 = vmul.f32 %v271, %v559
      %v570 = vmul.f32 %v272, %v559
      %v571 = vmul.f32 %v273, %v559
      %v572 = vmul.f32 %v274, %v559
      %v573 = vmul.f32 %v275, %v559
      %v574 = vmul.f32 %v276, %v559
      %v575 = vmul.f32 %v277, %v559
      %v576 = vadd.f32 %v543, %v560
      %v577 = vadd.f32 %v544, %v561
      %v578 = vadd.f32 %v545, %v562
      %v579 = vadd.f32 %v546, %v563
      %v580 = vadd.f32 %v547, %v564
      %v581 = vadd.f32 %v548, %v565
      %v582 = vadd.f32 %v549, %v566
      %v583 = vadd.f32 %v550, %v567
      %v584 = vadd.f32 %v551, %v568
      %v585 = vadd.f32 %v552, %v569
      %v586 = vadd.f32 %v553, %v570
      %v587 = vadd.f32 %v554, %v571
      %v588 = vadd.f32 %v555, %v572
      %v589 = vadd.f32 %v556, %v573
      %v590 = vadd.f32 %v557, %v574
      %v591 = vadd.f32 %v558, %v575
      %v592 = vperm.slane %v292, 1
      %v593 = vmul.f32 %v264, %v592
      %v594 = vmul.f32 %v265, %v592
      %v595 = vmul.f32 %v266, %v592
      %v596 = vmul.f32 %v267, %v592
      %v597 = vmul.f32 %v268, %v592
      %v598 = vmul.f32 %v269, %v592
      %v599 = vmul.f32 %v270, %v592
      %v600 = vmul.f32 %v271, %v592
      %v601 = vmul.f32 %v272, %v592
      %v602 = vmul.f32 %v273, %v592
      %v603 = vmul.f32 %v274, %v592
      %v604 = vmul.f32 %v275, %v592
      %v605 = vmul.f32 %v276, %v592
      %v606 = vmul.f32 %v277, %v592
      %v607 = vmul.f32 %v278, %v592
      %v608 = vmul.f32 %v279, %v592
      %v609 = vadd.f32 %v576, %v593
      %v610 = vadd.f32 %v577, %v594
      %v611 = vadd.f32 %v578, %v595
      %v612 = vadd.f32 %v579, %v596
      %v613 = vadd.f32 %v580, %v597
      %v614 = vadd.f32 %v581, %v598
      %v615 = vadd.f32 %v582, %v599
      %v616 = vadd.f32 %v583, %v600
      %v617 = vadd.f32 %v584, %v601
      %v618 = vadd.f32 %v585, %v602
      %v619 = vadd.f32 %v586, %v603
      %v620 = vadd.f32 %v587, %v604
      %v621 = vadd.f32 %v588, %v605
      %v622 = vadd.f32 %v589, %v606
      %v623 = vadd.f32 %v590, %v607
      %v624 = vadd.f32 %v591, %v608
      %v625 = vperm.slane %v293, 1
      %v626 = vmul.f32 %v266, %v625
      %v627 = vmul.f32 %v267, %v625
      %v628 = vmul.f32 %v268, %v625
      %v629 = vmul.f32 %v269, %v625
      %v630 = vmul.f32 %v270, %v625
      %v631 = vmul.f32 %v271, %v625
      %v632 = vmul.f32 %v272, %v625
      %v633 = vmul.f32 %v273, %v625
      %v634 = vmul.f32 %v274, %v625
      %v635 = vmul.f32 %v275, %v625
      %v636 = vmul.f32 %v276, %v625
      %v637 = vmul.f32 %v277, %v625
      %v638 = vmul.f32 %v278, %v625
      %v639 = vmul.f32 %v279, %v625
      %v640 = vmul.f32 %v280, %v625
      %v641 = vmul.f32 %v281, %v625
      %v642 = vadd.f32 %v609, %v626
      %v643 = vadd.f32 %v610, %v627
      %v644 = vadd.f32 %v611, %v628
      %v645 = vadd.f32 %v612, %v629
      %v646 = vadd.f32 %v613, %v630
      %v647 = vadd.f32 %v614, %v631
      %v648 = vadd.f32 %v615, %v632
      %v649 = vadd.f32 %v616, %v633
      %v650 = vadd.f32 %v617, %v634
      %v651 = vadd.f32 %v618, %v635
      %v652 = vadd.f32 %v619, %v636
      %v653 = vadd.f32 %v620, %v637
      %v654 = vadd.f32 %v621, %v638
      %v655 = vadd.f32 %v622, %v639
      %v656 = vadd.f32 %v623, %v640
      %v657 = vadd.f32 %v624, %v641
      %vm674 = vcmask 1046528
      %v675 = vrot.slane %v642, 1
      %v676 = vrot.slane %v643, 1
      %v677 = vsel %vm674, %v675, %v676
      %v678 = vrot.slane %v644, 1
      %v679 = vrot.slane %v645, 1
      %v680 = vsel %vm674, %v678, %v679
      %v681 = vrot.slane %v646, 1
      %v682 = vrot.slane %v647, 1
      %v683 = vsel %vm674, %v681, %v682
      %v684 = vrot.slane %v648, 1
      %v685 = vrot.slane %v649, 1
      %v686 = vsel %vm674, %v684, %v685
      %v687 = vrot.slane %v650, 1
      %v688 = vrot.slane %v651, 1
      %v689 = vsel %vm674, %v687, %v688
      %v690 = vrot.slane %v652, 1
      %v691 = vrot.slane %v653, 1
      %v692 = vsel %vm674, %v690, %v691
      %v693 = vrot.slane %v654, 1
      %v694 = vrot.slane %v655, 1
      %v695 = vsel %vm674, %v693, %v694
      %v696 = vrot.slane %v656, 1
      %v697 = vrot.slane %v657, 1
      %v698 = vsel %vm674, %v696, %v697
      %v715 = vadd.f32 %v460, %v677
      %v716 = vadd.f32 %v461, %v676
      %v717 = vadd.f32 %v462, %v680
      %v718 = vadd.f32 %v463, %v679
      %v719 = vadd.f32 %v464, %v683
      %v720 = vadd.f32 %v465, %v682
      %v721 = vadd.f32 %v466, %v686
      %v722 = vadd.f32 %v467, %v685
      %v723 = vadd.f32 %v468, %v689
      %v724 = vadd.f32 %v469, %v688
      %v725 = vadd.f32 %v470, %v692
      %v726 = vadd.f32 %v471, %v691
      %v727 = vadd.f32 %v472, %v695
      %v728 = vadd.f32 %v473, %v694
      %v729 = vadd.f32 %v474, %v698
      %v730 = vadd.f32 %v475, %v697
      %v731 = vld [vmem:[%s229] sm:$0xe]
      %v732 = vld [vmem:[%s229 + $0x4] sm:$0x3]
      %v733 = vld [vmem:[%s229 + $0x8] sm:$0xe]
      %v734 = vld [vmem:[%s229 + $0xc] sm:$0x3]
      %v735 = vld [vmem:[%s229 + $0x10] sm:$0xe]
      %v736 = vld [vmem:[%s229 + $0x14] sm:$0x3]
      %v737 = vld [vmem:[%s229 + $0x18] sm:$0xe]
      %v738 = vld [vmem:[%s229 + $0x1c] sm:$0x3]
      %v739 = vld [vmem:[%s229 + $0x20] sm:$0xe]
      %v740 = vld [vmem:[%s229 + $0x24] sm:$0x3]
      %v741 = vld [vmem:[%s229 + $0x28] sm:$0xe]
      %v742 = vld [vmem:[%s229 + $0x2c] sm:$0x3]
      %v743 = vld [vmem:[%s229 + $0x30] sm:$0xe]
      %v744 = vld [vmem:[%s229 + $0x34] sm:$0x3]
      %v745 = vld [vmem:[%s229 + $0x38] sm:$0xe]
      %v746 = vld [vmem:[%s229 + $0x3c] sm:$0x3]
      %v747 = vld [vmem:[%s229 + $0x40] sm:$0xe]
      %v748 = vld [vmem:[%s229 + $0x44] sm:$0x3]
      %v749 = vld [vmem:[%s229 + $0x48] sm:$0xe]
      %v750 = vld [vmem:[%s229 + $0x4c] sm:$0x3]
      %v751 = vld [vmem:[%s229 + $0x50] sm:$0xe]
      %v752 = vld [vmem:[%s229 + $0x54] sm:$0x3]
      %v753 = vld [vmem:[%s229 + $0x58] sm:$0xe]
      %v754 = vld [vmem:[%s229 + $0x5c] sm:$0x3]
      %v755 = vld [vmem:[%s229 + $0x60] sm:$0xe]
      %v756 = vld [vmem:[%s229 + $0x64] sm:$0x3]
      %v757 = vunpack.c.l.bf16 %v731
      %v758 = vunpack.c.l.bf16 %v732
      %v759 = vunpack.c.l.bf16 %v733
      %v760 = vunpack.c.l.bf16 %v734
      %v761 = vunpack.c.l.bf16 %v735
      %v762 = vunpack.c.l.bf16 %v736
      %v763 = vunpack.c.l.bf16 %v737
      %v764 = vunpack.c.l.bf16 %v738
      %v765 = vunpack.c.l.bf16 %v739
      %v766 = vunpack.c.l.bf16 %v740
      %v767 = vunpack.c.l.bf16 %v741
      %v768 = vunpack.c.l.bf16 %v742
      %v769 = vunpack.c.l.bf16 %v743
      %v770 = vunpack.c.l.bf16 %v744
      %v771 = vunpack.c.l.bf16 %v745
      %v772 = vunpack.c.l.bf16 %v746
      %v773 = vunpack.c.l.bf16 %v747
      %v774 = vunpack.c.l.bf16 %v748
      %v775 = vunpack.c.l.bf16 %v749
      %v776 = vunpack.c.l.bf16 %v750
      %v777 = vunpack.c.l.bf16 %v751
      %v778 = vunpack.c.l.bf16 %v752
      %v779 = vunpack.c.l.bf16 %v753
      %v780 = vunpack.c.l.bf16 %v754
      %v781 = vunpack.c.l.bf16 %v755
      %v782 = vunpack.c.l.bf16 %v756
      %v783 = vld [vmem:[%s211] sm:$0x2]
      %v784 = vld [vmem:[%s211 + $0x4] sm:$0x2]
      %v785 = vld [vmem:[%s211 + $0x8] sm:$0x2]
      %v786 = vld [vmem:[%s211 + $0xc] sm:$0x2]
      %v787 = vld [vmem:[%s211 + $0x10] sm:$0x2]
      %v788 = vld [vmem:[%s211 + $0x14] sm:$0x2]
      %v789 = vunpack.c.l.bf16 %v783
      %v790 = vunpack.c.l.bf16 %v784
      %v791 = vunpack.c.l.bf16 %v785
      %v792 = vunpack.c.l.bf16 %v786
      %v793 = vunpack.c.l.bf16 %v787
      %v794 = vunpack.c.l.bf16 %v788
      %v795 = vperm.slane %v789, 2
      %v796 = vmul.f32 %v757, %v795
      %v797 = vmul.f32 %v758, %v795
      %v798 = vmul.f32 %v759, %v795
      %v799 = vmul.f32 %v760, %v795
      %v800 = vmul.f32 %v761, %v795
      %v801 = vmul.f32 %v762, %v795
      %v802 = vmul.f32 %v763, %v795
      %v803 = vmul.f32 %v764, %v795
      %v804 = vmul.f32 %v765, %v795
      %v805 = vmul.f32 %v766, %v795
      %v806 = vmul.f32 %v767, %v795
      %v807 = vmul.f32 %v768, %v795
      %v808 = vmul.f32 %v769, %v795
      %v809 = vmul.f32 %v770, %v795
      %v810 = vmul.f32 %v771, %v795
      %v811 = vmul.f32 %v772, %v795
      %v812 = vperm.slane %v790, 2
      %v813 = vmul.f32 %v759, %v812
      %v814 = vmul.f32 %v760, %v812
      %v815 = vmul.f32 %v761, %v812
      %v816 = vmul.f32 %v762, %v812
      %v817 = vmul.f32 %v763, %v812
      %v818 = vmul.f32 %v764, %v812
      %v819 = vmul.f32 %v765, %v812
      %v820 = vmul.f32 %v766, %v812
      %v821 = vmul.f32 %v767, %v812
      %v822 = vmul.f32 %v768, %v812
      %v823 = vmul.f32 %v769, %v812
      %v824 = vmul.f32 %v770, %v812
      %v825 = vmul.f32 %v771, %v812
      %v826 = vmul.f32 %v772, %v812
      %v827 = vmul.f32 %v773, %v812
      %v828 = vmul.f32 %v774, %v812
      %v829 = vadd.f32 %v796, %v813
      %v830 = vadd.f32 %v797, %v814
      %v831 = vadd.f32 %v798, %v815
      %v832 = vadd.f32 %v799, %v816
      %v833 = vadd.f32 %v800, %v817
      %v834 = vadd.f32 %v801, %v818
      %v835 = vadd.f32 %v802, %v819
      %v836 = vadd.f32 %v803, %v820
      %v837 = vadd.f32 %v804, %v821
      %v838 = vadd.f32 %v805, %v822
      %v839 = vadd.f32 %v806, %v823
      %v840 = vadd.f32 %v807, %v824
      %v841 = vadd.f32 %v808, %v825
      %v842 = vadd.f32 %v809, %v826
      %v843 = vadd.f32 %v810, %v827
      %v844 = vadd.f32 %v811, %v828
      %v845 = vperm.slane %v791, 2
      %v846 = vmul.f32 %v761, %v845
      %v847 = vmul.f32 %v762, %v845
      %v848 = vmul.f32 %v763, %v845
      %v849 = vmul.f32 %v764, %v845
      %v850 = vmul.f32 %v765, %v845
      %v851 = vmul.f32 %v766, %v845
      %v852 = vmul.f32 %v767, %v845
      %v853 = vmul.f32 %v768, %v845
      %v854 = vmul.f32 %v769, %v845
      %v855 = vmul.f32 %v770, %v845
      %v856 = vmul.f32 %v771, %v845
      %v857 = vmul.f32 %v772, %v845
      %v858 = vmul.f32 %v773, %v845
      %v859 = vmul.f32 %v774, %v845
      %v860 = vmul.f32 %v775, %v845
      %v861 = vmul.f32 %v776, %v845
      %v862 = vadd.f32 %v829, %v846
      %v863 = vadd.f32 %v830, %v847
      %v864 = vadd.f32 %v831, %v848
      %v865 = vadd.f32 %v832, %v849
      %v866 = vadd.f32 %v833, %v850
      %v867 = vadd.f32 %v834, %v851
      %v868 = vadd.f32 %v835, %v852
      %v869 = vadd.f32 %v836, %v853
      %v870 = vadd.f32 %v837, %v854
      %v871 = vadd.f32 %v838, %v855
      %v872 = vadd.f32 %v839, %v856
      %v873 = vadd.f32 %v840, %v857
      %v874 = vadd.f32 %v841, %v858
      %v875 = vadd.f32 %v842, %v859
      %v876 = vadd.f32 %v843, %v860
      %v877 = vadd.f32 %v844, %v861
      %v878 = vperm.slane %v792, 2
      %v879 = vmul.f32 %v763, %v878
      %v880 = vmul.f32 %v764, %v878
      %v881 = vmul.f32 %v765, %v878
      %v882 = vmul.f32 %v766, %v878
      %v883 = vmul.f32 %v767, %v878
      %v884 = vmul.f32 %v768, %v878
      %v885 = vmul.f32 %v769, %v878
      %v886 = vmul.f32 %v770, %v878
      %v887 = vmul.f32 %v771, %v878
      %v888 = vmul.f32 %v772, %v878
      %v889 = vmul.f32 %v773, %v878
      %v890 = vmul.f32 %v774, %v878
      %v891 = vmul.f32 %v775, %v878
      %v892 = vmul.f32 %v776, %v878
      %v893 = vmul.f32 %v777, %v878
      %v894 = vmul.f32 %v778, %v878
      %v895 = vadd.f32 %v862, %v879
      %v896 = vadd.f32 %v863, %v880
      %v897 = vadd.f32 %v864, %v881
      %v898 = vadd.f32 %v865, %v882
      %v899 = vadd.f32 %v866, %v883
      %v900 = vadd.f32 %v867, %v884
      %v901 = vadd.f32 %v868, %v885
      %v902 = vadd.f32 %v869, %v886
      %v903 = vadd.f32 %v870, %v887
      %v904 = vadd.f32 %v871, %v888
      %v905 = vadd.f32 %v872, %v889
      %v906 = vadd.f32 %v873, %v890
      %v907 = vadd.f32 %v874, %v891
      %v908 = vadd.f32 %v875, %v892
      %v909 = vadd.f32 %v876, %v893
      %v910 = vadd.f32 %v877, %v894
      %v911 = vperm.slane %v793, 2
      %v912 = vmul.f32 %v765, %v911
      %v913 = vmul.f32 %v766, %v911
      %v914 = vmul.f32 %v767, %v911
      %v915 = vmul.f32 %v768, %v911
      %v916 = vmul.f32 %v769, %v911
      %v917 = vmul.f32 %v770, %v911
      %v918 = vmul.f32 %v771, %v911
      %v919 = vmul.f32 %v772, %v911
      %v920 = vmul.f32 %v773, %v911
      %v921 = vmul.f32 %v774, %v911
      %v922 = vmul.f32 %v775, %v911
      %v923 = vmul.f32 %v776, %v911
      %v924 = vmul.f32 %v777, %v911
      %v925 = vmul.f32 %v778, %v911
      %v926 = vmul.f32 %v779, %v911
      %v927 = vmul.f32 %v780, %v911
      %v928 = vadd.f32 %v895, %v912
      %v929 = vadd.f32 %v896, %v913
      %v930 = vadd.f32 %v897, %v914
      %v931 = vadd.f32 %v898, %v915
      %v932 = vadd.f32 %v899, %v916
      %v933 = vadd.f32 %v900, %v917
      %v934 = vadd.f32 %v901, %v918
      %v935 = vadd.f32 %v902, %v919
      %v936 = vadd.f32 %v903, %v920
      %v937 = vadd.f32 %v904, %v921
      %v938 = vadd.f32 %v905, %v922
      %v939 = vadd.f32 %v906, %v923
      %v940 = vadd.f32 %v907, %v924
      %v941 = vadd.f32 %v908, %v925
      %v942 = vadd.f32 %v909, %v926
      %v943 = vadd.f32 %v910, %v927
      %v944 = vperm.slane %v794, 2
      %v945 = vmul.f32 %v767, %v944
      %v946 = vmul.f32 %v768, %v944
      %v947 = vmul.f32 %v769, %v944
      %v948 = vmul.f32 %v770, %v944
      %v949 = vmul.f32 %v771, %v944
      %v950 = vmul.f32 %v772, %v944
      %v951 = vmul.f32 %v773, %v944
      %v952 = vmul.f32 %v774, %v944
      %v953 = vmul.f32 %v775, %v944
      %v954 = vmul.f32 %v776, %v944
      %v955 = vmul.f32 %v777, %v944
      %v956 = vmul.f32 %v778, %v944
      %v957 = vmul.f32 %v779, %v944
      %v958 = vmul.f32 %v780, %v944
      %v959 = vmul.f32 %v781, %v944
      %v960 = vmul.f32 %v782, %v944
      %v961 = vadd.f32 %v928, %v945
      %v962 = vadd.f32 %v929, %v946
      %v963 = vadd.f32 %v930, %v947
      %v964 = vadd.f32 %v931, %v948
      %v965 = vadd.f32 %v932, %v949
      %v966 = vadd.f32 %v933, %v950
      %v967 = vadd.f32 %v934, %v951
      %v968 = vadd.f32 %v935, %v952
      %v969 = vadd.f32 %v936, %v953
      %v970 = vadd.f32 %v937, %v954
      %v971 = vadd.f32 %v938, %v955
      %v972 = vadd.f32 %v939, %v956
      %v973 = vadd.f32 %v940, %v957
      %v974 = vadd.f32 %v941, %v958
      %v975 = vadd.f32 %v942, %v959
      %v976 = vadd.f32 %v943, %v960
      %vm993 = vcmask 1045504
      %v994 = vrot.slane %v961, 2
      %v995 = vrot.slane %v962, 2
      %v996 = vsel %vm993, %v994, %v995
      %v997 = vrot.slane %v963, 2
      %v998 = vrot.slane %v964, 2
      %v999 = vsel %vm993, %v997, %v998
      %v1000 = vrot.slane %v965, 2
      %v1001 = vrot.slane %v966, 2
      %v1002 = vsel %vm993, %v1000, %v1001
      %v1003 = vrot.slane %v967, 2
      %v1004 = vrot.slane %v968, 2
      %v1005 = vsel %vm993, %v1003, %v1004
      %v1006 = vrot.slane %v969, 2
      %v1007 = vrot.slane %v970, 2
      %v1008 = vsel %vm993, %v1006, %v1007
      %v1009 = vrot.slane %v971, 2
      %v1010 = vrot.slane %v972, 2
      %v1011 = vsel %vm993, %v1009, %v1010
      %v1012 = vrot.slane %v973, 2
      %v1013 = vrot.slane %v974, 2
      %v1014 = vsel %vm993, %v1012, %v1013
      %v1015 = vrot.slane %v975, 2
      %v1016 = vrot.slane %v976, 2
      %v1017 = vsel %vm993, %v1015, %v1016
      %v1034 = vadd.f32 %v715, %v996
      %v1035 = vadd.f32 %v716, %v995
      %v1036 = vadd.f32 %v717, %v999
      %v1037 = vadd.f32 %v718, %v998
      %v1038 = vadd.f32 %v719, %v1002
      %v1039 = vadd.f32 %v720, %v1001
      %v1040 = vadd.f32 %v721, %v1005
      %v1041 = vadd.f32 %v722, %v1004
      %v1042 = vadd.f32 %v723, %v1008
      %v1043 = vadd.f32 %v724, %v1007
      %v1044 = vadd.f32 %v725, %v1011
      %v1045 = vadd.f32 %v726, %v1010
      %v1046 = vadd.f32 %v727, %v1014
      %v1047 = vadd.f32 %v728, %v1013
      %v1048 = vadd.f32 %v729, %v1017
      %v1049 = vadd.f32 %v730, %v1016
      %v1050 = vperm.slane %v789, 3
      %v1051 = vmul.f32 %v757, %v1050
      %v1052 = vmul.f32 %v758, %v1050
      %v1053 = vmul.f32 %v759, %v1050
      %v1054 = vmul.f32 %v760, %v1050
      %v1055 = vmul.f32 %v761, %v1050
      %v1056 = vmul.f32 %v762, %v1050
      %v1057 = vmul.f32 %v763, %v1050
      %v1058 = vmul.f32 %v764, %v1050
      %v1059 = vmul.f32 %v765, %v1050
      %v1060 = vmul.f32 %v766, %v1050
      %v1061 = vmul.f32 %v767, %v1050
      %v1062 = vmul.f32 %v768, %v1050
      %v1063 = vmul.f32 %v769, %v1050
      %v1064 = vmul.f32 %v770, %v1050
      %v1065 = vmul.f32 %v771, %v1050
      %v1066 = vmul.f32 %v772, %v1050
      %v1067 = vperm.slane %v790, 3
      %v1068 = vmul.f32 %v759, %v1067
      %v1069 = vmul.f32 %v760, %v1067
      %v1070 = vmul.f32 %v761, %v1067
      %v1071 = vmul.f32 %v762, %v1067
      %v1072 = vmul.f32 %v763, %v1067
      %v1073 = vmul.f32 %v764, %v1067
      %v1074 = vmul.f32 %v765, %v1067
      %v1075 = vmul.f32 %v766, %v1067
      %v1076 = vmul.f32 %v767, %v1067
      %v1077 = vmul.f32 %v768, %v1067
      %v1078 = vmul.f32 %v769, %v1067
      %v1079 = vmul.f32 %v770, %v1067
      %v1080 = vmul.f32 %v771, %v1067
      %v1081 = vmul.f32 %v772, %v1067
      %v1082 = vmul.f32 %v773, %v1067
      %v1083 = vmul.f32 %v774, %v1067
      %v1084 = vadd.f32 %v1051, %v1068
      %v1085 = vadd.f32 %v1052, %v1069
      %v1086 = vadd.f32 %v1053, %v1070
      %v1087 = vadd.f32 %v1054, %v1071
      %v1088 = vadd.f32 %v1055, %v1072
      %v1089 = vadd.f32 %v1056, %v1073
      %v1090 = vadd.f32 %v1057, %v1074
      %v1091 = vadd.f32 %v1058, %v1075
      %v1092 = vadd.f32 %v1059, %v1076
      %v1093 = vadd.f32 %v1060, %v1077
      %v1094 = vadd.f32 %v1061, %v1078
      %v1095 = vadd.f32 %v1062, %v1079
      %v1096 = vadd.f32 %v1063, %v1080
      %v1097 = vadd.f32 %v1064, %v1081
      %v1098 = vadd.f32 %v1065, %v1082
      %v1099 = vadd.f32 %v1066, %v1083
      %v1100 = vperm.slane %v791, 3
      %v1101 = vmul.f32 %v761, %v1100
      %v1102 = vmul.f32 %v762, %v1100
      %v1103 = vmul.f32 %v763, %v1100
      %v1104 = vmul.f32 %v764, %v1100
      %v1105 = vmul.f32 %v765, %v1100
      %v1106 = vmul.f32 %v766, %v1100
      %v1107 = vmul.f32 %v767, %v1100
      %v1108 = vmul.f32 %v768, %v1100
      %v1109 = vmul.f32 %v769, %v1100
      %v1110 = vmul.f32 %v770, %v1100
      %v1111 = vmul.f32 %v771, %v1100
      %v1112 = vmul.f32 %v772, %v1100
      %v1113 = vmul.f32 %v773, %v1100
      %v1114 = vmul.f32 %v774, %v1100
      %v1115 = vmul.f32 %v775, %v1100
      %v1116 = vmul.f32 %v776, %v1100
      %v1117 = vadd.f32 %v1084, %v1101
      %v1118 = vadd.f32 %v1085, %v1102
      %v1119 = vadd.f32 %v1086, %v1103
      %v1120 = vadd.f32 %v1087, %v1104
      %v1121 = vadd.f32 %v1088, %v1105
      %v1122 = vadd.f32 %v1089, %v1106
      %v1123 = vadd.f32 %v1090, %v1107
      %v1124 = vadd.f32 %v1091, %v1108
      %v1125 = vadd.f32 %v1092, %v1109
      %v1126 = vadd.f32 %v1093, %v1110
      %v1127 = vadd.f32 %v1094, %v1111
      %v1128 = vadd.f32 %v1095, %v1112
      %v1129 = vadd.f32 %v1096, %v1113
      %v1130 = vadd.f32 %v1097, %v1114
      %v1131 = vadd.f32 %v1098, %v1115
      %v1132 = vadd.f32 %v1099, %v1116
      %v1133 = vperm.slane %v792, 3
      %v1134 = vmul.f32 %v763, %v1133
      %v1135 = vmul.f32 %v764, %v1133
      %v1136 = vmul.f32 %v765, %v1133
      %v1137 = vmul.f32 %v766, %v1133
      %v1138 = vmul.f32 %v767, %v1133
      %v1139 = vmul.f32 %v768, %v1133
      %v1140 = vmul.f32 %v769, %v1133
      %v1141 = vmul.f32 %v770, %v1133
      %v1142 = vmul.f32 %v771, %v1133
      %v1143 = vmul.f32 %v772, %v1133
      %v1144 = vmul.f32 %v773, %v1133
      %v1145 = vmul.f32 %v774, %v1133
      %v1146 = vmul.f32 %v775, %v1133
      %v1147 = vmul.f32 %v776, %v1133
      %v1148 = vmul.f32 %v777, %v1133
      %v1149 = vmul.f32 %v778, %v1133
      %v1150 = vadd.f32 %v1117, %v1134
      %v1151 = vadd.f32 %v1118, %v1135
      %v1152 = vadd.f32 %v1119, %v1136
      %v1153 = vadd.f32 %v1120, %v1137
      %v1154 = vadd.f32 %v1121, %v1138
      %v1155 = vadd.f32 %v1122, %v1139
      %v1156 = vadd.f32 %v1123, %v1140
      %v1157 = vadd.f32 %v1124, %v1141
      %v1158 = vadd.f32 %v1125, %v1142
      %v1159 = vadd.f32 %v1126, %v1143
      %v1160 = vadd.f32 %v1127, %v1144
      %v1161 = vadd.f32 %v1128, %v1145
      %v1162 = vadd.f32 %v1129, %v1146
      %v1163 = vadd.f32 %v1130, %v1147
      %v1164 = vadd.f32 %v1131, %v1148
      %v1165 = vadd.f32 %v1132, %v1149
      %v1166 = vperm.slane %v793, 3
      %v1167 = vmul.f32 %v765, %v1166
      %v1168 = vmul.f32 %v766, %v1166
      %v1169 = vmul.f32 %v767, %v1166
      %v1170 = vmul.f32 %v768, %v1166
      %v1171 = vmul.f32 %v769, %v1166
      %v1172 = vmul.f32 %v770, %v1166
      %v1173 = vmul.f32 %v771, %v1166
      %v1174 = vmul.f32 %v772, %v1166
      %v1175 = vmul.f32 %v773, %v1166
      %v1176 = vmul.f32 %v774, %v1166
      %v1177 = vmul.f32 %v775, %v1166
      %v1178 = vmul.f32 %v776, %v1166
      %v1179 = vmul.f32 %v777, %v1166
      %v1180 = vmul.f32 %v778, %v1166
      %v1181 = vmul.f32 %v779, %v1166
      %v1182 = vmul.f32 %v780, %v1166
      %v1183 = vadd.f32 %v1150, %v1167
      %v1184 = vadd.f32 %v1151, %v1168
      %v1185 = vadd.f32 %v1152, %v1169
      %v1186 = vadd.f32 %v1153, %v1170
      %v1187 = vadd.f32 %v1154, %v1171
      %v1188 = vadd.f32 %v1155, %v1172
      %v1189 = vadd.f32 %v1156, %v1173
      %v1190 = vadd.f32 %v1157, %v1174
      %v1191 = vadd.f32 %v1158, %v1175
      %v1192 = vadd.f32 %v1159, %v1176
      %v1193 = vadd.f32 %v1160, %v1177
      %v1194 = vadd.f32 %v1161, %v1178
      %v1195 = vadd.f32 %v1162, %v1179
      %v1196 = vadd.f32 %v1163, %v1180
      %v1197 = vadd.f32 %v1164, %v1181
      %v1198 = vadd.f32 %v1165, %v1182
      %v1199 = vperm.slane %v794, 3
      %v1200 = vmul.f32 %v767, %v1199
      %v1201 = vmul.f32 %v768, %v1199
      %v1202 = vmul.f32 %v769, %v1199
      %v1203 = vmul.f32 %v770, %v1199
      %v1204 = vmul.f32 %v771, %v1199
      %v1205 = vmul.f32 %v772, %v1199
      %v1206 = vmul.f32 %v773, %v1199
      %v1207 = vmul.f32 %v774, %v1199
      %v1208 = vmul.f32 %v775, %v1199
      %v1209 = vmul.f32 %v776, %v1199
      %v1210 = vmul.f32 %v777, %v1199
      %v1211 = vmul.f32 %v778, %v1199
      %v1212 = vmul.f32 %v779, %v1199
      %v1213 = vmul.f32 %v780, %v1199
      %v1214 = vmul.f32 %v781, %v1199
      %v1215 = vmul.f32 %v782, %v1199
      %v1216 = vadd.f32 %v1183, %v1200
      %v1217 = vadd.f32 %v1184, %v1201
      %v1218 = vadd.f32 %v1185, %v1202
      %v1219 = vadd.f32 %v1186, %v1203
      %v1220 = vadd.f32 %v1187, %v1204
      %v1221 = vadd.f32 %v1188, %v1205
      %v1222 = vadd.f32 %v1189, %v1206
      %v1223 = vadd.f32 %v1190, %v1207
      %v1224 = vadd.f32 %v1191, %v1208
      %v1225 = vadd.f32 %v1192, %v1209
      %v1226 = vadd.f32 %v1193, %v1210
      %v1227 = vadd.f32 %v1194, %v1211
      %v1228 = vadd.f32 %v1195, %v1212
      %v1229 = vadd.f32 %v1196, %v1213
      %v1230 = vadd.f32 %v1197, %v1214
      %v1231 = vadd.f32 %v1198, %v1215
      %vm1248 = vcmask 1044480
      %v1249 = vrot.slane %v1216, 3
      %v1250 = vrot.slane %v1217, 3
      %v1251 = vsel %vm1248, %v1249, %v1250
      %v1252 = vrot.slane %v1218, 3
      %v1253 = vrot.slane %v1219, 3
      %v1254 = vsel %vm1248, %v1252, %v1253
      %v1255 = vrot.slane %v1220, 3
      %v1256 = vrot.slane %v1221, 3
      %v1257 = vsel %vm1248, %v1255, %v1256
      %v1258 = vrot.slane %v1222, 3
      %v1259 = vrot.slane %v1223, 3
      %v1260 = vsel %vm1248, %v1258, %v1259
      %v1261 = vrot.slane %v1224, 3
      %v1262 = vrot.slane %v1225, 3
      %v1263 = vsel %vm1248, %v1261, %v1262
      %v1264 = vrot.slane %v1226, 3
      %v1265 = vrot.slane %v1227, 3
      %v1266 = vsel %vm1248, %v1264, %v1265
      %v1267 = vrot.slane %v1228, 3
      %v1268 = vrot.slane %v1229, 3
      %v1269 = vsel %vm1248, %v1267, %v1268
      %v1270 = vrot.slane %v1230, 3
      %v1271 = vrot.slane %v1231, 3
      %v1272 = vsel %vm1248, %v1270, %v1271
      %v1289 = vadd.f32 %v1034, %v1251
      %v1290 = vadd.f32 %v1035, %v1250
      %v1291 = vadd.f32 %v1036, %v1254
      %v1292 = vadd.f32 %v1037, %v1253
      %v1293 = vadd.f32 %v1038, %v1257
      %v1294 = vadd.f32 %v1039, %v1256
      %v1295 = vadd.f32 %v1040, %v1260
      %v1296 = vadd.f32 %v1041, %v1259
      %v1297 = vadd.f32 %v1042, %v1263
      %v1298 = vadd.f32 %v1043, %v1262
      %v1299 = vadd.f32 %v1044, %v1266
      %v1300 = vadd.f32 %v1045, %v1265
      %v1301 = vadd.f32 %v1046, %v1269
      %v1302 = vadd.f32 %v1047, %v1268
      %v1303 = vadd.f32 %v1048, %v1272
      %v1304 = vadd.f32 %v1049, %v1271
      %v1305 = vld [vmem:[%s229] sm:$0xc]
      %v1306 = vld [vmem:[%s229 + $0x4] sm:$0x7]
      %v1307 = vld [vmem:[%s229 + $0x8] sm:$0xc]
      %v1308 = vld [vmem:[%s229 + $0xc] sm:$0x7]
      %v1309 = vld [vmem:[%s229 + $0x10] sm:$0xc]
      %v1310 = vld [vmem:[%s229 + $0x14] sm:$0x7]
      %v1311 = vld [vmem:[%s229 + $0x18] sm:$0xc]
      %v1312 = vld [vmem:[%s229 + $0x1c] sm:$0x7]
      %v1313 = vld [vmem:[%s229 + $0x20] sm:$0xc]
      %v1314 = vld [vmem:[%s229 + $0x24] sm:$0x7]
      %v1315 = vld [vmem:[%s229 + $0x28] sm:$0xc]
      %v1316 = vld [vmem:[%s229 + $0x2c] sm:$0x7]
      %v1317 = vld [vmem:[%s229 + $0x30] sm:$0xc]
      %v1318 = vld [vmem:[%s229 + $0x34] sm:$0x7]
      %v1319 = vld [vmem:[%s229 + $0x38] sm:$0xc]
      %v1320 = vld [vmem:[%s229 + $0x3c] sm:$0x7]
      %v1321 = vld [vmem:[%s229 + $0x40] sm:$0xc]
      %v1322 = vld [vmem:[%s229 + $0x44] sm:$0x7]
      %v1323 = vld [vmem:[%s229 + $0x48] sm:$0xc]
      %v1324 = vld [vmem:[%s229 + $0x4c] sm:$0x7]
      %v1325 = vld [vmem:[%s229 + $0x50] sm:$0xc]
      %v1326 = vld [vmem:[%s229 + $0x54] sm:$0x7]
      %v1327 = vld [vmem:[%s229 + $0x58] sm:$0xc]
      %v1328 = vld [vmem:[%s229 + $0x5c] sm:$0x7]
      %v1329 = vld [vmem:[%s229 + $0x60] sm:$0xc]
      %v1330 = vld [vmem:[%s229 + $0x64] sm:$0x7]
      %v1331 = vunpack.c.l.bf16 %v1305
      %v1332 = vunpack.c.l.bf16 %v1306
      %v1333 = vunpack.c.l.bf16 %v1307
      %v1334 = vunpack.c.l.bf16 %v1308
      %v1335 = vunpack.c.l.bf16 %v1309
      %v1336 = vunpack.c.l.bf16 %v1310
      %v1337 = vunpack.c.l.bf16 %v1311
      %v1338 = vunpack.c.l.bf16 %v1312
      %v1339 = vunpack.c.l.bf16 %v1313
      %v1340 = vunpack.c.l.bf16 %v1314
      %v1341 = vunpack.c.l.bf16 %v1315
      %v1342 = vunpack.c.l.bf16 %v1316
      %v1343 = vunpack.c.l.bf16 %v1317
      %v1344 = vunpack.c.l.bf16 %v1318
      %v1345 = vunpack.c.l.bf16 %v1319
      %v1346 = vunpack.c.l.bf16 %v1320
      %v1347 = vunpack.c.l.bf16 %v1321
      %v1348 = vunpack.c.l.bf16 %v1322
      %v1349 = vunpack.c.l.bf16 %v1323
      %v1350 = vunpack.c.l.bf16 %v1324
      %v1351 = vunpack.c.l.bf16 %v1325
      %v1352 = vunpack.c.l.bf16 %v1326
      %v1353 = vunpack.c.l.bf16 %v1327
      %v1354 = vunpack.c.l.bf16 %v1328
      %v1355 = vunpack.c.l.bf16 %v1329
      %v1356 = vunpack.c.l.bf16 %v1330
      %v1357 = vld [vmem:[%s211] sm:$0x4]
      %v1358 = vld [vmem:[%s211 + $0x4] sm:$0x4]
      %v1359 = vld [vmem:[%s211 + $0x8] sm:$0x4]
      %v1360 = vld [vmem:[%s211 + $0xc] sm:$0x4]
      %v1361 = vld [vmem:[%s211 + $0x10] sm:$0x4]
      %v1362 = vld [vmem:[%s211 + $0x14] sm:$0x4]
      %v1363 = vunpack.c.l.bf16 %v1357
      %v1364 = vunpack.c.l.bf16 %v1358
      %v1365 = vunpack.c.l.bf16 %v1359
      %v1366 = vunpack.c.l.bf16 %v1360
      %v1367 = vunpack.c.l.bf16 %v1361
      %v1368 = vunpack.c.l.bf16 %v1362
      %v1369 = vperm.slane %v1363, 4
      %v1370 = vmul.f32 %v1331, %v1369
      %v1371 = vmul.f32 %v1332, %v1369
      %v1372 = vmul.f32 %v1333, %v1369
      %v1373 = vmul.f32 %v1334, %v1369
      %v1374 = vmul.f32 %v1335, %v1369
      %v1375 = vmul.f32 %v1336, %v1369
      %v1376 = vmul.f32 %v1337, %v1369
      %v1377 = vmul.f32 %v1338, %v1369
      %v1378 = vmul.f32 %v1339, %v1369
      %v1379 = vmul.f32 %v1340, %v1369
      %v1380 = vmul.f32 %v1341, %v1369
      %v1381 = vmul.f32 %v1342, %v1369
      %v1382 = vmul.f32 %v1343, %v1369
      %v1383 = vmul.f32 %v1344, %v1369
      %v1384 = vmul.f32 %v1345, %v1369
      %v1385 = vmul.f32 %v1346, %v1369
      %v1386 = vperm.slane %v1364, 4
      %v1387 = vmul.f32 %v1333, %v1386
      %v1388 = vmul.f32 %v1334, %v1386
      %v1389 = vmul.f32 %v1335, %v1386
      %v1390 = vmul.f32 %v1336, %v1386
      %v1391 = vmul.f32 %v1337, %v1386
      %v1392 = vmul.f32 %v1338, %v1386
      %v1393 = vmul.f32 %v1339, %v1386
      %v1394 = vmul.f32 %v1340, %v1386
      %v1395 = vmul.f32 %v1341, %v1386
      %v1396 = vmul.f32 %v1342, %v1386
      %v1397 = vmul.f32 %v1343, %v1386
      %v1398 = vmul.f32 %v1344, %v1386
      %v1399 = vmul.f32 %v1345, %v1386
      %v1400 = vmul.f32 %v1346, %v1386
      %v1401 = vmul.f32 %v1347, %v1386
      %v1402 = vmul.f32 %v1348, %v1386
      %v1403 = vadd.f32 %v1370, %v1387
      %v1404 = vadd.f32 %v1371, %v1388
      %v1405 = vadd.f32 %v1372, %v1389
      %v1406 = vadd.f32 %v1373, %v1390
      %v1407 = vadd.f32 %v1374, %v1391
      %v1408 = vadd.f32 %v1375, %v1392
      %v1409 = vadd.f32 %v1376, %v1393
      %v1410 = vadd.f32 %v1377, %v1394
      %v1411 = vadd.f32 %v1378, %v1395
      %v1412 = vadd.f32 %v1379, %v1396
      %v1413 = vadd.f32 %v1380, %v1397
      %v1414 = vadd.f32 %v1381, %v1398
      %v1415 = vadd.f32 %v1382, %v1399
      %v1416 = vadd.f32 %v1383, %v1400
      %v1417 = vadd.f32 %v1384, %v1401
      %v1418 = vadd.f32 %v1385, %v1402
      %v1419 = vperm.slane %v1365, 4
      %v1420 = vmul.f32 %v1335, %v1419
      %v1421 = vmul.f32 %v1336, %v1419
      %v1422 = vmul.f32 %v1337, %v1419
      %v1423 = vmul.f32 %v1338, %v1419
      %v1424 = vmul.f32 %v1339, %v1419
      %v1425 = vmul.f32 %v1340, %v1419
      %v1426 = vmul.f32 %v1341, %v1419
      %v1427 = vmul.f32 %v1342, %v1419
      %v1428 = vmul.f32 %v1343, %v1419
      %v1429 = vmul.f32 %v1344, %v1419
      %v1430 = vmul.f32 %v1345, %v1419
      %v1431 = vmul.f32 %v1346, %v1419
      %v1432 = vmul.f32 %v1347, %v1419
      %v1433 = vmul.f32 %v1348, %v1419
      %v1434 = vmul.f32 %v1349, %v1419
      %v1435 = vmul.f32 %v1350, %v1419
      %v1436 = vadd.f32 %v1403, %v1420
      %v1437 = vadd.f32 %v1404, %v1421
      %v1438 = vadd.f32 %v1405, %v1422
      %v1439 = vadd.f32 %v1406, %v1423
      %v1440 = vadd.f32 %v1407, %v1424
      %v1441 = vadd.f32 %v1408, %v1425
      %v1442 = vadd.f32 %v1409, %v1426
      %v1443 = vadd.f32 %v1410, %v1427
      %v1444 = vadd.f32 %v1411, %v1428
      %v1445 = vadd.f32 %v1412, %v1429
      %v1446 = vadd.f32 %v1413, %v1430
      %v1447 = vadd.f32 %v1414, %v1431
      %v1448 = vadd.f32 %v1415, %v1432
      %v1449 = vadd.f32 %v1416, %v1433
      %v1450 = vadd.f32 %v1417, %v1434
      %v1451 = vadd.f32 %v1418, %v1435
      %v1452 = vperm.slane %v1366, 4
      %v1453 = vmul.f32 %v1337, %v1452
      %v1454 = vmul.f32 %v1338, %v1452
      %v1455 = vmul.f32 %v1339, %v1452
      %v1456 = vmul.f32 %v1340, %v1452
      %v1457 = vmul.f32 %v1341, %v1452
      %v1458 = vmul.f32 %v1342, %v1452
      %v1459 = vmul.f32 %v1343, %v1452
      %v1460 = vmul.f32 %v1344, %v1452
      %v1461 = vmul.f32 %v1345, %v1452
      %v1462 = vmul.f32 %v1346, %v1452
      %v1463 = vmul.f32 %v1347, %v1452
      %v1464 = vmul.f32 %v1348, %v1452
      %v1465 = vmul.f32 %v1349, %v1452
      %v1466 = vmul.f32 %v1350, %v1452
      %v1467 = vmul.f32 %v1351, %v1452
      %v1468 = vmul.f32 %v1352, %v1452
      %v1469 = vadd.f32 %v1436, %v1453
      %v1470 = vadd.f32 %v1437, %v1454
      %v1471 = vadd.f32 %v1438, %v1455
      %v1472 = vadd.f32 %v1439, %v1456
      %v1473 = vadd.f32 %v1440, %v1457
      %v1474 = vadd.f32 %v1441, %v1458
      %v1475 = vadd.f32 %v1442, %v1459
      %v1476 = vadd.f32 %v1443, %v1460
      %v1477 = vadd.f32 %v1444, %v1461
      %v1478 = vadd.f32 %v1445, %v1462
      %v1479 = vadd.f32 %v1446, %v1463
      %v1480 = vadd.f32 %v1447, %v1464
      %v1481 = vadd.f32 %v1448, %v1465
      %v1482 = vadd.f32 %v1449, %v1466
      %v1483 = vadd.f32 %v1450, %v1467
      %v1484 = vadd.f32 %v1451, %v1468
      %v1485 = vperm.slane %v1367, 4
      %v1486 = vmul.f32 %v1339, %v1485
      %v1487 = vmul.f32 %v1340, %v1485
      %v1488 = vmul.f32 %v1341, %v1485
      %v1489 = vmul.f32 %v1342, %v1485
      %v1490 = vmul.f32 %v1343, %v1485
      %v1491 = vmul.f32 %v1344, %v1485
      %v1492 = vmul.f32 %v1345, %v1485
      %v1493 = vmul.f32 %v1346, %v1485
      %v1494 = vmul.f32 %v1347, %v1485
      %v1495 = vmul.f32 %v1348, %v1485
      %v1496 = vmul.f32 %v1349, %v1485
      %v1497 = vmul.f32 %v1350, %v1485
      %v1498 = vmul.f32 %v1351, %v1485
      %v1499 = vmul.f32 %v1352, %v1485
      %v1500 = vmul.f32 %v1353, %v1485
      %v1501 = vmul.f32 %v1354, %v1485
      %v1502 = vadd.f32 %v1469, %v1486
      %v1503 = vadd.f32 %v1470, %v1487
      %v1504 = vadd.f32 %v1471, %v1488
      %v1505 = vadd.f32 %v1472, %v1489
      %v1506 = vadd.f32 %v1473, %v1490
      %v1507 = vadd.f32 %v1474, %v1491
      %v1508 = vadd.f32 %v1475, %v1492
      %v1509 = vadd.f32 %v1476, %v1493
      %v1510 = vadd.f32 %v1477, %v1494
      %v1511 = vadd.f32 %v1478, %v1495
      %v1512 = vadd.f32 %v1479, %v1496
      %v1513 = vadd.f32 %v1480, %v1497
      %v1514 = vadd.f32 %v1481, %v1498
      %v1515 = vadd.f32 %v1482, %v1499
      %v1516 = vadd.f32 %v1483, %v1500
      %v1517 = vadd.f32 %v1484, %v1501
      %v1518 = vperm.slane %v1368, 4
      %v1519 = vmul.f32 %v1341, %v1518
      %v1520 = vmul.f32 %v1342, %v1518
      %v1521 = vmul.f32 %v1343, %v1518
      %v1522 = vmul.f32 %v1344, %v1518
      %v1523 = vmul.f32 %v1345, %v1518
      %v1524 = vmul.f32 %v1346, %v1518
      %v1525 = vmul.f32 %v1347, %v1518
      %v1526 = vmul.f32 %v1348, %v1518
      %v1527 = vmul.f32 %v1349, %v1518
      %v1528 = vmul.f32 %v1350, %v1518
      %v1529 = vmul.f32 %v1351, %v1518
      %v1530 = vmul.f32 %v1352, %v1518
      %v1531 = vmul.f32 %v1353, %v1518
      %v1532 = vmul.f32 %v1354, %v1518
      %v1533 = vmul.f32 %v1355, %v1518
      %v1534 = vmul.f32 %v1356, %v1518
      %v1535 = vadd.f32 %v1502, %v1519
      %v1536 = vadd.f32 %v1503, %v1520
      %v1537 = vadd.f32 %v1504, %v1521
      %v1538 = vadd.f32 %v1505, %v1522
      %v1539 = vadd.f32 %v1506, %v1523
      %v1540 = vadd.f32 %v1507, %v1524
      %v1541 = vadd.f32 %v1508, %v1525
      %v1542 = vadd.f32 %v1509, %v1526
      %v1543 = vadd.f32 %v1510, %v1527
      %v1544 = vadd.f32 %v1511, %v1528
      %v1545 = vadd.f32 %v1512, %v1529
      %v1546 = vadd.f32 %v1513, %v1530
      %v1547 = vadd.f32 %v1514, %v1531
      %v1548 = vadd.f32 %v1515, %v1532
      %v1549 = vadd.f32 %v1516, %v1533
      %v1550 = vadd.f32 %v1517, %v1534
      %vm1567 = vcmask 1043456
      %v1568 = vrot.slane %v1535, 4
      %v1569 = vrot.slane %v1536, 4
      %v1570 = vsel %vm1567, %v1568, %v1569
      %v1571 = vrot.slane %v1537, 4
      %v1572 = vrot.slane %v1538, 4
      %v1573 = vsel %vm1567, %v1571, %v1572
      %v1574 = vrot.slane %v1539, 4
      %v1575 = vrot.slane %v1540, 4
      %v1576 = vsel %vm1567, %v1574, %v1575
      %v1577 = vrot.slane %v1541, 4
      %v1578 = vrot.slane %v1542, 4
      %v1579 = vsel %vm1567, %v1577, %v1578
      %v1580 = vrot.slane %v1543, 4
      %v1581 = vrot.slane %v1544, 4
      %v1582 = vsel %vm1567, %v1580, %v1581
      %v1583 = vrot.slane %v1545, 4
      %v1584 = vrot.slane %v1546, 4
      %v1585 = vsel %vm1567, %v1583, %v1584
      %v1586 = vrot.slane %v1547, 4
      %v1587 = vrot.slane %v1548, 4
      %v1588 = vsel %vm1567, %v1586, %v1587
      %v1589 = vrot.slane %v1549, 4
      %v1590 = vrot.slane %v1550, 4
      %v1591 = vsel %vm1567, %v1589, %v1590
      %v1608 = vadd.f32 %v1289, %v1570
      %v1609 = vadd.f32 %v1290, %v1569
      %v1610 = vadd.f32 %v1291, %v1573
      %v1611 = vadd.f32 %v1292, %v1572
      %v1612 = vadd.f32 %v1293, %v1576
      %v1613 = vadd.f32 %v1294, %v1575
      %v1614 = vadd.f32 %v1295, %v1579
      %v1615 = vadd.f32 %v1296, %v1578
      %v1616 = vadd.f32 %v1297, %v1582
      %v1617 = vadd.f32 %v1298, %v1581
      %v1618 = vadd.f32 %v1299, %v1585
      %v1619 = vadd.f32 %v1300, %v1584
      %v1620 = vadd.f32 %v1301, %v1588
      %v1621 = vadd.f32 %v1302, %v1587
      %v1622 = vadd.f32 %v1303, %v1591
      %v1623 = vadd.f32 %v1304, %v1590
      %v1624 = vperm.slane %v1363, 5
      %v1625 = vmul.f32 %v1331, %v1624
      %v1626 = vmul.f32 %v1332, %v1624
      %v1627 = vmul.f32 %v1333, %v1624
      %v1628 = vmul.f32 %v1334, %v1624
      %v1629 = vmul.f32 %v1335, %v1624
      %v1630 = vmul.f32 %v1336, %v1624
      %v1631 = vmul.f32 %v1337, %v1624
      %v1632 = vmul.f32 %v1338, %v1624
      %v1633 = vmul.f32 %v1339, %v1624
      %v1634 = vmul.f32 %v1340, %v1624
      %v1635 = vmul.f32 %v1341, %v1624
      %v1636 = vmul.f32 %v1342, %v1624
      %v1637 = vmul.f32 %v1343, %v1624
      %v1638 = vmul.f32 %v1344, %v1624
      %v1639 = vmul.f32 %v1345, %v1624
      %v1640 = vmul.f32 %v1346, %v1624
      %v1641 = vperm.slane %v1364, 5
      %v1642 = vmul.f32 %v1333, %v1641
      %v1643 = vmul.f32 %v1334, %v1641
      %v1644 = vmul.f32 %v1335, %v1641
      %v1645 = vmul.f32 %v1336, %v1641
      %v1646 = vmul.f32 %v1337, %v1641
      %v1647 = vmul.f32 %v1338, %v1641
      %v1648 = vmul.f32 %v1339, %v1641
      %v1649 = vmul.f32 %v1340, %v1641
      %v1650 = vmul.f32 %v1341, %v1641
      %v1651 = vmul.f32 %v1342, %v1641
      %v1652 = vmul.f32 %v1343, %v1641
      %v1653 = vmul.f32 %v1344, %v1641
      %v1654 = vmul.f32 %v1345, %v1641
      %v1655 = vmul.f32 %v1346, %v1641
      %v1656 = vmul.f32 %v1347, %v1641
      %v1657 = vmul.f32 %v1348, %v1641
      %v1658 = vadd.f32 %v1625, %v1642
      %v1659 = vadd.f32 %v1626, %v1643
      %v1660 = vadd.f32 %v1627, %v1644
      %v1661 = vadd.f32 %v1628, %v1645
      %v1662 = vadd.f32 %v1629, %v1646
      %v1663 = vadd.f32 %v1630, %v1647
      %v1664 = vadd.f32 %v1631, %v1648
      %v1665 = vadd.f32 %v1632, %v1649
      %v1666 = vadd.f32 %v1633, %v1650
      %v1667 = vadd.f32 %v1634, %v1651
      %v1668 = vadd.f32 %v1635, %v1652
      %v1669 = vadd.f32 %v1636, %v1653
      %v1670 = vadd.f32 %v1637, %v1654
      %v1671 = vadd.f32 %v1638, %v1655
      %v1672 = vadd.f32 %v1639, %v1656
      %v1673 = vadd.f32 %v1640, %v1657
      %v1674 = vperm.slane %v1365, 5
      %v1675 = vmul.f32 %v1335, %v1674
      %v1676 = vmul.f32 %v1336, %v1674
      %v1677 = vmul.f32 %v1337, %v1674
      %v1678 = vmul.f32 %v1338, %v1674
      %v1679 = vmul.f32 %v1339, %v1674
      %v1680 = vmul.f32 %v1340, %v1674
      %v1681 = vmul.f32 %v1341, %v1674
      %v1682 = vmul.f32 %v1342, %v1674
      %v1683 = vmul.f32 %v1343, %v1674
      %v1684 = vmul.f32 %v1344, %v1674
      %v1685 = vmul.f32 %v1345, %v1674
      %v1686 = vmul.f32 %v1346, %v1674
      %v1687 = vmul.f32 %v1347, %v1674
      %v1688 = vmul.f32 %v1348, %v1674
      %v1689 = vmul.f32 %v1349, %v1674
      %v1690 = vmul.f32 %v1350, %v1674
      %v1691 = vadd.f32 %v1658, %v1675
      %v1692 = vadd.f32 %v1659, %v1676
      %v1693 = vadd.f32 %v1660, %v1677
      %v1694 = vadd.f32 %v1661, %v1678
      %v1695 = vadd.f32 %v1662, %v1679
      %v1696 = vadd.f32 %v1663, %v1680
      %v1697 = vadd.f32 %v1664, %v1681
      %v1698 = vadd.f32 %v1665, %v1682
      %v1699 = vadd.f32 %v1666, %v1683
      %v1700 = vadd.f32 %v1667, %v1684
      %v1701 = vadd.f32 %v1668, %v1685
      %v1702 = vadd.f32 %v1669, %v1686
      %v1703 = vadd.f32 %v1670, %v1687
      %v1704 = vadd.f32 %v1671, %v1688
      %v1705 = vadd.f32 %v1672, %v1689
      %v1706 = vadd.f32 %v1673, %v1690
      %v1707 = vperm.slane %v1366, 5
      %v1708 = vmul.f32 %v1337, %v1707
      %v1709 = vmul.f32 %v1338, %v1707
      %v1710 = vmul.f32 %v1339, %v1707
      %v1711 = vmul.f32 %v1340, %v1707
      %v1712 = vmul.f32 %v1341, %v1707
      %v1713 = vmul.f32 %v1342, %v1707
      %v1714 = vmul.f32 %v1343, %v1707
      %v1715 = vmul.f32 %v1344, %v1707
      %v1716 = vmul.f32 %v1345, %v1707
      %v1717 = vmul.f32 %v1346, %v1707
      %v1718 = vmul.f32 %v1347, %v1707
      %v1719 = vmul.f32 %v1348, %v1707
      %v1720 = vmul.f32 %v1349, %v1707
      %v1721 = vmul.f32 %v1350, %v1707
      %v1722 = vmul.f32 %v1351, %v1707
      %v1723 = vmul.f32 %v1352, %v1707
      %v1724 = vadd.f32 %v1691, %v1708
      %v1725 = vadd.f32 %v1692, %v1709
      %v1726 = vadd.f32 %v1693, %v1710
      %v1727 = vadd.f32 %v1694, %v1711
      %v1728 = vadd.f32 %v1695, %v1712
      %v1729 = vadd.f32 %v1696, %v1713
      %v1730 = vadd.f32 %v1697, %v1714
      %v1731 = vadd.f32 %v1698, %v1715
      %v1732 = vadd.f32 %v1699, %v1716
      %v1733 = vadd.f32 %v1700, %v1717
      %v1734 = vadd.f32 %v1701, %v1718
      %v1735 = vadd.f32 %v1702, %v1719
      %v1736 = vadd.f32 %v1703, %v1720
      %v1737 = vadd.f32 %v1704, %v1721
      %v1738 = vadd.f32 %v1705, %v1722
      %v1739 = vadd.f32 %v1706, %v1723
      %v1740 = vperm.slane %v1367, 5
      %v1741 = vmul.f32 %v1339, %v1740
      %v1742 = vmul.f32 %v1340, %v1740
      %v1743 = vmul.f32 %v1341, %v1740
      %v1744 = vmul.f32 %v1342, %v1740
      %v1745 = vmul.f32 %v1343, %v1740
      %v1746 = vmul.f32 %v1344, %v1740
      %v1747 = vmul.f32 %v1345, %v1740
      %v1748 = vmul.f32 %v1346, %v1740
      %v1749 = vmul.f32 %v1347, %v1740
      %v1750 = vmul.f32 %v1348, %v1740
      %v1751 = vmul.f32 %v1349, %v1740
      %v1752 = vmul.f32 %v1350, %v1740
      %v1753 = vmul.f32 %v1351, %v1740
      %v1754 = vmul.f32 %v1352, %v1740
      %v1755 = vmul.f32 %v1353, %v1740
      %v1756 = vmul.f32 %v1354, %v1740
      %v1757 = vadd.f32 %v1724, %v1741
      %v1758 = vadd.f32 %v1725, %v1742
      %v1759 = vadd.f32 %v1726, %v1743
      %v1760 = vadd.f32 %v1727, %v1744
      %v1761 = vadd.f32 %v1728, %v1745
      %v1762 = vadd.f32 %v1729, %v1746
      %v1763 = vadd.f32 %v1730, %v1747
      %v1764 = vadd.f32 %v1731, %v1748
      %v1765 = vadd.f32 %v1732, %v1749
      %v1766 = vadd.f32 %v1733, %v1750
      %v1767 = vadd.f32 %v1734, %v1751
      %v1768 = vadd.f32 %v1735, %v1752
      %v1769 = vadd.f32 %v1736, %v1753
      %v1770 = vadd.f32 %v1737, %v1754
      %v1771 = vadd.f32 %v1738, %v1755
      %v1772 = vadd.f32 %v1739, %v1756
      %v1773 = vperm.slane %v1368, 5
      %v1774 = vmul.f32 %v1341, %v1773
      %v1775 = vmul.f32 %v1342, %v1773
      %v1776 = vmul.f32 %v1343, %v1773
      %v1777 = vmul.f32 %v1344, %v1773
      %v1778 = vmul.f32 %v1345, %v1773
      %v1779 = vmul.f32 %v1346, %v1773
      %v1780 = vmul.f32 %v1347, %v1773
      %v1781 = vmul.f32 %v1348, %v1773
      %v1782 = vmul.f32 %v1349, %v1773
      %v1783 = vmul.f32 %v1350, %v1773
      %v1784 = vmul.f32 %v1351, %v1773
      %v1785 = vmul.f32 %v1352, %v1773
      %v1786 = vmul.f32 %v1353, %v1773
      %v1787 = vmul.f32 %v1354, %v1773
      %v1788 = vmul.f32 %v1355, %v1773
      %v1789 = vmul.f32 %v1356, %v1773
      %v1790 = vadd.f32 %v1757, %v1774
      %v1791 = vadd.f32 %v1758, %v1775
      %v1792 = vadd.f32 %v1759, %v1776
      %v1793 = vadd.f32 %v1760, %v1777
      %v1794 = vadd.f32 %v1761, %v1778
      %v1795 = vadd.f32 %v1762, %v1779
      %v1796 = vadd.f32 %v1763, %v1780
      %v1797 = vadd.f32 %v1764, %v1781
      %v1798 = vadd.f32 %v1765, %v1782
      %v1799 = vadd.f32 %v1766, %v1783
      %v1800 = vadd.f32 %v1767, %v1784
      %v1801 = vadd.f32 %v1768, %v1785
      %v1802 = vadd.f32 %v1769, %v1786
      %v1803 = vadd.f32 %v1770, %v1787
      %v1804 = vadd.f32 %v1771, %v1788
      %v1805 = vadd.f32 %v1772, %v1789
      %vm1822 = vcmask 1042432
      %v1823 = vrot.slane %v1790, 5
      %v1824 = vrot.slane %v1791, 5
      %v1825 = vsel %vm1822, %v1823, %v1824
      %v1826 = vrot.slane %v1792, 5
      %v1827 = vrot.slane %v1793, 5
      %v1828 = vsel %vm1822, %v1826, %v1827
      %v1829 = vrot.slane %v1794, 5
      %v1830 = vrot.slane %v1795, 5
      %v1831 = vsel %vm1822, %v1829, %v1830
      %v1832 = vrot.slane %v1796, 5
      %v1833 = vrot.slane %v1797, 5
      %v1834 = vsel %vm1822, %v1832, %v1833
      %v1835 = vrot.slane %v1798, 5
      %v1836 = vrot.slane %v1799, 5
      %v1837 = vsel %vm1822, %v1835, %v1836
      %v1838 = vrot.slane %v1800, 5
      %v1839 = vrot.slane %v1801, 5
      %v1840 = vsel %vm1822, %v1838, %v1839
      %v1841 = vrot.slane %v1802, 5
      %v1842 = vrot.slane %v1803, 5
      %v1843 = vsel %vm1822, %v1841, %v1842
      %v1844 = vrot.slane %v1804, 5
      %v1845 = vrot.slane %v1805, 5
      %v1846 = vsel %vm1822, %v1844, %v1845
      %v1863 = vadd.f32 %v1608, %v1825
      %v1864 = vadd.f32 %v1609, %v1824
      %v1865 = vadd.f32 %v1610, %v1828
      %v1866 = vadd.f32 %v1611, %v1827
      %v1867 = vadd.f32 %v1612, %v1831
      %v1868 = vadd.f32 %v1613, %v1830
      %v1869 = vadd.f32 %v1614, %v1834
      %v1870 = vadd.f32 %v1615, %v1833
      %v1871 = vadd.f32 %v1616, %v1837
      %v1872 = vadd.f32 %v1617, %v1836
      %v1873 = vadd.f32 %v1618, %v1840
      %v1874 = vadd.f32 %v1619, %v1839
      %v1875 = vadd.f32 %v1620, %v1843
      %v1876 = vadd.f32 %v1621, %v1842
      %v1877 = vadd.f32 %v1622, %v1846
      %v1878 = vadd.f32 %v1623, %v1845
      %v1879 = vpack.c.bf16 %v1863, %v1863
      %v1880 = vpack.c.bf16 %v1864, %v1864
      %v1881 = vpack.c.bf16 %v1865, %v1865
      %v1882 = vpack.c.bf16 %v1866, %v1866
      %v1883 = vpack.c.bf16 %v1867, %v1867
      %v1884 = vpack.c.bf16 %v1868, %v1868
      %v1885 = vpack.c.bf16 %v1869, %v1869
      %v1886 = vpack.c.bf16 %v1870, %v1870
      %v1887 = vpack.c.bf16 %v1871, %v1871
      %v1888 = vpack.c.bf16 %v1872, %v1872
      %v1889 = vpack.c.bf16 %v1873, %v1873
      %v1890 = vpack.c.bf16 %v1874, %v1874
      %v1891 = vpack.c.bf16 %v1875, %v1875
      %v1892 = vpack.c.bf16 %v1876, %v1876
      %v1893 = vpack.c.bf16 %v1877, %v1877
      %v1894 = vpack.c.bf16 %v1878, %v1878
      %vm1895 = vcmask 257024
      %1896 = vst.msk [vmem:[%s224] sm:$0xf] %vm1895, %v1879
      %vm1897 = vcmask 253952
      %vm1898 = vsmask.f32 256
      %vm1899 = vmand %vm1897, %vm1898
      %v1900 = vld [vmem:[%s224 + $0x4] sm:$0x1]
      %v1901 = vsel %vm1899, %v1880, %v1900
      %1902 = vst [vmem:[%s224 + $0x4] sm:$0x1] %v1901
      %1903 = vst.msk [vmem:[%s224 + $0x8] sm:$0xf] %vm1895, %v1881
      %v1904 = vld [vmem:[%s224 + $0xc] sm:$0x1]
      %v1905 = vsel %vm1899, %v1882, %v1904
      %1906 = vst [vmem:[%s224 + $0xc] sm:$0x1] %v1905
      %1907 = vst.msk [vmem:[%s224 + $0x10] sm:$0xf] %vm1895, %v1883
      %v1908 = vld [vmem:[%s224 + $0x14] sm:$0x1]
      %v1909 = vsel %vm1899, %v1884, %v1908
      %1910 = vst [vmem:[%s224 + $0x14] sm:$0x1] %v1909
      %1911 = vst.msk [vmem:[%s224 + $0x18] sm:$0xf] %vm1895, %v1885
      %v1912 = vld [vmem:[%s224 + $0x1c] sm:$0x1]
      %v1913 = vsel %vm1899, %v1886, %v1912
      %1914 = vst [vmem:[%s224 + $0x1c] sm:$0x1] %v1913
      %1915 = vst.msk [vmem:[%s224 + $0x20] sm:$0xf] %vm1895, %v1887
      %v1916 = vld [vmem:[%s224 + $0x24] sm:$0x1]
      %v1917 = vsel %vm1899, %v1888, %v1916
      %1918 = vst [vmem:[%s224 + $0x24] sm:$0x1] %v1917
      %1919 = vst.msk [vmem:[%s224 + $0x28] sm:$0xf] %vm1895, %v1889
      %v1920 = vld [vmem:[%s224 + $0x2c] sm:$0x1]
      %v1921 = vsel %vm1899, %v1890, %v1920
      %1922 = vst [vmem:[%s224 + $0x2c] sm:$0x1] %v1921
      %1923 = vst.msk [vmem:[%s224 + $0x30] sm:$0xf] %vm1895, %v1891
      %v1924 = vld [vmem:[%s224 + $0x34] sm:$0x1]
      %v1925 = vsel %vm1899, %v1892, %v1924
      %1926 = vst [vmem:[%s224 + $0x34] sm:$0x1] %v1925
      %1927 = vst.msk [vmem:[%s224 + $0x38] sm:$0xf] %vm1895, %v1893
      %v1928 = vld [vmem:[%s224 + $0x3c] sm:$0x1]
      %v1929 = vsel %vm1899, %v1894, %v1928
      %1930 = vst [vmem:[%s224 + $0x3c] sm:$0x1] %v1929
      %s1931 = smul.u32 8, %s20
      %p1932 = scmp.lt.s32.totalorder %s18, 1
      %s1933 = scalar_select %p1932, %s18, 1
      %p1934 = scmp.lt.s32.totalorder %s1931, 15
      %s1935 = scalar_select %p1934, %s1931, 15
      %p1936 = scmp.lt.s32.totalorder %s19, 0
      %s1937 = scalar_select %p1936, %s19, 0
      %s1938 = smul.addr %s1935, 2
      %s1939 = sadd.s32 %s1937, %s1938
      %s1940 = smul.addr %s1933, 32
      %s1941 = sadd.s32 %s1939, %s1940
      %s1942 = smul.addr %s1941, 4
      %s1943 = scalar_lea.vmem %s2, %s1942
      // Predicated region
      $region29: #{depthwise_xcorr_forward.6} parent=27 // pred_check
        %p1944 = pneg %p110
      $region30: #{depthwise_xcorr_forward.6} parent=27 // pred_check_branch
        %1946 = sbr.rel (%p1944) target = $region32
      $region31: #{depthwise_xcorr_forward.6} parent=27 // pred_region
        %s1947 = smul.u32 8, %s20
      $region32: #{depthwise_xcorr_forward.6} parent=27 // pred_fallthru
        _
    $region28: #{depthwise_xcorr_forward.6} parent=5 // pred_fallthru
      _
    %p1948 = scmp.le.s32.totalorder 2, %s8
    // Predicated region
    $region33: #{depthwise_xcorr_forward.6} parent=5 // pred_check
      %p1949 = pneg %p1948
    $region34: #{depthwise_xcorr_forward.6} parent=5 // pred_check_branch
      %1951 = sbr.rel (%p1949) target = $region36
    $region35: #{depthwise_xcorr_forward.6} parent=5 // pred_region
      %s1952 = ssub.s32 %s8, 2
      // Predicated region
      $region37: #{depthwise_xcorr_forward.6} parent=35 // pred_check
        %p1953 = pneg %p116
      $region38: #{depthwise_xcorr_forward.6} parent=35 // pred_check_branch
        %1955 = sbr.rel (%p1953) target = $region40
      $region39: #{depthwise_xcorr_forward.6} parent=35 // pred_region
        %s1956 = smul.u32 8, %s23
        %p1957 = scmp.lt.s32.totalorder %s21, 1
        %s1958 = scalar_select %p1957, %s21, 1
        %p1959 = scmp.lt.s32.totalorder %s1956, 15
        %s1960 = scalar_select %p1959, %s1956, 15
        %p1961 = scmp.lt.s32.totalorder %s22, 0
        %s1962 = scalar_select %p1961, %s22, 0
        %s1963 = smul.addr %s1960, 2
        %s1964 = sadd.s32 %s1962, %s1963
        %s1965 = smul.addr %s1958, 32
        %s1966 = sadd.s32 %s1964, %s1965
        %s1967 = smul.addr %s1966, 4
        %s1968 = scalar_lea.vmem %s2, %s1967
      $region40: #{depthwise_xcorr_forward.6} parent=35 // pred_fallthru
        _
    $region36: #{depthwise_xcorr_forward.6} parent=5 // pred_fallthru
      _
  $region6: #{depthwise_xcorr_forward.6} parent=0 // loop_footer
    %s12 = sadd.s32 1, %s8
  $region7: #{depthwise_xcorr_forward.6} parent=0 // loop_footer_branch
    %7 = sbr.rel target = $region3
  $region8: #{depthwise_xcorr_forward.6} parent=0 // loop_exit
    _

// kernel: depthwise_xcorr_forward.5
$region0: #{depthwise_xcorr_forward.5}
  #allocation0 [shape = 'u32[]', space=smem, size = 0x4, offset = 0x4, fixed_abs, tag = 'smem constant byte address 0x4 - core index']
  #allocation1 [shape = 'u32[72,128]{1,0:T(1,128)}', space=vmem, size = 0x9000, scoped, tag = 'internal scratch']
  #allocation2 [shape = 'f32[224,128]{1,0:T(8,128)}', space=vmem, size = 0x1c000, scoped, tag = 'scratch operand']
  %s0 = inlined_call_operand.vmem [shape: bf16[2,264,128], index: 0, kind: input, shape index: {}]
  %s1 = inlined_call_operand.vmem [shape: bf16[9,128,128], index: 1, kind: input, shape index: {}]
  %s2 = inlined_call_operand.vmem [shape: f32[1,128], index: 2, kind: input, shape index: {}]
  %s3 = inlined_call_operand.vmem [shape: f32[1,128], index: 3, kind: input, shape index: {}]
  %s4 = inlined_call_operand.vmem [shape: bf16[2,224,128], index: 4, kind: output, shape index: {}]
  %s5 = sld [smem:[#allocation0]]
  $region49: #{depthwise_xcorr_forward.5} parent=0
    _
  %s7 = ssub.s32 1, %s5
  %s8 = scalar_select 0, %s7, %s5
  loop: start=0, step=1, limit=4
  $region2: #{depthwise_xcorr_forward.5} parent=0 // loop_pre_header
    _
  $region3: #{depthwise_xcorr_forward.5} parent=0 // loop_header
    %s10 = sphi 0, %s14
    %p11 = scmp.ge.s32.totalorder %s10, 4
    %s17 = sphi 0, %s29
    %s18 = sphi 0, %s25
    %s19 = sphi 0, %s17
    %s20 = sphi 0, %s18
    %s21 = sphi 0, %s19
    %s22 = sphi 0, %s20
    %s32 = sphi 0, %s34
    %s35 = sphi 0, %s32
    %s36 = sphi 0, %s35
    %s52 = sphi 0, %s36
    %s58 = sphi 0, %s60
    %s61 = sphi 0, %s58
    %s62 = sphi 0, %s61
    %s78 = sphi 0, %s62
    %s84 = sphi 0, %s86
    %s87 = sphi 0, %s84
    %s88 = sphi 0, %s87
    %s104 = sphi 0, %s88
    %s110 = sphi 0, %s112
    %s113 = sphi 0, %s110
    %s114 = sphi 0, %s113
    %s130 = sphi 0, %s114
    %s138 = sphi 0, %s140
    %s141 = sphi 0, %s138
    %s142 = sphi 0, %s141
    %s158 = sphi 0, %s142
  $region4: #{depthwise_xcorr_forward.5} parent=0 // loop_header_branch
    %13 = sbr.rel (%p11) target = $region8
  $region5: #{depthwise_xcorr_forward.5} parent=0 // loop_body
    %s15 = ssub.s32 %s10, 1
    %s16 = ssub.s32 %s10, 2
    %s23 = sadd.s32 1, %s18
    %p24 = scmp.ge.s32.totalorder %s23, 1
    %s25 = scalar_select %p24, 0, %s23
    %s26 = sadd.s32 1, %s17
    %s27 = scalar_select %p24, %s26, %s17
    %p28 = scmp.ge.s32.totalorder %s27, 2
    %s29 = scalar_select %p28, 0, %s27
    %s30 = ssub.s32 %s17, %s29
    %p31 = scmp.eq.s32.totalorder %s30, 0
    %s33 = sadd.s32 %s32, 1
    %s34 = scalar_select %p31, %s32, %s33
    %p37 = pneg %p31
    %p38 = scmp.eq.s32.totalorder %s10, 1
    %p39 = por %p37, %p38
    %p40 = scmp.ne.s32.totalorder %s32, %s35
    %p41 = scmp.eq.s32.totalorder %s10, 0
    %p42 = por %p40, %p41
    %p43 = scmp.ne.s32.totalorder %s32, %s35
    %p44 = scmp.eq.s32.totalorder %s15, 1
    %p45 = por %p43, %p44
    %p46 = scmp.ne.s32.totalorder %s35, %s36
    %p47 = scmp.eq.s32.totalorder %s15, 0
    %p48 = por %p46, %p47
    %p49 = scmp.ne.s32.totalorder %s35, %s36
    %p50 = scmp.eq.s32.totalorder %s16, 1
    %p51 = por %p49, %p50
    %p53 = scmp.ne.s32.totalorder %s36, %s52
    %p54 = scmp.eq.s32.totalorder %s16, 0
    %p55 = por %p53, %p54
    %s56 = ssub.s32 %s18, %s25
    %p57 = scmp.eq.s32.totalorder %s56, 0
    %s59 = sadd.s32 %s58, 1
    %s60 = scalar_select %p57, %s58, %s59
    %p63 = pneg %p57
    %p64 = scmp.eq.s32.totalorder %s10, 1
    %p65 = por %p63, %p64
    %p66 = scmp.ne.s32.totalorder %s58, %s61
    %p67 = scmp.eq.s32.totalorder %s10, 0
    %p68 = por %p66, %p67
    %p69 = scmp.ne.s32.totalorder %s58, %s61
    %p70 = scmp.eq.s32.totalorder %s15, 1
    %p71 = por %p69, %p70
    %p72 = scmp.ne.s32.totalorder %s61, %s62
    %p73 = scmp.eq.s32.totalorder %s15, 0
    %p74 = por %p72, %p73
    %p75 = scmp.ne.s32.totalorder %s61, %s62
    %p76 = scmp.eq.s32.totalorder %s16, 1
    %p77 = por %p75, %p76
    %p79 = scmp.ne.s32.totalorder %s62, %s78
    %p80 = scmp.eq.s32.totalorder %s16, 0
    %p81 = por %p79, %p80
    %s82 = ssub.s32 %s18, %s25
    %p83 = scmp.eq.s32.totalorder %s82, 0
    %s85 = sadd.s32 %s84, 1
    %s86 = scalar_select %p83, %s84, %s85
    %p89 = pneg %p83
    %p90 = scmp.eq.s32.totalorder %s10, 1
    %p91 = por %p89, %p90
    %p92 = scmp.ne.s32.totalorder %s84, %s87
    %p93 = scmp.eq.s32.totalorder %s10, 0
    %p94 = por %p92, %p93
    %p95 = scmp.ne.s32.totalorder %s84, %s87
    %p96 = scmp.eq.s32.totalorder %s15, 1
    %p97 = por %p95, %p96
    %p98 = scmp.ne.s32.totalorder %s87, %s88
    %p99 = scmp.eq.s32.totalorder %s15, 0
    %p100 = por %p98, %p99
    %p101 = scmp.ne.s32.totalorder %s87, %s88
    %p102 = scmp.eq.s32.totalorder %s16, 1
    %p103 = por %p101, %p102
    %p105 = scmp.ne.s32.totalorder %s88, %s104
    %p106 = scmp.eq.s32.totalorder %s16, 0
    %p107 = por %p105, %p106
    %s108 = ssub.s32 %s18, %s25
    %p109 = scmp.eq.s32.totalorder %s108, 0
    %s111 = sadd.s32 %s110, 1
    %s112 = scalar_select %p109, %s110, %s111
    %p115 = pneg %p109
    %p116 = scmp.eq.s32.totalorder %s10, 1
    %p117 = por %p115, %p116
    %p118 = scmp.ne.s32.totalorder %s110, %s113
    %p119 = scmp.eq.s32.totalorder %s10, 0
    %p120 = por %p118, %p119
    %p121 = scmp.ne.s32.totalorder %s110, %s113
    %p122 = scmp.eq.s32.totalorder %s15, 1
    %p123 = por %p121, %p122
    %p124 = scmp.ne.s32.totalorder %s113, %s114
    %p125 = scmp.eq.s32.totalorder %s15, 0
    %p126 = por %p124, %p125
    %p127 = scmp.ne.s32.totalorder %s113, %s114
    %p128 = scmp.eq.s32.totalorder %s16, 1
    %p129 = por %p127, %p128
    %p131 = scmp.ne.s32.totalorder %s114, %s130
    %p132 = scmp.eq.s32.totalorder %s16, 0
    %p133 = por %p131, %p132
    %s134 = ssub.s32 %s17, %s29
    %s135 = ssub.s32 %s18, %s25
    %s136 = sor.u32 %s134, %s135
    %p137 = scmp.eq.s32.totalorder %s136, 0
    %s139 = sadd.s32 %s138, 1
    %s140 = scalar_select %p137, %s138, %s139
    %p143 = pneg %p137
    %p144 = scmp.eq.s32.totalorder %s10, 1
    %p145 = por %p143, %p144
    %p146 = scmp.ne.s32.totalorder %s138, %s141
    %p147 = scmp.eq.s32.totalorder %s10, 0
    %p148 = por %p146, %p147
    %p149 = scmp.ne.s32.totalorder %s138, %s141
    %p150 = scmp.eq.s32.totalorder %s15, 1
    %p151 = por %p149, %p150
    %p152 = scmp.ne.s32.totalorder %s141, %s142
    %p153 = scmp.eq.s32.totalorder %s15, 0
    %p154 = por %p152, %p153
    %p155 = scmp.ne.s32.totalorder %s141, %s142
    %p156 = scmp.eq.s32.totalorder %s16, 1
    %p157 = por %p155, %p156
    %p159 = scmp.ne.s32.totalorder %s142, %s158
    %p160 = scmp.eq.s32.totalorder %s16, 0
    %p161 = por %p159, %p160
    %p162 = scmp.le.s32.totalorder 1, %s10
    %p163 = scmp.lt.s32.totalorder %s10, 3
    %p164 = pnand %p162, %p163
    %p165 = pneg %p164
    // Predicated region
    $region9: #{depthwise_xcorr_forward.5} parent=5 // pred_check
      _
    $region10: #{depthwise_xcorr_forward.5} parent=5 // pred_check_branch
      %167 = sbr.rel (%p164) target = $region12
    $region11: #{depthwise_xcorr_forward.5} parent=5 // pred_region
      %s168 = ssub.s32 %s10, 1
      // Predicated region
      $region13: #{depthwise_xcorr_forward.5} parent=11 // pred_check
        %p169 = pneg %p74
      $region14: #{depthwise_xcorr_forward.5} parent=11 // pred_check_branch
        %171 = sbr.rel (%p169) target = $region16
      $region15: #{depthwise_xcorr_forward.5} parent=11 // pred_region
        %p172 = scmp.lt.s32.totalorder %s20, 0
        %s173 = scalar_select %p172, %s20, 0
        %s174 = smul.addr %s173, 4
        %s175 = scalar_lea.vmem %s1, %s174
      $region16: #{depthwise_xcorr_forward.5} parent=11 // pred_fallthru
        _
      // Predicated region
      $region17: #{depthwise_xcorr_forward.5} parent=11 // pred_check
        %p176 = pneg %p100
      $region18: #{depthwise_xcorr_forward.5} parent=11 // pred_check_branch
        %178 = sbr.rel (%p176) target = $region20
      $region19: #{depthwise_xcorr_forward.5} parent=11 // pred_region
        %p179 = scmp.lt.s32.totalorder %s20, 0
        %s180 = scalar_select %p179, %s20, 0
        %s181 = scalar_lea.vmem %s2, %s180
      $region20: #{depthwise_xcorr_forward.5} parent=11 // pred_fallthru
        _
      // Predicated region
      $region21: #{depthwise_xcorr_forward.5} parent=11 // pred_check
        %p182 = pneg %p126
      $region22: #{depthwise_xcorr_forward.5} parent=11 // pred_check_branch
        %184 = sbr.rel (%p182) target = $region24
      $region23: #{depthwise_xcorr_forward.5} parent=11 // pred_region
        %p185 = scmp.lt.s32.totalorder %s20, 0
        %s186 = scalar_select %p185, %s20, 0
        %s187 = scalar_lea.vmem %s3, %s186
      $region24: #{depthwise_xcorr_forward.5} parent=11 // pred_fallthru
        _
    $region12: #{depthwise_xcorr_forward.5} parent=5 // pred_fallthru
      _
    %p188 = scmp.lt.s32.totalorder %s10, 2
    // Predicated region
    $region25: #{depthwise_xcorr_forward.5} parent=5 // pred_check
      %p189 = pneg %p188
    $region26: #{depthwise_xcorr_forward.5} parent=5 // pred_check_branch
      %191 = sbr.rel (%p189) target = $region28
    $region27: #{depthwise_xcorr_forward.5} parent=5 // pred_region
      // Predicated region
      $region29: #{depthwise_xcorr_forward.5} parent=27 // pred_check
        %p192 = pneg %p42
      $region30: #{depthwise_xcorr_forward.5} parent=27 // pred_check_branch
        %194 = sbr.rel (%p192) target = $region32
      $region31: #{depthwise_xcorr_forward.5} parent=27 // pred_region
        %p195 = scmp.lt.s32.totalorder %s17, 1
        %s196 = scalar_select %p195, %s17, 1
        %s197 = smul.addr %s196, 33
        %s198 = smul.addr %s197, 4
        %s199 = scalar_lea.vmem %s0, %s198
      $region32: #{depthwise_xcorr_forward.5} parent=27 // pred_fallthru
        _
    $region28: #{depthwise_xcorr_forward.5} parent=5 // pred_fallthru
      _
    %p200 = scmp.le.s32.totalorder 1, %s10
    %p201 = scmp.lt.s32.totalorder %s10, 3
    %p202 = pnand %p200, %p201
    %p203 = pneg %p202
    // Predicated region
    $region33: #{depthwise_xcorr_forward.5} parent=5 // pred_check
      _
    $region34: #{depthwise_xcorr_forward.5} parent=5 // pred_check_branch
      %205 = sbr.rel (%p202) target = $region36
    $region35: #{depthwise_xcorr_forward.5} parent=5 // pred_region
      %s206 = ssub.s32 %s10, 1
      %p207 = scmp.lt.s32.totalorder %s19, 1
      %s208 = scalar_select %p207, %s19, 1
      %s209 = smul.addr %s208, 33
      %s210 = smul.addr %s209, 4
      %s211 = scalar_lea.vmem %s0, %s210
      %p212 = pneg %p48
      %p213 = pneg %p45
      %p214 = scmp.lt.s32.totalorder %s20, 0
      %s215 = scalar_select %p214, %s20, 0
      %s216 = smul.addr %s215, 4
      %s217 = scalar_lea.vmem %s1, %s216
      %p218 = pneg %p74
      %p219 = pneg %p71
      %p220 = scmp.lt.s32.totalorder %s20, 0
      %s221 = scalar_select %p220, %s20, 0
      %s222 = scalar_lea.vmem %s2, %s221
      %p223 = pneg %p100
      %p224 = pneg %p97
      %p225 = scmp.lt.s32.totalorder %s20, 0
      %s226 = scalar_select %p225, %s20, 0
      %s227 = scalar_lea.vmem %s3, %s226
      %p228 = pneg %p126
      %p229 = pneg %p123
      %p230 = pneg %p154
      %p231 = pneg %p151
      %p232 = scmp.lt.s32.totalorder %s19, 1
      %s233 = scalar_select %p232, %s19, 1
      %p234 = scmp.lt.s32.totalorder %s20, 0
      %s235 = scalar_select %p234, %s20, 0
      %s236 = smul.addr %s233, 28
      %s237 = sadd.s32 %s235, %s236
      %s238 = smul.addr %s237, 4
      %s239 = scalar_lea.vmem %s4, %s238
      %p240 = scmp.lt.s32.totalorder %s19, 1
      %s241 = scalar_select %p240, %s19, 1
      %s242 = smul.addr %s241, 33
      %s243 = smul.addr %s242, 4
      %s244 = scalar_lea.vmem %s0, %s243
      %p245 = scmp.lt.s32.totalorder %s20, 0
      %s246 = scalar_select %p245, %s20, 0
      %s247 = smul.addr %s246, 4
      %s248 = scalar_lea.vmem %s1, %s247
      %p249 = scmp.lt.s32.totalorder %s20, 0
      %s250 = scalar_select %p249, %s20, 0
      %s251 = scalar_lea.vmem %s2, %s250
      %p252 = scmp.lt.s32.totalorder %s20, 0
      %s253 = scalar_select %p252, %s20, 0
      %s254 = scalar_lea.vmem %s3, %s253
      %p255 = scmp.lt.s32.totalorder %s19, 1
      %s256 = scalar_select %p255, %s19, 1
      %p257 = scmp.lt.s32.totalorder %s20, 0
      %s258 = scalar_select %p257, %s20, 0
      %s259 = smul.addr %s256, 28
      %s260 = sadd.s32 %s258, %s259
      %s261 = smul.addr %s260, 4
      %s262 = scalar_lea.vmem %s4, %s261
      %v263 = vld [vmem:[%s244] sm:$0xf]
      %v264 = vld [vmem:[%s244 + $0x4] sm:$0xf]
      %v265 = vld [vmem:[%s244 + $0x8] sm:$0xf]
      %v266 = vld [vmem:[%s244 + $0xc] sm:$0xf]
      %v267 = vld [vmem:[%s244 + $0x10] sm:$0xf]
      %v268 = vld [vmem:[%s244 + $0x14] sm:$0xf]
      %v269 = vld [vmem:[%s244 + $0x18] sm:$0xf]
      %v270 = vld [vmem:[%s244 + $0x1c] sm:$0xf]
      %v271 = vld [vmem:[%s244 + $0x20] sm:$0xf]
      %v272 = vld [vmem:[%s244 + $0x24] sm:$0xf]
      %v273 = vld [vmem:[%s244 + $0x28] sm:$0xf]
      %v274 = vld [vmem:[%s244 + $0x2c] sm:$0xf]
      %v275 = vld [vmem:[%s244 + $0x30] sm:$0xf]
      %v276 = vld [vmem:[%s244 + $0x34] sm:$0xf]
      %v277 = vld [vmem:[%s244 + $0x38] sm:$0xf]
      %v278 = vld [vmem:[%s244 + $0x3c] sm:$0xf]
      %v279 = vld [vmem:[%s244 + $0x40] sm:$0xf]
      %v280 = vld [vmem:[%s244 + $0x44] sm:$0xf]
      %v281 = vld [vmem:[%s244 + $0x48] sm:$0xf]
      %v282 = vld [vmem:[%s244 + $0x4c] sm:$0xf]
      %v283 = vld [vmem:[%s244 + $0x50] sm:$0xf]
      %v284 = vld [vmem:[%s244 + $0x54] sm:$0xf]
      %v285 = vld [vmem:[%s244 + $0x58] sm:$0xf]
      %v286 = vld [vmem:[%s244 + $0x5c] sm:$0xf]
      %v287 = vld [vmem:[%s244 + $0x60] sm:$0xf]
      %v288 = vld [vmem:[%s244 + $0x64] sm:$0xf]
      %v289 = vld [vmem:[%s244 + $0x68] sm:$0xf]
      %v290 = vld [vmem:[%s244 + $0x6c] sm:$0xf]
      %v291 = vld [vmem:[%s248] sm:$0xf]
      %v292 = vld [vmem:[%s248 + $0x4] sm:$0xf]
      %v293 = vld [vmem:[%s248 + $0x8] sm:$0xf]
      %v294 = vld [vmem:[%s248 + $0xc] sm:$0xf]
      %v295 = vld [vmem:[%s248 + $0x10] sm:$0xf]
      %v296 = vld [vmem:[%s248 + $0x14] sm:$0xf]
      %v297 = vld [vmem:[%s248 + $0x18] sm:$0xf]
      %v298 = vld [vmem:[%s248 + $0x1c] sm:$0xf]
      %v299 = vld [vmem:[%s248 + $0x20] sm:$0xf]
      %v300 = vld [vmem:[%s248 + $0x24] sm:$0xf]
      %v301 = vld [vmem:[%s248 + $0x28] sm:$0xf]
      %v302 = vld [vmem:[%s248 + $0x2c] sm:$0xf]
      %v303 = vld [vmem:[%s248 + $0x30] sm:$0xf]
      %v304 = vld [vmem:[%s248 + $0x34] sm:$0xf]
      %v305 = vld [vmem:[%s248 + $0x38] sm:$0xf]
      %v306 = vld [vmem:[%s248 + $0x3c] sm:$0xf]
      %v335 = vunpack.c.l.b16 %v263
      %v336 = vunpack.c.l.b16 %v264
      %v337 = vunpack.c.l.b16 %v265
      %v338 = vunpack.c.l.b16 %v266
      %v339 = vunpack.c.l.b16 %v267
      %v340 = vunpack.c.l.b16 %v268
      %v341 = vunpack.c.l.b16 %v269
      %v342 = vunpack.c.l.b16 %v270
      %v343 = vunpack.c.l.b16 %v271
      %v344 = vunpack.c.l.b16 %v272
      %v345 = vunpack.c.l.b16 %v273
      %v346 = vunpack.c.l.b16 %v274
      %v347 = vunpack.c.l.b16 %v275
      %v348 = vunpack.c.l.b16 %v276
      %v349 = vunpack.c.l.b16 %v277
      %v350 = vunpack.c.l.b16 %v278
      %v351 = vunpack.c.l.b16 %v279
      %v352 = vunpack.c.l.b16 %v280
      %v353 = vunpack.c.l.b16 %v281
      %v354 = vunpack.c.l.b16 %v282
      %v355 = vunpack.c.l.b16 %v283
      %v356 = vunpack.c.l.b16 %v284
      %v357 = vunpack.c.l.b16 %v285
      %v358 = vunpack.c.l.b16 %v286
      %v359 = vunpack.c.l.b16 %v287
      %v360 = vunpack.c.l.b16 %v288
      %v361 = vunpack.c.l.b16 %v289
      %v362 = vunpack.c.l.b16 %v290
      %v363 = vpack.c.b16 %v336, %v335
      %v364 = vpack.c.b16 %v338, %v337
      %v365 = vpack.c.b16 %v340, %v339
      %v366 = vpack.c.b16 %v342, %v341
      %v367 = vpack.c.b16 %v344, %v343
      %v368 = vpack.c.b16 %v346, %v345
      %v369 = vpack.c.b16 %v348, %v347
      %v370 = vpack.c.b16 %v350, %v349
      %v371 = vpack.c.b16 %v352, %v351
      %v372 = vpack.c.b16 %v354, %v353
      %v373 = vpack.c.b16 %v356, %v355
      %v374 = vpack.c.b16 %v358, %v357
      %v375 = vpack.c.b16 %v360, %v359
      %v376 = vpack.c.b16 %v362, %v361
      %v407 = vunpack.c.l.b16 %v291
      %v408 = vunpack.c.l.b16 %v292
      %v409 = vunpack.c.l.b16 %v293
      %v410 = vunpack.c.l.b16 %v294
      %v411 = vunpack.c.l.b16 %v295
      %v412 = vunpack.c.l.b16 %v296
      %v413 = vunpack.c.l.b16 %v297
      %v414 = vunpack.c.l.b16 %v298
      %v415 = vunpack.c.l.b16 %v299
      %v416 = vunpack.c.l.b16 %v300
      %v417 = vunpack.c.l.b16 %v301
      %v418 = vunpack.c.l.b16 %v302
      %v419 = vunpack.c.l.b16 %v303
      %v420 = vunpack.c.l.b16 %v304
      %v421 = vunpack.c.l.b16 %v305
      %v422 = vunpack.c.l.b16 %v306
      %v423 = vpack.c.b16 %v408, %v407
      %v424 = vpack.c.b16 %v410, %v409
      %v425 = vpack.c.b16 %v412, %v411
      %v426 = vpack.c.b16 %v414, %v413
      %v427 = vpack.c.b16 %v416, %v415
      %v428 = vpack.c.b16 %v418, %v417
      %v429 = vpack.c.b16 %v420, %v419
      %v430 = vpack.c.b16 %v422, %v421
      %439 = vmatpush.bf16.msra.mxu0 %v430
      %440 = vmatpush.bf16.msra.mxu0 %v429
      %441 = vmatpush.bf16.msra.mxu0 %v428
      %442 = vmatpush.bf16.msra.mxu0 %v427
      %443 = vmatpush.bf16.msra.mxu0 %v426
      %444 = vmatpush.bf16.msra.mxu0 %v425
      %445 = vmatpush.bf16.msra.mxu0 %v424
      %446 = vmatpush.bf16.msra.mxu0 %v423
      %447 = vmatmul.bf16.gmra.mxu0 %v363
      %v448 = vpop.f32.mrf.mxu0
      %v449 = vadd.f32 0.0, %v448
      %v450 = vpop.f32.mrf.mxu0
      %v451 = vadd.f32 0.0, %v450
      %452 = vmatmul.bf16.gmra.mxu0 %v364
      %v453 = vpop.f32.mrf.mxu0
      %v454 = vadd.f32 0.0, %v453
      %v455 = vpop.f32.mrf.mxu0
      %v456 = vadd.f32 0.0, %v455
      %457 = vmatmul.bf16.gmra.mxu0 %v365
      %v458 = vpop.f32.mrf.mxu0
      %v459 = vadd.f32 0.0, %v458
      %v460 = vpop.f32.mrf.mxu0
      %v461 = vadd.f32 0.0, %v460
      %462 = vmatmul.bf16.gmra.mxu0 %v366
      %v463 = vpop.f32.mrf.mxu0
      %v464 = vadd.f32 0.0, %v463
      %v465 = vpop.f32.mrf.mxu0
      %v466 = vadd.f32 0.0, %v465
      %467 = vmatmul.bf16.gmra.mxu0 %v367
      %v468 = vpop.f32.mrf.mxu0
      %v469 = vadd.f32 0.0, %v468
      %v470 = vpop.f32.mrf.mxu0
      %v471 = vadd.f32 0.0, %v470
      %472 = vmatmul.bf16.gmra.mxu0 %v368
      %v473 = vpop.f32.mrf.mxu0
      %v474 = vadd.f32 0.0, %v473
      %v475 = vpop.f32.mrf.mxu0
      %v476 = vadd.f32 0.0, %v475
      %477 = vmatmul.bf16.gmra.mxu0 %v369
      %v478 = vpop.f32.mrf.mxu0
      %v479 = vadd.f32 0.0, %v478
      %v480 = vpop.f32.mrf.mxu0
      %v481 = vadd.f32 0.0, %v480
      %482 = vmatmul.bf16.gmra.mxu0 %v370
      %v483 = vpop.f32.mrf.mxu0
      %v484 = vadd.f32 0.0, %v483
      %v485 = vpop.f32.mrf.mxu0
      %v486 = vadd.f32 0.0, %v485
      %487 = vmatmul.bf16.gmra.mxu0 %v371
      %v488 = vpop.f32.mrf.mxu0
      %v489 = vadd.f32 0.0, %v488
      %v490 = vpop.f32.mrf.mxu0
      %v491 = vadd.f32 0.0, %v490
      %492 = vmatmul.bf16.gmra.mxu0 %v372
      %v493 = vpop.f32.mrf.mxu0
      %v494 = vadd.f32 0.0, %v493
      %v495 = vpop.f32.mrf.mxu0
      %v496 = vadd.f32 0.0, %v495
      %497 = vmatmul.bf16.gmra.mxu0 %v373
      %v498 = vpop.f32.mrf.mxu0
      %v499 = vadd.f32 0.0, %v498
      %v500 = vpop.f32.mrf.mxu0
      %v501 = vadd.f32 0.0, %v500
      %502 = vmatmul.bf16.gmra.mxu0 %v374
      %v503 = vpop.f32.mrf.mxu0
      %v504 = vadd.f32 0.0, %v503
      %v505 = vpop.f32.mrf.mxu0
      %v506 = vadd.f32 0.0, %v505
      %507 = vmatmul.bf16.gmra.mxu0 %v375
      %v508 = vpop.f32.mrf.mxu0
      %v509 = vadd.f32 0.0, %v508
      %v510 = vpop.f32.mrf.mxu0
      %v511 = vadd.f32 0.0, %v510
      %512 = vmatmul.bf16.gmra.mxu0 %v376
      %v513 = vpop.f32.mrf.mxu0
      %v514 = vadd.f32 0.0, %v513
      %v515 = vpop.f32.mrf.mxu0
      %v516 = vadd.f32 0.0, %v515
      %517 = vdwg.mxu0
      %518 = vst [vmem:[#allocation2] sm:$0xff] %v449
      %519 = vst [vmem:[#allocation2 + $0x8] sm:$0xff] %v451
      %520 = vst [vmem:[#allocation2 + $0x10] sm:$0xff] %v454
      %521 = vst [vmem:[#allocation2 + $0x18] sm:$0xff] %v456
      %522 = vst [vmem:[#allocation2 + $0x20] sm:$0xff] %v459
      %523 = vst [vmem:[#allocation2 + $0x28] sm:$0xff] %v461
      %524 = vst [vmem:[#allocation2 + $0x30] sm:$0xff] %v464
      %525 = vst [vmem:[#allocation2 + $0x38] sm:$0xff] %v466
      %526 = vst [vmem:[#allocation2 + $0x40] sm:$0xff] %v469
      %527 = vst [vmem:[#allocation2 + $0x48] sm:$0xff] %v471
      %528 = vst [vmem:[#allocation2 + $0x50] sm:$0xff] %v474
      %529 = vst [vmem:[#allocation2 + $0x58] sm:$0xff] %v476
      %530 = vst [vmem:[#allocation2 + $0x60] sm:$0xff] %v479
      %531 = vst [vmem:[#allocation2 + $0x68] sm:$0xff] %v481
      %532 = vst [vmem:[#allocation2 + $0x70] sm:$0xff] %v484
      %533 = vst [vmem:[#allocation2 + $0x78] sm:$0xff] %v486
      %534 = vst [vmem:[#allocation2 + $0x80] sm:$0xff] %v489
      %535 = vst [vmem:[#allocation2 + $0x88] sm:$0xff] %v491
      %536 = vst [vmem:[#allocation2 + $0x90] sm:$0xff] %v494
      %537 = vst [vmem:[#allocation2 + $0x98] sm:$0xff] %v496
      %538 = vst [vmem:[#allocation2 + $0xa0] sm:$0xff] %v499
      %539 = vst [vmem:[#allocation2 + $0xa8] sm:$0xff] %v501
      %540 = vst [vmem:[#allocation2 + $0xb0] sm:$0xff] %v504
      %541 = vst [vmem:[#allocation2 + $0xb8] sm:$0xff] %v506
      %542 = vst [vmem:[#allocation2 + $0xc0] sm:$0xff] %v509
      %543 = vst [vmem:[#allocation2 + $0xc8] sm:$0xff] %v511
      %544 = vst [vmem:[#allocation2 + $0xd0] sm:$0xff] %v514
      %545 = vst [vmem:[#allocation2 + $0xd8] sm:$0xff] %v516
      %v546 = vld [vmem:[%s244] sm:$0xf]
      %v547 = vld [vmem:[%s244 + $0x4] sm:$0xf]
      %v548 = vld [vmem:[%s244 + $0x8] sm:$0xf]
      %v549 = vld [vmem:[%s244 + $0xc] sm:$0xf]
      %v550 = vld [vmem:[%s244 + $0x10] sm:$0xf]
      %v551 = vld [vmem:[%s244 + $0x14] sm:$0xf]
      %v552 = vld [vmem:[%s244 + $0x18] sm:$0xf]
      %v553 = vld [vmem:[%s244 + $0x1c] sm:$0xf]
      %v554 = vld [vmem:[%s244 + $0x20] sm:$0xf]
      %v555 = vld [vmem:[%s244 + $0x24] sm:$0xf]
      %v556 = vld [vmem:[%s244 + $0x28] sm:$0xf]
      %v557 = vld [vmem:[%s244 + $0x2c] sm:$0xf]
      %v558 = vld [vmem:[%s244 + $0x30] sm:$0xf]
      %v559 = vld [vmem:[%s244 + $0x34] sm:$0xf]
      %v560 = vld [vmem:[%s244 + $0x38] sm:$0xf]
      %v561 = vld [vmem:[%s244 + $0x3c] sm:$0xf]
      %v562 = vld [vmem:[%s244 + $0x40] sm:$0xf]
      %v563 = vld [vmem:[%s244 + $0x44] sm:$0xf]
      %v564 = vld [vmem:[%s244 + $0x48] sm:$0xf]
      %v565 = vld [vmem:[%s244 + $0x4c] sm:$0xf]
      %v566 = vld [vmem:[%s244 + $0x50] sm:$0xf]
      %v567 = vld [vmem:[%s244 + $0x54] sm:$0xf]
      %v568 = vld [vmem:[%s244 + $0x58] sm:$0xf]
      %v569 = vld [vmem:[%s244 + $0x5c] sm:$0xf]
      %v570 = vld [vmem:[%s244 + $0x60] sm:$0xf]
      %v571 = vld [vmem:[%s244 + $0x64] sm:$0xf]
      %v572 = vld [vmem:[%s244 + $0x68] sm:$0xf]
      %v573 = vld [vmem:[%s244 + $0x6c] sm:$0xf]
      %v574 = vld [vmem:[%s244 + $0x70] sm:$0x1]
      %s575 = scalar_lea.vmem %s248, 64
      %v576 = vld [vmem:[%s575] sm:$0xf]
      %v577 = vld [vmem:[%s575 + $0x4] sm:$0xf]
      %v578 = vld [vmem:[%s575 + $0x8] sm:$0xf]
      %v579 = vld [vmem:[%s575 + $0xc] sm:$0xf]
      %v580 = vld [vmem:[%s575 + $0x10] sm:$0xf]
      %v581 = vld [vmem:[%s575 + $0x14] sm:$0xf]
      %v582 = vld [vmem:[%s575 + $0x18] sm:$0xf]
      %v583 = vld [vmem:[%s575 + $0x1c] sm:$0xf]
      %v584 = vld [vmem:[%s575 + $0x20] sm:$0xf]
      %v585 = vld [vmem:[%s575 + $0x24] sm:$0xf]
      %v586 = vld [vmem:[%s575 + $0x28] sm:$0xf]
      %v587 = vld [vmem:[%s575 + $0x2c] sm:$0xf]
      %v588 = vld [vmem:[%s575 + $0x30] sm:$0xf]
      %v589 = vld [vmem:[%s575 + $0x34] sm:$0xf]
      %v590 = vld [vmem:[%s575 + $0x38] sm:$0xf]
      %v591 = vld [vmem:[%s575 + $0x3c] sm:$0xf]
      %v621 = vunpack.c.l.b16 %v546
      %v622 = vunpack.c.l.b16 %v547
      %v623 = vunpack.c.l.b16 %v548
      %v624 = vunpack.c.l.b16 %v549
      %v625 = vunpack.c.l.b16 %v550
      %v626 = vunpack.c.l.b16 %v551
      %v627 = vunpack.c.l.b16 %v552
      %v628 = vunpack.c.l.b16 %v553
      %v629 = vunpack.c.l.b16 %v554
      %v630 = vunpack.c.l.b16 %v555
      %v631 = vunpack.c.l.b16 %v556
      %v632 = vunpack.c.l.b16 %v557
      %v633 = vunpack.c.l.b16 %v558
      %v634 = vunpack.c.l.b16 %v559
      %v635 = vunpack.c.l.b16 %v560
      %v636 = vunpack.c.l.b16 %v561
      %v637 = vunpack.c.l.b16 %v562
      %v638 = vunpack.c.l.b16 %v563
      %v639 = vunpack.c.l.b16 %v564
      %v640 = vunpack.c.l.b16 %v565
      %v641 = vunpack.c.l.b16 %v566
      %v642 = vunpack.c.l.b16 %v567
      %v643 = vunpack.c.l.b16 %v568
      %v644 = vunpack.c.l.b16 %v569
      %v645 = vunpack.c.l.b16 %v570
      %v646 = vunpack.c.l.b16 %v571
      %v647 = vunpack.c.l.b16 %v572
      %v648 = vunpack.c.l.b16 %v573
      %v649 = vunpack.c.l.b16 %v574
      %v650 = vpack.c.b16 %v622, %v621
      %v651 = vpack.c.b16 %v624, %v623
      %v652 = vpack.c.b16 %v626, %v625
      %v653 = vpack.c.b16 %v628, %v627
      %v654 = vpack.c.b16 %v630, %v629
      %v655 = vpack.c.b16 %v632, %v631
      %v656 = vpack.c.b16 %v634, %v633
      %v657 = vpack.c.b16 %v636, %v635
      %v658 = vpack.c.b16 %v638, %v637
      %v659 = vpack.c.b16 %v640, %v639
      %v660 = vpack.c.b16 %v642, %v641
      %v661 = vpack.c.b16 %v644, %v643
      %v662 = vpack.c.b16 %v646, %v645
      %v663 = vpack.c.b16 %v648, %v647
      %v664 = vpack.c.b16 %v649, %v649
      %vm665 = vsmask.f32 7424
      %v667 = vshrl.u32 %v650, 16
      %v669 = vshll.u32 %v650, 16
      %v671 = vrot.slane %v669, 1
      %v672 = vor.u32 %v667, %v671
      %v674 = vshll.u32 %v651, 16
      %v676 = vrot.slane %v674, 1
      %v677 = vsel %vm665, %v672, %v676
      %v678 = vshrl.u32 %v651, 16
      %v680 = vor.u32 %v678, %v676
      %v682 = vshll.u32 %v652, 16
      %v684 = vrot.slane %v682, 1
      %v685 = vsel %vm665, %v680, %v684
      %v686 = vshrl.u32 %v652, 16
      %v688 = vor.u32 %v686, %v684
      %v690 = vshll.u32 %v653, 16
      %v692 = vrot.slane %v690, 1
      %v693 = vsel %vm665, %v688, %v692
      %v694 = vshrl.u32 %v653, 16
      %v696 = vor.u32 %v694, %v692
      %v698 = vshll.u32 %v654, 16
      %v700 = vrot.slane %v698, 1
      %v701 = vsel %vm665, %v696, %v700
      %v702 = vshrl.u32 %v654, 16
      %v704 = vor.u32 %v702, %v700
      %v706 = vshll.u32 %v655, 16
      %v708 = vrot.slane %v706, 1
      %v709 = vsel %vm665, %v704, %v708
      %v710 = vshrl.u32 %v655, 16
      %v712 = vor.u32 %v710, %v708
      %v714 = vshll.u32 %v656, 16
      %v716 = vrot.slane %v714, 1
      %v717 = vsel %vm665, %v712, %v716
      %v718 = vshrl.u32 %v656, 16
      %v720 = vor.u32 %v718, %v716
      %v722 = vshll.u32 %v657, 16
      %v724 = vrot.slane %v722, 1
      %v725 = vsel %vm665, %v720, %v724
      %v726 = vshrl.u32 %v657, 16
      %v728 = vor.u32 %v726, %v724
      %v730 = vshll.u32 %v658, 16
      %v732 = vrot.slane %v730, 1
      %v733 = vsel %vm665, %v728, %v732
      %v734 = vshrl.u32 %v658, 16
      %v736 = vor.u32 %v734, %v732
      %v738 = vshll.u32 %v659, 16
      %v740 = vrot.slane %v738, 1
      %v741 = vsel %vm665, %v736, %v740
      %v742 = vshrl.u32 %v659, 16
      %v744 = vor.u32 %v742, %v740
      %v746 = vshll.u32 %v660, 16
      %v748 = vrot.slane %v746, 1
      %v749 = vsel %vm665, %v744, %v748
      %v750 = vshrl.u32 %v660, 16
      %v752 = vor.u32 %v750, %v748
      %v754 = vshll.u32 %v661, 16
      %v756 = vrot.slane %v754, 1
      %v757 = vsel %vm665, %v752, %v756
      %v758 = vshrl.u32 %v661, 16
      %v760 = vor.u32 %v758, %v756
      %v762 = vshll.u32 %v662, 16
      %v764 = vrot.slane %v762, 1
      %v765 = vsel %vm665, %v760, %v764
      %v766 = vshrl.u32 %v662, 16
      %v768 = vor.u32 %v766, %v764
      %v770 = vshll.u32 %v663, 16
      %v772 = vrot.slane %v770, 1
      %v773 = vsel %vm665, %v768, %v772
      %v774 = vshrl.u32 %v663, 16
      %v776 = vor.u32 %v774, %v772
      %v778 = vshll.u32 %v664, 16
      %v780 = vrot.slane %v778, 1
      %v781 = vsel %vm665, %v776, %v780
      %v812 = vunpack.c.l.b16 %v576
      %v813 = vunpack.c.l.b16 %v577
      %v814 = vunpack.c.l.b16 %v578
      %v815 = vunpack.c.l.b16 %v579
      %v816 = vunpack.c.l.b16 %v580
      %v817 = vunpack.c.l.b16 %v581
      %v818 = vunpack.c.l.b16 %v582
      %v819 = vunpack.c.l.b16 %v583
      %v820 = vunpack.c.l.b16 %v584
      %v821 = vunpack.c.l.b16 %v585
      %v822 = vunpack.c.l.b16 %v586
      %v823 = vunpack.c.l.b16 %v587
      %v824 = vunpack.c.l.b16 %v588
      %v825 = vunpack.c.l.b16 %v589
      %v826 = vunpack.c.l.b16 %v590
      %v827 = vunpack.c.l.b16 %v591
      %v828 = vpack.c.b16 %v813, %v812
      %v829 = vpack.c.b16 %v815, %v814
      %v830 = vpack.c.b16 %v817, %v816
      %v831 = vpack.c.b16 %v819, %v818
      %v832 = vpack.c.b16 %v821, %v820
      %v833 = vpack.c.b16 %v823, %v822
      %v834 = vpack.c.b16 %v825, %v824
      %v835 = vpack.c.b16 %v827, %v826
      %844 = vmatpush.bf16.msra.mxu0 %v835
      %845 = vmatpush.bf16.msra.mxu0 %v834
      %846 = vmatpush.bf16.msra.mxu0 %v833
      %847 = vmatpush.bf16.msra.mxu0 %v832
      %848 = vmatpush.bf16.msra.mxu0 %v831
      %849 = vmatpush.bf16.msra.mxu0 %v830
      %850 = vmatpush.bf16.msra.mxu0 %v829
      %851 = vmatpush.bf16.msra.mxu0 %v828
      %852 = vmatmul.bf16.gmra.mxu0 %v677
      %v853 = vpop.f32.mrf.mxu0
      %v854 = vadd.f32 0.0, %v853
      %v855 = vpop.f32.mrf.mxu0
      %v856 = vadd.f32 0.0, %v855
      %857 = vmatmul.bf16.gmra.mxu0 %v685
      %v858 = vpop.f32.mrf.mxu0
      %v859 = vadd.f32 0.0, %v858
      %v860 = vpop.f32.mrf.mxu0
      %v861 = vadd.f32 0.0, %v860
      %862 = vmatmul.bf16.gmra.mxu0 %v693
      %v863 = vpop.f32.mrf.mxu0
      %v864 = vadd.f32 0.0, %v863
      %v865 = vpop.f32.mrf.mxu0
      %v866 = vadd.f32 0.0, %v865
      %867 = vmatmul.bf16.gmra.mxu0 %v701
      %v868 = vpop.f32.mrf.mxu0
      %v869 = vadd.f32 0.0, %v868
      %v870 = vpop.f32.mrf.mxu0
      %v871 = vadd.f32 0.0, %v870
      %872 = vmatmul.bf16.gmra.mxu0 %v709
      %v873 = vpop.f32.mrf.mxu0
      %v874 = vadd.f32 0.0, %v873
      %v875 = vpop.f32.mrf.mxu0
      %v876 = vadd.f32 0.0, %v875
      %877 = vmatmul.bf16.gmra.mxu0 %v717
      %v878 = vpop.f32.mrf.mxu0
      %v879 = vadd.f32 0.0, %v878
      %v880 = vpop.f32.mrf.mxu0
      %v881 = vadd.f32 0.0, %v880
      %882 = vmatmul.bf16.gmra.mxu0 %v725
      %v883 = vpop.f32.mrf.mxu0
      %v884 = vadd.f32 0.0, %v883
      %v885 = vpop.f32.mrf.mxu0
      %v886 = vadd.f32 0.0, %v885
      %887 = vmatmul.bf16.gmra.mxu0 %v733
      %v888 = vpop.f32.mrf.mxu0
      %v889 = vadd.f32 0.0, %v888
      %v890 = vpop.f32.mrf.mxu0
      %v891 = vadd.f32 0.0, %v890
      %892 = vmatmul.bf16.gmra.mxu0 %v741
      %v893 = vpop.f32.mrf.mxu0
      %v894 = vadd.f32 0.0, %v893
      %v895 = vpop.f32.mrf.mxu0
      %v896 = vadd.f32 0.0, %v895
      %897 = vmatmul.bf16.gmra.mxu0 %v749
      %v898 = vpop.f32.mrf.mxu0
      %v899 = vadd.f32 0.0, %v898
      %v900 = vpop.f32.mrf.mxu0
      %v901 = vadd.f32 0.0, %v900
      %902 = vmatmul.bf16.gmra.mxu0 %v757
      %v903 = vpop.f32.mrf.mxu0
      %v904 = vadd.f32 0.0, %v903
      %v905 = vpop.f32.mrf.mxu0
      %v906 = vadd.f32 0.0, %v905
      %907 = vmatmul.bf16.gmra.mxu0 %v765
      %v908 = vpop.f32.mrf.mxu0
      %v909 = vadd.f32 0.0, %v908
      %v910 = vpop.f32.mrf.mxu0
      %v911 = vadd.f32 0.0, %v910
      %912 = vmatmul.bf16.gmra.mxu0 %v773
      %v913 = vpop.f32.mrf.mxu0
      %v914 = vadd.f32 0.0, %v913
      %v915 = vpop.f32.mrf.mxu0
      %v916 = vadd.f32 0.0, %v915
      %917 = vmatmul.bf16.gmra.mxu0 %v781
      %v918 = vpop.f32.mrf.mxu0
      %v919 = vadd.f32 0.0, %v918
      %v920 = vpop.f32.mrf.mxu0
      %v921 = vadd.f32 0.0, %v920
      %922 = vdwg.mxu0
      %v923 = vld [vmem:[#allocation2] sm:$0xff]
      %v924 = vld [vmem:[#allocation2 + $0x8] sm:$0xff]
      %v925 = vld [vmem:[#allocation2 + $0x10] sm:$0xff]
      %v926 = vld [vmem:[#allocation2 + $0x18] sm:$0xff]
      %v927 = vld [vmem:[#allocation2 + $0x20] sm:$0xff]
      %v928 = vld [vmem:[#allocation2 + $0x28] sm:$0xff]
      %v929 = vld [vmem:[#allocation2 + $0x30] sm:$0xff]
      %v930 = vld [vmem:[#allocation2 + $0x38] sm:$0xff]
      %v931 = vld [vmem:[#allocation2 + $0x40] sm:$0xff]
      %v932 = vld [vmem:[#allocation2 + $0x48] sm:$0xff]
      %v933 = vld [vmem:[#allocation2 + $0x50] sm:$0xff]
      %v934 = vld [vmem:[#allocation2 + $0x58] sm:$0xff]
      %v935 = vld [vmem:[#allocation2 + $0x60] sm:$0xff]
      %v936 = vld [vmem:[#allocation2 + $0x68] sm:$0xff]
      %v937 = vld [vmem:[#allocation2 + $0x70] sm:$0xff]
      %v938 = vld [vmem:[#allocation2 + $0x78] sm:$0xff]
      %v939 = vld [vmem:[#allocation2 + $0x80] sm:$0xff]
      %v940 = vld [vmem:[#allocation2 + $0x88] sm:$0xff]
      %v941 = vld [vmem:[#allocation2 + $0x90] sm:$0xff]
      %v942 = vld [vmem:[#allocation2 + $0x98] sm:$0xff]
      %v943 = vld [vmem:[#allocation2 + $0xa0] sm:$0xff]
      %v944 = vld [vmem:[#allocation2 + $0xa8] sm:$0xff]
      %v945 = vld [vmem:[#allocation2 + $0xb0] sm:$0xff]
      %v946 = vld [vmem:[#allocation2 + $0xb8] sm:$0xff]
      %v947 = vld [vmem:[#allocation2 + $0xc0] sm:$0xff]
      %v948 = vld [vmem:[#allocation2 + $0xc8] sm:$0xff]
      %v949 = vld [vmem:[#allocation2 + $0xd0] sm:$0xff]
      %v950 = vld [vmem:[#allocation2 + $0xd8] sm:$0xff]
      %v951 = vadd.f32 %v923, %v854
      %v952 = vadd.f32 %v924, %v856
      %v953 = vadd.f32 %v925, %v859
      %v954 = vadd.f32 %v926, %v861
      %v955 = vadd.f32 %v927, %v864
      %v956 = vadd.f32 %v928, %v866
      %v957 = vadd.f32 %v929, %v869
      %v958 = vadd.f32 %v930, %v871
      %v959 = vadd.f32 %v931, %v874
      %v960 = vadd.f32 %v932, %v876
      %v961 = vadd.f32 %v933, %v879
      %v962 = vadd.f32 %v934, %v881
      %v963 = vadd.f32 %v935, %v884
      %v964 = vadd.f32 %v936, %v886
      %v965 = vadd.f32 %v937, %v889
      %v966 = vadd.f32 %v938, %v891
      %v967 = vadd.f32 %v939, %v894
      %v968 = vadd.f32 %v940, %v896
      %v969 = vadd.f32 %v941, %v899
      %v970 = vadd.f32 %v942, %v901
      %v971 = vadd.f32 %v943, %v904
      %v972 = vadd.f32 %v944, %v906
      %v973 = vadd.f32 %v945, %v909
      %v974 = vadd.f32 %v946, %v911
      %v975 = vadd.f32 %v947, %v914
      %v976 = vadd.f32 %v948, %v916
      %v977 = vadd.f32 %v949, %v919
      %v978 = vadd.f32 %v950, %v921
      %979 = vst [vmem:[#allocation2] sm:$0xff] %v951
      %980 = vst [vmem:[#allocation2 + $0x8] sm:$0xff] %v952
      %981 = vst [vmem:[#allocation2 + $0x10] sm:$0xff] %v953
      %982 = vst [vmem:[#allocation2 + $0x18] sm:$0xff] %v954
      %983 = vst [vmem:[#allocation2 + $0x20] sm:$0xff] %v955
      %984 = vst [vmem:[#allocation2 + $0x28] sm:$0xff] %v956
      %985 = vst [vmem:[#allocation2 + $0x30] sm:$0xff] %v957
      %986 = vst [vmem:[#allocation2 + $0x38] sm:$0xff] %v958
      %987 = vst [vmem:[#allocation2 + $0x40] sm:$0xff] %v959
      %988 = vst [vmem:[#allocation2 + $0x48] sm:$0xff] %v960
      %989 = vst [vmem:[#allocation2 + $0x50] sm:$0xff] %v961
      %990 = vst [vmem:[#allocation2 + $0x58] sm:$0xff] %v962
      %991 = vst [vmem:[#allocation2 + $0x60] sm:$0xff] %v963
      %992 = vst [vmem:[#allocation2 + $0x68] sm:$0xff] %v964
      %993 = vst [vmem:[#allocation2 + $0x70] sm:$0xff] %v965
      %994 = vst [vmem:[#allocation2 + $0x78] sm:$0xff] %v966
      %995 = vst [vmem:[#allocation2 + $0x80] sm:$0xff] %v967
      %996 = vst [vmem:[#allocation2 + $0x88] sm:$0xff] %v968
      %997 = vst [vmem:[#allocation2 + $0x90] sm:$0xff] %v969
      %998 = vst [vmem:[#allocation2 + $0x98] sm:$0xff] %v970
      %999 = vst [vmem:[#allocation2 + $0xa0] sm:$0xff] %v971
      %1000 = vst [vmem:[#allocation2 + $0xa8] sm:$0xff] %v972
      %1001 = vst [vmem:[#allocation2 + $0xb0] sm:$0xff] %v973
      %1002 = vst [vmem:[#allocation2 + $0xb8] sm:$0xff] %v974
      %1003 = vst [vmem:[#allocation2 + $0xc0] sm:$0xff] %v975
      %1004 = vst [vmem:[#allocation2 + $0xc8] sm:$0xff] %v976
      %1005 = vst [vmem:[#allocation2 + $0xd0] sm:$0xff] %v977
      %1006 = vst [vmem:[#allocation2 + $0xd8] sm:$0xff] %v978
      %v1007 = vld [vmem:[%s244] sm:$0xe]
      %v1008 = vld [vmem:[%s244 + $0x4] sm:$0xf]
      %v1009 = vld [vmem:[%s244 + $0x8] sm:$0xf]
      %v1010 = vld [vmem:[%s244 + $0xc] sm:$0xf]
      %v1011 = vld [vmem:[%s244 + $0x10] sm:$0xf]
      %v1012 = vld [vmem:[%s244 + $0x14] sm:$0xf]
      %v1013 = vld [vmem:[%s244 + $0x18] sm:$0xf]
      %v1014 = vld [vmem:[%s244 + $0x1c] sm:$0xf]
      %v1015 = vld [vmem:[%s244 + $0x20] sm:$0xf]
      %v1016 = vld [vmem:[%s244 + $0x24] sm:$0xf]
      %v1017 = vld [vmem:[%s244 + $0x28] sm:$0xf]
      %v1018 = vld [vmem:[%s244 + $0x2c] sm:$0xf]
      %v1019 = vld [vmem:[%s244 + $0x30] sm:$0xf]
      %v1020 = vld [vmem:[%s244 + $0x34] sm:$0xf]
      %v1021 = vld [vmem:[%s244 + $0x38] sm:$0xf]
      %v1022 = vld [vmem:[%s244 + $0x3c] sm:$0xf]
      %v1023 = vld [vmem:[%s244 + $0x40] sm:$0xf]
      %v1024 = vld [vmem:[%s244 + $0x44] sm:$0xf]
      %v1025 = vld [vmem:[%s244 + $0x48] sm:$0xf]
      %v1026 = vld [vmem:[%s244 + $0x4c] sm:$0xf]
      %v1027 = vld [vmem:[%s244 + $0x50] sm:$0xf]
      %v1028 = vld [vmem:[%s244 + $0x54] sm:$0xf]
      %v1029 = vld [vmem:[%s244 + $0x58] sm:$0xf]
      %v1030 = vld [vmem:[%s244 + $0x5c] sm:$0xf]
      %v1031 = vld [vmem:[%s244 + $0x60] sm:$0xf]
      %v1032 = vld [vmem:[%s244 + $0x64] sm:$0xf]
      %v1033 = vld [vmem:[%s244 + $0x68] sm:$0xf]
      %v1034 = vld [vmem:[%s244 + $0x6c] sm:$0xf]
      %v1035 = vld [vmem:[%s244 + $0x70] sm:$0x1]
      %s1036 = scalar_lea.vmem %s248, 128
      %v1037 = vld [vmem:[%s1036] sm:$0xf]
      %v1038 = vld [vmem:[%s1036 + $0x4] sm:$0xf]
      %v1039 = vld [vmem:[%s1036 + $0x8] sm:$0xf]
      %v1040 = vld [vmem:[%s1036 + $0xc] sm:$0xf]
      %v1041 = vld [vmem:[%s1036 + $0x10] sm:$0xf]
      %v1042 = vld [vmem:[%s1036 + $0x14] sm:$0xf]
      %v1043 = vld [vmem:[%s1036 + $0x18] sm:$0xf]
      %v1044 = vld [vmem:[%s1036 + $0x1c] sm:$0xf]
      %v1045 = vld [vmem:[%s1036 + $0x20] sm:$0xf]
      %v1046 = vld [vmem:[%s1036 + $0x24] sm:$0xf]
      %v1047 = vld [vmem:[%s1036 + $0x28] sm:$0xf]
      %v1048 = vld [vmem:[%s1036 + $0x2c] sm:$0xf]
      %v1049 = vld [vmem:[%s1036 + $0x30] sm:$0xf]
      %v1050 = vld [vmem:[%s1036 + $0x34] sm:$0xf]
      %v1051 = vld [vmem:[%s1036 + $0x38] sm:$0xf]
      %v1052 = vld [vmem:[%s1036 + $0x3c] sm:$0xf]
      %v1082 = vunpack.c.l.b16 %v1007
      %v1083 = vunpack.c.l.b16 %v1008
      %v1084 = vunpack.c.l.b16 %v1009
      %v1085 = vunpack.c.l.b16 %v1010
      %v1086 = vunpack.c.l.b16 %v1011
      %v1087 = vunpack.c.l.b16 %v1012
      %v1088 = vunpack.c.l.b16 %v1013
      %v1089 = vunpack.c.l.b16 %v1014
      %v1090 = vunpack.c.l.b16 %v1015
      %v1091 = vunpack.c.l.b16 %v1016
      %v1092 = vunpack.c.l.b16 %v1017
      %v1093 = vunpack.c.l.b16 %v1018
      %v1094 = vunpack.c.l.b16 %v1019
      %v1095 = vunpack.c.l.b16 %v1020
      %v1096 = vunpack.c.l.b16 %v1021
      %v1097 = vunpack.c.l.b16 %v1022
      %v1098 = vunpack.c.l.b16 %v1023
      %v1099 = vunpack.c.l.b16 %v1024
      %v1100 = vunpack.c.l.b16 %v1025
      %v1101 = vunpack.c.l.b16 %v1026
      %v1102 = vunpack.c.l.b16 %v1027
      %v1103 = vunpack.c.l.b16 %v1028
      %v1104 = vunpack.c.l.b16 %v1029
      %v1105 = vunpack.c.l.b16 %v1030
      %v1106 = vunpack.c.l.b16 %v1031
      %v1107 = vunpack.c.l.b16 %v1032
      %v1108 = vunpack.c.l.b16 %v1033
      %v1109 = vunpack.c.l.b16 %v1034
      %v1110 = vunpack.c.l.b16 %v1035
      %v1111 = vpack.c.b16 %v1083, %v1082
      %v1112 = vpack.c.b16 %v1085, %v1084
      %v1113 = vpack.c.b16 %v1087, %v1086
      %v1114 = vpack.c.b16 %v1089, %v1088
      %v1115 = vpack.c.b16 %v1091, %v1090
      %v1116 = vpack.c.b16 %v1093, %v1092
      %v1117 = vpack.c.b16 %v1095, %v1094
      %v1118 = vpack.c.b16 %v1097, %v1096
      %v1119 = vpack.c.b16 %v1099, %v1098
      %v1120 = vpack.c.b16 %v1101, %v1100
      %v1121 = vpack.c.b16 %v1103, %v1102
      %v1122 = vpack.c.b16 %v1105, %v1104
      %v1123 = vpack.c.b16 %v1107, %v1106
      %v1124 = vpack.c.b16 %v1109, %v1108
      %v1125 = vpack.c.b16 %v1110, %v1110
      %vm1126 = vcmask 1046528
      %v1127 = vrot.slane %v1111, 1
      %v1128 = vrot.slane %v1112, 1
      %v1129 = vsel %vm1126, %v1127, %v1128
      %v1130 = vrot.slane %v1113, 1
      %v1131 = vsel %vm1126, %v1128, %v1130
      %v1132 = vrot.slane %v1114, 1
      %v1133 = vsel %vm1126, %v1130, %v1132
      %v1134 = vrot.slane %v1115, 1
      %v1135 = vsel %vm1126, %v1132, %v1134
      %v1136 = vrot.slane %v1116, 1
      %v1137 = vsel %vm1126, %v1134, %v1136
      %v1138 = vrot.slane %v1117, 1
      %v1139 = vsel %vm1126, %v1136, %v1138
      %v1140 = vrot.slane %v1118, 1
      %v1141 = vsel %vm1126, %v1138, %v1140
      %v1142 = vrot.slane %v1119, 1
      %v1143 = vsel %vm1126, %v1140, %v1142
      %v1144 = vrot.slane %v1120, 1
      %v1145 = vsel %vm1126, %v1142, %v1144
      %v1146 = vrot.slane %v1121, 1
      %v1147 = vsel %vm1126, %v1144, %v1146
      %v1148 = vrot.slane %v1122, 1
      %v1149 = vsel %vm1126, %v1146, %v1148
      %v1150 = vrot.slane %v1123, 1
      %v1151 = vsel %vm1126, %v1148, %v1150
      %v1152 = vrot.slane %v1124, 1
      %v1153 = vsel %vm1126, %v1150, %v1152
      %v1154 = vrot.slane %v1125, 1
      %v1155 = vsel %vm1126, %v1152, %v1154
      %v1186 = vunpack.c.l.b16 %v1037
      %v1187 = vunpack.c.l.b16 %v1038
      %v1188 = vunpack.c.l.b16 %v1039
      %v1189 = vunpack.c.l.b16 %v1040
      %v1190 = vunpack.c.l.b16 %v1041
      %v1191 = vunpack.c.l.b16 %v1042
      %v1192 = vunpack.c.l.b16 %v1043
      %v1193 = vunpack.c.l.b16 %v1044
      %v1194 = vunpack.c.l.b16 %v1045
      %v1195 = vunpack.c.l.b16 %v1046
      %v1196 = vunpack.c.l.b16 %v1047
      %v1197 = vunpack.c.l.b16 %v1048
      %v1198 = vunpack.c.l.b16 %v1049
      %v1199 = vunpack.c.l.b16 %v1050
      %v1200 = vunpack.c.l.b16 %v1051
      %v1201 = vunpack.c.l.b16 %v1052
      %v1202 = vpack.c.b16 %v1187, %v1186
      %v1203 = vpack.c.b16 %v1189, %v1188
      %v1204 = vpack.c.b16 %v1191, %v1190
      %v1205 = vpack.c.b16 %v1193, %v1192
      %v1206 = vpack.c.b16 %v1195, %v1194
      %v1207 = vpack.c.b16 %v1197, %v1196
      %v1208 = vpack.c.b16 %v1199, %v1198
      %v1209 = vpack.c.b16 %v1201, %v1200
      %1218 = vmatpush.bf16.msra.mxu0 %v1209
      %1219 = vmatpush.bf16.msra.mxu0 %v1208
      %1220 = vmatpush.bf16.msra.mxu0 %v1207
      %1221 = vmatpush.bf16.msra.mxu0 %v1206
      %1222 = vmatpush.bf16.msra.mxu0 %v1205
      %1223 = vmatpush.bf16.msra.mxu0 %v1204
      %1224 = vmatpush.bf16.msra.mxu0 %v1203
      %1225 = vmatpush.bf16.msra.mxu0 %v1202
      %1226 = vmatmul.bf16.gmra.mxu0 %v1129
      %v1227 = vpop.f32.mrf.mxu0
      %v1228 = vadd.f32 0.0, %v1227
      %v1229 = vpop.f32.mrf.mxu0
      %v1230 = vadd.f32 0.0, %v1229
      %1231 = vmatmul.bf16.gmra.mxu0 %v1131
      %v1232 = vpop.f32.mrf.mxu0
      %v1233 = vadd.f32 0.0, %v1232
      %v1234 = vpop.f32.mrf.mxu0
      %v1235 = vadd.f32 0.0, %v1234
      %1236 = vmatmul.bf16.gmra.mxu0 %v1133
      %v1237 = vpop.f32.mrf.mxu0
      %v1238 = vadd.f32 0.0, %v1237
      %v1239 = vpop.f32.mrf.mxu0
      %v1240 = vadd.f32 0.0, %v1239
      %1241 = vmatmul.bf16.gmra.mxu0 %v1135
      %v1242 = vpop.f32.mrf.mxu0
      %v1243 = vadd.f32 0.0, %v1242
      %v1244 = vpop.f32.mrf.mxu0
      %v1245 = vadd.f32 0.0, %v1244
      %1246 = vmatmul.bf16.gmra.mxu0 %v1137
      %v1247 = vpop.f32.mrf.mxu0
      %v1248 = vadd.f32 0.0, %v1247
      %v1249 = vpop.f32.mrf.mxu0
      %v1250 = vadd.f32 0.0, %v1249
      %1251 = vmatmul.bf16.gmra.mxu0 %v1139
      %v1252 = vpop.f32.mrf.mxu0
      %v1253 = vadd.f32 0.0, %v1252
      %v1254 = vpop.f32.mrf.mxu0
      %v1255 = vadd.f32 0.0, %v1254
      %1256 = vmatmul.bf16.gmra.mxu0 %v1141
      %v1257 = vpop.f32.mrf.mxu0
      %v1258 = vadd.f32 0.0, %v1257
      %v1259 = vpop.f32.mrf.mxu0
      %v1260 = vadd.f32 0.0, %v1259
      %1261 = vmatmul.bf16.gmra.mxu0 %v1143
      %v1262 = vpop.f32.mrf.mxu0
      %v1263 = vadd.f32 0.0, %v1262
      %v1264 = vpop.f32.mrf.mxu0
      %v1265 = vadd.f32 0.0, %v1264
      %1266 = vmatmul.bf16.gmra.mxu0 %v1145
      %v1267 = vpop.f32.mrf.mxu0
      %v1268 = vadd.f32 0.0, %v1267
      %v1269 = vpop.f32.mrf.mxu0
      %v1270 = vadd.f32 0.0, %v1269
      %1271 = vmatmul.bf16.gmra.mxu0 %v1147
      %v1272 = vpop.f32.mrf.mxu0
      %v1273 = vadd.f32 0.0, %v1272
      %v1274 = vpop.f32.mrf.mxu0
      %v1275 = vadd.f32 0.0, %v1274
      %1276 = vmatmul.bf16.gmra.mxu0 %v1149
      %v1277 = vpop.f32.mrf.mxu0
      %v1278 = vadd.f32 0.0, %v1277
      %v1279 = vpop.f32.mrf.mxu0
      %v1280 = vadd.f32 0.0, %v1279
      %1281 = vmatmul.bf16.gmra.mxu0 %v1151
      %v1282 = vpop.f32.mrf.mxu0
      %v1283 = vadd.f32 0.0, %v1282
      %v1284 = vpop.f32.mrf.mxu0
      %v1285 = vadd.f32 0.0, %v1284
      %1286 = vmatmul.bf16.gmra.mxu0 %v1153
      %v1287 = vpop.f32.mrf.mxu0
      %v1288 = vadd.f32 0.0, %v1287
      %v1289 = vpop.f32.mrf.mxu0
      %v1290 = vadd.f32 0.0, %v1289
      %1291 = vmatmul.bf16.gmra.mxu0 %v1155
      %v1292 = vpop.f32.mrf.mxu0
      %v1293 = vadd.f32 0.0, %v1292
      %v1294 = vpop.f32.mrf.mxu0
      %v1295 = vadd.f32 0.0, %v1294
      %1296 = vdwg.mxu0
      %v1297 = vld [vmem:[#allocation2] sm:$0xff]
      %v1298 = vld [vmem:[#allocation2 + $0x8] sm:$0xff]
      %v1299 = vld [vmem:[#allocation2 + $0x10] sm:$0xff]
      %v1300 = vld [vmem:[#allocation2 + $0x18] sm:$0xff]
      %v1301 = vld [vmem:[#allocation2 + $0x20] sm:$0xff]
      %v1302 = vld [vmem:[#allocation2 + $0x28] sm:$0xff]
      %v1303 = vld [vmem:[#allocation2 + $0x30] sm:$0xff]
      %v1304 = vld [vmem:[#allocation2 + $0x38] sm:$0xff]
      %v1305 = vld [vmem:[#allocation2 + $0x40] sm:$0xff]
      %v1306 = vld [vmem:[#allocation2 + $0x48] sm:$0xff]
      %v1307 = vld [vmem:[#allocation2 + $0x50] sm:$0xff]
      %v1308 = vld [vmem:[#allocation2 + $0x58] sm:$0xff]
      %v1309 = vld [vmem:[#allocation2 + $0x60] sm:$0xff]
      %v1310 = vld [vmem:[#allocation2 + $0x68] sm:$0xff]
      %v1311 = vld [vmem:[#allocation2 + $0x70] sm:$0xff]
      %v1312 = vld [vmem:[#allocation2 + $0x78] sm:$0xff]
      %v1313 = vld [vmem:[#allocation2 + $0x80] sm:$0xff]
      %v1314 = vld [vmem:[#allocation2 + $0x88] sm:$0xff]
      %v1315 = vld [vmem:[#allocation2 + $0x90] sm:$0xff]
      %v1316 = vld [vmem:[#allocation2 + $0x98] sm:$0xff]
      %v1317 = vld [vmem:[#allocation2 + $0xa0] sm:$0xff]
      %v1318 = vld [vmem:[#allocation2 + $0xa8] sm:$0xff]
      %v1319 = vld [vmem:[#allocation2 + $0xb0] sm:$0xff]
      %v1320 = vld [vmem:[#allocation2 + $0xb8] sm:$0xff]
      %v1321 = vld [vmem:[#allocation2 + $0xc0] sm:$0xff]
      %v1322 = vld [vmem:[#allocation2 + $0xc8] sm:$0xff]
      %v1323 = vld [vmem:[#allocation2 + $0xd0] sm:$0xff]
      %v1324 = vld [vmem:[#allocation2 + $0xd8] sm:$0xff]
      %v1325 = vadd.f32 %v1297, %v1228
      %v1326 = vadd.f32 %v1298, %v1230
      %v1327 = vadd.f32 %v1299, %v1233
      %v1328 = vadd.f32 %v1300, %v1235
      %v1329 = vadd.f32 %v1301, %v1238
      %v1330 = vadd.f32 %v1302, %v1240
      %v1331 = vadd.f32 %v1303, %v1243
      %v1332 = vadd.f32 %v1304, %v1245
      %v1333 = vadd.f32 %v1305, %v1248
      %v1334 = vadd.f32 %v1306, %v1250
      %v1335 = vadd.f32 %v1307, %v1253
      %v1336 = vadd.f32 %v1308, %v1255
      %v1337 = vadd.f32 %v1309, %v1258
      %v1338 = vadd.f32 %v1310, %v1260
      %v1339 = vadd.f32 %v1311, %v1263
      %v1340 = vadd.f32 %v1312, %v1265
      %v1341 = vadd.f32 %v1313, %v1268
      %v1342 = vadd.f32 %v1314, %v1270
      %v1343 = vadd.f32 %v1315, %v1273
      %v1344 = vadd.f32 %v1316, %v1275
      %v1345 = vadd.f32 %v1317, %v1278
      %v1346 = vadd.f32 %v1318, %v1280
      %v1347 = vadd.f32 %v1319, %v1283
      %v1348 = vadd.f32 %v1320, %v1285
      %v1349 = vadd.f32 %v1321, %v1288
      %v1350 = vadd.f32 %v1322, %v1290
      %v1351 = vadd.f32 %v1323, %v1293
      %v1352 = vadd.f32 %v1324, %v1295
      %1353 = vst [vmem:[#allocation2] sm:$0xff] %v1325
      %1354 = vst [vmem:[#allocation2 + $0x8] sm:$0xff] %v1326
      %1355 = vst [vmem:[#allocation2 + $0x10] sm:$0xff] %v1327
      %1356 = vst [vmem:[#allocation2 + $0x18] sm:$0xff] %v1328
      %1357 = vst [vmem:[#allocation2 + $0x20] sm:$0xff] %v1329
      %1358 = vst [vmem:[#allocation2 + $0x28] sm:$0xff] %v1330
      %1359 = vst [vmem:[#allocation2 + $0x30] sm:$0xff] %v1331
      %1360 = vst [vmem:[#allocation2 + $0x38] sm:$0xff] %v1332
      %1361 = vst [vmem:[#allocation2 + $0x40] sm:$0xff] %v1333
      %1362 = vst [vmem:[#allocation2 + $0x48] sm:$0xff] %v1334
      %1363 = vst [vmem:[#allocation2 + $0x50] sm:$0xff] %v1335
      %1364 = vst [vmem:[#allocation2 + $0x58] sm:$0xff] %v1336
      %1365 = vst [vmem:[#allocation2 + $0x60] sm:$0xff] %v1337
      %1366 = vst [vmem:[#allocation2 + $0x68] sm:$0xff] %v1338
      %1367 = vst [vmem:[#allocation2 + $0x70] sm:$0xff] %v1339
      %1368 = vst [vmem:[#allocation2 + $0x78] sm:$0xff] %v1340
      %1369 = vst [vmem:[#allocation2 + $0x80] sm:$0xff] %v1341
      %1370 = vst [vmem:[#allocation2 + $0x88] sm:$0xff] %v1342
      %1371 = vst [vmem:[#allocation2 + $0x90] sm:$0xff] %v1343
      %1372 = vst [vmem:[#allocation2 + $0x98] sm:$0xff] %v1344
      %1373 = vst [vmem:[#allocation2 + $0xa0] sm:$0xff] %v1345
      %1374 = vst [vmem:[#allocation2 + $0xa8] sm:$0xff] %v1346
      %1375 = vst [vmem:[#allocation2 + $0xb0] sm:$0xff] %v1347
      %1376 = vst [vmem:[#allocation2 + $0xb8] sm:$0xff] %v1348
      %1377 = vst [vmem:[#allocation2 + $0xc0] sm:$0xff] %v1349
      %1378 = vst [vmem:[#allocation2 + $0xc8] sm:$0xff] %v1350
      %1379 = vst [vmem:[#allocation2 + $0xd0] sm:$0xff] %v1351
      %1380 = vst [vmem:[#allocation2 + $0xd8] sm:$0xff] %v1352
      %v1381 = vld [vmem:[%s244 + $0x8] sm:$0xf]
      %v1382 = vld [vmem:[%s244 + $0xc] sm:$0xf]
      %v1383 = vld [vmem:[%s244 + $0x10] sm:$0xf]
      %v1384 = vld [vmem:[%s244 + $0x14] sm:$0xf]
      %v1385 = vld [vmem:[%s244 + $0x18] sm:$0xf]
      %v1386 = vld [vmem:[%s244 + $0x1c] sm:$0xf]
      %v1387 = vld [vmem:[%s244 + $0x20] sm:$0xf]
      %v1388 = vld [vmem:[%s244 + $0x24] sm:$0xf]
      %v1389 = vld [vmem:[%s244 + $0x28] sm:$0xf]
      %v1390 = vld [vmem:[%s244 + $0x2c] sm:$0xf]
      %v1391 = vld [vmem:[%s244 + $0x30] sm:$0xf]
      %v1392 = vld [vmem:[%s244 + $0x34] sm:$0xf]
      %v1393 = vld [vmem:[%s244 + $0x38] sm:$0xf]
      %v1394 = vld [vmem:[%s244 + $0x3c] sm:$0xf]
      %v1395 = vld [vmem:[%s244 + $0x40] sm:$0xf]
      %v1396 = vld [vmem:[%s244 + $0x44] sm:$0xf]
      %v1397 = vld [vmem:[%s244 + $0x48] sm:$0xf]
      %v1398 = vld [vmem:[%s244 + $0x4c] sm:$0xf]
      %v1399 = vld [vmem:[%s244 + $0x50] sm:$0xf]
      %v1400 = vld [vmem:[%s244 + $0x54] sm:$0xf]
      %v1401 = vld [vmem:[%s244 + $0x58] sm:$0xf]
      %v1402 = vld [vmem:[%s244 + $0x5c] sm:$0xf]
      %v1403 = vld [vmem:[%s244 + $0x60] sm:$0xf]
      %v1404 = vld [vmem:[%s244 + $0x64] sm:$0xf]
      %v1405 = vld [vmem:[%s244 + $0x68] sm:$0xf]
      %v1406 = vld [vmem:[%s244 + $0x6c] sm:$0xf]
      %v1407 = vld [vmem:[%s244 + $0x70] sm:$0xf]
      %v1408 = vld [vmem:[%s244 + $0x74] sm:$0xf]
      %s1409 = scalar_lea.vmem %s248, 192
      %v1410 = vld [vmem:[%s1409] sm:$0xf]
      %v1411 = vld [vmem:[%s1409 + $0x4] sm:$0xf]
      %v1412 = vld [vmem:[%s1409 + $0x8] sm:$0xf]
      %v1413 = vld [vmem:[%s1409 + $0xc] sm:$0xf]
      %v1414 = vld [vmem:[%s1409 + $0x10] sm:$0xf]
      %v1415 = vld [vmem:[%s1409 + $0x14] sm:$0xf]
      %v1416 = vld [vmem:[%s1409 + $0x18] sm:$0xf]
      %v1417 = vld [vmem:[%s1409 + $0x1c] sm:$0xf]
      %v1418 = vld [vmem:[%s1409 + $0x20] sm:$0xf]
      %v1419 = vld [vmem:[%s1409 + $0x24] sm:$0xf]
      %v1420 = vld [vmem:[%s1409 + $0x28] sm:$0xf]
      %v1421 = vld [vmem:[%s1409 + $0x2c] sm:$0xf]
      %v1422 = vld [vmem:[%s1409 + $0x30] sm:$0xf]
      %v1423 = vld [vmem:[%s1409 + $0x34] sm:$0xf]
      %v1424 = vld [vmem:[%s1409 + $0x38] sm:$0xf]
      %v1425 = vld [vmem:[%s1409 + $0x3c] sm:$0xf]
      %v1454 = vunpack.c.l.b16 %v1381
      %v1455 = vunpack.c.l.b16 %v1382
      %v1456 = vunpack.c.l.b16 %v1383
      %v1457 = vunpack.c.l.b16 %v1384
      %v1458 = vunpack.c.l.b16 %v1385
      %v1459 = vunpack.c.l.b16 %v1386
      %v1460 = vunpack.c.l.b16 %v1387
      %v1461 = vunpack.c.l.b16 %v1388
      %v1462 = vunpack.c.l.b16 %v1389
      %v1463 = vunpack.c.l.b16 %v1390
      %v1464 = vunpack.c.l.b16 %v1391
      %v1465 = vunpack.c.l.b16 %v1392
      %v1466 = vunpack.c.l.b16 %v1393
      %v1467 = vunpack.c.l.b16 %v1394
      %v1468 = vunpack.c.l.b16 %v1395
      %v1469 = vunpack.c.l.b16 %v1396
      %v1470 = vunpack.c.l.b16 %v1397
      %v1471 = vunpack.c.l.b16 %v1398
      %v1472 = vunpack.c.l.b16 %v1399
      %v1473 = vunpack.c.l.b16 %v1400
      %v1474 = vunpack.c.l.b16 %v1401
      %v1475 = vunpack.c.l.b16 %v1402
      %v1476 = vunpack.c.l.b16 %v1403
      %v1477 = vunpack.c.l.b16 %v1404
      %v1478 = vunpack.c.l.b16 %v1405
      %v1479 = vunpack.c.l.b16 %v1406
      %v1480 = vunpack.c.l.b16 %v1407
      %v1481 = vunpack.c.l.b16 %v1408
      %v1482 = vpack.c.b16 %v1455, %v1454
      %v1483 = vpack.c.b16 %v1457, %v1456
      %v1484 = vpack.c.b16 %v1459, %v1458
      %v1485 = vpack.c.b16 %v1461, %v1460
      %v1486 = vpack.c.b16 %v1463, %v1462
      %v1487 = vpack.c.b16 %v1465, %v1464
      %v1488 = vpack.c.b16 %v1467, %v1466
      %v1489 = vpack.c.b16 %v1469, %v1468
      %v1490 = vpack.c.b16 %v1471, %v1470
      %v1491 = vpack.c.b16 %v1473, %v1472
      %v1492 = vpack.c.b16 %v1475, %v1474
      %v1493 = vpack.c.b16 %v1477, %v1476
      %v1494 = vpack.c.b16 %v1479, %v1478
      %v1495 = vpack.c.b16 %v1481, %v1480
      %v1526 = vunpack.c.l.b16 %v1410
      %v1527 = vunpack.c.l.b16 %v1411
      %v1528 = vunpack.c.l.b16 %v1412
      %v1529 = vunpack.c.l.b16 %v1413
      %v1530 = vunpack.c.l.b16 %v1414
      %v1531 = vunpack.c.l.b16 %v1415
      %v1532 = vunpack.c.l.b16 %v1416
      %v1533 = vunpack.c.l.b16 %v1417
      %v1534 = vunpack.c.l.b16 %v1418
      %v1535 = vunpack.c.l.b16 %v1419
      %v1536 = vunpack.c.l.b16 %v1420
      %v1537 = vunpack.c.l.b16 %v1421
      %v1538 = vunpack.c.l.b16 %v1422
      %v1539 = vunpack.c.l.b16 %v1423
      %v1540 = vunpack.c.l.b16 %v1424
      %v1541 = vunpack.c.l.b16 %v1425
      %v1542 = vpack.c.b16 %v1527, %v1526
      %v1543 = vpack.c.b16 %v1529, %v1528
      %v1544 = vpack.c.b16 %v1531, %v1530
      %v1545 = vpack.c.b16 %v1533, %v1532
      %v1546 = vpack.c.b16 %v1535, %v1534
      %v1547 = vpack.c.b16 %v1537, %v1536
      %v1548 = vpack.c.b16 %v1539, %v1538
      %v1549 = vpack.c.b16 %v1541, %v1540
      %1558 = vmatpush.bf16.msra.mxu0 %v1549
      %1559 = vmatpush.bf16.msra.mxu0 %v1548
      %1560 = vmatpush.bf16.msra.mxu0 %v1547
      %1561 = vmatpush.bf16.msra.mxu0 %v1546
      %1562 = vmatpush.bf16.msra.mxu0 %v1545
      %1563 = vmatpush.bf16.msra.mxu0 %v1544
      %1564 = vmatpush.bf16.msra.mxu0 %v1543
      %1565 = vmatpush.bf16.msra.mxu0 %v1542
      %1566 = vmatmul.bf16.gmra.mxu0 %v1482
      %v1567 = vpop.f32.mrf.mxu0
      %v1568 = vadd.f32 0.0, %v1567
      %v1569 = vpop.f32.mrf.mxu0
      %v1570 = vadd.f32 0.0, %v1569
      %1571 = vmatmul.bf16.gmra.mxu0 %v1483
      %v1572 = vpop.f32.mrf.mxu0
      %v1573 = vadd.f32 0.0, %v1572
      %v1574 = vpop.f32.mrf.mxu0
      %v1575 = vadd.f32 0.0, %v1574
      %1576 = vmatmul.bf16.gmra.mxu0 %v1484
      %v1577 = vpop.f32.mrf.mxu0
      %v1578 = vadd.f32 0.0, %v1577
      %v1579 = vpop.f32.mrf.mxu0
      %v1580 = vadd.f32 0.0, %v1579
      %1581 = vmatmul.bf16.gmra.mxu0 %v1485
      %v1582 = vpop.f32.mrf.mxu0
      %v1583 = vadd.f32 0.0, %v1582
      %v1584 = vpop.f32.mrf.mxu0
      %v1585 = vadd.f32 0.0, %v1584
      %1586 = vmatmul.bf16.gmra.mxu0 %v1486
      %v1587 = vpop.f32.mrf.mxu0
      %v1588 = vadd.f32 0.0, %v1587
      %v1589 = vpop.f32.mrf.mxu0
      %v1590 = vadd.f32 0.0, %v1589
      %1591 = vmatmul.bf16.gmra.mxu0 %v1487
      %v1592 = vpop.f32.mrf.mxu0
      %v1593 = vadd.f32 0.0, %v1592
      %v1594 = vpop.f32.mrf.mxu0
      %v1595 = vadd.f32 0.0, %v1594
      %1596 = vmatmul.bf16.gmra.mxu0 %v1488
      %v1597 = vpop.f32.mrf.mxu0
      %v1598 = vadd.f32 0.0, %v1597
      %v1599 = vpop.f32.mrf.mxu0
      %v1600 = vadd.f32 0.0, %v1599
      %1601 = vmatmul.bf16.gmra.mxu0 %v1489
      %v1602 = vpop.f32.mrf.mxu0
      %v1603 = vadd.f32 0.0, %v1602
      %v1604 = vpop.f32.mrf.mxu0
      %v1605 = vadd.f32 0.0, %v1604
      %1606 = vmatmul.bf16.gmra.mxu0 %v1490
      %v1607 = vpop.f32.mrf.mxu0
      %v1608 = vadd.f32 0.0, %v1607
      %v1609 = vpop.f32.mrf.mxu0
      %v1610 = vadd.f32 0.0, %v1609
      %1611 = vmatmul.bf16.gmra.mxu0 %v1491
      %v1612 = vpop.f32.mrf.mxu0
      %v1613 = vadd.f32 0.0, %v1612
      %v1614 = vpop.f32.mrf.mxu0
      %v1615 = vadd.f32 0.0, %v1614
      %1616 = vmatmul.bf16.gmra.mxu0 %v1492
      %v1617 = vpop.f32.mrf.mxu0
      %v1618 = vadd.f32 0.0, %v1617
      %v1619 = vpop.f32.mrf.mxu0
      %v1620 = vadd.f32 0.0, %v1619
      %1621 = vmatmul.bf16.gmra.mxu0 %v1493
      %v1622 = vpop.f32.mrf.mxu0
      %v1623 = vadd.f32 0.0, %v1622
      %v1624 = vpop.f32.mrf.mxu0
      %v1625 = vadd.f32 0.0, %v1624
      %1626 = vmatmul.bf16.gmra.mxu0 %v1494
      %v1627 = vpop.f32.mrf.mxu0
      %v1628 = vadd.f32 0.0, %v1627
      %v1629 = vpop.f32.mrf.mxu0
      %v1630 = vadd.f32 0.0, %v1629
      %1631 = vmatmul.bf16.gmra.mxu0 %v1495
      %v1632 = vpop.f32.mrf.mxu0
      %v1633 = vadd.f32 0.0, %v1632
      %v1634 = vpop.f32.mrf.mxu0
      %v1635 = vadd.f32 0.0, %v1634
      %1636 = vdwg.mxu0
      %v1637 = vld [vmem:[#allocation2] sm:$0xff]
      %v1638 = vld [vmem:[#allocation2 + $0x8] sm:$0xff]
      %v1639 = vld [vmem:[#allocation2 + $0x10] sm:$0xff]
      %v1640 = vld [vmem:[#allocation2 + $0x18] sm:$0xff]
      %v1641 = vld [vmem:[#allocation2 + $0x20] sm:$0xff]
      %v1642 = vld [vmem:[#allocation2 + $0x28] sm:$0xff]
      %v1643 = vld [vmem:[#allocation2 + $0x30] sm:$0xff]
      %v1644 = vld [vmem:[#allocation2 + $0x38] sm:$0xff]
      %v1645 = vld [vmem:[#allocation2 + $0x40] sm:$0xff]
      %v1646 = vld [vmem:[#allocation2 + $0x48] sm:$0xff]
      %v1647 = vld [vmem:[#allocation2 + $0x50] sm:$0xff]
      %v1648 = vld [vmem:[#allocation2 + $0x58] sm:$0xff]
      %v1649 = vld [vmem:[#allocation2 + $0x60] sm:$0xff]
      %v1650 = vld [vmem:[#allocation2 + $0x68] sm:$0xff]
      %v1651 = vld [vmem:[#allocation2 + $0x70] sm:$0xff]
      %v1652 = vld [vmem:[#allocation2 + $0x78] sm:$0xff]
      %v1653 = vld [vmem:[#allocation2 + $0x80] sm:$0xff]
      %v1654 = vld [vmem:[#allocation2 + $0x88] sm:$0xff]
      %v1655 = vld [vmem:[#allocation2 + $0x90] sm:$0xff]
      %v1656 = vld [vmem:[#allocation2 + $0x98] sm:$0xff]
      %v1657 = vld [vmem:[#allocation2 + $0xa0] sm:$0xff]
      %v1658 = vld [vmem:[#allocation2 + $0xa8] sm:$0xff]
      %v1659 = vld [vmem:[#allocation2 + $0xb0] sm:$0xff]
      %v1660 = vld [vmem:[#allocation2 + $0xb8] sm:$0xff]
      %v1661 = vld [vmem:[#allocation2 + $0xc0] sm:$0xff]
      %v1662 = vld [vmem:[#allocation2 + $0xc8] sm:$0xff]
      %v1663 = vld [vmem:[#allocation2 + $0xd0] sm:$0xff]
      %v1664 = vld [vmem:[#allocation2 + $0xd8] sm:$0xff]
      %v1665 = vadd.f32 %v1637, %v1568
      %v1666 = vadd.f32 %v1638, %v1570
      %v1667 = vadd.f32 %v1639, %v1573
      %v1668 = vadd.f32 %v1640, %v1575
      %v1669 = vadd.f32 %v1641, %v1578
      %v1670 = vadd.f32 %v1642, %v1580
      %v1671 = vadd.f32 %v1643, %v1583
      %v1672 = vadd.f32 %v1644, %v1585
      %v1673 = vadd.f32 %v1645, %v1588
      %v1674 = vadd.f32 %v1646, %v1590
      %v1675 = vadd.f32 %v1647, %v1593
      %v1676 = vadd.f32 %v1648, %v1595
      %v1677 = vadd.f32 %v1649, %v1598
      %v1678 = vadd.f32 %v1650, %v1600
      %v1679 = vadd.f32 %v1651, %v1603
      %v1680 = vadd.f32 %v1652, %v1605
      %v1681 = vadd.f32 %v1653, %v1608
      %v1682 = vadd.f32 %v1654, %v1610
      %v1683 = vadd.f32 %v1655, %v1613
      %v1684 = vadd.f32 %v1656, %v1615
      %v1685 = vadd.f32 %v1657, %v1618
      %v1686 = vadd.f32 %v1658, %v1620
      %v1687 = vadd.f32 %v1659, %v1623
      %v1688 = vadd.f32 %v1660, %v1625
      %v1689 = vadd.f32 %v1661, %v1628
      %v1690 = vadd.f32 %v1662, %v1630
      %v1691 = vadd.f32 %v1663, %v1633
      %v1692 = vadd.f32 %v1664, %v1635
      %1693 = vst [vmem:[#allocation2] sm:$0xff] %v1665
      %1694 = vst [vmem:[#allocation2 + $0x8] sm:$0xff] %v1666
      %1695 = vst [vmem:[#allocation2 + $0x10] sm:$0xff] %v1667
      %1696 = vst [vmem:[#allocation2 + $0x18] sm:$0xff] %v1668
      %1697 = vst [vmem:[#allocation2 + $0x20] sm:$0xff] %v1669
      %1698 = vst [vmem:[#allocation2 + $0x28] sm:$0xff] %v1670
      %1699 = vst [vmem:[#allocation2 + $0x30] sm:$0xff] %v1671
      %1700 = vst [vmem:[#allocation2 + $0x38] sm:$0xff] %v1672
      %1701 = vst [vmem:[#allocation2 + $0x40] sm:$0xff] %v1673
      %1702 = vst [vmem:[#allocation2 + $0x48] sm:$0xff] %v1674
      %1703 = vst [vmem:[#allocation2 + $0x50] sm:$0xff] %v1675
      %1704 = vst [vmem:[#allocation2 + $0x58] sm:$0xff] %v1676
      %1705 = vst [vmem:[#allocation2 + $0x60] sm:$0xff] %v1677
      %1706 = vst [vmem:[#allocation2 + $0x68] sm:$0xff] %v1678
      %1707 = vst [vmem:[#allocation2 + $0x70] sm:$0xff] %v1679
      %1708 = vst [vmem:[#allocation2 + $0x78] sm:$0xff] %v1680
      %1709 = vst [vmem:[#allocation2 + $0x80] sm:$0xff] %v1681
      %1710 = vst [vmem:[#allocation2 + $0x88] sm:$0xff] %v1682
      %1711 = vst [vmem:[#allocation2 + $0x90] sm:$0xff] %v1683
      %1712 = vst [vmem:[#allocation2 + $0x98] sm:$0xff] %v1684
      %1713 = vst [vmem:[#allocation2 + $0xa0] sm:$0xff] %v1685
      %1714 = vst [vmem:[#allocation2 + $0xa8] sm:$0xff] %v1686
      %1715 = vst [vmem:[#allocation2 + $0xb0] sm:$0xff] %v1687
      %1716 = vst [vmem:[#allocation2 + $0xb8] sm:$0xff] %v1688
      %1717 = vst [vmem:[#allocation2 + $0xc0] sm:$0xff] %v1689
      %1718 = vst [vmem:[#allocation2 + $0xc8] sm:$0xff] %v1690
      %1719 = vst [vmem:[#allocation2 + $0xd0] sm:$0xff] %v1691
      %1720 = vst [vmem:[#allocation2 + $0xd8] sm:$0xff] %v1692
      %v1721 = vld [vmem:[%s244 + $0x8] sm:$0xf]
      %v1722 = vld [vmem:[%s244 + $0xc] sm:$0xf]
      %v1723 = vld [vmem:[%s244 + $0x10] sm:$0xf]
      %v1724 = vld [vmem:[%s244 + $0x14] sm:$0xf]
      %v1725 = vld [vmem:[%s244 + $0x18] sm:$0xf]
      %v1726 = vld [vmem:[%s244 + $0x1c] sm:$0xf]
      %v1727 = vld [vmem:[%s244 + $0x20] sm:$0xf]
      %v1728 = vld [vmem:[%s244 + $0x24] sm:$0xf]
      %v1729 = vld [vmem:[%s244 + $0x28] sm:$0xf]
      %v1730 = vld [vmem:[%s244 + $0x2c] sm:$0xf]
      %v1731 = vld [vmem:[%s244 + $0x30] sm:$0xf]
      %v1732 = vld [vmem:[%s244 + $0x34] sm:$0xf]
      %v1733 = vld [vmem:[%s244 + $0x38] sm:$0xf]
      %v1734 = vld [vmem:[%s244 + $0x3c] sm:$0xf]
      %v1735 = vld [vmem:[%s244 + $0x40] sm:$0xf]
      %v1736 = vld [vmem:[%s244 + $0x44] sm:$0xf]
      %v1737 = vld [vmem:[%s244 + $0x48] sm:$0xf]
      %v1738 = vld [vmem:[%s244 + $0x4c] sm:$0xf]
      %v1739 = vld [vmem:[%s244 + $0x50] sm:$0xf]
      %v1740 = vld [vmem:[%s244 + $0x54] sm:$0xf]
      %v1741 = vld [vmem:[%s244 + $0x58] sm:$0xf]
      %v1742 = vld [vmem:[%s244 + $0x5c] sm:$0xf]
      %v1743 = vld [vmem:[%s244 + $0x60] sm:$0xf]
      %v1744 = vld [vmem:[%s244 + $0x64] sm:$0xf]
      %v1745 = vld [vmem:[%s244 + $0x68] sm:$0xf]
      %v1746 = vld [vmem:[%s244 + $0x6c] sm:$0xf]
      %v1747 = vld [vmem:[%s244 + $0x70] sm:$0xf]
      %v1748 = vld [vmem:[%s244 + $0x74] sm:$0xf]
      %v1749 = vld [vmem:[%s244 + $0x78] sm:$0x1]
      %s1750 = scalar_lea.vmem %s248, 256
      %v1751 = vld [vmem:[%s1750] sm:$0xf]
      %v1752 = vld [vmem:[%s1750 + $0x4] sm:$0xf]
      %v1753 = vld [vmem:[%s1750 + $0x8] sm:$0xf]
      %v1754 = vld [vmem:[%s1750 + $0xc] sm:$0xf]
      %v1755 = vld [vmem:[%s1750 + $0x10] sm:$0xf]
      %v1756 = vld [vmem:[%s1750 + $0x14] sm:$0xf]
      %v1757 = vld [vmem:[%s1750 + $0x18] sm:$0xf]
      %v1758 = vld [vmem:[%s1750 + $0x1c] sm:$0xf]
      %v1759 = vld [vmem:[%s1750 + $0x20] sm:$0xf]
      %v1760 = vld [vmem:[%s1750 + $0x24] sm:$0xf]
      %v1761 = vld [vmem:[%s1750 + $0x28] sm:$0xf]
      %v1762 = vld [vmem:[%s1750 + $0x2c] sm:$0xf]
      %v1763 = vld [vmem:[%s1750 + $0x30] sm:$0xf]
      %v1764 = vld [vmem:[%s1750 + $0x34] sm:$0xf]
      %v1765 = vld [vmem:[%s1750 + $0x38] sm:$0xf]
      %v1766 = vld [vmem:[%s1750 + $0x3c] sm:$0xf]
      %v1796 = vunpack.c.l.b16 %v1721
      %v1797 = vunpack.c.l.b16 %v1722
      %v1798 = vunpack.c.l.b16 %v1723
      %v1799 = vunpack.c.l.b16 %v1724
      %v1800 = vunpack.c.l.b16 %v1725
      %v1801 = vunpack.c.l.b16 %v1726
      %v1802 = vunpack.c.l.b16 %v1727
      %v1803 = vunpack.c.l.b16 %v1728
      %v1804 = vunpack.c.l.b16 %v1729
      %v1805 = vunpack.c.l.b16 %v1730
      %v1806 = vunpack.c.l.b16 %v1731
      %v1807 = vunpack.c.l.b16 %v1732
      %v1808 = vunpack.c.l.b16 %v1733
      %v1809 = vunpack.c.l.b16 %v1734
      %v1810 = vunpack.c.l.b16 %v1735
      %v1811 = vunpack.c.l.b16 %v1736
      %v1812 = vunpack.c.l.b16 %v1737
      %v1813 = vunpack.c.l.b16 %v1738
      %v1814 = vunpack.c.l.b16 %v1739
      %v1815 = vunpack.c.l.b16 %v1740
      %v1816 = vunpack.c.l.b16 %v1741
      %v1817 = vunpack.c.l.b16 %v1742
      %v1818 = vunpack.c.l.b16 %v1743
      %v1819 = vunpack.c.l.b16 %v1744
      %v1820 = vunpack.c.l.b16 %v1745
      %v1821 = vunpack.c.l.b16 %v1746
      %v1822 = vunpack.c.l.b16 %v1747
      %v1823 = vunpack.c.l.b16 %v1748
      %v1824 = vunpack.c.l.b16 %v1749
      %v1825 = vpack.c.b16 %v1797, %v1796
      %v1826 = vpack.c.b16 %v1799, %v1798
      %v1827 = vpack.c.b16 %v1801, %v1800
      %v1828 = vpack.c.b16 %v1803, %v1802
      %v1829 = vpack.c.b16 %v1805, %v1804
      %v1830 = vpack.c.b16 %v1807, %v1806
      %v1831 = vpack.c.b16 %v1809, %v1808
      %v1832 = vpack.c.b16 %v1811, %v1810
      %v1833 = vpack.c.b16 %v1813, %v1812
      %v1834 = vpack.c.b16 %v1815, %v1814
      %v1835 = vpack.c.b16 %v1817, %v1816
      %v1836 = vpack.c.b16 %v1819, %v1818
      %v1837 = vpack.c.b16 %v1821, %v1820
      %v1838 = vpack.c.b16 %v1823, %v1822
      %v1839 = vpack.c.b16 %v1824, %v1824
      %v1841 = vshrl.u32 %v1825, 16
      %v1843 = vshll.u32 %v1825, 16
      %v1845 = vrot.slane %v1843, 1
      %v1846 = vor.u32 %v1841, %v1845
      %v1848 = vshll.u32 %v1826, 16
      %v1850 = vrot.slane %v1848, 1
      %v1851 = vsel %vm665, %v1846, %v1850
      %v1852 = vshrl.u32 %v1826, 16
      %v1854 = vor.u32 %v1852, %v1850
      %v1856 = vshll.u32 %v1827, 16
      %v1858 = vrot.slane %v1856, 1
      %v1859 = vsel %vm665, %v1854, %v1858
      %v1860 = vshrl.u32 %v1827, 16
      %v1862 = vor.u32 %v1860, %v1858
      %v1864 = vshll.u32 %v1828, 16
      %v1866 = vrot.slane %v1864, 1
      %v1867 = vsel %vm665, %v1862, %v1866
      %v1868 = vshrl.u32 %v1828, 16
      %v1870 = vor.u32 %v1868, %v1866
      %v1872 = vshll.u32 %v1829, 16
      %v1874 = vrot.slane %v1872, 1
      %v1875 = vsel %vm665, %v1870, %v1874
      %v1876 = vshrl.u32 %v1829, 16
      %v1878 = vor.u32 %v1876, %v1874
      %v1880 = vshll.u32 %v1830, 16
      %v1882 = vrot.slane %v1880, 1
      %v1883 = vsel %vm665, %v1878, %v1882
      %v1884 = vshrl.u32 %v1830, 16
      %v1886 = vor.u32 %v1884, %v1882
      %v1888 = vshll.u32 %v1831, 16
      %v1890 = vrot.slane %v1888, 1
      %v1891 = vsel %vm665, %v1886, %v1890
      %v1892 = vshrl.u32 %v1831, 16
      %v1894 = vor.u32 %v1892, %v1890
      %v1896 = vshll.u32 %v1832, 16
      %v1898 = vrot.slane %v1896, 1
      %v1899 = vsel %vm665, %v1894, %v1898
      %v1900 = vshrl.u32 %v1832, 16
      %v1902 = vor.u32 %v1900, %v1898
      %v1904 = vshll.u32 %v1833, 16
      %v1906 = vrot.slane %v1904, 1
      %v1907 = vsel %vm665, %v1902, %v1906
      %v1908 = vshrl.u32 %v1833, 16
      %v1910 = vor.u32 %v1908, %v1906
      %v1912 = vshll.u32 %v1834, 16
      %v1914 = vrot.slane %v1912, 1
      %v1915 = vsel %vm665, %v1910, %v1914
      %v1916 = vshrl.u32 %v1834, 16
      %v1918 = vor.u32 %v1916, %v1914
      %v1920 = vshll.u32 %v1835, 16
      %v1922 = vrot.slane %v1920, 1
      %v1923 = vsel %vm665, %v1918, %v1922
      %v1924 = vshrl.u32 %v1835, 16
      %v1926 = vor.u32 %v1924, %v1922
      %v1928 = vshll.u32 %v1836, 16
      %v1930 = vrot.slane %v1928, 1
      %v1931 = vsel %vm665, %v1926, %v1930
      %v1932 = vshrl.u32 %v1836, 16
      %v1934 = vor.u32 %v1932, %v1930
      %v1936 = vshll.u32 %v1837, 16
      %v1938 = vrot.slane %v1936, 1
      %v1939 = vsel %vm665, %v1934, %v1938
      %v1940 = vshrl.u32 %v1837, 16
      %v1942 = vor.u32 %v1940, %v1938
      %v1944 = vshll.u32 %v1838, 16
      %v1946 = vrot.slane %v1944, 1
      %v1947 = vsel %vm665, %v1942, %v1946
      %v1948 = vshrl.u32 %v1838, 16
      %v1950 = vor.u32 %v1948, %v1946
      %v1952 = vshll.u32 %v1839, 16
      %v1954 = vrot.slane %v1952, 1
      %v1955 = vsel %vm665, %v1950, %v1954
      %v1986 = vunpack.c.l.b16 %v1751
      %v1987 = vunpack.c.l.b16 %v1752
      %v1988 = vunpack.c.l.b16 %v1753
      %v1989 = vunpack.c.l.b16 %v1754
      %v1990 = vunpack.c.l.b16 %v1755
      %v1991 = vunpack.c.l.b16 %v1756
      %v1992 = vunpack.c.l.b16 %v1757
      %v1993 = vunpack.c.l.b16 %v1758
      %v1994 = vunpack.c.l.b16 %v1759
      %v1995 = vunpack.c.l.b16 %v1760
      %v1996 = vunpack.c.l.b16 %v1761
      %v1997 = vunpack.c.l.b16 %v1762
      %v1998 = vunpack.c.l.b16 %v1763
      %v1999 = vunpack.c.l.b16 %v1764
      %v2000 = vunpack.c.l.b16 %v1765
      %v2001 = vunpack.c.l.b16 %v1766
      %v2002 = vpack.c.b16 %v1987, %v1986
      %v2003 = vpack.c.b16 %v1989, %v1988
      %v2004 = vpack.c.b16 %v1991, %v1990
      %v2005 = vpack.c.b16 %v1993, %v1992
      %v2006 = vpack.c.b16 %v1995, %v1994
      %v2007 = vpack.c.b16 %v1997, %v1996
      %v2008 = vpack.c.b16 %v1999, %v1998
      %v2009 = vpack.c.b16 %v2001, %v2000
      %2018 = vmatpush.bf16.msra.mxu0 %v2009
      %2019 = vmatpush.bf16.msra.mxu0 %v2008
      %2020 = vmatpush.bf16.msra.mxu0 %v2007
      %2021 = vmatpush.bf16.msra.mxu0 %v2006
      %2022 = vmatpush.bf16.msra.mxu0 %v2005
      %2023 = vmatpush.bf16.msra.mxu0 %v2004
      %2024 = vmatpush.bf16.msra.mxu0 %v2003
      %2025 = vmatpush.bf16.msra.mxu0 %v2002
      %2026 = vmatmul.bf16.gmra.mxu0 %v1851
      %v2027 = vpop.f32.mrf.mxu0
      %v2028 = vadd.f32 0.0, %v2027
      %v2029 = vpop.f32.mrf.mxu0
      %v2030 = vadd.f32 0.0, %v2029
      %2031 = vmatmul.bf16.gmra.mxu0 %v1859
      %v2032 = vpop.f32.mrf.mxu0
      %v2033 = vadd.f32 0.0, %v2032
      %v2034 = vpop.f32.mrf.mxu0
      %v2035 = vadd.f32 0.0, %v2034
      %2036 = vmatmul.bf16.gmra.mxu0 %v1867
      %v2037 = vpop.f32.mrf.mxu0
      %v2038 = vadd.f32 0.0, %v2037
      %v2039 = vpop.f32.mrf.mxu0
      %v2040 = vadd.f32 0.0, %v2039
      %2041 = vmatmul.bf16.gmra.mxu0 %v1875
      %v2042 = vpop.f32.mrf.mxu0
      %v2043 = vadd.f32 0.0, %v2042
      %v2044 = vpop.f32.mrf.mxu0
      %v2045 = vadd.f32 0.0, %v2044
      %2046 = vmatmul.bf16.gmra.mxu0 %v1883
      %v2047 = vpop.f32.mrf.mxu0
      %v2048 = vadd.f32 0.0, %v2047
      %v2049 = vpop.f32.mrf.mxu0
      %v2050 = vadd.f32 0.0, %v2049
      %2051 = vmatmul.bf16.gmra.mxu0 %v1891
      %v2052 = vpop.f32.mrf.mxu0
      %v2053 = vadd.f32 0.0, %v2052
      %v2054 = vpop.f32.mrf.mxu0
      %v2055 = vadd.f32 0.0, %v2054
      %2056 = vmatmul.bf16.gmra.mxu0 %v1899
      %v2057 = vpop.f32.mrf.mxu0
      %v2058 = vadd.f32 0.0, %v2057
      %v2059 = vpop.f32.mrf.mxu0
      %v2060 = vadd.f32 0.0, %v2059
      %2061 = vmatmul.bf16.gmra.mxu0 %v1907
      %v2062 = vpop.f32.mrf.mxu0
      %v2063 = vadd.f32 0.0, %v2062
      %v2064 = vpop.f32.mrf.mxu0
      %v2065 = vadd.f32 0.0, %v2064
      %2066 = vmatmul.bf16.gmra.mxu0 %v1915
      %v2067 = vpop.f32.mrf.mxu0
      %v2068 = vadd.f32 0.0, %v2067
      %v2069 = vpop.f32.mrf.mxu0
      %v2070 = vadd.f32 0.0, %v2069
      %2071 = vmatmul.bf16.gmra.mxu0 %v1923
      %v2072 = vpop.f32.mrf.mxu0
      %v2073 = vadd.f32 0.0, %v2072
      %v2074 = vpop.f32.mrf.mxu0
      %v2075 = vadd.f32 0.0, %v2074
      %2076 = vmatmul.bf16.gmra.mxu0 %v1931
      %v2077 = vpop.f32.mrf.mxu0
      %v2078 = vadd.f32 0.0, %v2077
      %v2079 = vpop.f32.mrf.mxu0
      %v2080 = vadd.f32 0.0, %v2079
      %2081 = vmatmul.bf16.gmra.mxu0 %v1939
      %v2082 = vpop.f32.mrf.mxu0
      %v2083 = vadd.f32 0.0, %v2082
      %v2084 = vpop.f32.mrf.mxu0
      %v2085 = vadd.f32 0.0, %v2084
      %2086 = vmatmul.bf16.gmra.mxu0 %v1947
      %v2087 = vpop.f32.mrf.mxu0
      %v2088 = vadd.f32 0.0, %v2087
      %v2089 = vpop.f32.mrf.mxu0
      %v2090 = vadd.f32 0.0, %v2089
      %2091 = vmatmul.bf16.gmra.mxu0 %v1955
      %v2092 = vpop.f32.mrf.mxu0
      %v2093 = vadd.f32 0.0, %v2092
      %v2094 = vpop.f32.mrf.mxu0
      %v2095 = vadd.f32 0.0, %v2094
      %2096 = vdwg.mxu0
      %v2097 = vld [vmem:[#allocation2] sm:$0xff]
      %v2098 = vld [vmem:[#allocation2 + $0x8] sm:$0xff]
      %v2099 = vld [vmem:[#allocation2 + $0x10] sm:$0xff]
      %v2100 = vld [vmem:[#allocation2 + $0x18] sm:$0xff]
      %v2101 = vld [vmem:[#allocation2 + $0x20] sm:$0xff]
      %v2102 = vld [vmem:[#allocation2 + $0x28] sm:$0xff]
      %v2103 = vld [vmem:[#allocation2 + $0x30] sm:$0xff]
      %v2104 = vld [vmem:[#allocation2 + $0x38] sm:$0xff]
      %v2105 = vld [vmem:[#allocation2 + $0x40] sm:$0xff]
      %v2106 = vld [vmem:[#allocation2 + $0x48] sm:$0xff]
      %v2107 = vld [vmem:[#allocation2 + $0x50] sm:$0xff]
      %v2108 = vld [vmem:[#allocation2 + $0x58] sm:$0xff]
      %v2109 = vld [vmem:[#allocation2 + $0x60] sm:$0xff]
      %v2110 = vld [vmem:[#allocation2 + $0x68] sm:$0xff]
      %v2111 = vld [vmem:[#allocation2 + $0x70] sm:$0xff]
      %v2112 = vld [vmem:[#allocation2 + $0x78] sm:$0xff]
      %v2113 = vld [vmem:[#allocation2 + $0x80] sm:$0xff]
      %v2114 = vld [vmem:[#allocation2 + $0x88] sm:$0xff]
      %v2115 = vld [vmem:[#allocation2 + $0x90] sm:$0xff]
      %v2116 = vld [vmem:[#allocation2 + $0x98] sm:$0xff]
      %v2117 = vld [vmem:[#allocation2 + $0xa0] sm:$0xff]
      %v2118 = vld [vmem:[#allocation2 + $0xa8] sm:$0xff]
      %v2119 = vld [vmem:[#allocation2 + $0xb0] sm:$0xff]
      %v2120 = vld [vmem:[#allocation2 + $0xb8] sm:$0xff]
      %v2121 = vld [vmem:[#allocation2 + $0xc0] sm:$0xff]
      %v2122 = vld [vmem:[#allocation2 + $0xc8] sm:$0xff]
      %v2123 = vld [vmem:[#allocation2 + $0xd0] sm:$0xff]
      %v2124 = vld [vmem:[#allocation2 + $0xd8] sm:$0xff]
      %v2125 = vadd.f32 %v2097, %v2028
      %v2126 = vadd.f32 %v2098, %v2030
      %v2127 = vadd.f32 %v2099, %v2033
      %v2128 = vadd.f32 %v2100, %v2035
      %v2129 = vadd.f32 %v2101, %v2038
      %v2130 = vadd.f32 %v2102, %v2040
      %v2131 = vadd.f32 %v2103, %v2043
      %v2132 = vadd.f32 %v2104, %v2045
      %v2133 = vadd.f32 %v2105, %v2048
      %v2134 = vadd.f32 %v2106, %v2050
      %v2135 = vadd.f32 %v2107, %v2053
      %v2136 = vadd.f32 %v2108, %v2055
      %v2137 = vadd.f32 %v2109, %v2058
      %v2138 = vadd.f32 %v2110, %v2060
      %v2139 = vadd.f32 %v2111, %v2063
      %v2140 = vadd.f32 %v2112, %v2065
      %v2141 = vadd.f32 %v2113, %v2068
      %v2142 = vadd.f32 %v2114, %v2070
      %v2143 = vadd.f32 %v2115, %v2073
      %v2144 = vadd.f32 %v2116, %v2075
      %v2145 = vadd.f32 %v2117, %v2078
      %v2146 = vadd.f32 %v2118, %v2080
      %v2147 = vadd.f32 %v2119, %v2083
      %v2148 = vadd.f32 %v2120, %v2085
      %v2149 = vadd.f32 %v2121, %v2088
      %v2150 = vadd.f32 %v2122, %v2090
      %v2151 = vadd.f32 %v2123, %v2093
      %v2152 = vadd.f32 %v2124, %v2095
      %2153 = vst [vmem:[#allocation2] sm:$0xff] %v2125
      %2154 = vst [vmem:[#allocation2 + $0x8] sm:$0xff] %v2126
      %2155 = vst [vmem:[#allocation2 + $0x10] sm:$0xff] %v2127
      %2156 = vst [vmem:[#allocation2 + $0x18] sm:$0xff] %v2128
      %2157 = vst [vmem:[#allocation2 + $0x20] sm:$0xff] %v2129
      %2158 = vst [vmem:[#allocation2 + $0x28] sm:$0xff] %v2130
      %2159 = vst [vmem:[#allocation2 + $0x30] sm:$0xff] %v2131
      %2160 = vst [vmem:[#allocation2 + $0x38] sm:$0xff] %v2132
      %2161 = vst [vmem:[#allocation2 + $0x40] sm:$0xff] %v2133
      %2162 = vst [vmem:[#allocation2 + $0x48] sm:$0xff] %v2134
      %2163 = vst [vmem:[#allocation2 + $0x50] sm:$0xff] %v2135
      %2164 = vst [vmem:[#allocation2 + $0x58] sm:$0xff] %v2136
      %2165 = vst [vmem:[#allocation2 + $0x60] sm:$0xff] %v2137
      %2166 = vst [vmem:[#allocation2 + $0x68] sm:$0xff] %v2138
      %2167 = vst [vmem:[#allocation2 + $0x70] sm:$0xff] %v2139
      %2168 = vst [vmem:[#allocation2 + $0x78] sm:$0xff] %v2140
      %2169 = vst [vmem:[#allocation2 + $0x80] sm:$0xff] %v2141
      %2170 = vst [vmem:[#allocation2 + $0x88] sm:$0xff] %v2142
      %2171 = vst [vmem:[#allocation2 + $0x90] sm:$0xff] %v2143
      %2172 = vst [vmem:[#allocation2 + $0x98] sm:$0xff] %v2144
      %2173 = vst [vmem:[#allocation2 + $0xa0] sm:$0xff] %v2145
      %2174 = vst [vmem:[#allocation2 + $0xa8] sm:$0xff] %v2146
      %2175 = vst [vmem:[#allocation2 + $0xb0] sm:$0xff] %v2147
      %2176 = vst [vmem:[#allocation2 + $0xb8] sm:$0xff] %v2148
      %2177 = vst [vmem:[#allocation2 + $0xc0] sm:$0xff] %v2149
      %2178 = vst [vmem:[#allocation2 + $0xc8] sm:$0xff] %v2150
      %2179 = vst [vmem:[#allocation2 + $0xd0] sm:$0xff] %v2151
      %2180 = vst [vmem:[#allocation2 + $0xd8] sm:$0xff] %v2152
      %v2181 = vld [vmem:[%s244 + $0x8] sm:$0xe]
      %v2182 = vld [vmem:[%s244 + $0xc] sm:$0xf]
      %v2183 = vld [vmem:[%s244 + $0x10] sm:$0xf]
      %v2184 = vld [vmem:[%s244 + $0x14] sm:$0xf]
      %v2185 = vld [vmem:[%s244 + $0x18] sm:$0xf]
      %v2186 = vld [vmem:[%s244 + $0x1c] sm:$0xf]
      %v2187 = vld [vmem:[%s244 + $0x20] sm:$0xf]
      %v2188 = vld [vmem:[%s244 + $0x24] sm:$0xf]
      %v2189 = vld [vmem:[%s244 + $0x28] sm:$0xf]
      %v2190 = vld [vmem:[%s244 + $0x2c] sm:$0xf]
      %v2191 = vld [vmem:[%s244 + $0x30] sm:$0xf]
      %v2192 = vld [vmem:[%s244 + $0x34] sm:$0xf]
      %v2193 = vld [vmem:[%s244 + $0x38] sm:$0xf]
      %v2194 = vld [vmem:[%s244 + $0x3c] sm:$0xf]
      %v2195 = vld [vmem:[%s244 + $0x40] sm:$0xf]
      %v2196 = vld [vmem:[%s244 + $0x44] sm:$0xf]
      %v2197 = vld [vmem:[%s244 + $0x48] sm:$0xf]
      %v2198 = vld [vmem:[%s244 + $0x4c] sm:$0xf]
      %v2199 = vld [vmem:[%s244 + $0x50] sm:$0xf]
      %v2200 = vld [vmem:[%s244 + $0x54] sm:$0xf]
      %v2201 = vld [vmem:[%s244 + $0x58] sm:$0xf]
      %v2202 = vld [vmem:[%s244 + $0x5c] sm:$0xf]
      %v2203 = vld [vmem:[%s244 + $0x60] sm:$0xf]
      %v2204 = vld [vmem:[%s244 + $0x64] sm:$0xf]
      %v2205 = vld [vmem:[%s244 + $0x68] sm:$0xf]
      %v2206 = vld [vmem:[%s244 + $0x6c] sm:$0xf]
      %v2207 = vld [vmem:[%s244 + $0x70] sm:$0xf]
      %v2208 = vld [vmem:[%s244 + $0x74] sm:$0xf]
      %v2209 = vld [vmem:[%s244 + $0x78] sm:$0x1]
      %s2210 = scalar_lea.vmem %s248, 320
      %v2211 = vld [vmem:[%s2210] sm:$0xf]
      %v2212 = vld [vmem:[%s2210 + $0x4] sm:$0xf]
      %v2213 = vld [vmem:[%s2210 + $0x8] sm:$0xf]
      %v2214 = vld [vmem:[%s2210 + $0xc] sm:$0xf]
      %v2215 = vld [vmem:[%s2210 + $0x10] sm:$0xf]
      %v2216 = vld [vmem:[%s2210 + $0x14] sm:$0xf]
      %v2217 = vld [vmem:[%s2210 + $0x18] sm:$0xf]
      %v2218 = vld [vmem:[%s2210 + $0x1c] sm:$0xf]
      %v2219 = vld [vmem:[%s2210 + $0x20] sm:$0xf]
      %v2220 = vld [vmem:[%s2210 + $0x24] sm:$0xf]
      %v2221 = vld [vmem:[%s2210 + $0x28] sm:$0xf]
      %v2222 = vld [vmem:[%s2210 + $0x2c] sm:$0xf]
      %v2223 = vld [vmem:[%s2210 + $0x30] sm:$0xf]
      %v2224 = vld [vmem:[%s2210 + $0x34] sm:$0xf]
      %v2225 = vld [vmem:[%s2210 + $0x38] sm:$0xf]
      %v2226 = vld [vmem:[%s2210 + $0x3c] sm:$0xf]
      %v2256 = vunpack.c.l.b16 %v2181
      %v2257 = vunpack.c.l.b16 %v2182
      %v2258 = vunpack.c.l.b16 %v2183
      %v2259 = vunpack.c.l.b16 %v2184
      %v2260 = vunpack.c.l.b16 %v2185
      %v2261 = vunpack.c.l.b16 %v2186
      %v2262 = vunpack.c.l.b16 %v2187
      %v2263 = vunpack.c.l.b16 %v2188
      %v2264 = vunpack.c.l.b16 %v2189
      %v2265 = vunpack.c.l.b16 %v2190
      %v2266 = vunpack.c.l.b16 %v2191
      %v2267 = vunpack.c.l.b16 %v2192
      %v2268 = vunpack.c.l.b16 %v2193
      %v2269 = vunpack.c.l.b16 %v2194
      %v2270 = vunpack.c.l.b16 %v2195
      %v2271 = vunpack.c.l.b16 %v2196
      %v2272 = vunpack.c.l.b16 %v2197
      %v2273 = vunpack.c.l.b16 %v2198
      %v2274 = vunpack.c.l.b16 %v2199
      %v2275 = vunpack.c.l.b16 %v2200
      %v2276 = vunpack.c.l.b16 %v2201
      %v2277 = vunpack.c.l.b16 %v2202
      %v2278 = vunpack.c.l.b16 %v2203
      %v2279 = vunpack.c.l.b16 %v2204
      %v2280 = vunpack.c.l.b16 %v2205
      %v2281 = vunpack.c.l.b16 %v2206
      %v2282 = vunpack.c.l.b16 %v2207
      %v2283 = vunpack.c.l.b16 %v2208
      %v2284 = vunpack.c.l.b16 %v2209
      %v2285 = vpack.c.b16 %v2257, %v2256
      %v2286 = vpack.c.b16 %v2259, %v2258
      %v2287 = vpack.c.b16 %v2261, %v2260
      %v2288 = vpack.c.b16 %v2263, %v2262
      %v2289 = vpack.c.b16 %v2265, %v2264
      %v2290 = vpack.c.b16 %v2267, %v2266
      %v2291 = vpack.c.b16 %v2269, %v2268
      %v2292 = vpack.c.b16 %v2271, %v2270
      %v2293 = vpack.c.b16 %v2273, %v2272
      %v2294 = vpack.c.b16 %v2275, %v2274
      %v2295 = vpack.c.b16 %v2277, %v2276
      %v2296 = vpack.c.b16 %v2279, %v2278
      %v2297 = vpack.c.b16 %v2281, %v2280
      %v2298 = vpack.c.b16 %v2283, %v2282
      %v2299 = vpack.c.b16 %v2284, %v2284
      %v2300 = vrot.slane %v2285, 1
      %v2301 = vrot.slane %v2286, 1
      %v2302 = vsel %vm1126, %v2300, %v2301
      %v2303 = vrot.slane %v2287, 1
      %v2304 = vsel %vm1126, %v2301, %v2303
      %v2305 = vrot.slane %v2288, 1
      %v2306 = vsel %vm1126, %v2303, %v2305
      %v2307 = vrot.slane %v2289, 1
      %v2308 = vsel %vm1126, %v2305, %v2307
      %v2309 = vrot.slane %v2290, 1
      %v2310 = vsel %vm1126, %v2307, %v2309
      %v2311 = vrot.slane %v2291, 1
      %v2312 = vsel %vm1126, %v2309, %v2311
      %v2313 = vrot.slane %v2292, 1
      %v2314 = vsel %vm1126, %v2311, %v2313
      %v2315 = vrot.slane %v2293, 1
      %v2316 = vsel %vm1126, %v2313, %v2315
      %v2317 = vrot.slane %v2294, 1
      %v2318 = vsel %vm1126, %v2315, %v2317
      %v2319 = vrot.slane %v2295, 1
      %v2320 = vsel %vm1126, %v2317, %v2319
      %v2321 = vrot.slane %v2296, 1
      %v2322 = vsel %vm1126, %v2319, %v2321
      %v2323 = vrot.slane %v2297, 1
      %v2324 = vsel %vm1126, %v2321, %v2323
      %v2325 = vrot.slane %v2298, 1
      %v2326 = vsel %vm1126, %v2323, %v2325
      %v2327 = vrot.slane %v2299, 1
      %v2328 = vsel %vm1126, %v2325, %v2327
      %v2359 = vunpack.c.l.b16 %v2211
      %v2360 = vunpack.c.l.b16 %v2212
      %v2361 = vunpack.c.l.b16 %v2213
      %v2362 = vunpack.c.l.b16 %v2214
      %v2363 = vunpack.c.l.b16 %v2215
      %v2364 = vunpack.c.l.b16 %v2216
      %v2365 = vunpack.c.l.b16 %v2217
      %v2366 = vunpack.c.l.b16 %v2218
      %v2367 = vunpack.c.l.b16 %v2219
      %v2368 = vunpack.c.l.b16 %v2220
      %v2369 = vunpack.c.l.b16 %v2221
      %v2370 = vunpack.c.l.b16 %v2222
      %v2371 = vunpack.c.l.b16 %v2223
      %v2372 = vunpack.c.l.b16 %v2224
      %v2373 = vunpack.c.l.b16 %v2225
      %v2374 = vunpack.c.l.b16 %v2226
      %v2375 = vpack.c.b16 %v2360, %v2359
      %v2376 = vpack.c.b16 %v2362, %v2361
      %v2377 = vpack.c.b16 %v2364, %v2363
      %v2378 = vpack.c.b16 %v2366, %v2365
      %v2379 = vpack.c.b16 %v2368, %v2367
      %v2380 = vpack.c.b16 %v2370, %v2369
      %v2381 = vpack.c.b16 %v2372, %v2371
      %v2382 = vpack.c.b16 %v2374, %v2373
      %2391 = vmatpush.bf16.msra.mxu0 %v2382
      %2392 = vmatpush.bf16.msra.mxu0 %v2381
      %2393 = vmatpush.bf16.msra.mxu0 %v2380
      %2394 = vmatpush.bf16.msra.mxu0 %v2379
      %2395 = vmatpush.bf16.msra.mxu0 %v2378
      %2396 = vmatpush.bf16.msra.mxu0 %v2377
      %2397 = vmatpush.bf16.msra.mxu0 %v2376
      %2398 = vmatpush.bf16.msra.mxu0 %v2375
      %2399 = vmatmul.bf16.gmra.mxu0 %v2302
      %v2400 = vpop.f32.mrf.mxu0
      %v2401 = vadd.f32 0.0, %v2400
      %v2402 = vpop.f32.mrf.mxu0
      %v2403 = vadd.f32 0.0, %v2402
      %2404 = vmatmul.bf16.gmra.mxu0 %v2304
      %v2405 = vpop.f32.mrf.mxu0
      %v2406 = vadd.f32 0.0, %v2405
      %v2407 = vpop.f32.mrf.mxu0
      %v2408 = vadd.f32 0.0, %v2407
      %2409 = vmatmul.bf16.gmra.mxu0 %v2306
      %v2410 = vpop.f32.mrf.mxu0
      %v2411 = vadd.f32 0.0, %v2410
      %v2412 = vpop.f32.mrf.mxu0
      %v2413 = vadd.f32 0.0, %v2412
      %2414 = vmatmul.bf16.gmra.mxu0 %v2308
      %v2415 = vpop.f32.mrf.mxu0
      %v2416 = vadd.f32 0.0, %v2415
      %v2417 = vpop.f32.mrf.mxu0
      %v2418 = vadd.f32 0.0, %v2417
      %2419 = vmatmul.bf16.gmra.mxu0 %v2310
      %v2420 = vpop.f32.mrf.mxu0
      %v2421 = vadd.f32 0.0, %v2420
      %v2422 = vpop.f32.mrf.mxu0
      %v2423 = vadd.f32 0.0, %v2422
      %2424 = vmatmul.bf16.gmra.mxu0 %v2312
      %v2425 = vpop.f32.mrf.mxu0
      %v2426 = vadd.f32 0.0, %v2425
      %v2427 = vpop.f32.mrf.mxu0
      %v2428 = vadd.f32 0.0, %v2427
      %2429 = vmatmul.bf16.gmra.mxu0 %v2314
      %v2430 = vpop.f32.mrf.mxu0
      %v2431 = vadd.f32 0.0, %v2430
      %v2432 = vpop.f32.mrf.mxu0
      %v2433 = vadd.f32 0.0, %v2432
      %2434 = vmatmul.bf16.gmra.mxu0 %v2316
      %v2435 = vpop.f32.mrf.mxu0
      %v2436 = vadd.f32 0.0, %v2435
      %v2437 = vpop.f32.mrf.mxu0
      %v2438 = vadd.f32 0.0, %v2437
      %2439 = vmatmul.bf16.gmra.mxu0 %v2318
      %v2440 = vpop.f32.mrf.mxu0
      %v2441 = vadd.f32 0.0, %v2440
      %v2442 = vpop.f32.mrf.mxu0
      %v2443 = vadd.f32 0.0, %v2442
      %2444 = vmatmul.bf16.gmra.mxu0 %v2320
      %v2445 = vpop.f32.mrf.mxu0
      %v2446 = vadd.f32 0.0, %v2445
      %v2447 = vpop.f32.mrf.mxu0
      %v2448 = vadd.f32 0.0, %v2447
      %2449 = vmatmul.bf16.gmra.mxu0 %v2322
      %v2450 = vpop.f32.mrf.mxu0
      %v2451 = vadd.f32 0.0, %v2450
      %v2452 = vpop.f32.mrf.mxu0
      %v2453 = vadd.f32 0.0, %v2452
      %2454 = vmatmul.bf16.gmra.mxu0 %v2324
      %v2455 = vpop.f32.mrf.mxu0
      %v2456 = vadd.f32 0.0, %v2455
      %v2457 = vpop.f32.mrf.mxu0
      %v2458 = vadd.f32 0.0, %v2457
      %2459 = vmatmul.bf16.gmra.mxu0 %v2326
      %v2460 = vpop.f32.mrf.mxu0
      %v2461 = vadd.f32 0.0, %v2460
      %v2462 = vpop.f32.mrf.mxu0
      %v2463 = vadd.f32 0.0, %v2462
      %2464 = vmatmul.bf16.gmra.mxu0 %v2328
      %v2465 = vpop.f32.mrf.mxu0
      %v2466 = vadd.f32 0.0, %v2465
      %v2467 = vpop.f32.mrf.mxu0
      %v2468 = vadd.f32 0.0, %v2467
      %2469 = vdwg.mxu0
      %v2470 = vld [vmem:[#allocation2] sm:$0xff]
      %v2471 = vld [vmem:[#allocation2 + $0x8] sm:$0xff]
      %v2472 = vld [vmem:[#allocation2 + $0x10] sm:$0xff]
      %v2473 = vld [vmem:[#allocation2 + $0x18] sm:$0xff]
      %v2474 = vld [vmem:[#allocation2 + $0x20] sm:$0xff]
      %v2475 = vld [vmem:[#allocation2 + $0x28] sm:$0xff]
      %v2476 = vld [vmem:[#allocation2 + $0x30] sm:$0xff]
      %v2477 = vld [vmem:[#allocation2 + $0x38] sm:$0xff]
      %v2478 = vld [vmem:[#allocation2 + $0x40] sm:$0xff]
      %v2479 = vld [vmem:[#allocation2 + $0x48] sm:$0xff]
      %v2480 = vld [vmem:[#allocation2 + $0x50] sm:$0xff]
      %v2481 = vld [vmem:[#allocation2 + $0x58] sm:$0xff]
      %v2482 = vld [vmem:[#allocation2 + $0x60] sm:$0xff]
      %v2483 = vld [vmem:[#allocation2 + $0x68] sm:$0xff]
      %v2484 = vld [vmem:[#allocation2 + $0x70] sm:$0xff]
      %v2485 = vld [vmem:[#allocation2 + $0x78] sm:$0xff]
      %v2486 = vld [vmem:[#allocation2 + $0x80] sm:$0xff]
      %v2487 = vld [vmem:[#allocation2 + $0x88] sm:$0xff]
      %v2488 = vld [vmem:[#allocation2 + $0x90] sm:$0xff]
      %v2489 = vld [vmem:[#allocation2 + $0x98] sm:$0xff]
      %v2490 = vld [vmem:[#allocation2 + $0xa0] sm:$0xff]
      %v2491 = vld [vmem:[#allocation2 + $0xa8] sm:$0xff]
      %v2492 = vld [vmem:[#allocation2 + $0xb0] sm:$0xff]
      %v2493 = vld [vmem:[#allocation2 + $0xb8] sm:$0xff]
      %v2494 = vld [vmem:[#allocation2 + $0xc0] sm:$0xff]
      %v2495 = vld [vmem:[#allocation2 + $0xc8] sm:$0xff]
      %v2496 = vld [vmem:[#allocation2 + $0xd0] sm:$0xff]
      %v2497 = vld [vmem:[#allocation2 + $0xd8] sm:$0xff]
      %v2498 = vadd.f32 %v2470, %v2401
      %v2499 = vadd.f32 %v2471, %v2403
      %v2500 = vadd.f32 %v2472, %v2406
      %v2501 = vadd.f32 %v2473, %v2408
      %v2502 = vadd.f32 %v2474, %v2411
      %v2503 = vadd.f32 %v2475, %v2413
      %v2504 = vadd.f32 %v2476, %v2416
      %v2505 = vadd.f32 %v2477, %v2418
      %v2506 = vadd.f32 %v2478, %v2421
      %v2507 = vadd.f32 %v2479, %v2423
      %v2508 = vadd.f32 %v2480, %v2426
      %v2509 = vadd.f32 %v2481, %v2428
      %v2510 = vadd.f32 %v2482, %v2431
      %v2511 = vadd.f32 %v2483, %v2433
      %v2512 = vadd.f32 %v2484, %v2436
      %v2513 = vadd.f32 %v2485, %v2438
      %v2514 = vadd.f32 %v2486, %v2441
      %v2515 = vadd.f32 %v2487, %v2443
      %v2516 = vadd.f32 %v2488, %v2446
      %v2517 = vadd.f32 %v2489, %v2448
      %v2518 = vadd.f32 %v2490, %v2451
      %v2519 = vadd.f32 %v2491, %v2453
      %v2520 = vadd.f32 %v2492, %v2456
      %v2521 = vadd.f32 %v2493, %v2458
      %v2522 = vadd.f32 %v2494, %v2461
      %v2523 = vadd.f32 %v2495, %v2463
      %v2524 = vadd.f32 %v2496, %v2466
      %v2525 = vadd.f32 %v2497, %v2468
      %2526 = vst [vmem:[#allocation2] sm:$0xff] %v2498
      %2527 = vst [vmem:[#allocation2 + $0x8] sm:$0xff] %v2499
      %2528 = vst [vmem:[#allocation2 + $0x10] sm:$0xff] %v2500
      %2529 = vst [vmem:[#allocation2 + $0x18] sm:$0xff] %v2501
      %2530 = vst [vmem:[#allocation2 + $0x20] sm:$0xff] %v2502
      %2531 = vst [vmem:[#allocation2 + $0x28] sm:$0xff] %v2503
      %2532 = vst [vmem:[#allocation2 + $0x30] sm:$0xff] %v2504
      %2533 = vst [vmem:[#allocation2 + $0x38] sm:$0xff] %v2505
      %2534 = vst [vmem:[#allocation2 + $0x40] sm:$0xff] %v2506
      %2535 = vst [vmem:[#allocation2 + $0x48] sm:$0xff] %v2507
      %2536 = vst [vmem:[#allocation2 + $0x50] sm:$0xff] %v2508
      %2537 = vst [vmem:[#allocation2 + $0x58] sm:$0xff] %v2509
      %2538 = vst [vmem:[#allocation2 + $0x60] sm:$0xff] %v2510
      %2539 = vst [vmem:[#allocation2 + $0x68] sm:$0xff] %v2511
      %2540 = vst [vmem:[#allocation2 + $0x70] sm:$0xff] %v2512
      %2541 = vst [vmem:[#allocation2 + $0x78] sm:$0xff] %v2513
      %2542 = vst [vmem:[#allocation2 + $0x80] sm:$0xff] %v2514
      %2543 = vst [vmem:[#allocation2 + $0x88] sm:$0xff] %v2515
      %2544 = vst [vmem:[#allocation2 + $0x90] sm:$0xff] %v2516
      %2545 = vst [vmem:[#allocation2 + $0x98] sm:$0xff] %v2517
      %2546 = vst [vmem:[#allocation2 + $0xa0] sm:$0xff] %v2518
      %2547 = vst [vmem:[#allocation2 + $0xa8] sm:$0xff] %v2519
      %2548 = vst [vmem:[#allocation2 + $0xb0] sm:$0xff] %v2520
      %2549 = vst [vmem:[#allocation2 + $0xb8] sm:$0xff] %v2521
      %2550 = vst [vmem:[#allocation2 + $0xc0] sm:$0xff] %v2522
      %2551 = vst [vmem:[#allocation2 + $0xc8] sm:$0xff] %v2523
      %2552 = vst [vmem:[#allocation2 + $0xd0] sm:$0xff] %v2524
      %2553 = vst [vmem:[#allocation2 + $0xd8] sm:$0xff] %v2525
      %v2554 = vld [vmem:[%s244 + $0x10] sm:$0xf]
      %v2555 = vld [vmem:[%s244 + $0x14] sm:$0xf]
      %v2556 = vld [vmem:[%s244 + $0x18] sm:$0xf]
      %v2557 = vld [vmem:[%s244 + $0x1c] sm:$0xf]
      %v2558 = vld [vmem:[%s244 + $0x20] sm:$0xf]
      %v2559 = vld [vmem:[%s244 + $0x24] sm:$0xf]
      %v2560 = vld [vmem:[%s244 + $0x28] sm:$0xf]
      %v2561 = vld [vmem:[%s244 + $0x2c] sm:$0xf]
      %v2562 = vld [vmem:[%s244 + $0x30] sm:$0xf]
      %v2563 = vld [vmem:[%s244 + $0x34] sm:$0xf]
      %v2564 = vld [vmem:[%s244 + $0x38] sm:$0xf]
      %v2565 = vld [vmem:[%s244 + $0x3c] sm:$0xf]
      %v2566 = vld [vmem:[%s244 + $0x40] sm:$0xf]
      %v2567 = vld [vmem:[%s244 + $0x44] sm:$0xf]
      %v2568 = vld [vmem:[%s244 + $0x48] sm:$0xf]
      %v2569 = vld [vmem:[%s244 + $0x4c] sm:$0xf]
      %v2570 = vld [vmem:[%s244 + $0x50] sm:$0xf]
      %v2571 = vld [vmem:[%s244 + $0x54] sm:$0xf]
      %v2572 = vld [vmem:[%s244 + $0x58] sm:$0xf]
      %v2573 = vld [vmem:[%s244 + $0x5c] sm:$0xf]
      %v2574 = vld [vmem:[%s244 + $0x60] sm:$0xf]
      %v2575 = vld [vmem:[%s244 + $0x64] sm:$0xf]
      %v2576 = vld [vmem:[%s244 + $0x68] sm:$0xf]
      %v2577 = vld [vmem:[%s244 + $0x6c] sm:$0xf]
      %v2578 = vld [vmem:[%s244 + $0x70] sm:$0xf]
      %v2579 = vld [vmem:[%s244 + $0x74] sm:$0xf]
      %v2580 = vld [vmem:[%s244 + $0x78] sm:$0xf]
      %v2581 = vld [vmem:[%s244 + $0x7c] sm:$0xf]
      %s2582 = scalar_lea.vmem %s248, 384
      %v2583 = vld [vmem:[%s2582] sm:$0xf]
      %v2584 = vld [vmem:[%s2582 + $0x4] sm:$0xf]
      %v2585 = vld [vmem:[%s2582 + $0x8] sm:$0xf]
      %v2586 = vld [vmem:[%s2582 + $0xc] sm:$0xf]
      %v2587 = vld [vmem:[%s2582 + $0x10] sm:$0xf]
      %v2588 = vld [vmem:[%s2582 + $0x14] sm:$0xf]
      %v2589 = vld [vmem:[%s2582 + $0x18] sm:$0xf]
      %v2590 = vld [vmem:[%s2582 + $0x1c] sm:$0xf]
      %v2591 = vld [vmem:[%s2582 + $0x20] sm:$0xf]
      %v2592 = vld [vmem:[%s2582 + $0x24] sm:$0xf]
      %v2593 = vld [vmem:[%s2582 + $0x28] sm:$0xf]
      %v2594 = vld [vmem:[%s2582 + $0x2c] sm:$0xf]
      %v2595 = vld [vmem:[%s2582 + $0x30] sm:$0xf]
      %v2596 = vld [vmem:[%s2582 + $0x34] sm:$0xf]
      %v2597 = vld [vmem:[%s2582 + $0x38] sm:$0xf]
      %v2598 = vld [vmem:[%s2582 + $0x3c] sm:$0xf]
      %v2627 = vunpack.c.l.b16 %v2554
      %v2628 = vunpack.c.l.b16 %v2555
      %v2629 = vunpack.c.l.b16 %v2556
      %v2630 = vunpack.c.l.b16 %v2557
      %v2631 = vunpack.c.l.b16 %v2558
      %v2632 = vunpack.c.l.b16 %v2559
      %v2633 = vunpack.c.l.b16 %v2560
      %v2634 = vunpack.c.l.b16 %v2561
      %v2635 = vunpack.c.l.b16 %v2562
      %v2636 = vunpack.c.l.b16 %v2563
      %v2637 = vunpack.c.l.b16 %v2564
      %v2638 = vunpack.c.l.b16 %v2565
      %v2639 = vunpack.c.l.b16 %v2566
      %v2640 = vunpack.c.l.b16 %v2567
      %v2641 = vunpack.c.l.b16 %v2568
      %v2642 = vunpack.c.l.b16 %v2569
      %v2643 = vunpack.c.l.b16 %v2570
      %v2644 = vunpack.c.l.b16 %v2571
      %v2645 = vunpack.c.l.b16 %v2572
      %v2646 = vunpack.c.l.b16 %v2573
      %v2647 = vunpack.c.l.b16 %v2574
      %v2648 = vunpack.c.l.b16 %v2575
      %v2649 = vunpack.c.l.b16 %v2576
      %v2650 = vunpack.c.l.b16 %v2577
      %v2651 = vunpack.c.l.b16 %v2578
      %v2652 = vunpack.c.l.b16 %v2579
      %v2653 = vunpack.c.l.b16 %v2580
      %v2654 = vunpack.c.l.b16 %v2581
      %v2655 = vpack.c.b16 %v2628, %v2627
      %v2656 = vpack.c.b16 %v2630, %v2629
      %v2657 = vpack.c.b16 %v2632, %v2631
      %v2658 = vpack.c.b16 %v2634, %v2633
      %v2659 = vpack.c.b16 %v2636, %v2635
      %v2660 = vpack.c.b16 %v2638, %v2637
      %v2661 = vpack.c.b16 %v2640, %v2639
      %v2662 = vpack.c.b16 %v2642, %v2641
      %v2663 = vpack.c.b16 %v2644, %v2643
      %v2664 = vpack.c.b16 %v2646, %v2645
      %v2665 = vpack.c.b16 %v2648, %v2647
      %v2666 = vpack.c.b16 %v2650, %v2649
      %v2667 = vpack.c.b16 %v2652, %v2651
      %v2668 = vpack.c.b16 %v2654, %v2653
      %v2699 = vunpack.c.l.b16 %v2583
      %v2700 = vunpack.c.l.b16 %v2584
      %v2701 = vunpack.c.l.b16 %v2585
      %v2702 = vunpack.c.l.b16 %v2586
      %v2703 = vunpack.c.l.b16 %v2587
      %v2704 = vunpack.c.l.b16 %v2588
      %v2705 = vunpack.c.l.b16 %v2589
      %v2706 = vunpack.c.l.b16 %v2590
      %v2707 = vunpack.c.l.b16 %v2591
      %v2708 = vunpack.c.l.b16 %v2592
      %v2709 = vunpack.c.l.b16 %v2593
      %v2710 = vunpack.c.l.b16 %v2594
      %v2711 = vunpack.c.l.b16 %v2595
      %v2712 = vunpack.c.l.b16 %v2596
      %v2713 = vunpack.c.l.b16 %v2597
      %v2714 = vunpack.c.l.b16 %v2598
      %v2715 = vpack.c.b16 %v2700, %v2699
      %v2716 = vpack.c.b16 %v2702, %v2701
      %v2717 = vpack.c.b16 %v2704, %v2703
      %v2718 = vpack.c.b16 %v2706, %v2705
      %v2719 = vpack.c.b16 %v2708, %v2707
      %v2720 = vpack.c.b16 %v2710, %v2709
      %v2721 = vpack.c.b16 %v2712, %v2711
      %v2722 = vpack.c.b16 %v2714, %v2713
      %2731 = vmatpush.bf16.msra.mxu0 %v2722
      %2732 = vmatpush.bf16.msra.mxu0 %v2721
      %2733 = vmatpush.bf16.msra.mxu0 %v2720
      %2734 = vmatpush.bf16.msra.mxu0 %v2719
      %2735 = vmatpush.bf16.msra.mxu0 %v2718
      %2736 = vmatpush.bf16.msra.mxu0 %v2717
      %2737 = vmatpush.bf16.msra.mxu0 %v2716
      %2738 = vmatpush.bf16.msra.mxu0 %v2715
      %2739 = vmatmul.bf16.gmra.mxu0 %v2655
      %v2740 = vpop.f32.mrf.mxu0
      %v2741 = vadd.f32 0.0, %v2740
      %v2742 = vpop.f32.mrf.mxu0
      %v2743 = vadd.f32 0.0, %v2742
      %2744 = vmatmul.bf16.gmra.mxu0 %v2656
      %v2745 = vpop.f32.mrf.mxu0
      %v2746 = vadd.f32 0.0, %v2745
      %v2747 = vpop.f32.mrf.mxu0
      %v2748 = vadd.f32 0.0, %v2747
      %2749 = vmatmul.bf16.gmra.mxu0 %v2657
      %v2750 = vpop.f32.mrf.mxu0
      %v2751 = vadd.f32 0.0, %v2750
      %v2752 = vpop.f32.mrf.mxu0
      %v2753 = vadd.f32 0.0, %v2752
      %2754 = vmatmul.bf16.gmra.mxu0 %v2658
      %v2755 = vpop.f32.mrf.mxu0
      %v2756 = vadd.f32 0.0, %v2755
      %v2757 = vpop.f32.mrf.mxu0
      %v2758 = vadd.f32 0.0, %v2757
      %2759 = vmatmul.bf16.gmra.mxu0 %v2659
      %v2760 = vpop.f32.mrf.mxu0
      %v2761 = vadd.f32 0.0, %v2760
      %v2762 = vpop.f32.mrf.mxu0
      %v2763 = vadd.f32 0.0, %v2762
      %2764 = vmatmul.bf16.gmra.mxu0 %v2660
      %v2765 = vpop.f32.mrf.mxu0
      %v2766 = vadd.f32 0.0, %v2765
      %v2767 = vpop.f32.mrf.mxu0
      %v2768 = vadd.f32 0.0, %v2767
      %2769 = vmatmul.bf16.gmra.mxu0 %v2661
      %v2770 = vpop.f32.mrf.mxu0
      %v2771 = vadd.f32 0.0, %v2770
      %v2772 = vpop.f32.mrf.mxu0
      %v2773 = vadd.f32 0.0, %v2772
      %2774 = vmatmul.bf16.gmra.mxu0 %v2662
      %v2775 = vpop.f32.mrf.mxu0
      %v2776 = vadd.f32 0.0, %v2775
      %v2777 = vpop.f32.mrf.mxu0
      %v2778 = vadd.f32 0.0, %v2777
      %2779 = vmatmul.bf16.gmra.mxu0 %v2663
      %v2780 = vpop.f32.mrf.mxu0
      %v2781 = vadd.f32 0.0, %v2780
      %v2782 = vpop.f32.mrf.mxu0
      %v2783 = vadd.f32 0.0, %v2782
      %2784 = vmatmul.bf16.gmra.mxu0 %v2664
      %v2785 = vpop.f32.mrf.mxu0
      %v2786 = vadd.f32 0.0, %v2785
      %v2787 = vpop.f32.mrf.mxu0
      %v2788 = vadd.f32 0.0, %v2787
      %2789 = vmatmul.bf16.gmra.mxu0 %v2665
      %v2790 = vpop.f32.mrf.mxu0
      %v2791 = vadd.f32 0.0, %v2790
      %v2792 = vpop.f32.mrf.mxu0
      %v2793 = vadd.f32 0.0, %v2792
      %2794 = vmatmul.bf16.gmra.mxu0 %v2666
      %v2795 = vpop.f32.mrf.mxu0
      %v2796 = vadd.f32 0.0, %v2795
      %v2797 = vpop.f32.mrf.mxu0
      %v2798 = vadd.f32 0.0, %v2797
      %2799 = vmatmul.bf16.gmra.mxu0 %v2667
      %v2800 = vpop.f32.mrf.mxu0
      %v2801 = vadd.f32 0.0, %v2800
      %v2802 = vpop.f32.mrf.mxu0
      %v2803 = vadd.f32 0.0, %v2802
      %2804 = vmatmul.bf16.gmra.mxu0 %v2668
      %v2805 = vpop.f32.mrf.mxu0
      %v2806 = vadd.f32 0.0, %v2805
      %v2807 = vpop.f32.mrf.mxu0
      %v2808 = vadd.f32 0.0, %v2807
      %2809 = vdwg.mxu0
      %v2810 = vld [vmem:[#allocation2] sm:$0xff]
      %v2811 = vld [vmem:[#allocation2 + $0x8] sm:$0xff]
      %v2812 = vld [vmem:[#allocation2 + $0x10] sm:$0xff]
      %v2813 = vld [vmem:[#allocation2 + $0x18] sm:$0xff]
      %v2814 = vld [vmem:[#allocation2 + $0x20] sm:$0xff]
      %v2815 = vld [vmem:[#allocation2 + $0x28] sm:$0xff]
      %v2816 = vld [vmem:[#allocation2 + $0x30] sm:$0xff]
      %v2817 = vld [vmem:[#allocation2 + $0x38] sm:$0xff]
      %v2818 = vld [vmem:[#allocation2 + $0x40] sm:$0xff]
      %v2819 = vld [vmem:[#allocation2 + $0x48] sm:$0xff]
      %v2820 = vld [vmem:[#allocation2 + $0x50] sm:$0xff]
      %v2821 = vld [vmem:[#allocation2 + $0x58] sm:$0xff]
      %v2822 = vld [vmem:[#allocation2 + $0x60] sm:$0xff]
      %v2823 = vld [vmem:[#allocation2 + $0x68] sm:$0xff]
      %v2824 = vld [vmem:[#allocation2 + $0x70] sm:$0xff]
      %v2825 = vld [vmem:[#allocation2 + $0x78] sm:$0xff]
      %v2826 = vld [vmem:[#allocation2 + $0x80] sm:$0xff]
      %v2827 = vld [vmem:[#allocation2 + $0x88] sm:$0xff]
      %v2828 = vld [vmem:[#allocation2 + $0x90] sm:$0xff]
      %v2829 = vld [vmem:[#allocation2 + $0x98] sm:$0xff]
      %v2830 = vld [vmem:[#allocation2 + $0xa0] sm:$0xff]
      %v2831 = vld [vmem:[#allocation2 + $0xa8] sm:$0xff]
      %v2832 = vld [vmem:[#allocation2 + $0xb0] sm:$0xff]
      %v2833 = vld [vmem:[#allocation2 + $0xb8] sm:$0xff]
      %v2834 = vld [vmem:[#allocation2 + $0xc0] sm:$0xff]
      %v2835 = vld [vmem:[#allocation2 + $0xc8] sm:$0xff]
      %v2836 = vld [vmem:[#allocation2 + $0xd0] sm:$0xff]
      %v2837 = vld [vmem:[#allocation2 + $0xd8] sm:$0xff]
      %v2838 = vadd.f32 %v2810, %v2741
      %v2839 = vadd.f32 %v2811, %v2743
      %v2840 = vadd.f32 %v2812, %v2746
      %v2841 = vadd.f32 %v2813, %v2748
      %v2842 = vadd.f32 %v2814, %v2751
      %v2843 = vadd.f32 %v2815, %v2753
      %v2844 = vadd.f32 %v2816, %v2756
      %v2845 = vadd.f32 %v2817, %v2758
      %v2846 = vadd.f32 %v2818, %v2761
      %v2847 = vadd.f32 %v2819, %v2763
      %v2848 = vadd.f32 %v2820, %v2766
      %v2849 = vadd.f32 %v2821, %v2768
      %v2850 = vadd.f32 %v2822, %v2771
      %v2851 = vadd.f32 %v2823, %v2773
      %v2852 = vadd.f32 %v2824, %v2776
      %v2853 = vadd.f32 %v2825, %v2778
      %v2854 = vadd.f32 %v2826, %v2781
      %v2855 = vadd.f32 %v2827, %v2783
      %v2856 = vadd.f32 %v2828, %v2786
      %v2857 = vadd.f32 %v2829, %v2788
      %v2858 = vadd.f32 %v2830, %v2791
      %v2859 = vadd.f32 %v2831, %v2793
      %v2860 = vadd.f32 %v2832, %v2796
      %v2861 = vadd.f32 %v2833, %v2798
      %v2862 = vadd.f32 %v2834, %v2801
      %v2863 = vadd.f32 %v2835, %v2803
      %v2864 = vadd.f32 %v2836, %v2806
      %v2865 = vadd.f32 %v2837, %v2808
      %2866 = vst [vmem:[#allocation2] sm:$0xff] %v2838
      %2867 = vst [vmem:[#allocation2 + $0x8] sm:$0xff] %v2839
      %2868 = vst [vmem:[#allocation2 + $0x10] sm:$0xff] %v2840
      %2869 = vst [vmem:[#allocation2 + $0x18] sm:$0xff] %v2841
      %2870 = vst [vmem:[#allocation2 + $0x20] sm:$0xff] %v2842
      %2871 = vst [vmem:[#allocation2 + $0x28] sm:$0xff] %v2843
      %2872 = vst [vmem:[#allocation2 + $0x30] sm:$0xff] %v2844
      %2873 = vst [vmem:[#allocation2 + $0x38] sm:$0xff] %v2845
      %2874 = vst [vmem:[#allocation2 + $0x40] sm:$0xff] %v2846
      %2875 = vst [vmem:[#allocation2 + $0x48] sm:$0xff] %v2847
      %2876 = vst [vmem:[#allocation2 + $0x50] sm:$0xff] %v2848
      %2877 = vst [vmem:[#allocation2 + $0x58] sm:$0xff] %v2849
      %2878 = vst [vmem:[#allocation2 + $0x60] sm:$0xff] %v2850
      %2879 = vst [vmem:[#allocation2 + $0x68] sm:$0xff] %v2851
      %2880 = vst [vmem:[#allocation2 + $0x70] sm:$0xff] %v2852
      %2881 = vst [vmem:[#allocation2 + $0x78] sm:$0xff] %v2853
      %2882 = vst [vmem:[#allocation2 + $0x80] sm:$0xff] %v2854
      %2883 = vst [vmem:[#allocation2 + $0x88] sm:$0xff] %v2855
      %2884 = vst [vmem:[#allocation2 + $0x90] sm:$0xff] %v2856
      %2885 = vst [vmem:[#allocation2 + $0x98] sm:$0xff] %v2857
      %2886 = vst [vmem:[#allocation2 + $0xa0] sm:$0xff] %v2858
      %2887 = vst [vmem:[#allocation2 + $0xa8] sm:$0xff] %v2859
      %2888 = vst [vmem:[#allocation2 + $0xb0] sm:$0xff] %v2860
      %2889 = vst [vmem:[#allocation2 + $0xb8] sm:$0xff] %v2861
      %2890 = vst [vmem:[#allocation2 + $0xc0] sm:$0xff] %v2862
      %2891 = vst [vmem:[#allocation2 + $0xc8] sm:$0xff] %v2863
      %2892 = vst [vmem:[#allocation2 + $0xd0] sm:$0xff] %v2864
      %2893 = vst [vmem:[#allocation2 + $0xd8] sm:$0xff] %v2865
      %v2894 = vld [vmem:[%s244 + $0x10] sm:$0xf]
      %v2895 = vld [vmem:[%s244 + $0x14] sm:$0xf]
      %v2896 = vld [vmem:[%s244 + $0x18] sm:$0xf]
      %v2897 = vld [vmem:[%s244 + $0x1c] sm:$0xf]
      %v2898 = vld [vmem:[%s244 + $0x20] sm:$0xf]
      %v2899 = vld [vmem:[%s244 + $0x24] sm:$0xf]
      %v2900 = vld [vmem:[%s244 + $0x28] sm:$0xf]
      %v2901 = vld [vmem:[%s244 + $0x2c] sm:$0xf]
      %v2902 = vld [vmem:[%s244 + $0x30] sm:$0xf]
      %v2903 = vld [vmem:[%s244 + $0x34] sm:$0xf]
      %v2904 = vld [vmem:[%s244 + $0x38] sm:$0xf]
      %v2905 = vld [vmem:[%s244 + $0x3c] sm:$0xf]
      %v2906 = vld [vmem:[%s244 + $0x40] sm:$0xf]
      %v2907 = vld [vmem:[%s244 + $0x44] sm:$0xf]
      %v2908 = vld [vmem:[%s244 + $0x48] sm:$0xf]
      %v2909 = vld [vmem:[%s244 + $0x4c] sm:$0xf]
      %v2910 = vld [vmem:[%s244 + $0x50] sm:$0xf]
      %v2911 = vld [vmem:[%s244 + $0x54] sm:$0xf]
      %v2912 = vld [vmem:[%s244 + $0x58] sm:$0xf]
      %v2913 = vld [vmem:[%s244 + $0x5c] sm:$0xf]
      %v2914 = vld [vmem:[%s244 + $0x60] sm:$0xf]
      %v2915 = vld [vmem:[%s244 + $0x64] sm:$0xf]
      %v2916 = vld [vmem:[%s244 + $0x68] sm:$0xf]
      %v2917 = vld [vmem:[%s244 + $0x6c] sm:$0xf]
      %v2918 = vld [vmem:[%s244 + $0x70] sm:$0xf]
      %v2919 = vld [vmem:[%s244 + $0x74] sm:$0xf]
      %v2920 = vld [vmem:[%s244 + $0x78] sm:$0xf]
      %v2921 = vld [vmem:[%s244 + $0x7c] sm:$0xf]
      %v2922 = vld [vmem:[%s244 + $0x80] sm:$0x1]
      %s2923 = scalar_lea.vmem %s248, 448
      %v2924 = vld [vmem:[%s2923] sm:$0xf]
      %v2925 = vld [vmem:[%s2923 + $0x4] sm:$0xf]
      %v2926 = vld [vmem:[%s2923 + $0x8] sm:$0xf]
      %v2927 = vld [vmem:[%s2923 + $0xc] sm:$0xf]
      %v2928 = vld [vmem:[%s2923 + $0x10] sm:$0xf]
      %v2929 = vld [vmem:[%s2923 + $0x14] sm:$0xf]
      %v2930 = vld [vmem:[%s2923 + $0x18] sm:$0xf]
      %v2931 = vld [vmem:[%s2923 + $0x1c] sm:$0xf]
      %v2932 = vld [vmem:[%s2923 + $0x20] sm:$0xf]
      %v2933 = vld [vmem:[%s2923 + $0x24] sm:$0xf]
      %v2934 = vld [vmem:[%s2923 + $0x28] sm:$0xf]
      %v2935 = vld [vmem:[%s2923 + $0x2c] sm:$0xf]
      %v2936 = vld [vmem:[%s2923 + $0x30] sm:$0xf]
      %v2937 = vld [vmem:[%s2923 + $0x34] sm:$0xf]
      %v2938 = vld [vmem:[%s2923 + $0x38] sm:$0xf]
      %v2939 = vld [vmem:[%s2923 + $0x3c] sm:$0xf]
      %v2969 = vunpack.c.l.b16 %v2894
      %v2970 = vunpack.c.l.b16 %v2895
      %v2971 = vunpack.c.l.b16 %v2896
      %v2972 = vunpack.c.l.b16 %v2897
      %v2973 = vunpack.c.l.b16 %v2898
      %v2974 = vunpack.c.l.b16 %v2899
      %v2975 = vunpack.c.l.b16 %v2900
      %v2976 = vunpack.c.l.b16 %v2901
      %v2977 = vunpack.c.l.b16 %v2902
      %v2978 = vunpack.c.l.b16 %v2903
      %v2979 = vunpack.c.l.b16 %v2904
      %v2980 = vunpack.c.l.b16 %v2905
      %v2981 = vunpack.c.l.b16 %v2906
      %v2982 = vunpack.c.l.b16 %v2907
      %v2983 = vunpack.c.l.b16 %v2908
      %v2984 = vunpack.c.l.b16 %v2909
      %v2985 = vunpack.c.l.b16 %v2910
      %v2986 = vunpack.c.l.b16 %v2911
      %v2987 = vunpack.c.l.b16 %v2912
      %v2988 = vunpack.c.l.b16 %v2913
      %v2989 = vunpack.c.l.b16 %v2914
      %v2990 = vunpack.c.l.b16 %v2915
      %v2991 = vunpack.c.l.b16 %v2916
      %v2992 = vunpack.c.l.b16 %v2917
      %v2993 = vunpack.c.l.b16 %v2918
      %v2994 = vunpack.c.l.b16 %v2919
      %v2995 = vunpack.c.l.b16 %v2920
      %v2996 = vunpack.c.l.b16 %v2921
      %v2997 = vunpack.c.l.b16 %v2922
      %v2998 = vpack.c.b16 %v2970, %v2969
      %v2999 = vpack.c.b16 %v2972, %v2971
      %v3000 = vpack.c.b16 %v2974, %v2973
      %v3001 = vpack.c.b16 %v2976, %v2975
      %v3002 = vpack.c.b16 %v2978, %v2977
      %v3003 = vpack.c.b16 %v2980, %v2979
      %v3004 = vpack.c.b16 %v2982, %v2981
      %v3005 = vpack.c.b16 %v2984, %v2983
      %v3006 = vpack.c.b16 %v2986, %v2985
      %v3007 = vpack.c.b16 %v2988, %v2987
      %v3008 = vpack.c.b16 %v2990, %v2989
      %v3009 = vpack.c.b16 %v2992, %v2991
      %v3010 = vpack.c.b16 %v2994, %v2993
      %v3011 = vpack.c.b16 %v2996, %v2995
      %v3012 = vpack.c.b16 %v2997, %v2997
      %v3014 = vshrl.u32 %v2998, 16
      %v3016 = vshll.u32 %v2998, 16
      %v3018 = vrot.slane %v3016, 1
      %v3019 = vor.u32 %v3014, %v3018
      %v3021 = vshll.u32 %v2999, 16
      %v3023 = vrot.slane %v3021, 1
      %v3024 = vsel %vm665, %v3019, %v3023
      %v3025 = vshrl.u32 %v2999, 16
      %v3027 = vor.u32 %v3025, %v3023
      %v3029 = vshll.u32 %v3000, 16
      %v3031 = vrot.slane %v3029, 1
      %v3032 = vsel %vm665, %v3027, %v3031
      %v3033 = vshrl.u32 %v3000, 16
      %v3035 = vor.u32 %v3033, %v3031
      %v3037 = vshll.u32 %v3001, 16
      %v3039 = vrot.slane %v3037, 1
      %v3040 = vsel %vm665, %v3035, %v3039
      %v3041 = vshrl.u32 %v3001, 16
      %v3043 = vor.u32 %v3041, %v3039
      %v3045 = vshll.u32 %v3002, 16
      %v3047 = vrot.slane %v3045, 1
      %v3048 = vsel %vm665, %v3043, %v3047
      %v3049 = vshrl.u32 %v3002, 16
      %v3051 = vor.u32 %v3049, %v3047
      %v3053 = vshll.u32 %v3003, 16
      %v3055 = vrot.slane %v3053, 1
      %v3056 = vsel %vm665, %v3051, %v3055
      %v3057 = vshrl.u32 %v3003, 16
      %v3059 = vor.u32 %v3057, %v3055
      %v3061 = vshll.u32 %v3004, 16
      %v3063 = vrot.slane %v3061, 1
      %v3064 = vsel %vm665, %v3059, %v3063
      %v3065 = vshrl.u32 %v3004, 16
      %v3067 = vor.u32 %v3065, %v3063
      %v3069 = vshll.u32 %v3005, 16
      %v3071 = vrot.slane %v3069, 1
      %v3072 = vsel %vm665, %v3067, %v3071
      %v3073 = vshrl.u32 %v3005, 16
      %v3075 = vor.u32 %v3073, %v3071
      %v3077 = vshll.u32 %v3006, 16
      %v3079 = vrot.slane %v3077, 1
      %v3080 = vsel %vm665, %v3075, %v3079
      %v3081 = vshrl.u32 %v3006, 16
      %v3083 = vor.u32 %v3081, %v3079
      %v3085 = vshll.u32 %v3007, 16
      %v3087 = vrot.slane %v3085, 1
      %v3088 = vsel %vm665, %v3083, %v3087
      %v3089 = vshrl.u32 %v3007, 16
      %v3091 = vor.u32 %v3089, %v3087
      %v3093 = vshll.u32 %v3008, 16
      %v3095 = vrot.slane %v3093, 1
      %v3096 = vsel %vm665, %v3091, %v3095
      %v3097 = vshrl.u32 %v3008, 16
      %v3099 = vor.u32 %v3097, %v3095
      %v3101 = vshll.u32 %v3009, 16
      %v3103 = vrot.slane %v3101, 1
      %v3104 = vsel %vm665, %v3099, %v3103
      %v3105 = vshrl.u32 %v3009, 16
      %v3107 = vor.u32 %v3105, %v3103
      %v3109 = vshll.u32 %v3010, 16
      %v3111 = vrot.slane %v3109, 1
      %v3112 = vsel %vm665, %v3107, %v3111
      %v3113 = vshrl.u32 %v3010, 16
      %v3115 = vor.u32 %v3113, %v3111
      %v3117 = vshll.u32 %v3011, 16
      %v3119 = vrot.slane %v3117, 1
      %v3120 = vsel %vm665, %v3115, %v3119
      %v3121 = vshrl.u32 %v3011, 16
      %v3123 = vor.u32 %v3121, %v3119
      %v3125 = vshll.u32 %v3012, 16
      %v3127 = vrot.slane %v3125, 1
      %v3128 = vsel %vm665, %v3123, %v3127
      %v3159 = vunpack.c.l.b16 %v2924
      %v3160 = vunpack.c.l.b16 %v2925
      %v3161 = vunpack.c.l.b16 %v2926
      %v3162 = vunpack.c.l.b16 %v2927
      %v3163 = vunpack.c.l.b16 %v2928
      %v3164 = vunpack.c.l.b16 %v2929
      %v3165 = vunpack.c.l.b16 %v2930
      %v3166 = vunpack.c.l.b16 %v2931
      %v3167 = vunpack.c.l.b16 %v2932
      %v3168 = vunpack.c.l.b16 %v2933
      %v3169 = vunpack.c.l.b16 %v2934
      %v3170 = vunpack.c.l.b16 %v2935
      %v3171 = vunpack.c.l.b16 %v2936
      %v3172 = vunpack.c.l.b16 %v2937
      %v3173 = vunpack.c.l.b16 %v2938
      %v3174 = vunpack.c.l.b16 %v2939
      %v3175 = vpack.c.b16 %v3160, %v3159
      %v3176 = vpack.c.b16 %v3162, %v3161
      %v3177 = vpack.c.b16 %v3164, %v3163
      %v3178 = vpack.c.b16 %v3166, %v3165
      %v3179 = vpack.c.b16 %v3168, %v3167
      %v3180 = vpack.c.b16 %v3170, %v3169
      %v3181 = vpack.c.b16 %v3172, %v3171
      %v3182 = vpack.c.b16 %v3174, %v3173
      %3191 = vmatpush.bf16.msra.mxu0 %v3182
      %3192 = vmatpush.bf16.msra.mxu0 %v3181
      %3193 = vmatpush.bf16.msra.mxu0 %v3180
      %3194 = vmatpush.bf16.msra.mxu0 %v3179
      %3195 = vmatpush.bf16.msra.mxu0 %v3178
      %3196 = vmatpush.bf16.msra.mxu0 %v3177
      %3197 = vmatpush.bf16.msra.mxu0 %v3176
      %3198 = vmatpush.bf16.msra.mxu0 %v3175
      %3199 = vmatmul.bf16.gmra.mxu0 %v3024
      %v3200 = vpop.f32.mrf.mxu0
      %v3201 = vadd.f32 0.0, %v3200
      %v3202 = vpop.f32.mrf.mxu0
      %v3203 = vadd.f32 0.0, %v3202
      %3204 = vmatmul.bf16.gmra.mxu0 %v3032
      %v3205 = vpop.f32.mrf.mxu0
      %v3206 = vadd.f32 0.0, %v3205
      %v3207 = vpop.f32.mrf.mxu0
      %v3208 = vadd.f32 0.0, %v3207
      %3209 = vmatmul.bf16.gmra.mxu0 %v3040
      %v3210 = vpop.f32.mrf.mxu0
      %v3211 = vadd.f32 0.0, %v3210
      %v3212 = vpop.f32.mrf.mxu0
      %v3213 = vadd.f32 0.0, %v3212
      %3214 = vmatmul.bf16.gmra.mxu0 %v3048
      %v3215 = vpop.f32.mrf.mxu0
      %v3216 = vadd.f32 0.0, %v3215
      %v3217 = vpop.f32.mrf.mxu0
      %v3218 = vadd.f32 0.0, %v3217
      %3219 = vmatmul.bf16.gmra.mxu0 %v3056
      %v3220 = vpop.f32.mrf.mxu0
      %v3221 = vadd.f32 0.0, %v3220
      %v3222 = vpop.f32.mrf.mxu0
      %v3223 = vadd.f32 0.0, %v3222
      %3224 = vmatmul.bf16.gmra.mxu0 %v3064
      %v3225 = vpop.f32.mrf.mxu0
      %v3226 = vadd.f32 0.0, %v3225
      %v3227 = vpop.f32.mrf.mxu0
      %v3228 = vadd.f32 0.0, %v3227
      %3229 = vmatmul.bf16.gmra.mxu0 %v3072
      %v3230 = vpop.f32.mrf.mxu0
      %v3231 = vadd.f32 0.0, %v3230
      %v3232 = vpop.f32.mrf.mxu0
      %v3233 = vadd.f32 0.0, %v3232
      %3234 = vmatmul.bf16.gmra.mxu0 %v3080
      %v3235 = vpop.f32.mrf.mxu0
      %v3236 = vadd.f32 0.0, %v3235
      %v3237 = vpop.f32.mrf.mxu0
      %v3238 = vadd.f32 0.0, %v3237
      %3239 = vmatmul.bf16.gmra.mxu0 %v3088
      %v3240 = vpop.f32.mrf.mxu0
      %v3241 = vadd.f32 0.0, %v3240
      %v3242 = vpop.f32.mrf.mxu0
      %v3243 = vadd.f32 0.0, %v3242
      %3244 = vmatmul.bf16.gmra.mxu0 %v3096
      %v3245 = vpop.f32.mrf.mxu0
      %v3246 = vadd.f32 0.0, %v3245
      %v3247 = vpop.f32.mrf.mxu0
      %v3248 = vadd.f32 0.0, %v3247
      %3249 = vmatmul.bf16.gmra.mxu0 %v3104
      %v3250 = vpop.f32.mrf.mxu0
      %v3251 = vadd.f32 0.0, %v3250
      %v3252 = vpop.f32.mrf.mxu0
      %v3253 = vadd.f32 0.0, %v3252
      %3254 = vmatmul.bf16.gmra.mxu0 %v3112
      %v3255 = vpop.f32.mrf.mxu0
      %v3256 = vadd.f32 0.0, %v3255
      %v3257 = vpop.f32.mrf.mxu0
      %v3258 = vadd.f32 0.0, %v3257
      %3259 = vmatmul.bf16.gmra.mxu0 %v3120
      %v3260 = vpop.f32.mrf.mxu0
      %v3261 = vadd.f32 0.0, %v3260
      %v3262 = vpop.f32.mrf.mxu0
      %v3263 = vadd.f32 0.0, %v3262
      %3264 = vmatmul.bf16.gmra.mxu0 %v3128
      %v3265 = vpop.f32.mrf.mxu0
      %v3266 = vadd.f32 0.0, %v3265
      %v3267 = vpop.f32.mrf.mxu0
      %v3268 = vadd.f32 0.0, %v3267
      %3269 = vdwg.mxu0
      %v3270 = vld [vmem:[#allocation2] sm:$0xff]
      %v3271 = vld [vmem:[#allocation2 + $0x8] sm:$0xff]
      %v3272 = vld [vmem:[#allocation2 + $0x10] sm:$0xff]
      %v3273 = vld [vmem:[#allocation2 + $0x18] sm:$0xff]
      %v3274 = vld [vmem:[#allocation2 + $0x20] sm:$0xff]
      %v3275 = vld [vmem:[#allocation2 + $0x28] sm:$0xff]
      %v3276 = vld [vmem:[#allocation2 + $0x30] sm:$0xff]
      %v3277 = vld [vmem:[#allocation2 + $0x38] sm:$0xff]
      %v3278 = vld [vmem:[#allocation2 + $0x40] sm:$0xff]
      %v3279 = vld [vmem:[#allocation2 + $0x48] sm:$0xff]
      %v3280 = vld [vmem:[#allocation2 + $0x50] sm:$0xff]
      %v3281 = vld [vmem:[#allocation2 + $0x58] sm:$0xff]
      %v3282 = vld [vmem:[#allocation2 + $0x60] sm:$0xff]
      %v3283 = vld [vmem:[#allocation2 + $0x68] sm:$0xff]
      %v3284 = vld [vmem:[#allocation2 + $0x70] sm:$0xff]
      %v3285 = vld [vmem:[#allocation2 + $0x78] sm:$0xff]
      %v3286 = vld [vmem:[#allocation2 + $0x80] sm:$0xff]
      %v3287 = vld [vmem:[#allocation2 + $0x88] sm:$0xff]
      %v3288 = vld [vmem:[#allocation2 + $0x90] sm:$0xff]
      %v3289 = vld [vmem:[#allocation2 + $0x98] sm:$0xff]
      %v3290 = vld [vmem:[#allocation2 + $0xa0] sm:$0xff]
      %v3291 = vld [vmem:[#allocation2 + $0xa8] sm:$0xff]
      %v3292 = vld [vmem:[#allocation2 + $0xb0] sm:$0xff]
      %v3293 = vld [vmem:[#allocation2 + $0xb8] sm:$0xff]
      %v3294 = vld [vmem:[#allocation2 + $0xc0] sm:$0xff]
      %v3295 = vld [vmem:[#allocation2 + $0xc8] sm:$0xff]
      %v3296 = vld [vmem:[#allocation2 + $0xd0] sm:$0xff]
      %v3297 = vld [vmem:[#allocation2 + $0xd8] sm:$0xff]
      %v3298 = vadd.f32 %v3270, %v3201
      %v3299 = vadd.f32 %v3271, %v3203
      %v3300 = vadd.f32 %v3272, %v3206
      %v3301 = vadd.f32 %v3273, %v3208
      %v3302 = vadd.f32 %v3274, %v3211
      %v3303 = vadd.f32 %v3275, %v3213
      %v3304 = vadd.f32 %v3276, %v3216
      %v3305 = vadd.f32 %v3277, %v3218
      %v3306 = vadd.f32 %v3278, %v3221
      %v3307 = vadd.f32 %v3279, %v3223
      %v3308 = vadd.f32 %v3280, %v3226
      %v3309 = vadd.f32 %v3281, %v3228
      %v3310 = vadd.f32 %v3282, %v3231
      %v3311 = vadd.f32 %v3283, %v3233
      %v3312 = vadd.f32 %v3284, %v3236
      %v3313 = vadd.f32 %v3285, %v3238
      %v3314 = vadd.f32 %v3286, %v3241
      %v3315 = vadd.f32 %v3287, %v3243
      %v3316 = vadd.f32 %v3288, %v3246
      %v3317 = vadd.f32 %v3289, %v3248
      %v3318 = vadd.f32 %v3290, %v3251
      %v3319 = vadd.f32 %v3291, %v3253
      %v3320 = vadd.f32 %v3292, %v3256
      %v3321 = vadd.f32 %v3293, %v3258
      %v3322 = vadd.f32 %v3294, %v3261
      %v3323 = vadd.f32 %v3295, %v3263
      %v3324 = vadd.f32 %v3296, %v3266
      %v3325 = vadd.f32 %v3297, %v3268
      %3326 = vst [vmem:[#allocation2] sm:$0xff] %v3298
      %3327 = vst [vmem:[#allocation2 + $0x8] sm:$0xff] %v3299
      %3328 = vst [vmem:[#allocation2 + $0x10] sm:$0xff] %v3300
      %3329 = vst [vmem:[#allocation2 + $0x18] sm:$0xff] %v3301
      %3330 = vst [vmem:[#allocation2 + $0x20] sm:$0xff] %v3302
      %3331 = vst [vmem:[#allocation2 + $0x28] sm:$0xff] %v3303
      %3332 = vst [vmem:[#allocation2 + $0x30] sm:$0xff] %v3304
      %3333 = vst [vmem:[#allocation2 + $0x38] sm:$0xff] %v3305
      %3334 = vst [vmem:[#allocation2 + $0x40] sm:$0xff] %v3306
      %3335 = vst [vmem:[#allocation2 + $0x48] sm:$0xff] %v3307
      %3336 = vst [vmem:[#allocation2 + $0x50] sm:$0xff] %v3308
      %3337 = vst [vmem:[#allocation2 + $0x58] sm:$0xff] %v3309
      %3338 = vst [vmem:[#allocation2 + $0x60] sm:$0xff] %v3310
      %3339 = vst [vmem:[#allocation2 + $0x68] sm:$0xff] %v3311
      %3340 = vst [vmem:[#allocation2 + $0x70] sm:$0xff] %v3312
      %3341 = vst [vmem:[#allocation2 + $0x78] sm:$0xff] %v3313
      %3342 = vst [vmem:[#allocation2 + $0x80] sm:$0xff] %v3314
      %3343 = vst [vmem:[#allocation2 + $0x88] sm:$0xff] %v3315
      %3344 = vst [vmem:[#allocation2 + $0x90] sm:$0xff] %v3316
      %3345 = vst [vmem:[#allocation2 + $0x98] sm:$0xff] %v3317
      %3346 = vst [vmem:[#allocation2 + $0xa0] sm:$0xff] %v3318
      %3347 = vst [vmem:[#allocation2 + $0xa8] sm:$0xff] %v3319
      %3348 = vst [vmem:[#allocation2 + $0xb0] sm:$0xff] %v3320
      %3349 = vst [vmem:[#allocation2 + $0xb8] sm:$0xff] %v3321
      %3350 = vst [vmem:[#allocation2 + $0xc0] sm:$0xff] %v3322
      %3351 = vst [vmem:[#allocation2 + $0xc8] sm:$0xff] %v3323
      %3352 = vst [vmem:[#allocation2 + $0xd0] sm:$0xff] %v3324
      %3353 = vst [vmem:[#allocation2 + $0xd8] sm:$0xff] %v3325
      %v3354 = vld [vmem:[%s244 + $0x10] sm:$0xe]
      %v3355 = vld [vmem:[%s244 + $0x14] sm:$0xf]
      %v3356 = vld [vmem:[%s244 + $0x18] sm:$0xf]
      %v3357 = vld [vmem:[%s244 + $0x1c] sm:$0xf]
      %v3358 = vld [vmem:[%s244 + $0x20] sm:$0xf]
      %v3359 = vld [vmem:[%s244 + $0x24] sm:$0xf]
      %v3360 = vld [vmem:[%s244 + $0x28] sm:$0xf]
      %v3361 = vld [vmem:[%s244 + $0x2c] sm:$0xf]
      %v3362 = vld [vmem:[%s244 + $0x30] sm:$0xf]
      %v3363 = vld [vmem:[%s244 + $0x34] sm:$0xf]
      %v3364 = vld [vmem:[%s244 + $0x38] sm:$0xf]
      %v3365 = vld [vmem:[%s244 + $0x3c] sm:$0xf]
      %v3366 = vld [vmem:[%s244 + $0x40] sm:$0xf]
      %v3367 = vld [vmem:[%s244 + $0x44] sm:$0xf]
      %v3368 = vld [vmem:[%s244 + $0x48] sm:$0xf]
      %v3369 = vld [vmem:[%s244 + $0x4c] sm:$0xf]
      %v3370 = vld [vmem:[%s244 + $0x50] sm:$0xf]
      %v3371 = vld [vmem:[%s244 + $0x54] sm:$0xf]
      %v3372 = vld [vmem:[%s244 + $0x58] sm:$0xf]
      %v3373 = vld [vmem:[%s244 + $0x5c] sm:$0xf]
      %v3374 = vld [vmem:[%s244 + $0x60] sm:$0xf]
      %v3375 = vld [vmem:[%s244 + $0x64] sm:$0xf]
      %v3376 = vld [vmem:[%s244 + $0x68] sm:$0xf]
      %v3377 = vld [vmem:[%s244 + $0x6c] sm:$0xf]
      %v3378 = vld [vmem:[%s244 + $0x70] sm:$0xf]
      %v3379 = vld [vmem:[%s244 + $0x74] sm:$0xf]
      %v3380 = vld [vmem:[%s244 + $0x78] sm:$0xf]
      %v3381 = vld [vmem:[%s244 + $0x7c] sm:$0xf]
      %v3382 = vld [vmem:[%s244 + $0x80] sm:$0x1]
      %s3383 = scalar_lea.vmem %s248, 512
      %v3384 = vld [vmem:[%s3383] sm:$0xf]
      %v3385 = vld [vmem:[%s3383 + $0x4] sm:$0xf]
      %v3386 = vld [vmem:[%s3383 + $0x8] sm:$0xf]
      %v3387 = vld [vmem:[%s3383 + $0xc] sm:$0xf]
      %v3388 = vld [vmem:[%s3383 + $0x10] sm:$0xf]
      %v3389 = vld [vmem:[%s3383 + $0x14] sm:$0xf]
      %v3390 = vld [vmem:[%s3383 + $0x18] sm:$0xf]
      %v3391 = vld [vmem:[%s3383 + $0x1c] sm:$0xf]
      %v3392 = vld [vmem:[%s3383 + $0x20] sm:$0xf]
      %v3393 = vld [vmem:[%s3383 + $0x24] sm:$0xf]
      %v3394 = vld [vmem:[%s3383 + $0x28] sm:$0xf]
      %v3395 = vld [vmem:[%s3383 + $0x2c] sm:$0xf]
      %v3396 = vld [vmem:[%s3383 + $0x30] sm:$0xf]
      %v3397 = vld [vmem:[%s3383 + $0x34] sm:$0xf]
      %v3398 = vld [vmem:[%s3383 + $0x38] sm:$0xf]
      %v3399 = vld [vmem:[%s3383 + $0x3c] sm:$0xf]
      %v3429 = vunpack.c.l.b16 %v3354
      %v3430 = vunpack.c.l.b16 %v3355
      %v3431 = vunpack.c.l.b16 %v3356
      %v3432 = vunpack.c.l.b16 %v3357
      %v3433 = vunpack.c.l.b16 %v3358
      %v3434 = vunpack.c.l.b16 %v3359
      %v3435 = vunpack.c.l.b16 %v3360
      %v3436 = vunpack.c.l.b16 %v3361
      %v3437 = vunpack.c.l.b16 %v3362
      %v3438 = vunpack.c.l.b16 %v3363
      %v3439 = vunpack.c.l.b16 %v3364
      %v3440 = vunpack.c.l.b16 %v3365
      %v3441 = vunpack.c.l.b16 %v3366
      %v3442 = vunpack.c.l.b16 %v3367
      %v3443 = vunpack.c.l.b16 %v3368
      %v3444 = vunpack.c.l.b16 %v3369
      %v3445 = vunpack.c.l.b16 %v3370
      %v3446 = vunpack.c.l.b16 %v3371
      %v3447 = vunpack.c.l.b16 %v3372
      %v3448 = vunpack.c.l.b16 %v3373
      %v3449 = vunpack.c.l.b16 %v3374
      %v3450 = vunpack.c.l.b16 %v3375
      %v3451 = vunpack.c.l.b16 %v3376
      %v3452 = vunpack.c.l.b16 %v3377
      %v3453 = vunpack.c.l.b16 %v3378
      %v3454 = vunpack.c.l.b16 %v3379
      %v3455 = vunpack.c.l.b16 %v3380
      %v3456 = vunpack.c.l.b16 %v3381
      %v3457 = vunpack.c.l.b16 %v3382
      %v3458 = vpack.c.b16 %v3430, %v3429
      %v3459 = vpack.c.b16 %v3432, %v3431
      %v3460 = vpack.c.b16 %v3434, %v3433
      %v3461 = vpack.c.b16 %v3436, %v3435
      %v3462 = vpack.c.b16 %v3438, %v3437
      %v3463 = vpack.c.b16 %v3440, %v3439
      %v3464 = vpack.c.b16 %v3442, %v3441
      %v3465 = vpack.c.b16 %v3444, %v3443
      %v3466 = vpack.c.b16 %v3446, %v3445
      %v3467 = vpack.c.b16 %v3448, %v3447
      %v3468 = vpack.c.b16 %v3450, %v3449
      %v3469 = vpack.c.b16 %v3452, %v3451
      %v3470 = vpack.c.b16 %v3454, %v3453
      %v3471 = vpack.c.b16 %v3456, %v3455
      %v3472 = vpack.c.b16 %v3457, %v3457
      %v3473 = vrot.slane %v3458, 1
      %v3474 = vrot.slane %v3459, 1
      %v3475 = vsel %vm1126, %v3473, %v3474
      %v3476 = vrot.slane %v3460, 1
      %v3477 = vsel %vm1126, %v3474, %v3476
      %v3478 = vrot.slane %v3461, 1
      %v3479 = vsel %vm1126, %v3476, %v3478
      %v3480 = vrot.slane %v3462, 1
      %v3481 = vsel %vm1126, %v3478, %v3480
      %v3482 = vrot.slane %v3463, 1
      %v3483 = vsel %vm1126, %v3480, %v3482
      %v3484 = vrot.slane %v3464, 1
      %v3485 = vsel %vm1126, %v3482, %v3484
      %v3486 = vrot.slane %v3465, 1
      %v3487 = vsel %vm1126, %v3484, %v3486
      %v3488 = vrot.slane %v3466, 1
      %v3489 = vsel %vm1126, %v3486, %v3488
      %v3490 = vrot.slane %v3467, 1
      %v3491 = vsel %vm1126, %v3488, %v3490
      %v3492 = vrot.slane %v3468, 1
      %v3493 = vsel %vm1126, %v3490, %v3492
      %v3494 = vrot.slane %v3469, 1
      %v3495 = vsel %vm1126, %v3492, %v3494
      %v3496 = vrot.slane %v3470, 1
      %v3497 = vsel %vm1126, %v3494, %v3496
      %v3498 = vrot.slane %v3471, 1
      %v3499 = vsel %vm1126, %v3496, %v3498
      %v3500 = vrot.slane %v3472, 1
      %v3501 = vsel %vm1126, %v3498, %v3500
      %v3532 = vunpack.c.l.b16 %v3384
      %v3533 = vunpack.c.l.b16 %v3385
      %v3534 = vunpack.c.l.b16 %v3386
      %v3535 = vunpack.c.l.b16 %v3387
      %v3536 = vunpack.c.l.b16 %v3388
      %v3537 = vunpack.c.l.b16 %v3389
      %v3538 = vunpack.c.l.b16 %v3390
      %v3539 = vunpack.c.l.b16 %v3391
      %v3540 = vunpack.c.l.b16 %v3392
      %v3541 = vunpack.c.l.b16 %v3393
      %v3542 = vunpack.c.l.b16 %v3394
      %v3543 = vunpack.c.l.b16 %v3395
      %v3544 = vunpack.c.l.b16 %v3396
      %v3545 = vunpack.c.l.b16 %v3397
      %v3546 = vunpack.c.l.b16 %v3398
      %v3547 = vunpack.c.l.b16 %v3399
      %v3548 = vpack.c.b16 %v3533, %v3532
      %v3549 = vpack.c.b16 %v3535, %v3534
      %v3550 = vpack.c.b16 %v3537, %v3536
      %v3551 = vpack.c.b16 %v3539, %v3538
      %v3552 = vpack.c.b16 %v3541, %v3540
      %v3553 = vpack.c.b16 %v3543, %v3542
      %v3554 = vpack.c.b16 %v3545, %v3544
      %v3555 = vpack.c.b16 %v3547, %v3546
      %3564 = vmatpush.bf16.msra.mxu0 %v3555
      %3565 = vmatpush.bf16.msra.mxu0 %v3554
      %3566 = vmatpush.bf16.msra.mxu0 %v3553
      %3567 = vmatpush.bf16.msra.mxu0 %v3552
      %3568 = vmatpush.bf16.msra.mxu0 %v3551
      %3569 = vmatpush.bf16.msra.mxu0 %v3550
      %3570 = vmatpush.bf16.msra.mxu0 %v3549
      %3571 = vmatpush.bf16.msra.mxu0 %v3548
      %3572 = vmatmul.bf16.gmra.mxu0 %v3475
      %v3573 = vpop.f32.mrf.mxu0
      %v3574 = vadd.f32 0.0, %v3573
      %v3575 = vpop.f32.mrf.mxu0
      %v3576 = vadd.f32 0.0, %v3575
      %3577 = vmatmul.bf16.gmra.mxu0 %v3477
      %v3578 = vpop.f32.mrf.mxu0
      %v3579 = vadd.f32 0.0, %v3578
      %v3580 = vpop.f32.mrf.mxu0
      %v3581 = vadd.f32 0.0, %v3580
      %3582 = vmatmul.bf16.gmra.mxu0 %v3479
      %v3583 = vpop.f32.mrf.mxu0
      %v3584 = vadd.f32 0.0, %v3583
      %v3585 = vpop.f32.mrf.mxu0
      %v3586 = vadd.f32 0.0, %v3585
      %3587 = vmatmul.bf16.gmra.mxu0 %v3481
      %v3588 = vpop.f32.mrf.mxu0
      %v3589 = vadd.f32 0.0, %v3588
      %v3590 = vpop.f32.mrf.mxu0
      %v3591 = vadd.f32 0.0, %v3590
      %3592 = vmatmul.bf16.gmra.mxu0 %v3483
      %v3593 = vpop.f32.mrf.mxu0
      %v3594 = vadd.f32 0.0, %v3593
      %v3595 = vpop.f32.mrf.mxu0
      %v3596 = vadd.f32 0.0, %v3595
      %3597 = vmatmul.bf16.gmra.mxu0 %v3485
      %v3598 = vpop.f32.mrf.mxu0
      %v3599 = vadd.f32 0.0, %v3598
      %v3600 = vpop.f32.mrf.mxu0
      %v3601 = vadd.f32 0.0, %v3600
      %3602 = vmatmul.bf16.gmra.mxu0 %v3487
      %v3603 = vpop.f32.mrf.mxu0
      %v3604 = vadd.f32 0.0, %v3603
      %v3605 = vpop.f32.mrf.mxu0
      %v3606 = vadd.f32 0.0, %v3605
      %3607 = vmatmul.bf16.gmra.mxu0 %v3489
      %v3608 = vpop.f32.mrf.mxu0
      %v3609 = vadd.f32 0.0, %v3608
      %v3610 = vpop.f32.mrf.mxu0
      %v3611 = vadd.f32 0.0, %v3610
      %3612 = vmatmul.bf16.gmra.mxu0 %v3491
      %v3613 = vpop.f32.mrf.mxu0
      %v3614 = vadd.f32 0.0, %v3613
      %v3615 = vpop.f32.mrf.mxu0
      %v3616 = vadd.f32 0.0, %v3615
      %3617 = vmatmul.bf16.gmra.mxu0 %v3493
      %v3618 = vpop.f32.mrf.mxu0
      %v3619 = vadd.f32 0.0, %v3618
      %v3620 = vpop.f32.mrf.mxu0
      %v3621 = vadd.f32 0.0, %v3620
      %3622 = vmatmul.bf16.gmra.mxu0 %v3495
      %v3623 = vpop.f32.mrf.mxu0
      %v3624 = vadd.f32 0.0, %v3623
      %v3625 = vpop.f32.mrf.mxu0
      %v3626 = vadd.f32 0.0, %v3625
      %3627 = vmatmul.bf16.gmra.mxu0 %v3497
      %v3628 = vpop.f32.mrf.mxu0
      %v3629 = vadd.f32 0.0, %v3628
      %v3630 = vpop.f32.mrf.mxu0
      %v3631 = vadd.f32 0.0, %v3630
      %3632 = vmatmul.bf16.gmra.mxu0 %v3499
      %v3633 = vpop.f32.mrf.mxu0
      %v3634 = vadd.f32 0.0, %v3633
      %v3635 = vpop.f32.mrf.mxu0
      %v3636 = vadd.f32 0.0, %v3635
      %3637 = vmatmul.bf16.gmra.mxu0 %v3501
      %v3638 = vpop.f32.mrf.mxu0
      %v3639 = vadd.f32 0.0, %v3638
      %v3640 = vpop.f32.mrf.mxu0
      %v3641 = vadd.f32 0.0, %v3640
      %3642 = vdwg.mxu0
      %v3643 = vld [vmem:[#allocation2] sm:$0xff]
      %v3644 = vld [vmem:[#allocation2 + $0x8] sm:$0xff]
      %v3645 = vld [vmem:[#allocation2 + $0x10] sm:$0xff]
      %v3646 = vld [vmem:[#allocation2 + $0x18] sm:$0xff]
      %v3647 = vld [vmem:[#allocation2 + $0x20] sm:$0xff]
      %v3648 = vld [vmem:[#allocation2 + $0x28] sm:$0xff]
      %v3649 = vld [vmem:[#allocation2 + $0x30] sm:$0xff]
      %v3650 = vld [vmem:[#allocation2 + $0x38] sm:$0xff]
      %v3651 = vld [vmem:[#allocation2 + $0x40] sm:$0xff]
      %v3652 = vld [vmem:[#allocation2 + $0x48] sm:$0xff]
      %v3653 = vld [vmem:[#allocation2 + $0x50] sm:$0xff]
      %v3654 = vld [vmem:[#allocation2 + $0x58] sm:$0xff]
      %v3655 = vld [vmem:[#allocation2 + $0x60] sm:$0xff]
      %v3656 = vld [vmem:[#allocation2 + $0x68] sm:$0xff]
      %v3657 = vld [vmem:[#allocation2 + $0x70] sm:$0xff]
      %v3658 = vld [vmem:[#allocation2 + $0x78] sm:$0xff]
      %v3659 = vld [vmem:[#allocation2 + $0x80] sm:$0xff]
      %v3660 = vld [vmem:[#allocation2 + $0x88] sm:$0xff]
      %v3661 = vld [vmem:[#allocation2 + $0x90] sm:$0xff]
      %v3662 = vld [vmem:[#allocation2 + $0x98] sm:$0xff]
      %v3663 = vld [vmem:[#allocation2 + $0xa0] sm:$0xff]
      %v3664 = vld [vmem:[#allocation2 + $0xa8] sm:$0xff]
      %v3665 = vld [vmem:[#allocation2 + $0xb0] sm:$0xff]
      %v3666 = vld [vmem:[#allocation2 + $0xb8] sm:$0xff]
      %v3667 = vld [vmem:[#allocation2 + $0xc0] sm:$0xff]
      %v3668 = vld [vmem:[#allocation2 + $0xc8] sm:$0xff]
      %v3669 = vld [vmem:[#allocation2 + $0xd0] sm:$0xff]
      %v3670 = vld [vmem:[#allocation2 + $0xd8] sm:$0xff]
      %v3671 = vadd.f32 %v3643, %v3574
      %v3672 = vadd.f32 %v3644, %v3576
      %v3673 = vadd.f32 %v3645, %v3579
      %v3674 = vadd.f32 %v3646, %v3581
      %v3675 = vadd.f32 %v3647, %v3584
      %v3676 = vadd.f32 %v3648, %v3586
      %v3677 = vadd.f32 %v3649, %v3589
      %v3678 = vadd.f32 %v3650, %v3591
      %v3679 = vadd.f32 %v3651, %v3594
      %v3680 = vadd.f32 %v3652, %v3596
      %v3681 = vadd.f32 %v3653, %v3599
      %v3682 = vadd.f32 %v3654, %v3601
      %v3683 = vadd.f32 %v3655, %v3604
      %v3684 = vadd.f32 %v3656, %v3606
      %v3685 = vadd.f32 %v3657, %v3609
      %v3686 = vadd.f32 %v3658, %v3611
      %v3687 = vadd.f32 %v3659, %v3614
      %v3688 = vadd.f32 %v3660, %v3616
      %v3689 = vadd.f32 %v3661, %v3619
      %v3690 = vadd.f32 %v3662, %v3621
      %v3691 = vadd.f32 %v3663, %v3624
      %v3692 = vadd.f32 %v3664, %v3626
      %v3693 = vadd.f32 %v3665, %v3629
      %v3694 = vadd.f32 %v3666, %v3631
      %v3695 = vadd.f32 %v3667, %v3634
      %v3696 = vadd.f32 %v3668, %v3636
      %v3697 = vadd.f32 %v3669, %v3639
      %v3698 = vadd.f32 %v3670, %v3641
      %3699 = vst [vmem:[#allocation2] sm:$0xff] %v3671
      %3700 = vst [vmem:[#allocation2 + $0x8] sm:$0xff] %v3672
      %3701 = vst [vmem:[#allocation2 + $0x10] sm:$0xff] %v3673
      %3702 = vst [vmem:[#allocation2 + $0x18] sm:$0xff] %v3674
      %3703 = vst [vmem:[#allocation2 + $0x20] sm:$0xff] %v3675
      %3704 = vst [vmem:[#allocation2 + $0x28] sm:$0xff] %v3676
      %3705 = vst [vmem:[#allocation2 + $0x30] sm:$0xff] %v3677
      %3706 = vst [vmem:[#allocation2 + $0x38] sm:$0xff] %v3678
      %3707 = vst [vmem:[#allocation2 + $0x40] sm:$0xff] %v3679
      %3708 = vst [vmem:[#allocation2 + $0x48] sm:$0xff] %v3680
      %3709 = vst [vmem:[#allocation2 + $0x50] sm:$0xff] %v3681
      %3710 = vst [vmem:[#allocation2 + $0x58] sm:$0xff] %v3682
      %3711 = vst [vmem:[#allocation2 + $0x60] sm:$0xff] %v3683
      %3712 = vst [vmem:[#allocation2 + $0x68] sm:$0xff] %v3684
      %3713 = vst [vmem:[#allocation2 + $0x70] sm:$0xff] %v3685
      %3714 = vst [vmem:[#allocation2 + $0x78] sm:$0xff] %v3686
      %3715 = vst [vmem:[#allocation2 + $0x80] sm:$0xff] %v3687
      %3716 = vst [vmem:[#allocation2 + $0x88] sm:$0xff] %v3688
      %3717 = vst [vmem:[#allocation2 + $0x90] sm:$0xff] %v3689
      %3718 = vst [vmem:[#allocation2 + $0x98] sm:$0xff] %v3690
      %3719 = vst [vmem:[#allocation2 + $0xa0] sm:$0xff] %v3691
      %3720 = vst [vmem:[#allocation2 + $0xa8] sm:$0xff] %v3692
      %3721 = vst [vmem:[#allocation2 + $0xb0] sm:$0xff] %v3693
      %3722 = vst [vmem:[#allocation2 + $0xb8] sm:$0xff] %v3694
      %3723 = vst [vmem:[#allocation2 + $0xc0] sm:$0xff] %v3695
      %3724 = vst [vmem:[#allocation2 + $0xc8] sm:$0xff] %v3696
      %3725 = vst [vmem:[#allocation2 + $0xd0] sm:$0xff] %v3697
      %3726 = vst [vmem:[#allocation2 + $0xd8] sm:$0xff] %v3698
      %v3727 = vld [vmem:[#allocation2] sm:$0xff]
      %v3728 = vld [vmem:[#allocation2 + $0x8] sm:$0xff]
      %v3729 = vld [vmem:[#allocation2 + $0x10] sm:$0xff]
      %v3730 = vld [vmem:[#allocation2 + $0x18] sm:$0xff]
      %v3731 = vld [vmem:[#allocation2 + $0x20] sm:$0xff]
      %v3732 = vld [vmem:[#allocation2 + $0x28] sm:$0xff]
      %v3733 = vld [vmem:[#allocation2 + $0x30] sm:$0xff]
      %v3734 = vld [vmem:[#allocation2 + $0x38] sm:$0xff]
      %v3735 = vld [vmem:[#allocation2 + $0x40] sm:$0xff]
      %v3736 = vld [vmem:[#allocation2 + $0x48] sm:$0xff]
      %v3737 = vld [vmem:[#allocation2 + $0x50] sm:$0xff]
      %v3738 = vld [vmem:[#allocation2 + $0x58] sm:$0xff]
      %v3739 = vld [vmem:[#allocation2 + $0x60] sm:$0xff]
      %v3740 = vld [vmem:[#allocation2 + $0x68] sm:$0xff]
      %v3741 = vld [vmem:[#allocation2 + $0x70] sm:$0xff]
      %v3742 = vld [vmem:[#allocation2 + $0x78] sm:$0xff]
      %v3743 = vld [vmem:[#allocation2 + $0x80] sm:$0xff]
      %v3744 = vld [vmem:[#allocation2 + $0x88] sm:$0xff]
      %v3745 = vld [vmem:[#allocation2 + $0x90] sm:$0xff]
      %v3746 = vld [vmem:[#allocation2 + $0x98] sm:$0xff]
      %v3747 = vld [vmem:[#allocation2 + $0xa0] sm:$0xff]
      %v3748 = vld [vmem:[#allocation2 + $0xa8] sm:$0xff]
      %v3749 = vld [vmem:[#allocation2 + $0xb0] sm:$0xff]
      %v3750 = vld [vmem:[#allocation2 + $0xb8] sm:$0xff]
      %v3751 = vld [vmem:[#allocation2 + $0xc0] sm:$0xff]
      %v3752 = vld [vmem:[#allocation2 + $0xc8] sm:$0xff]
      %v3753 = vld [vmem:[#allocation2 + $0xd0] sm:$0xff]
      %v3754 = vld [vmem:[#allocation2 + $0xd8] sm:$0xff]
      %v3755 = vld [vmem:[%s251] sm:$0x1]
      %v3757 = vperm.slane %v3755, 0
      %v3759 = vmul.f32 %v3727, %v3757
      %v3760 = vmul.f32 %v3728, %v3757
      %v3761 = vmul.f32 %v3729, %v3757
      %v3762 = vmul.f32 %v3730, %v3757
      %v3763 = vmul.f32 %v3731, %v3757
      %v3764 = vmul.f32 %v3732, %v3757
      %v3765 = vmul.f32 %v3733, %v3757
      %v3766 = vmul.f32 %v3734, %v3757
      %v3767 = vmul.f32 %v3735, %v3757
      %v3768 = vmul.f32 %v3736, %v3757
      %v3769 = vmul.f32 %v3737, %v3757
      %v3770 = vmul.f32 %v3738, %v3757
      %v3771 = vmul.f32 %v3739, %v3757
      %v3772 = vmul.f32 %v3740, %v3757
      %v3773 = vmul.f32 %v3741, %v3757
      %v3774 = vmul.f32 %v3742, %v3757
      %v3775 = vmul.f32 %v3743, %v3757
      %v3776 = vmul.f32 %v3744, %v3757
      %v3777 = vmul.f32 %v3745, %v3757
      %v3778 = vmul.f32 %v3746, %v3757
      %v3779 = vmul.f32 %v3747, %v3757
      %v3780 = vmul.f32 %v3748, %v3757
      %v3781 = vmul.f32 %v3749, %v3757
      %v3782 = vmul.f32 %v3750, %v3757
      %v3783 = vmul.f32 %v3751, %v3757
      %v3784 = vmul.f32 %v3752, %v3757
      %v3785 = vmul.f32 %v3753, %v3757
      %v3786 = vmul.f32 %v3754, %v3757
      %v3787 = vld [vmem:[%s254] sm:$0x1]
      %v3789 = vperm.slane %v3787, 0
      %v3791 = vadd.f32 %v3759, %v3789
      %v3792 = vadd.f32 %v3760, %v3789
      %v3793 = vadd.f32 %v3761, %v3789
      %v3794 = vadd.f32 %v3762, %v3789
      %v3795 = vadd.f32 %v3763, %v3789
      %v3796 = vadd.f32 %v3764, %v3789
      %v3797 = vadd.f32 %v3765, %v3789
      %v3798 = vadd.f32 %v3766, %v3789
      %v3799 = vadd.f32 %v3767, %v3789
      %v3800 = vadd.f32 %v3768, %v3789
      %v3801 = vadd.f32 %v3769, %v3789
      %v3802 = vadd.f32 %v3770, %v3789
      %v3803 = vadd.f32 %v3771, %v3789
      %v3804 = vadd.f32 %v3772, %v3789
      %v3805 = vadd.f32 %v3773, %v3789
      %v3806 = vadd.f32 %v3774, %v3789
      %v3807 = vadd.f32 %v3775, %v3789
      %v3808 = vadd.f32 %v3776, %v3789
      %v3809 = vadd.f32 %v3777, %v3789
      %v3810 = vadd.f32 %v3778, %v3789
      %v3811 = vadd.f32 %v3779, %v3789
      %v3812 = vadd.f32 %v3780, %v3789
      %v3813 = vadd.f32 %v3781, %v3789
      %v3814 = vadd.f32 %v3782, %v3789
      %v3815 = vadd.f32 %v3783, %v3789
      %v3816 = vadd.f32 %v3784, %v3789
      %v3817 = vadd.f32 %v3785, %v3789
      %v3818 = vadd.f32 %v3786, %v3789
      %v3819 = vmax.f32 %v3791, 0.0
      %v3820 = vmax.f32 %v3792, 0.0
      %v3821 = vmax.f32 %v3793, 0.0
      %v3822 = vmax.f32 %v3794, 0.0
      %v3823 = vmax.f32 %v3795, 0.0
      %v3824 = vmax.f32 %v3796, 0.0
      %v3825 = vmax.f32 %v3797, 0.0
      %v3826 = vmax.f32 %v3798, 0.0
      %v3827 = vmax.f32 %v3799, 0.0
      %v3828 = vmax.f32 %v3800, 0.0
      %v3829 = vmax.f32 %v3801, 0.0
      %v3830 = vmax.f32 %v3802, 0.0
      %v3831 = vmax.f32 %v3803, 0.0
      %v3832 = vmax.f32 %v3804, 0.0
      %v3833 = vmax.f32 %v3805, 0.0
      %v3834 = vmax.f32 %v3806, 0.0
      %v3835 = vmax.f32 %v3807, 0.0
      %v3836 = vmax.f32 %v3808, 0.0
      %v3837 = vmax.f32 %v3809, 0.0
      %v3838 = vmax.f32 %v3810, 0.0
      %v3839 = vmax.f32 %v3811, 0.0
      %v3840 = vmax.f32 %v3812, 0.0
      %v3841 = vmax.f32 %v3813, 0.0
      %v3842 = vmax.f32 %v3814, 0.0
      %v3843 = vmax.f32 %v3815, 0.0
      %v3844 = vmax.f32 %v3816, 0.0
      %v3845 = vmax.f32 %v3817, 0.0
      %v3846 = vmax.f32 %v3818, 0.0
      %v3847 = vpack.c.bf16 %v3819, %v3819
      %v3848 = vpack.c.bf16 %v3820, %v3820
      %v3849 = vpack.c.bf16 %v3821, %v3821
      %v3850 = vpack.c.bf16 %v3822, %v3822
      %v3851 = vpack.c.bf16 %v3823, %v3823
      %v3852 = vpack.c.bf16 %v3824, %v3824
      %v3853 = vpack.c.bf16 %v3825, %v3825
      %v3854 = vpack.c.bf16 %v3826, %v3826
      %v3855 = vpack.c.bf16 %v3827, %v3827
      %v3856 = vpack.c.bf16 %v3828, %v3828
      %v3857 = vpack.c.bf16 %v3829, %v3829
      %v3858 = vpack.c.bf16 %v3830, %v3830
      %v3859 = vpack.c.bf16 %v3831, %v3831
      %v3860 = vpack.c.bf16 %v3832, %v3832
      %v3861 = vpack.c.bf16 %v3833, %v3833
      %v3862 = vpack.c.bf16 %v3834, %v3834
      %v3863 = vpack.c.bf16 %v3835, %v3835
      %v3864 = vpack.c.bf16 %v3836, %v3836
      %v3865 = vpack.c.bf16 %v3837, %v3837
      %v3866 = vpack.c.bf16 %v3838, %v3838
      %v3867 = vpack.c.bf16 %v3839, %v3839
      %v3868 = vpack.c.bf16 %v3840, %v3840
      %v3869 = vpack.c.bf16 %v3841, %v3841
      %v3870 = vpack.c.bf16 %v3842, %v3842
      %v3871 = vpack.c.bf16 %v3843, %v3843
      %v3872 = vpack.c.bf16 %v3844, %v3844
      %v3873 = vpack.c.bf16 %v3845, %v3845
      %v3874 = vpack.c.bf16 %v3846, %v3846
      %3875 = vst [vmem:[%s262] sm:$0xf] %v3847
      %3876 = vst [vmem:[%s262 + $0x4] sm:$0xf] %v3848
      %3877 = vst [vmem:[%s262 + $0x8] sm:$0xf] %v3849
      %3878 = vst [vmem:[%s262 + $0xc] sm:$0xf] %v3850
      %3879 = vst [vmem:[%s262 + $0x10] sm:$0xf] %v3851
      %3880 = vst [vmem:[%s262 + $0x14] sm:$0xf] %v3852
      %3881 = vst [vmem:[%s262 + $0x18] sm:$0xf] %v3853
      %3882 = vst [vmem:[%s262 + $0x1c] sm:$0xf] %v3854
      %3883 = vst [vmem:[%s262 + $0x20] sm:$0xf] %v3855
      %3884 = vst [vmem:[%s262 + $0x24] sm:$0xf] %v3856
      %3885 = vst [vmem:[%s262 + $0x28] sm:$0xf] %v3857
      %3886 = vst [vmem:[%s262 + $0x2c] sm:$0xf] %v3858
      %3887 = vst [vmem:[%s262 + $0x30] sm:$0xf] %v3859
      %3888 = vst [vmem:[%s262 + $0x34] sm:$0xf] %v3860
      %3889 = vst [vmem:[%s262 + $0x38] sm:$0xf] %v3861
      %3890 = vst [vmem:[%s262 + $0x3c] sm:$0xf] %v3862
      %3891 = vst [vmem:[%s262 + $0x40] sm:$0xf] %v3863
      %3892 = vst [vmem:[%s262 + $0x44] sm:$0xf] %v3864
      %3893 = vst [vmem:[%s262 + $0x48] sm:$0xf] %v3865
      %3894 = vst [vmem:[%s262 + $0x4c] sm:$0xf] %v3866
      %3895 = vst [vmem:[%s262 + $0x50] sm:$0xf] %v3867
      %3896 = vst [vmem:[%s262 + $0x54] sm:$0xf] %v3868
      %3897 = vst [vmem:[%s262 + $0x58] sm:$0xf] %v3869
      %3898 = vst [vmem:[%s262 + $0x5c] sm:$0xf] %v3870
      %3899 = vst [vmem:[%s262 + $0x60] sm:$0xf] %v3871
      %3900 = vst [vmem:[%s262 + $0x64] sm:$0xf] %v3872
      %3901 = vst [vmem:[%s262 + $0x68] sm:$0xf] %v3873
      %3902 = vst [vmem:[%s262 + $0x6c] sm:$0xf] %v3874
      %p3903 = scmp.lt.s32.totalorder %s19, 1
      %s3904 = scalar_select %p3903, %s19, 1
      %p3905 = scmp.lt.s32.totalorder %s20, 0
      %s3906 = scalar_select %p3905, %s20, 0
      %s3907 = smul.addr %s3904, 28
      %s3908 = sadd.s32 %s3906, %s3907
      %s3909 = smul.addr %s3908, 4
      %s3910 = scalar_lea.vmem %s4, %s3909
      // Predicated region
      $region37: #{depthwise_xcorr_forward.5} parent=35 // pred_check
        %p3911 = pneg %p151
      $region38: #{depthwise_xcorr_forward.5} parent=35 // pred_check_branch
        %3913 = sbr.rel (%p3911) target = $region40
      $region39: #{depthwise_xcorr_forward.5} parent=35 // pred_region
        _
      $region40: #{depthwise_xcorr_forward.5} parent=35 // pred_fallthru
        _
    $region36: #{depthwise_xcorr_forward.5} parent=5 // pred_fallthru
      _
    %p3914 = scmp.le.s32.totalorder 2, %s10
    // Predicated region
    $region41: #{depthwise_xcorr_forward.5} parent=5 // pred_check
      %p3915 = pneg %p3914
    $region42: #{depthwise_xcorr_forward.5} parent=5 // pred_check_branch
      %3917 = sbr.rel (%p3915) target = $region44
    $region43: #{depthwise_xcorr_forward.5} parent=5 // pred_region
      %s3918 = ssub.s32 %s10, 2
      // Predicated region
      $region45: #{depthwise_xcorr_forward.5} parent=43 // pred_check
        %p3919 = pneg %p157
      $region46: #{depthwise_xcorr_forward.5} parent=43 // pred_check_branch
        %3921 = sbr.rel (%p3919) target = $region48
      $region47: #{depthwise_xcorr_forward.5} parent=43 // pred_region
        %p3922 = scmp.lt.s32.totalorder %s21, 1
        %s3923 = scalar_select %p3922, %s21, 1
        %p3924 = scmp.lt.s32.totalorder %s22, 0
        %s3925 = scalar_select %p3924, %s22, 0
        %s3926 = smul.addr %s3923, 28
        %s3927 = sadd.s32 %s3925, %s3926
        %s3928 = smul.addr %s3927, 4
        %s3929 = scalar_lea.vmem %s4, %s3928
      $region48: #{depthwise_xcorr_forward.5} parent=43 // pred_fallthru
        _
    $region44: #{depthwise_xcorr_forward.5} parent=5 // pred_fallthru
      _
  $region6: #{depthwise_xcorr_forward.5} parent=0 // loop_footer
    %s14 = sadd.s32 1, %s10
  $region7: #{depthwise_xcorr_forward.5} parent=0 // loop_footer_branch
    %9 = sbr.rel target = $region3
  $region8: #{depthwise_xcorr_forward.5} parent=0 // loop_exit
    _

</llo_original>
